<compile_context>
chip_gen: v7x
topology: tpu7x:2x2x1
jax: 0.10.0
libtpu: 0.0.40
codegen_flags: <defaults>
</compile_context>

<pallas_src>
import functools

import numpy as np
import jax
import jax.numpy as jnp
from jax import lax
from jax.experimental import pallas as pl
from jax.experimental.pallas import tpu as pltpu


def _round_up(x, m):
    return ((x + m - 1) // m) * m


# -----------------------------------------------------------------------------
# Pallas kernel: per (batch, q-tile) deformable-attention aggregation, all heads.
# -----------------------------------------------------------------------------
def _ms_deform_attn_kernel(idx_ref, w_ref, val_ref, out_ref, *,
                           level_info, M, Dh, L, P, out_pad):
    """
    idx_ref: (1, TQ, M*L*P*8) int32   corner flat index local to its level (-1 if invalid)
    w_ref  : (1, TQ, M*L*P*8) float32 attention * trilinear weight (0 if invalid)
    val_ref: (1, Len_in, M*Dh)        per-head value, heads lane-concatenated
    out_ref: (1, TQ, M*Dh + out_pad)  lane-dense (padded to a multiple of 128)
    """
    TQ = idx_ref.shape[1]
    idx = idx_ref[0]          # (TQ, K)
    w = w_ref[0]              # (TQ, K)

    # Hoist per-level iotas (JAX does not CSE broadcasts/iotas inside loops).
    pos = [lax.broadcasted_iota(jnp.int32, (TQ, dhw), 1) for (_, dhw) in level_info]

    outs = []
    for m in range(M):
        acc = jnp.zeros((TQ, Dh), jnp.float32)
        for l, (start, dhw) in enumerate(level_info):
            base = (m * L + l) * P * 8
            comb = None
            for p in range(P):
                # The 8 corners of one sampling point have pairwise-distinct flat
                # indices (OOB corners are -1 and never match pos >= 0), so a nested
                # select chain is exact and replaces per-corner select+add:
                # 8 cmp + 8 sel + 1 add per point instead of 8 cmp + 8 sel + 8 add.
                contrib = jnp.zeros((), jnp.float32)
                for c in reversed(range(8)):
                    col = base + p * 8 + c
                    contrib = jnp.where(pos[l] == idx[:, col:col + 1],
                                        w[:, col:col + 1], contrib)
                comb = contrib if comb is None else comb + contrib
            # Per-level, per-head value slice; keep value dtype for the MXU.
            vlm = val_ref[0, start:start + dhw, m * Dh:(m + 1) * Dh]
            acc = acc + jnp.dot(comb.astype(vlm.dtype), vlm,
                                preferred_element_type=jnp.float32)
        outs.append(acc)
    if out_pad:
        outs.append(jnp.zeros((TQ, out_pad), jnp.float32))
    # Lane-dense (TQ, round_up(M*Dh, 128)) store.
    out_ref[0] = jnp.concatenate(outs, axis=-1).astype(out_ref.dtype)


def ms_deform_attn_core_pallas(value, spatial_shapes, level_start_index,
                               sampling_locations, attention_weights,
                               *, q_tile=128):
    """value: (N, Len_in, M, Dh); loc: (N, Lq, M, L, P, 3) in [0,1]; attn: (N, Lq, M, L, P).

    spatial_shapes / level_start_index must be concrete (host) values: the per-level
    extents are baked into the kernel (needed for per-level value slicing).
    """
    N, Len_in, M, Dh = value.shape
    _, Lq, _, L, P, _ = sampling_locations.shape

    ss = np.asarray(spatial_shapes).astype(np.int64)        # (L, 3) = (D, H, W)
    lsi = np.asarray(level_start_index).astype(np.int64)    # (L,)
    level_info = tuple((int(lsi[l]), int(ss[l, 0] * ss[l, 1] * ss[l, 2]))
                       for l in range(L))
    assert sum(d for _, d in level_info) == Len_in

    # --- hoisted trilinear corner weights / local flat indices (vectorized XLA) ---
    loc = sampling_locations.astype(jnp.float32)
    attn = attention_weights.astype(jnp.float32)
    idx_levels, w_levels = [], []
    for l in range(L):
        D_, H_, W_ = int(ss[l, 0]), int(ss[l, 1]), int(ss[l, 2])
        # grid_sample(mode='bilinear', align_corners=False, padding_mode='zeros')
        x = loc[:, :, :, l, :, 0] * W_ - 0.5
        y = loc[:, :, :, l, :, 1] * H_ - 0.5
        z = loc[:, :, :, l, :, 2] * D_ - 0.5
        x0f, y0f, z0f = jnp.floor(x), jnp.floor(y), jnp.floor(z)
        fx, fy, fz = x - x0f, y - y0f, z - z0f
        x0 = x0f.astype(jnp.int32)
        y0 = y0f.astype(jnp.int32)
        z0 = z0f.astype(jnp.int32)
        a = attn[:, :, :, l, :]                              # (N, Lq, M, P)
        idx_c, w_c = [], []
        for dz in (0, 1):
            wz = fz if dz else (1.0 - fz)
            cz = z0 + dz
            for dy in (0, 1):
                wy = fy if dy else (1.0 - fy)
                cy = y0 + dy
                for dx in (0, 1):
                    wx = fx if dx else (1.0 - fx)
                    cx = x0 + dx
                    valid = ((cx >= 0) & (cx < W_) & (cy >= 0) & (cy < H_)
                             & (cz >= 0) & (cz < D_))
                    w_c.append(jnp.where(valid, a * wz * wy * wx, 0.0))
                    flat = (cz * H_ + cy) * W_ + cx          # LOCAL index within level l
                    idx_c.append(jnp.where(valid, flat, -1))
        idx_levels.append(jnp.stack(idx_c, axis=-1))         # (N, Lq, M, P, 8)
        w_levels.append(jnp.stack(w_c, axis=-1))

    K = M * L * P * 8
    # (N, Lq, M, L, P, 8) -> (N, Lq, K); column order = ((m*L + l)*P + p)*8 + corner.
    idx_t = jnp.stack(idx_levels, axis=3).reshape(N, Lq, K).astype(jnp.int32)
    w_t = jnp.stack(w_levels, axis=3).reshape(N, Lq, K).astype(jnp.float32)

    # Keep value at its incoming dtype (bf16 stays bf16); heads lane-concatenated.
    value_t = value.reshape(N, Len_in, M * Dh)

    # --- q tiling (pipelined grid axis, keeps the live comb tile VMEM-friendly) ---
    TQ = min(int(q_tile), _round_up(Lq, 8))
    Lq_pad = _round_up(Lq, TQ)
    if Lq_pad != Lq:
        idx_t = jnp.pad(idx_t, ((0, 0), (0, Lq_pad - Lq), (0, 0)), constant_values=-1)
        w_t = jnp.pad(w_t, ((0, 0), (0, Lq_pad - Lq), (0, 0)))

    # Lane-dense output: pad M*Dh up to a multiple of 128 so the per-tile store is
    # an unmasked vst; sliced off in the return.
    MD = M * Dh
    MDp = _round_up(MD, 128)
    out_pad = MDp - MD

    # TODO(synk): the dense per-level comb (TQ, D*H*W_l) requires the whole level in VMEM;
    # very large levels would need an extra Len_in grid axis (a true sparse gather of value
    # rows has no clean/efficient Pallas TPU equivalent).
    kernel = functools.partial(_ms_deform_attn_kernel, level_info=level_info,
                               M=M, Dh=Dh, L=L, P=P, out_pad=out_pad)
    out = pl.pallas_call(
        kernel,
        out_shape=jax.ShapeDtypeStruct((N, Lq_pad, MDp), value_t.dtype),
        grid_spec=pltpu.PrefetchScalarGridSpec(
            num_scalar_prefetch=0,
            grid=(N, Lq_pad // TQ),
            in_specs=[
                pl.BlockSpec((1, TQ, K), lambda b, q: (b, q, 0)),
                pl.BlockSpec((1, TQ, K), lambda b, q: (b, q, 0)),
                pl.BlockSpec((1, Len_in, MD), lambda b, q: (b, 0, 0)),
            ],
            out_specs=pl.BlockSpec((1, TQ, MDp), lambda b, q: (b, q, 0)),
        ),
        compiler_params=pltpu.CompilerParams(
            dimension_semantics=("parallel", "parallel")),
    )(idx_t, w_t, value_t)
    return out[:, :Lq, :MD]


# -----------------------------------------------------------------------------
# Pure-numpy reference core (matches grid_sample trilinear, align_corners=False).
# -----------------------------------------------------------------------------
def ms_deform_attn_core_ref(value, spatial_shapes, level_start_index,
                            sampling_locations, attention_weights):
    value = np.asarray(value, np.float64)
    loc = np.asarray(sampling_locations, np.float64)
    attn = np.asarray(attention_weights, np.float64)
    ss = np.asarray(spatial_shapes)
    lsi = np.asarray(level_start_index)
    N, Len_in, M, Dh = value.shape
    _, Lq, _, L, P, _ = loc.shape
    out = np.zeros((N, Lq, M, Dh), np.float64)
    for n in range(N):
        for q in range(Lq):
            for m in range(M):
                for l in range(L):
                    D_, H_, W_ = int(ss[l, 0]), int(ss[l, 1]), int(ss[l, 2])
                    start = int(lsi[l])
                    for p in range(P):
                        x, y, z = loc[n, q, m, l, p]
                        a = attn[n, q, m, l, p]
                        ix = x * W_ - 0.5
                        iy = y * H_ - 0.5
                        iz = z * D_ - 0.5
                        ix0 = int(np.floor(ix)); iy0 = int(np.floor(iy)); iz0 = int(np.floor(iz))
                        fx = ix - ix0; fy = iy - iy0; fz = iz - iz0
                        for dz in (0, 1):
                            for dy in (0, 1):
                                for dx in (0, 1):
                                    cx, cy, cz = ix0 + dx, iy0 + dy, iz0 + dz
                                    if 0 <= cx < W_ and 0 <= cy < H_ and 0 <= cz < D_:
                                        w = (a * (fx if dx else 1 - fx)
                                             * (fy if dy else 1 - fy)
                                             * (fz if dz else 1 - fz))
                                        out[n, q, m] += w * value[n, start + (cz * H_ + cy) * W_ + cx, m]
    return out.reshape(N, Lq, M * Dh).astype(np.float32)


# -----------------------------------------------------------------------------
# Module glue (parameter init mirroring MSDeformAttn._reset_parameters + forward).
# -----------------------------------------------------------------------------
def init_params(key, d_model, n_levels, n_heads, n_points):
    assert d_model % n_heads == 0
    k1, k2 = jax.random.split(key)

    # sampling_offsets: weight = 0, bias = directional grid (n_heads in {6, 26})
    vals = np.array([-1, 0, 1], dtype=np.float32)
    grid = np.stack(np.meshgrid(vals, vals, vals, indexing='ij'), axis=-1).reshape(-1, 3)
    abs_sum = np.abs(grid).sum(-1)
    if n_heads == 26:
        grid = grid[abs_sum > 0]
    elif n_heads == 6:
        grid = grid[(abs_sum > 0) & (abs_sum < 2)]
    else:
        raise ValueError('Only nheads of value 26 or 6 are supported.')
    grid = np.tile(grid.reshape(n_heads, 1, 1, 3), (1, n_levels, n_points, 1)).copy()
    for i in range(n_points):
        grid[:, :, i, :] *= (i + 1)

    def xavier_uniform(k, out_f, in_f):
        limit = np.sqrt(6.0 / (in_f + out_f))
        return jax.random.uniform(k, (out_f, in_f), jnp.float32, -limit, limit)

    return {
        'sampling_offsets_w': jnp.zeros((n_heads * n_levels * n_points * 3, d_model), jnp.float32),
        'sampling_offsets_b': jnp.asarray(grid.reshape(-1), jnp.float32),
        'attention_weights_w': jnp.zeros((n_heads * n_levels * n_points, d_model), jnp.float32),
        'attention_weights_b': jnp.zeros((n_heads * n_levels * n_points,), jnp.float32),
        'value_proj_w': xavier_uniform(k1, d_model, d_model),
        'value_proj_b': jnp.zeros((d_model,), jnp.float32),
        'output_proj_w': xavier_uniform(k2, d_model, d_model),
        'output_proj_b': jnp.zeros((d_model,), jnp.float32),
    }


def msdeform_attn_forward(params, query, reference_points, input_flatten,
                          input_spatial_shapes, input_level_start_index,
                          input_padding_mask=None, *,
                          n_heads, n_levels, n_points,
                          core_fn=ms_deform_attn_core_pallas):
    N, Lq, C = query.shape
    _, Len_in, _ = input_flatten.shape
    d_head = C // n_heads

    value = input_flatten @ params['value_proj_w'].T + params['value_proj_b']
    if input_padding_mask is not None:
        value = jnp.where(input_padding_mask[..., None], 0.0, value)
    value = value.reshape(N, Len_in, n_heads, d_head)

    sampling_offsets = (query @ params['sampling_offsets_w'].T
                        + params['sampling_offsets_b']).reshape(
                            N, Lq, n_heads, n_levels, n_points, 3)
    attn = (query @ params['attention_weights_w'].T
            + params['attention_weights_b']).reshape(N, Lq, n_heads, n_levels * n_points)
    attn = jax.nn.softmax(attn, axis=-1).reshape(N, Lq, n_heads, n_levels, n_points)

    # reference_points last dim == 3: normalizer = (W, H, D)
    ss = jnp.asarray(input_spatial_shapes)
    offset_normalizer = jnp.stack([ss[..., 2], ss[..., 1], ss[..., 0]], -1).astype(jnp.float32)
    sampling_locations = (reference_points[:, :, None, :, None, :]
                          + sampling_offsets
                          / offset_normalizer[None, None, None, :, None, :])

    out = core_fn(value, input_spatial_shapes, input_level_start_index,
                  sampling_locations, attn)
    return out @ params['output_proj_w'].T + params['output_proj_b']


# -----------------------------------------------------------------------------
if __name__ == "__main__":
    d_model, n_levels, n_heads, n_points = 48, 2, 6, 4
    N, Lq = 2, 10
    spatial_shapes_np = np.array([[4, 4, 4], [2, 2, 2]], dtype=np.int32)  # (D, H, W) per level
    level_sizes = (spatial_shapes_np.prod(axis=1)).tolist()
    level_start_np = np.array([0] + list(np.cumsum(level_sizes)[:-1]), dtype=np.int32)
    Len_in = int(sum(level_sizes))

    key = jax.random.PRNGKey(0)
    kp, kq, kr, kf = jax.random.split(key, 4)

    params = init_params(kp, d_model, n_levels, n_heads, n_points)
    query = jax.random.normal(kq, (N, Lq, d_model), jnp.float32)
    reference_points = jax.random.uniform(kr, (N, Lq, n_levels, 3), jnp.float32)
    input_flatten = jax.random.normal(kf, (N, Len_in, d_model), jnp.float32)
    spatial_shapes = jnp.asarray(spatial_shapes_np)
    level_start_index = jnp.asarray(level_start_np)

    # q_tile=8 exercises the q-grid pipelining + padding path at these small shapes.
    core = functools.partial(ms_deform_attn_core_pallas, q_tile=8)
    out = msdeform_attn_forward(
        params, query, reference_points, input_flatten,
        spatial_shapes, level_start_index, None,
        n_heads=n_heads, n_levels=n_levels, n_points=n_points,
        core_fn=core)
    out = jax.block_until_ready(out)

    # Pure-numpy reference check of the deformable-attention core + forward glue.
    out_ref = msdeform_attn_forward(
        params, query, reference_points, input_flatten,
        spatial_shapes, level_start_index, None,
        n_heads=n_heads, n_levels=n_levels, n_points=n_points,
        core_fn=lambda *a: jnp.asarray(ms_deform_attn_core_ref(*a)))
    np.testing.assert_allclose(np.asarray(out), np.asarray(out_ref), rtol=2e-3, atol=1e-3)

    assert out.shape == (N, Lq, d_model)
    print("KERNEL_OK")
</pallas_src>

<mosaic_0001>
module attributes {stable_mosaic.version = 11 : i64} {
  func.func @_ms_deform_attn_kernel(%arg0: i32, %arg1: i32, %arg2: memref<1x8x384xi32, #tpu.memory_space<vmem>>, %arg3: memref<1x8x384xf32, #tpu.memory_space<vmem>>, %arg4: memref<1x72x48xf32, #tpu.memory_space<vmem>>, %arg5: memref<1x8x128xf32, #tpu.memory_space<vmem>>) attributes {dimension_semantics = [#tpu.dimension_semantics<parallel>, #tpu.dimension_semantics<parallel>], iteration_bounds = array<i64: 2, 2>, scalar_prefetch = 0 : i64, scratch_operands = 0 : i64, tpu.core_type = #tpu.core_type<tc>, window_params = [{transform_indices = @transform_0, window_bounds = array<i64: 1, 8, 384>}, {transform_indices = @transform_1, window_bounds = array<i64: 1, 8, 384>}, {transform_indices = @transform_2, window_bounds = array<i64: 1, 72, 48>}, {transform_indices = @transform_3, window_bounds = array<i64: 1, 8, 128>}]} {
    %c0 = arith.constant 0 : index
    %c0_0 = arith.constant 0 : index
    %c0_1 = arith.constant 0 : index
    %0 = vector.load %arg2[%c0, %c0_0, %c0_1] : memref<1x8x384xi32, #tpu.memory_space<vmem>>, vector<1x8x384xi32>
    %1 = vector.shape_cast %0 : vector<1x8x384xi32> to vector<8x384xi32>
    %c0_2 = arith.constant 0 : index
    %c0_3 = arith.constant 0 : index
    %c0_4 = arith.constant 0 : index
    %2 = vector.load %arg3[%c0_2, %c0_3, %c0_4] : memref<1x8x384xf32, #tpu.memory_space<vmem>>, vector<1x8x384xf32>
    %3 = vector.shape_cast %2 : vector<1x8x384xf32> to vector<8x384xf32>
    %4 = tpu.iota {dimensions = array<i32: 1>} : vector<8x64xi32>
    %5 = tpu.iota {dimensions = array<i32: 1>} : vector<8x8xi32>
    %cst = arith.constant 0.000000e+00 : f32
    %6 = vector.broadcast %cst : f32 to vector<8x8xf32>
    %7 = vector.extract_strided_slice %1 {offsets = [0, 7], sizes = [8, 1], strides = [1, 1]} : vector<8x384xi32> to vector<8x1xi32>
    %8 = vector.broadcast %7 : vector<8x1xi32> to vector<8x64xi32>
    %9 = arith.cmpi eq, %4, %8 : vector<8x64xi32>
    %10 = vector.extract_strided_slice %3 {offsets = [0, 7], sizes = [8, 1], strides = [1, 1]} : vector<8x384xf32> to vector<8x1xf32>
    %cst_5 = arith.constant 0.000000e+00 : f32
    %11 = vector.shape_cast %10 : vector<8x1xf32> to vector<8x1xf32>
    %12 = vector.broadcast %11 : vector<8x1xf32> to vector<8x64xf32>
    %13 = vector.broadcast %cst_5 : f32 to vector<8x64xf32>
    %14 = arith.select %9, %12, %13 : vector<8x64xi1>, vector<8x64xf32>
    %15 = vector.extract_strided_slice %1 {offsets = [0, 6], sizes = [8, 1], strides = [1, 1]} : vector<8x384xi32> to vector<8x1xi32>
    %16 = vector.broadcast %15 : vector<8x1xi32> to vector<8x64xi32>
    %17 = arith.cmpi eq, %4, %16 : vector<8x64xi32>
    %18 = vector.extract_strided_slice %3 {offsets = [0, 6], sizes = [8, 1], strides = [1, 1]} : vector<8x384xf32> to vector<8x1xf32>
    %19 = vector.shape_cast %18 : vector<8x1xf32> to vector<8x1xf32>
    %20 = vector.broadcast %19 : vector<8x1xf32> to vector<8x64xf32>
    %21 = arith.select %17, %20, %14 : vector<8x64xi1>, vector<8x64xf32>
    %22 = vector.extract_strided_slice %1 {offsets = [0, 5], sizes = [8, 1], strides = [1, 1]} : vector<8x384xi32> to vector<8x1xi32>
    %23 = vector.broadcast %22 : vector<8x1xi32> to vector<8x64xi32>
    %24 = arith.cmpi eq, %4, %23 : vector<8x64xi32>
    %25 = vector.extract_strided_slice %3 {offsets = [0, 5], sizes = [8, 1], strides = [1, 1]} : vector<8x384xf32> to vector<8x1xf32>
    %26 = vector.shape_cast %25 : vector<8x1xf32> to vector<8x1xf32>
    %27 = vector.broadcast %26 : vector<8x1xf32> to vector<8x64xf32>
    %28 = arith.select %24, %27, %21 : vector<8x64xi1>, vector<8x64xf32>
    %29 = vector.extract_strided_slice %1 {offsets = [0, 4], sizes = [8, 1], strides = [1, 1]} : vector<8x384xi32> to vector<8x1xi32>
    %30 = vector.broadcast %29 : vector<8x1xi32> to vector<8x64xi32>
    %31 = arith.cmpi eq, %4, %30 : vector<8x64xi32>
    %32 = vector.extract_strided_slice %3 {offsets = [0, 4], sizes = [8, 1], strides = [1, 1]} : vector<8x384xf32> to vector<8x1xf32>
    %33 = vector.shape_cast %32 : vector<8x1xf32> to vector<8x1xf32>
    %34 = vector.broadcast %33 : vector<8x1xf32> to vector<8x64xf32>
    %35 = arith.select %31, %34, %28 : vector<8x64xi1>, vector<8x64xf32>
    %36 = vector.extract_strided_slice %1 {offsets = [0, 3], sizes = [8, 1], strides = [1, 1]} : vector<8x384xi32> to vector<8x1xi32>
    %37 = vector.broadcast %36 : vector<8x1xi32> to vector<8x64xi32>
    %38 = arith.cmpi eq, %4, %37 : vector<8x64xi32>
    %39 = vector.extract_strided_slice %3 {offsets = [0, 3], sizes = [8, 1], strides = [1, 1]} : vector<8x384xf32> to vector<8x1xf32>
    %40 = vector.shape_cast %39 : vector<8x1xf32> to vector<8x1xf32>
    %41 = vector.broadcast %40 : vector<8x1xf32> to vector<8x64xf32>
    %42 = arith.select %38, %41, %35 : vector<8x64xi1>, vector<8x64xf32>
    %43 = vector.extract_strided_slice %1 {offsets = [0, 2], sizes = [8, 1], strides = [1, 1]} : vector<8x384xi32> to vector<8x1xi32>
    %44 = vector.broadcast %43 : vector<8x1xi32> to vector<8x64xi32>
    %45 = arith.cmpi eq, %4, %44 : vector<8x64xi32>
    %46 = vector.extract_strided_slice %3 {offsets = [0, 2], sizes = [8, 1], strides = [1, 1]} : vector<8x384xf32> to vector<8x1xf32>
    %47 = vector.shape_cast %46 : vector<8x1xf32> to vector<8x1xf32>
    %48 = vector.broadcast %47 : vector<8x1xf32> to vector<8x64xf32>
    %49 = arith.select %45, %48, %42 : vector<8x64xi1>, vector<8x64xf32>
    %50 = vector.extract_strided_slice %1 {offsets = [0, 1], sizes = [8, 1], strides = [1, 1]} : vector<8x384xi32> to vector<8x1xi32>
    %51 = vector.broadcast %50 : vector<8x1xi32> to vector<8x64xi32>
    %52 = arith.cmpi eq, %4, %51 : vector<8x64xi32>
    %53 = vector.extract_strided_slice %3 {offsets = [0, 1], sizes = [8, 1], strides = [1, 1]} : vector<8x384xf32> to vector<8x1xf32>
    %54 = vector.shape_cast %53 : vector<8x1xf32> to vector<8x1xf32>
    %55 = vector.broadcast %54 : vector<8x1xf32> to vector<8x64xf32>
    %56 = arith.select %52, %55, %49 : vector<8x64xi1>, vector<8x64xf32>
    %57 = vector.extract_strided_slice %1 {offsets = [0, 0], sizes = [8, 1], strides = [1, 1]} : vector<8x384xi32> to vector<8x1xi32>
    %58 = vector.broadcast %57 : vector<8x1xi32> to vector<8x64xi32>
    %59 = arith.cmpi eq, %4, %58 : vector<8x64xi32>
    %60 = vector.extract_strided_slice %3 {offsets = [0, 0], sizes = [8, 1], strides = [1, 1]} : vector<8x384xf32> to vector<8x1xf32>
    %61 = vector.shape_cast %60 : vector<8x1xf32> to vector<8x1xf32>
    %62 = vector.broadcast %61 : vector<8x1xf32> to vector<8x64xf32>
    %63 = arith.select %59, %62, %56 : vector<8x64xi1>, vector<8x64xf32>
    %64 = vector.extract_strided_slice %1 {offsets = [0, 15], sizes = [8, 1], strides = [1, 1]} : vector<8x384xi32> to vector<8x1xi32>
    %65 = vector.broadcast %64 : vector<8x1xi32> to vector<8x64xi32>
    %66 = arith.cmpi eq, %4, %65 : vector<8x64xi32>
    %67 = vector.extract_strided_slice %3 {offsets = [0, 15], sizes = [8, 1], strides = [1, 1]} : vector<8x384xf32> to vector<8x1xf32>
    %cst_6 = arith.constant 0.000000e+00 : f32
    %68 = vector.shape_cast %67 : vector<8x1xf32> to vector<8x1xf32>
    %69 = vector.broadcast %68 : vector<8x1xf32> to vector<8x64xf32>
    %70 = vector.broadcast %cst_6 : f32 to vector<8x64xf32>
    %71 = arith.select %66, %69, %70 : vector<8x64xi1>, vector<8x64xf32>
    %72 = vector.extract_strided_slice %1 {offsets = [0, 14], sizes = [8, 1], strides = [1, 1]} : vector<8x384xi32> to vector<8x1xi32>
    %73 = vector.broadcast %72 : vector<8x1xi32> to vector<8x64xi32>
    %74 = arith.cmpi eq, %4, %73 : vector<8x64xi32>
    %75 = vector.extract_strided_slice %3 {offsets = [0, 14], sizes = [8, 1], strides = [1, 1]} : vector<8x384xf32> to vector<8x1xf32>
    %76 = vector.shape_cast %75 : vector<8x1xf32> to vector<8x1xf32>
    %77 = vector.broadcast %76 : vector<8x1xf32> to vector<8x64xf32>
    %78 = arith.select %74, %77, %71 : vector<8x64xi1>, vector<8x64xf32>
    %79 = vector.extract_strided_slice %1 {offsets = [0, 13], sizes = [8, 1], strides = [1, 1]} : vector<8x384xi32> to vector<8x1xi32>
    %80 = vector.broadcast %79 : vector<8x1xi32> to vector<8x64xi32>
    %81 = arith.cmpi eq, %4, %80 : vector<8x64xi32>
    %82 = vector.extract_strided_slice %3 {offsets = [0, 13], sizes = [8, 1], strides = [1, 1]} : vector<8x384xf32> to vector<8x1xf32>
    %83 = vector.shape_cast %82 : vector<8x1xf32> to vector<8x1xf32>
    %84 = vector.broadcast %83 : vector<8x1xf32> to vector<8x64xf32>
    %85 = arith.select %81, %84, %78 : vector<8x64xi1>, vector<8x64xf32>
    %86 = vector.extract_strided_slice %1 {offsets = [0, 12], sizes = [8, 1], strides = [1, 1]} : vector<8x384xi32> to vector<8x1xi32>
    %87 = vector.broadcast %86 : vector<8x1xi32> to vector<8x64xi32>
    %88 = arith.cmpi eq, %4, %87 : vector<8x64xi32>
    %89 = vector.extract_strided_slice %3 {offsets = [0, 12], sizes = [8, 1], strides = [1, 1]} : vector<8x384xf32> to vector<8x1xf32>
    %90 = vector.shape_cast %89 : vector<8x1xf32> to vector<8x1xf32>
    %91 = vector.broadcast %90 : vector<8x1xf32> to vector<8x64xf32>
    %92 = arith.select %88, %91, %85 : vector<8x64xi1>, vector<8x64xf32>
    %93 = vector.extract_strided_slice %1 {offsets = [0, 11], sizes = [8, 1], strides = [1, 1]} : vector<8x384xi32> to vector<8x1xi32>
    %94 = vector.broadcast %93 : vector<8x1xi32> to vector<8x64xi32>
    %95 = arith.cmpi eq, %4, %94 : vector<8x64xi32>
    %96 = vector.extract_strided_slice %3 {offsets = [0, 11], sizes = [8, 1], strides = [1, 1]} : vector<8x384xf32> to vector<8x1xf32>
    %97 = vector.shape_cast %96 : vector<8x1xf32> to vector<8x1xf32>
    %98 = vector.broadcast %97 : vector<8x1xf32> to vector<8x64xf32>
    %99 = arith.select %95, %98, %92 : vector<8x64xi1>, vector<8x64xf32>
    %100 = vector.extract_strided_slice %1 {offsets = [0, 10], sizes = [8, 1], strides = [1, 1]} : vector<8x384xi32> to vector<8x1xi32>
    %101 = vector.broadcast %100 : vector<8x1xi32> to vector<8x64xi32>
    %102 = arith.cmpi eq, %4, %101 : vector<8x64xi32>
    %103 = vector.extract_strided_slice %3 {offsets = [0, 10], sizes = [8, 1], strides = [1, 1]} : vector<8x384xf32> to vector<8x1xf32>
    %104 = vector.shape_cast %103 : vector<8x1xf32> to vector<8x1xf32>
    %105 = vector.broadcast %104 : vector<8x1xf32> to vector<8x64xf32>
    %106 = arith.select %102, %105, %99 : vector<8x64xi1>, vector<8x64xf32>
    %107 = vector.extract_strided_slice %1 {offsets = [0, 9], sizes = [8, 1], strides = [1, 1]} : vector<8x384xi32> to vector<8x1xi32>
    %108 = vector.broadcast %107 : vector<8x1xi32> to vector<8x64xi32>
    %109 = arith.cmpi eq, %4, %108 : vector<8x64xi32>
    %110 = vector.extract_strided_slice %3 {offsets = [0, 9], sizes = [8, 1], strides = [1, 1]} : vector<8x384xf32> to vector<8x1xf32>
    %111 = vector.shape_cast %110 : vector<8x1xf32> to vector<8x1xf32>
    %112 = vector.broadcast %111 : vector<8x1xf32> to vector<8x64xf32>
    %113 = arith.select %109, %112, %106 : vector<8x64xi1>, vector<8x64xf32>
    %114 = vector.extract_strided_slice %1 {offsets = [0, 8], sizes = [8, 1], strides = [1, 1]} : vector<8x384xi32> to vector<8x1xi32>
    %115 = vector.broadcast %114 : vector<8x1xi32> to vector<8x64xi32>
    %116 = arith.cmpi eq, %4, %115 : vector<8x64xi32>
    %117 = vector.extract_strided_slice %3 {offsets = [0, 8], sizes = [8, 1], strides = [1, 1]} : vector<8x384xf32> to vector<8x1xf32>
    %118 = vector.shape_cast %117 : vector<8x1xf32> to vector<8x1xf32>
    %119 = vector.broadcast %118 : vector<8x1xf32> to vector<8x64xf32>
    %120 = arith.select %116, %119, %113 : vector<8x64xi1>, vector<8x64xf32>
    %121 = arith.addf %63, %120 : vector<8x64xf32>
    %122 = vector.extract_strided_slice %1 {offsets = [0, 23], sizes = [8, 1], strides = [1, 1]} : vector<8x384xi32> to vector<8x1xi32>
    %123 = vector.broadcast %122 : vector<8x1xi32> to vector<8x64xi32>
    %124 = arith.cmpi eq, %4, %123 : vector<8x64xi32>
    %125 = vector.extract_strided_slice %3 {offsets = [0, 23], sizes = [8, 1], strides = [1, 1]} : vector<8x384xf32> to vector<8x1xf32>
    %cst_7 = arith.constant 0.000000e+00 : f32
    %126 = vector.shape_cast %125 : vector<8x1xf32> to vector<8x1xf32>
    %127 = vector.broadcast %126 : vector<8x1xf32> to vector<8x64xf32>
    %128 = vector.broadcast %cst_7 : f32 to vector<8x64xf32>
    %129 = arith.select %124, %127, %128 : vector<8x64xi1>, vector<8x64xf32>
    %130 = vector.extract_strided_slice %1 {offsets = [0, 22], sizes = [8, 1], strides = [1, 1]} : vector<8x384xi32> to vector<8x1xi32>
    %131 = vector.broadcast %130 : vector<8x1xi32> to vector<8x64xi32>
    %132 = arith.cmpi eq, %4, %131 : vector<8x64xi32>
    %133 = vector.extract_strided_slice %3 {offsets = [0, 22], sizes = [8, 1], strides = [1, 1]} : vector<8x384xf32> to vector<8x1xf32>
    %134 = vector.shape_cast %133 : vector<8x1xf32> to vector<8x1xf32>
    %135 = vector.broadcast %134 : vector<8x1xf32> to vector<8x64xf32>
    %136 = arith.select %132, %135, %129 : vector<8x64xi1>, vector<8x64xf32>
    %137 = vector.extract_strided_slice %1 {offsets = [0, 21], sizes = [8, 1], strides = [1, 1]} : vector<8x384xi32> to vector<8x1xi32>
    %138 = vector.broadcast %137 : vector<8x1xi32> to vector<8x64xi32>
    %139 = arith.cmpi eq, %4, %138 : vector<8x64xi32>
    %140 = vector.extract_strided_slice %3 {offsets = [0, 21], sizes = [8, 1], strides = [1, 1]} : vector<8x384xf32> to vector<8x1xf32>
    %141 = vector.shape_cast %140 : vector<8x1xf32> to vector<8x1xf32>
    %142 = vector.broadcast %141 : vector<8x1xf32> to vector<8x64xf32>
    %143 = arith.select %139, %142, %136 : vector<8x64xi1>, vector<8x64xf32>
    %144 = vector.extract_strided_slice %1 {offsets = [0, 20], sizes = [8, 1], strides = [1, 1]} : vector<8x384xi32> to vector<8x1xi32>
    %145 = vector.broadcast %144 : vector<8x1xi32> to vector<8x64xi32>
    %146 = arith.cmpi eq, %4, %145 : vector<8x64xi32>
    %147 = vector.extract_strided_slice %3 {offsets = [0, 20], sizes = [8, 1], strides = [1, 1]} : vector<8x384xf32> to vector<8x1xf32>
    %148 = vector.shape_cast %147 : vector<8x1xf32> to vector<8x1xf32>
    %149 = vector.broadcast %148 : vector<8x1xf32> to vector<8x64xf32>
    %150 = arith.select %146, %149, %143 : vector<8x64xi1>, vector<8x64xf32>
    %151 = vector.extract_strided_slice %1 {offsets = [0, 19], sizes = [8, 1], strides = [1, 1]} : vector<8x384xi32> to vector<8x1xi32>
    %152 = vector.broadcast %151 : vector<8x1xi32> to vector<8x64xi32>
    %153 = arith.cmpi eq, %4, %152 : vector<8x64xi32>
    %154 = vector.extract_strided_slice %3 {offsets = [0, 19], sizes = [8, 1], strides = [1, 1]} : vector<8x384xf32> to vector<8x1xf32>
    %155 = vector.shape_cast %154 : vector<8x1xf32> to vector<8x1xf32>
    %156 = vector.broadcast %155 : vector<8x1xf32> to vector<8x64xf32>
    %157 = arith.select %153, %156, %150 : vector<8x64xi1>, vector<8x64xf32>
    %158 = vector.extract_strided_slice %1 {offsets = [0, 18], sizes = [8, 1], strides = [1, 1]} : vector<8x384xi32> to vector<8x1xi32>
    %159 = vector.broadcast %158 : vector<8x1xi32> to vector<8x64xi32>
    %160 = arith.cmpi eq, %4, %159 : vector<8x64xi32>
    %161 = vector.extract_strided_slice %3 {offsets = [0, 18], sizes = [8, 1], strides = [1, 1]} : vector<8x384xf32> to vector<8x1xf32>
    %162 = vector.shape_cast %161 : vector<8x1xf32> to vector<8x1xf32>
    %163 = vector.broadcast %162 : vector<8x1xf32> to vector<8x64xf32>
    %164 = arith.select %160, %163, %157 : vector<8x64xi1>, vector<8x64xf32>
    %165 = vector.extract_strided_slice %1 {offsets = [0, 17], sizes = [8, 1], strides = [1, 1]} : vector<8x384xi32> to vector<8x1xi32>
    %166 = vector.broadcast %165 : vector<8x1xi32> to vector<8x64xi32>
    %167 = arith.cmpi eq, %4, %166 : vector<8x64xi32>
    %168 = vector.extract_strided_slice %3 {offsets = [0, 17], sizes = [8, 1], strides = [1, 1]} : vector<8x384xf32> to vector<8x1xf32>
    %169 = vector.shape_cast %168 : vector<8x1xf32> to vector<8x1xf32>
    %170 = vector.broadcast %169 : vector<8x1xf32> to vector<8x64xf32>
    %171 = arith.select %167, %170, %164 : vector<8x64xi1>, vector<8x64xf32>
    %172 = vector.extract_strided_slice %1 {offsets = [0, 16], sizes = [8, 1], strides = [1, 1]} : vector<8x384xi32> to vector<8x1xi32>
    %173 = vector.broadcast %172 : vector<8x1xi32> to vector<8x64xi32>
    %174 = arith.cmpi eq, %4, %173 : vector<8x64xi32>
    %175 = vector.extract_strided_slice %3 {offsets = [0, 16], sizes = [8, 1], strides = [1, 1]} : vector<8x384xf32> to vector<8x1xf32>
    %176 = vector.shape_cast %175 : vector<8x1xf32> to vector<8x1xf32>
    %177 = vector.broadcast %176 : vector<8x1xf32> to vector<8x64xf32>
    %178 = arith.select %174, %177, %171 : vector<8x64xi1>, vector<8x64xf32>
    %179 = arith.addf %121, %178 : vector<8x64xf32>
    %180 = vector.extract_strided_slice %1 {offsets = [0, 31], sizes = [8, 1], strides = [1, 1]} : vector<8x384xi32> to vector<8x1xi32>
    %181 = vector.broadcast %180 : vector<8x1xi32> to vector<8x64xi32>
    %182 = arith.cmpi eq, %4, %181 : vector<8x64xi32>
    %183 = vector.extract_strided_slice %3 {offsets = [0, 31], sizes = [8, 1], strides = [1, 1]} : vector<8x384xf32> to vector<8x1xf32>
    %cst_8 = arith.constant 0.000000e+00 : f32
    %184 = vector.shape_cast %183 : vector<8x1xf32> to vector<8x1xf32>
    %185 = vector.broadcast %184 : vector<8x1xf32> to vector<8x64xf32>
    %186 = vector.broadcast %cst_8 : f32 to vector<8x64xf32>
    %187 = arith.select %182, %185, %186 : vector<8x64xi1>, vector<8x64xf32>
    %188 = vector.extract_strided_slice %1 {offsets = [0, 30], sizes = [8, 1], strides = [1, 1]} : vector<8x384xi32> to vector<8x1xi32>
    %189 = vector.broadcast %188 : vector<8x1xi32> to vector<8x64xi32>
    %190 = arith.cmpi eq, %4, %189 : vector<8x64xi32>
    %191 = vector.extract_strided_slice %3 {offsets = [0, 30], sizes = [8, 1], strides = [1, 1]} : vector<8x384xf32> to vector<8x1xf32>
    %192 = vector.shape_cast %191 : vector<8x1xf32> to vector<8x1xf32>
    %193 = vector.broadcast %192 : vector<8x1xf32> to vector<8x64xf32>
    %194 = arith.select %190, %193, %187 : vector<8x64xi1>, vector<8x64xf32>
    %195 = vector.extract_strided_slice %1 {offsets = [0, 29], sizes = [8, 1], strides = [1, 1]} : vector<8x384xi32> to vector<8x1xi32>
    %196 = vector.broadcast %195 : vector<8x1xi32> to vector<8x64xi32>
    %197 = arith.cmpi eq, %4, %196 : vector<8x64xi32>
    %198 = vector.extract_strided_slice %3 {offsets = [0, 29], sizes = [8, 1], strides = [1, 1]} : vector<8x384xf32> to vector<8x1xf32>
    %199 = vector.shape_cast %198 : vector<8x1xf32> to vector<8x1xf32>
    %200 = vector.broadcast %199 : vector<8x1xf32> to vector<8x64xf32>
    %201 = arith.select %197, %200, %194 : vector<8x64xi1>, vector<8x64xf32>
    %202 = vector.extract_strided_slice %1 {offsets = [0, 28], sizes = [8, 1], strides = [1, 1]} : vector<8x384xi32> to vector<8x1xi32>
    %203 = vector.broadcast %202 : vector<8x1xi32> to vector<8x64xi32>
    %204 = arith.cmpi eq, %4, %203 : vector<8x64xi32>
    %205 = vector.extract_strided_slice %3 {offsets = [0, 28], sizes = [8, 1], strides = [1, 1]} : vector<8x384xf32> to vector<8x1xf32>
    %206 = vector.shape_cast %205 : vector<8x1xf32> to vector<8x1xf32>
    %207 = vector.broadcast %206 : vector<8x1xf32> to vector<8x64xf32>
    %208 = arith.select %204, %207, %201 : vector<8x64xi1>, vector<8x64xf32>
    %209 = vector.extract_strided_slice %1 {offsets = [0, 27], sizes = [8, 1], strides = [1, 1]} : vector<8x384xi32> to vector<8x1xi32>
    %210 = vector.broadcast %209 : vector<8x1xi32> to vector<8x64xi32>
    %211 = arith.cmpi eq, %4, %210 : vector<8x64xi32>
    %212 = vector.extract_strided_slice %3 {offsets = [0, 27], sizes = [8, 1], strides = [1, 1]} : vector<8x384xf32> to vector<8x1xf32>
    %213 = vector.shape_cast %212 : vector<8x1xf32> to vector<8x1xf32>
    %214 = vector.broadcast %213 : vector<8x1xf32> to vector<8x64xf32>
    %215 = arith.select %211, %214, %208 : vector<8x64xi1>, vector<8x64xf32>
    %216 = vector.extract_strided_slice %1 {offsets = [0, 26], sizes = [8, 1], strides = [1, 1]} : vector<8x384xi32> to vector<8x1xi32>
    %217 = vector.broadcast %216 : vector<8x1xi32> to vector<8x64xi32>
    %218 = arith.cmpi eq, %4, %217 : vector<8x64xi32>
    %219 = vector.extract_strided_slice %3 {offsets = [0, 26], sizes = [8, 1], strides = [1, 1]} : vector<8x384xf32> to vector<8x1xf32>
    %220 = vector.shape_cast %219 : vector<8x1xf32> to vector<8x1xf32>
    %221 = vector.broadcast %220 : vector<8x1xf32> to vector<8x64xf32>
    %222 = arith.select %218, %221, %215 : vector<8x64xi1>, vector<8x64xf32>
    %223 = vector.extract_strided_slice %1 {offsets = [0, 25], sizes = [8, 1], strides = [1, 1]} : vector<8x384xi32> to vector<8x1xi32>
    %224 = vector.broadcast %223 : vector<8x1xi32> to vector<8x64xi32>
    %225 = arith.cmpi eq, %4, %224 : vector<8x64xi32>
    %226 = vector.extract_strided_slice %3 {offsets = [0, 25], sizes = [8, 1], strides = [1, 1]} : vector<8x384xf32> to vector<8x1xf32>
    %227 = vector.shape_cast %226 : vector<8x1xf32> to vector<8x1xf32>
    %228 = vector.broadcast %227 : vector<8x1xf32> to vector<8x64xf32>
    %229 = arith.select %225, %228, %222 : vector<8x64xi1>, vector<8x64xf32>
    %230 = vector.extract_strided_slice %1 {offsets = [0, 24], sizes = [8, 1], strides = [1, 1]} : vector<8x384xi32> to vector<8x1xi32>
    %231 = vector.broadcast %230 : vector<8x1xi32> to vector<8x64xi32>
    %232 = arith.cmpi eq, %4, %231 : vector<8x64xi32>
    %233 = vector.extract_strided_slice %3 {offsets = [0, 24], sizes = [8, 1], strides = [1, 1]} : vector<8x384xf32> to vector<8x1xf32>
    %234 = vector.shape_cast %233 : vector<8x1xf32> to vector<8x1xf32>
    %235 = vector.broadcast %234 : vector<8x1xf32> to vector<8x64xf32>
    %236 = arith.select %232, %235, %229 : vector<8x64xi1>, vector<8x64xf32>
    %237 = arith.addf %179, %236 : vector<8x64xf32>
    %c0_9 = arith.constant 0 : index
    %c0_10 = arith.constant 0 : index
    %c0_11 = arith.constant 0 : index
    %238 = vector.load %arg4[%c0_9, %c0_10, %c0_11] : memref<1x72x48xf32, #tpu.memory_space<vmem>>, vector<1x64x8xf32>
    %239 = vector.shape_cast %238 : vector<1x64x8xf32> to vector<64x8xf32>
    %cst_12 = arith.constant dense<0.000000e+00> : vector<8x8xf32>
    %240 = tpu.matmul %237, %239, %cst_12 {dimension_numbers = #tpu.dot_dimension_numbers<[1], [0], [0], [1], [0, 0, 1, 1], [], []>} : vector<8x64xf32>, vector<64x8xf32>, vector<8x8xf32> -> vector<8x8xf32>
    %241 = arith.addf %6, %240 : vector<8x8xf32>
    %242 = vector.extract_strided_slice %1 {offsets = [0, 39], sizes = [8, 1], strides = [1, 1]} : vector<8x384xi32> to vector<8x1xi32>
    %243 = vector.broadcast %242 : vector<8x1xi32> to vector<8x8xi32>
    %244 = arith.cmpi eq, %5, %243 : vector<8x8xi32>
    %245 = vector.extract_strided_slice %3 {offsets = [0, 39], sizes = [8, 1], strides = [1, 1]} : vector<8x384xf32> to vector<8x1xf32>
    %cst_13 = arith.constant 0.000000e+00 : f32
    %246 = vector.shape_cast %245 : vector<8x1xf32> to vector<8x1xf32>
    %247 = vector.broadcast %246 : vector<8x1xf32> to vector<8x8xf32>
    %248 = vector.broadcast %cst_13 : f32 to vector<8x8xf32>
    %249 = arith.select %244, %247, %248 : vector<8x8xi1>, vector<8x8xf32>
    %250 = vector.extract_strided_slice %1 {offsets = [0, 38], sizes = [8, 1], strides = [1, 1]} : vector<8x384xi32> to vector<8x1xi32>
    %251 = vector.broadcast %250 : vector<8x1xi32> to vector<8x8xi32>
    %252 = arith.cmpi eq, %5, %251 : vector<8x8xi32>
    %253 = vector.extract_strided_slice %3 {offsets = [0, 38], sizes = [8, 1], strides = [1, 1]} : vector<8x384xf32> to vector<8x1xf32>
    %254 = vector.shape_cast %253 : vector<8x1xf32> to vector<8x1xf32>
    %255 = vector.broadcast %254 : vector<8x1xf32> to vector<8x8xf32>
    %256 = arith.select %252, %255, %249 : vector<8x8xi1>, vector<8x8xf32>
    %257 = vector.extract_strided_slice %1 {offsets = [0, 37], sizes = [8, 1], strides = [1, 1]} : vector<8x384xi32> to vector<8x1xi32>
    %258 = vector.broadcast %257 : vector<8x1xi32> to vector<8x8xi32>
    %259 = arith.cmpi eq, %5, %258 : vector<8x8xi32>
    %260 = vector.extract_strided_slice %3 {offsets = [0, 37], sizes = [8, 1], strides = [1, 1]} : vector<8x384xf32> to vector<8x1xf32>
    %261 = vector.shape_cast %260 : vector<8x1xf32> to vector<8x1xf32>
    %262 = vector.broadcast %261 : vector<8x1xf32> to vector<8x8xf32>
    %263 = arith.select %259, %262, %256 : vector<8x8xi1>, vector<8x8xf32>
    %264 = vector.extract_strided_slice %1 {offsets = [0, 36], sizes = [8, 1], strides = [1, 1]} : vector<8x384xi32> to vector<8x1xi32>
    %265 = vector.broadcast %264 : vector<8x1xi32> to vector<8x8xi32>
    %266 = arith.cmpi eq, %5, %265 : vector<8x8xi32>
    %267 = vector.extract_strided_slice %3 {offsets = [0, 36], sizes = [8, 1], strides = [1, 1]} : vector<8x384xf32> to vector<8x1xf32>
    %268 = vector.shape_cast %267 : vector<8x1xf32> to vector<8x1xf32>
    %269 = vector.broadcast %268 : vector<8x1xf32> to vector<8x8xf32>
    %270 = arith.select %266, %269, %263 : vector<8x8xi1>, vector<8x8xf32>
    %271 = vector.extract_strided_slice %1 {offsets = [0, 35], sizes = [8, 1], strides = [1, 1]} : vector<8x384xi32> to vector<8x1xi32>
    %272 = vector.broadcast %271 : vector<8x1xi32> to vector<8x8xi32>
    %273 = arith.cmpi eq, %5, %272 : vector<8x8xi32>
    %274 = vector.extract_strided_slice %3 {offsets = [0, 35], sizes = [8, 1], strides = [1, 1]} : vector<8x384xf32> to vector<8x1xf32>
    %275 = vector.shape_cast %274 : vector<8x1xf32> to vector<8x1xf32>
    %276 = vector.broadcast %275 : vector<8x1xf32> to vector<8x8xf32>
    %277 = arith.select %273, %276, %270 : vector<8x8xi1>, vector<8x8xf32>
    %278 = vector.extract_strided_slice %1 {offsets = [0, 34], sizes = [8, 1], strides = [1, 1]} : vector<8x384xi32> to vector<8x1xi32>
    %279 = vector.broadcast %278 : vector<8x1xi32> to vector<8x8xi32>
    %280 = arith.cmpi eq, %5, %279 : vector<8x8xi32>
    %281 = vector.extract_strided_slice %3 {offsets = [0, 34], sizes = [8, 1], strides = [1, 1]} : vector<8x384xf32> to vector<8x1xf32>
    %282 = vector.shape_cast %281 : vector<8x1xf32> to vector<8x1xf32>
    %283 = vector.broadcast %282 : vector<8x1xf32> to vector<8x8xf32>
    %284 = arith.select %280, %283, %277 : vector<8x8xi1>, vector<8x8xf32>
    %285 = vector.extract_strided_slice %1 {offsets = [0, 33], sizes = [8, 1], strides = [1, 1]} : vector<8x384xi32> to vector<8x1xi32>
    %286 = vector.broadcast %285 : vector<8x1xi32> to vector<8x8xi32>
    %287 = arith.cmpi eq, %5, %286 : vector<8x8xi32>
    %288 = vector.extract_strided_slice %3 {offsets = [0, 33], sizes = [8, 1], strides = [1, 1]} : vector<8x384xf32> to vector<8x1xf32>
    %289 = vector.shape_cast %288 : vector<8x1xf32> to vector<8x1xf32>
    %290 = vector.broadcast %289 : vector<8x1xf32> to vector<8x8xf32>
    %291 = arith.select %287, %290, %284 : vector<8x8xi1>, vector<8x8xf32>
    %292 = vector.extract_strided_slice %1 {offsets = [0, 32], sizes = [8, 1], strides = [1, 1]} : vector<8x384xi32> to vector<8x1xi32>
    %293 = vector.broadcast %292 : vector<8x1xi32> to vector<8x8xi32>
    %294 = arith.cmpi eq, %5, %293 : vector<8x8xi32>
    %295 = vector.extract_strided_slice %3 {offsets = [0, 32], sizes = [8, 1], strides = [1, 1]} : vector<8x384xf32> to vector<8x1xf32>
    %296 = vector.shape_cast %295 : vector<8x1xf32> to vector<8x1xf32>
    %297 = vector.broadcast %296 : vector<8x1xf32> to vector<8x8xf32>
    %298 = arith.select %294, %297, %291 : vector<8x8xi1>, vector<8x8xf32>
    %299 = vector.extract_strided_slice %1 {offsets = [0, 47], sizes = [8, 1], strides = [1, 1]} : vector<8x384xi32> to vector<8x1xi32>
    %300 = vector.broadcast %299 : vector<8x1xi32> to vector<8x8xi32>
    %301 = arith.cmpi eq, %5, %300 : vector<8x8xi32>
    %302 = vector.extract_strided_slice %3 {offsets = [0, 47], sizes = [8, 1], strides = [1, 1]} : vector<8x384xf32> to vector<8x1xf32>
    %cst_14 = arith.constant 0.000000e+00 : f32
    %303 = vector.shape_cast %302 : vector<8x1xf32> to vector<8x1xf32>
    %304 = vector.broadcast %303 : vector<8x1xf32> to vector<8x8xf32>
    %305 = vector.broadcast %cst_14 : f32 to vector<8x8xf32>
    %306 = arith.select %301, %304, %305 : vector<8x8xi1>, vector<8x8xf32>
    %307 = vector.extract_strided_slice %1 {offsets = [0, 46], sizes = [8, 1], strides = [1, 1]} : vector<8x384xi32> to vector<8x1xi32>
    %308 = vector.broadcast %307 : vector<8x1xi32> to vector<8x8xi32>
    %309 = arith.cmpi eq, %5, %308 : vector<8x8xi32>
    %310 = vector.extract_strided_slice %3 {offsets = [0, 46], sizes = [8, 1], strides = [1, 1]} : vector<8x384xf32> to vector<8x1xf32>
    %311 = vector.shape_cast %310 : vector<8x1xf32> to vector<8x1xf32>
    %312 = vector.broadcast %311 : vector<8x1xf32> to vector<8x8xf32>
    %313 = arith.select %309, %312, %306 : vector<8x8xi1>, vector<8x8xf32>
    %314 = vector.extract_strided_slice %1 {offsets = [0, 45], sizes = [8, 1], strides = [1, 1]} : vector<8x384xi32> to vector<8x1xi32>
    %315 = vector.broadcast %314 : vector<8x1xi32> to vector<8x8xi32>
    %316 = arith.cmpi eq, %5, %315 : vector<8x8xi32>
    %317 = vector.extract_strided_slice %3 {offsets = [0, 45], sizes = [8, 1], strides = [1, 1]} : vector<8x384xf32> to vector<8x1xf32>
    %318 = vector.shape_cast %317 : vector<8x1xf32> to vector<8x1xf32>
    %319 = vector.broadcast %318 : vector<8x1xf32> to vector<8x8xf32>
    %320 = arith.select %316, %319, %313 : vector<8x8xi1>, vector<8x8xf32>
    %321 = vector.extract_strided_slice %1 {offsets = [0, 44], sizes = [8, 1], strides = [1, 1]} : vector<8x384xi32> to vector<8x1xi32>
    %322 = vector.broadcast %321 : vector<8x1xi32> to vector<8x8xi32>
    %323 = arith.cmpi eq, %5, %322 : vector<8x8xi32>
    %324 = vector.extract_strided_slice %3 {offsets = [0, 44], sizes = [8, 1], strides = [1, 1]} : vector<8x384xf32> to vector<8x1xf32>
    %325 = vector.shape_cast %324 : vector<8x1xf32> to vector<8x1xf32>
    %326 = vector.broadcast %325 : vector<8x1xf32> to vector<8x8xf32>
    %327 = arith.select %323, %326, %320 : vector<8x8xi1>, vector<8x8xf32>
    %328 = vector.extract_strided_slice %1 {offsets = [0, 43], sizes = [8, 1], strides = [1, 1]} : vector<8x384xi32> to vector<8x1xi32>
    %329 = vector.broadcast %328 : vector<8x1xi32> to vector<8x8xi32>
    %330 = arith.cmpi eq, %5, %329 : vector<8x8xi32>
    %331 = vector.extract_strided_slice %3 {offsets = [0, 43], sizes = [8, 1], strides = [1, 1]} : vector<8x384xf32> to vector<8x1xf32>
    %332 = vector.shape_cast %331 : vector<8x1xf32> to vector<8x1xf32>
    %333 = vector.broadcast %332 : vector<8x1xf32> to vector<8x8xf32>
    %334 = arith.select %330, %333, %327 : vector<8x8xi1>, vector<8x8xf32>
    %335 = vector.extract_strided_slice %1 {offsets = [0, 42], sizes = [8, 1], strides = [1, 1]} : vector<8x384xi32> to vector<8x1xi32>
    %336 = vector.broadcast %335 : vector<8x1xi32> to vector<8x8xi32>
    %337 = arith.cmpi eq, %5, %336 : vector<8x8xi32>
    %338 = vector.extract_strided_slice %3 {offsets = [0, 42], sizes = [8, 1], strides = [1, 1]} : vector<8x384xf32> to vector<8x1xf32>
    %339 = vector.shape_cast %338 : vector<8x1xf32> to vector<8x1xf32>
    %340 = vector.broadcast %339 : vector<8x1xf32> to vector<8x8xf32>
    %341 = arith.select %337, %340, %334 : vector<8x8xi1>, vector<8x8xf32>
    %342 = vector.extract_strided_slice %1 {offsets = [0, 41], sizes = [8, 1], strides = [1, 1]} : vector<8x384xi32> to vector<8x1xi32>
    %343 = vector.broadcast %342 : vector<8x1xi32> to vector<8x8xi32>
    %344 = arith.cmpi eq, %5, %343 : vector<8x8xi32>
    %345 = vector.extract_strided_slice %3 {offsets = [0, 41], sizes = [8, 1], strides = [1, 1]} : vector<8x384xf32> to vector<8x1xf32>
    %346 = vector.shape_cast %345 : vector<8x1xf32> to vector<8x1xf32>
    %347 = vector.broadcast %346 : vector<8x1xf32> to vector<8x8xf32>
    %348 = arith.select %344, %347, %341 : vector<8x8xi1>, vector<8x8xf32>
    %349 = vector.extract_strided_slice %1 {offsets = [0, 40], sizes = [8, 1], strides = [1, 1]} : vector<8x384xi32> to vector<8x1xi32>
    %350 = vector.broadcast %349 : vector<8x1xi32> to vector<8x8xi32>
    %351 = arith.cmpi eq, %5, %350 : vector<8x8xi32>
    %352 = vector.extract_strided_slice %3 {offsets = [0, 40], sizes = [8, 1], strides = [1, 1]} : vector<8x384xf32> to vector<8x1xf32>
    %353 = vector.shape_cast %352 : vector<8x1xf32> to vector<8x1xf32>
    %354 = vector.broadcast %353 : vector<8x1xf32> to vector<8x8xf32>
    %355 = arith.select %351, %354, %348 : vector<8x8xi1>, vector<8x8xf32>
    %356 = arith.addf %298, %355 : vector<8x8xf32>
    %357 = vector.extract_strided_slice %1 {offsets = [0, 55], sizes = [8, 1], strides = [1, 1]} : vector<8x384xi32> to vector<8x1xi32>
    %358 = vector.broadcast %357 : vector<8x1xi32> to vector<8x8xi32>
    %359 = arith.cmpi eq, %5, %358 : vector<8x8xi32>
    %360 = vector.extract_strided_slice %3 {offsets = [0, 55], sizes = [8, 1], strides = [1, 1]} : vector<8x384xf32> to vector<8x1xf32>
    %cst_15 = arith.constant 0.000000e+00 : f32
    %361 = vector.shape_cast %360 : vector<8x1xf32> to vector<8x1xf32>
    %362 = vector.broadcast %361 : vector<8x1xf32> to vector<8x8xf32>
    %363 = vector.broadcast %cst_15 : f32 to vector<8x8xf32>
    %364 = arith.select %359, %362, %363 : vector<8x8xi1>, vector<8x8xf32>
    %365 = vector.extract_strided_slice %1 {offsets = [0, 54], sizes = [8, 1], strides = [1, 1]} : vector<8x384xi32> to vector<8x1xi32>
    %366 = vector.broadcast %365 : vector<8x1xi32> to vector<8x8xi32>
    %367 = arith.cmpi eq, %5, %366 : vector<8x8xi32>
    %368 = vector.extract_strided_slice %3 {offsets = [0, 54], sizes = [8, 1], strides = [1, 1]} : vector<8x384xf32> to vector<8x1xf32>
    %369 = vector.shape_cast %368 : vector<8x1xf32> to vector<8x1xf32>
    %370 = vector.broadcast %369 : vector<8x1xf32> to vector<8x8xf32>
    %371 = arith.select %367, %370, %364 : vector<8x8xi1>, vector<8x8xf32>
    %372 = vector.extract_strided_slice %1 {offsets = [0, 53], sizes = [8, 1], strides = [1, 1]} : vector<8x384xi32> to vector<8x1xi32>
    %373 = vector.broadcast %372 : vector<8x1xi32> to vector<8x8xi32>
    %374 = arith.cmpi eq, %5, %373 : vector<8x8xi32>
    %375 = vector.extract_strided_slice %3 {offsets = [0, 53], sizes = [8, 1], strides = [1, 1]} : vector<8x384xf32> to vector<8x1xf32>
    %376 = vector.shape_cast %375 : vector<8x1xf32> to vector<8x1xf32>
    %377 = vector.broadcast %376 : vector<8x1xf32> to vector<8x8xf32>
    %378 = arith.select %374, %377, %371 : vector<8x8xi1>, vector<8x8xf32>
    %379 = vector.extract_strided_slice %1 {offsets = [0, 52], sizes = [8, 1], strides = [1, 1]} : vector<8x384xi32> to vector<8x1xi32>
    %380 = vector.broadcast %379 : vector<8x1xi32> to vector<8x8xi32>
    %381 = arith.cmpi eq, %5, %380 : vector<8x8xi32>
    %382 = vector.extract_strided_slice %3 {offsets = [0, 52], sizes = [8, 1], strides = [1, 1]} : vector<8x384xf32> to vector<8x1xf32>
    %383 = vector.shape_cast %382 : vector<8x1xf32> to vector<8x1xf32>
    %384 = vector.broadcast %383 : vector<8x1xf32> to vector<8x8xf32>
    %385 = arith.select %381, %384, %378 : vector<8x8xi1>, vector<8x8xf32>
    %386 = vector.extract_strided_slice %1 {offsets = [0, 51], sizes = [8, 1], strides = [1, 1]} : vector<8x384xi32> to vector<8x1xi32>
    %387 = vector.broadcast %386 : vector<8x1xi32> to vector<8x8xi32>
    %388 = arith.cmpi eq, %5, %387 : vector<8x8xi32>
    %389 = vector.extract_strided_slice %3 {offsets = [0, 51], sizes = [8, 1], strides = [1, 1]} : vector<8x384xf32> to vector<8x1xf32>
    %390 = vector.shape_cast %389 : vector<8x1xf32> to vector<8x1xf32>
    %391 = vector.broadcast %390 : vector<8x1xf32> to vector<8x8xf32>
    %392 = arith.select %388, %391, %385 : vector<8x8xi1>, vector<8x8xf32>
    %393 = vector.extract_strided_slice %1 {offsets = [0, 50], sizes = [8, 1], strides = [1, 1]} : vector<8x384xi32> to vector<8x1xi32>
    %394 = vector.broadcast %393 : vector<8x1xi32> to vector<8x8xi32>
    %395 = arith.cmpi eq, %5, %394 : vector<8x8xi32>
    %396 = vector.extract_strided_slice %3 {offsets = [0, 50], sizes = [8, 1], strides = [1, 1]} : vector<8x384xf32> to vector<8x1xf32>
    %397 = vector.shape_cast %396 : vector<8x1xf32> to vector<8x1xf32>
    %398 = vector.broadcast %397 : vector<8x1xf32> to vector<8x8xf32>
    %399 = arith.select %395, %398, %392 : vector<8x8xi1>, vector<8x8xf32>
    %400 = vector.extract_strided_slice %1 {offsets = [0, 49], sizes = [8, 1], strides = [1, 1]} : vector<8x384xi32> to vector<8x1xi32>
    %401 = vector.broadcast %400 : vector<8x1xi32> to vector<8x8xi32>
    %402 = arith.cmpi eq, %5, %401 : vector<8x8xi32>
    %403 = vector.extract_strided_slice %3 {offsets = [0, 49], sizes = [8, 1], strides = [1, 1]} : vector<8x384xf32> to vector<8x1xf32>
    %404 = vector.shape_cast %403 : vector<8x1xf32> to vector<8x1xf32>
    %405 = vector.broadcast %404 : vector<8x1xf32> to vector<8x8xf32>
    %406 = arith.select %402, %405, %399 : vector<8x8xi1>, vector<8x8xf32>
    %407 = vector.extract_strided_slice %1 {offsets = [0, 48], sizes = [8, 1], strides = [1, 1]} : vector<8x384xi32> to vector<8x1xi32>
    %408 = vector.broadcast %407 : vector<8x1xi32> to vector<8x8xi32>
    %409 = arith.cmpi eq, %5, %408 : vector<8x8xi32>
    %410 = vector.extract_strided_slice %3 {offsets = [0, 48], sizes = [8, 1], strides = [1, 1]} : vector<8x384xf32> to vector<8x1xf32>
    %411 = vector.shape_cast %410 : vector<8x1xf32> to vector<8x1xf32>
    %412 = vector.broadcast %411 : vector<8x1xf32> to vector<8x8xf32>
    %413 = arith.select %409, %412, %406 : vector<8x8xi1>, vector<8x8xf32>
    %414 = arith.addf %356, %413 : vector<8x8xf32>
    %415 = vector.extract_strided_slice %1 {offsets = [0, 63], sizes = [8, 1], strides = [1, 1]} : vector<8x384xi32> to vector<8x1xi32>
    %416 = vector.broadcast %415 : vector<8x1xi32> to vector<8x8xi32>
    %417 = arith.cmpi eq, %5, %416 : vector<8x8xi32>
    %418 = vector.extract_strided_slice %3 {offsets = [0, 63], sizes = [8, 1], strides = [1, 1]} : vector<8x384xf32> to vector<8x1xf32>
    %cst_16 = arith.constant 0.000000e+00 : f32
    %419 = vector.shape_cast %418 : vector<8x1xf32> to vector<8x1xf32>
    %420 = vector.broadcast %419 : vector<8x1xf32> to vector<8x8xf32>
    %421 = vector.broadcast %cst_16 : f32 to vector<8x8xf32>
    %422 = arith.select %417, %420, %421 : vector<8x8xi1>, vector<8x8xf32>
    %423 = vector.extract_strided_slice %1 {offsets = [0, 62], sizes = [8, 1], strides = [1, 1]} : vector<8x384xi32> to vector<8x1xi32>
    %424 = vector.broadcast %423 : vector<8x1xi32> to vector<8x8xi32>
    %425 = arith.cmpi eq, %5, %424 : vector<8x8xi32>
    %426 = vector.extract_strided_slice %3 {offsets = [0, 62], sizes = [8, 1], strides = [1, 1]} : vector<8x384xf32> to vector<8x1xf32>
    %427 = vector.shape_cast %426 : vector<8x1xf32> to vector<8x1xf32>
    %428 = vector.broadcast %427 : vector<8x1xf32> to vector<8x8xf32>
    %429 = arith.select %425, %428, %422 : vector<8x8xi1>, vector<8x8xf32>
    %430 = vector.extract_strided_slice %1 {offsets = [0, 61], sizes = [8, 1], strides = [1, 1]} : vector<8x384xi32> to vector<8x1xi32>
    %431 = vector.broadcast %430 : vector<8x1xi32> to vector<8x8xi32>
    %432 = arith.cmpi eq, %5, %431 : vector<8x8xi32>
    %433 = vector.extract_strided_slice %3 {offsets = [0, 61], sizes = [8, 1], strides = [1, 1]} : vector<8x384xf32> to vector<8x1xf32>
    %434 = vector.shape_cast %433 : vector<8x1xf32> to vector<8x1xf32>
    %435 = vector.broadcast %434 : vector<8x1xf32> to vector<8x8xf32>
    %436 = arith.select %432, %435, %429 : vector<8x8xi1>, vector<8x8xf32>
    %437 = vector.extract_strided_slice %1 {offsets = [0, 60], sizes = [8, 1], strides = [1, 1]} : vector<8x384xi32> to vector<8x1xi32>
    %438 = vector.broadcast %437 : vector<8x1xi32> to vector<8x8xi32>
    %439 = arith.cmpi eq, %5, %438 : vector<8x8xi32>
    %440 = vector.extract_strided_slice %3 {offsets = [0, 60], sizes = [8, 1], strides = [1, 1]} : vector<8x384xf32> to vector<8x1xf32>
    %441 = vector.shape_cast %440 : vector<8x1xf32> to vector<8x1xf32>
    %442 = vector.broadcast %441 : vector<8x1xf32> to vector<8x8xf32>
    %443 = arith.select %439, %442, %436 : vector<8x8xi1>, vector<8x8xf32>
    %444 = vector.extract_strided_slice %1 {offsets = [0, 59], sizes = [8, 1], strides = [1, 1]} : vector<8x384xi32> to vector<8x1xi32>
    %445 = vector.broadcast %444 : vector<8x1xi32> to vector<8x8xi32>
    %446 = arith.cmpi eq, %5, %445 : vector<8x8xi32>
    %447 = vector.extract_strided_slice %3 {offsets = [0, 59], sizes = [8, 1], strides = [1, 1]} : vector<8x384xf32> to vector<8x1xf32>
    %448 = vector.shape_cast %447 : vector<8x1xf32> to vector<8x1xf32>
    %449 = vector.broadcast %448 : vector<8x1xf32> to vector<8x8xf32>
    %450 = arith.select %446, %449, %443 : vector<8x8xi1>, vector<8x8xf32>
    %451 = vector.extract_strided_slice %1 {offsets = [0, 58], sizes = [8, 1], strides = [1, 1]} : vector<8x384xi32> to vector<8x1xi32>
    %452 = vector.broadcast %451 : vector<8x1xi32> to vector<8x8xi32>
    %453 = arith.cmpi eq, %5, %452 : vector<8x8xi32>
    %454 = vector.extract_strided_slice %3 {offsets = [0, 58], sizes = [8, 1], strides = [1, 1]} : vector<8x384xf32> to vector<8x1xf32>
    %455 = vector.shape_cast %454 : vector<8x1xf32> to vector<8x1xf32>
    %456 = vector.broadcast %455 : vector<8x1xf32> to vector<8x8xf32>
    %457 = arith.select %453, %456, %450 : vector<8x8xi1>, vector<8x8xf32>
    %458 = vector.extract_strided_slice %1 {offsets = [0, 57], sizes = [8, 1], strides = [1, 1]} : vector<8x384xi32> to vector<8x1xi32>
    %459 = vector.broadcast %458 : vector<8x1xi32> to vector<8x8xi32>
    %460 = arith.cmpi eq, %5, %459 : vector<8x8xi32>
    %461 = vector.extract_strided_slice %3 {offsets = [0, 57], sizes = [8, 1], strides = [1, 1]} : vector<8x384xf32> to vector<8x1xf32>
    %462 = vector.shape_cast %461 : vector<8x1xf32> to vector<8x1xf32>
    %463 = vector.broadcast %462 : vector<8x1xf32> to vector<8x8xf32>
    %464 = arith.select %460, %463, %457 : vector<8x8xi1>, vector<8x8xf32>
    %465 = vector.extract_strided_slice %1 {offsets = [0, 56], sizes = [8, 1], strides = [1, 1]} : vector<8x384xi32> to vector<8x1xi32>
    %466 = vector.broadcast %465 : vector<8x1xi32> to vector<8x8xi32>
    %467 = arith.cmpi eq, %5, %466 : vector<8x8xi32>
    %468 = vector.extract_strided_slice %3 {offsets = [0, 56], sizes = [8, 1], strides = [1, 1]} : vector<8x384xf32> to vector<8x1xf32>
    %469 = vector.shape_cast %468 : vector<8x1xf32> to vector<8x1xf32>
    %470 = vector.broadcast %469 : vector<8x1xf32> to vector<8x8xf32>
    %471 = arith.select %467, %470, %464 : vector<8x8xi1>, vector<8x8xf32>
    %472 = arith.addf %414, %471 : vector<8x8xf32>
    %c0_17 = arith.constant 0 : index
    %c64 = arith.constant 64 : index
    %c0_18 = arith.constant 0 : index
    %473 = vector.load %arg4[%c0_17, %c64, %c0_18] : memref<1x72x48xf32, #tpu.memory_space<vmem>>, vector<1x8x8xf32>
    %474 = vector.shape_cast %473 : vector<1x8x8xf32> to vector<8x8xf32>
    %cst_19 = arith.constant dense<0.000000e+00> : vector<8x8xf32>
    %475 = tpu.matmul %472, %474, %cst_19 {dimension_numbers = #tpu.dot_dimension_numbers<[1], [0], [0], [1], [0, 0, 1, 1], [], []>} : vector<8x8xf32>, vector<8x8xf32>, vector<8x8xf32> -> vector<8x8xf32>
    %476 = arith.addf %241, %475 : vector<8x8xf32>
    %cst_20 = arith.constant 0.000000e+00 : f32
    %477 = vector.broadcast %cst_20 : f32 to vector<8x8xf32>
    %478 = vector.extract_strided_slice %1 {offsets = [0, 71], sizes = [8, 1], strides = [1, 1]} : vector<8x384xi32> to vector<8x1xi32>
    %479 = vector.broadcast %478 : vector<8x1xi32> to vector<8x64xi32>
    %480 = arith.cmpi eq, %4, %479 : vector<8x64xi32>
    %481 = vector.extract_strided_slice %3 {offsets = [0, 71], sizes = [8, 1], strides = [1, 1]} : vector<8x384xf32> to vector<8x1xf32>
    %cst_21 = arith.constant 0.000000e+00 : f32
    %482 = vector.shape_cast %481 : vector<8x1xf32> to vector<8x1xf32>
    %483 = vector.broadcast %482 : vector<8x1xf32> to vector<8x64xf32>
    %484 = vector.broadcast %cst_21 : f32 to vector<8x64xf32>
    %485 = arith.select %480, %483, %484 : vector<8x64xi1>, vector<8x64xf32>
    %486 = vector.extract_strided_slice %1 {offsets = [0, 70], sizes = [8, 1], strides = [1, 1]} : vector<8x384xi32> to vector<8x1xi32>
    %487 = vector.broadcast %486 : vector<8x1xi32> to vector<8x64xi32>
    %488 = arith.cmpi eq, %4, %487 : vector<8x64xi32>
    %489 = vector.extract_strided_slice %3 {offsets = [0, 70], sizes = [8, 1], strides = [1, 1]} : vector<8x384xf32> to vector<8x1xf32>
    %490 = vector.shape_cast %489 : vector<8x1xf32> to vector<8x1xf32>
    %491 = vector.broadcast %490 : vector<8x1xf32> to vector<8x64xf32>
    %492 = arith.select %488, %491, %485 : vector<8x64xi1>, vector<8x64xf32>
    %493 = vector.extract_strided_slice %1 {offsets = [0, 69], sizes = [8, 1], strides = [1, 1]} : vector<8x384xi32> to vector<8x1xi32>
    %494 = vector.broadcast %493 : vector<8x1xi32> to vector<8x64xi32>
    %495 = arith.cmpi eq, %4, %494 : vector<8x64xi32>
    %496 = vector.extract_strided_slice %3 {offsets = [0, 69], sizes = [8, 1], strides = [1, 1]} : vector<8x384xf32> to vector<8x1xf32>
    %497 = vector.shape_cast %496 : vector<8x1xf32> to vector<8x1xf32>
    %498 = vector.broadcast %497 : vector<8x1xf32> to vector<8x64xf32>
    %499 = arith.select %495, %498, %492 : vector<8x64xi1>, vector<8x64xf32>
    %500 = vector.extract_strided_slice %1 {offsets = [0, 68], sizes = [8, 1], strides = [1, 1]} : vector<8x384xi32> to vector<8x1xi32>
    %501 = vector.broadcast %500 : vector<8x1xi32> to vector<8x64xi32>
    %502 = arith.cmpi eq, %4, %501 : vector<8x64xi32>
    %503 = vector.extract_strided_slice %3 {offsets = [0, 68], sizes = [8, 1], strides = [1, 1]} : vector<8x384xf32> to vector<8x1xf32>
    %504 = vector.shape_cast %503 : vector<8x1xf32> to vector<8x1xf32>
    %505 = vector.broadcast %504 : vector<8x1xf32> to vector<8x64xf32>
    %506 = arith.select %502, %505, %499 : vector<8x64xi1>, vector<8x64xf32>
    %507 = vector.extract_strided_slice %1 {offsets = [0, 67], sizes = [8, 1], strides = [1, 1]} : vector<8x384xi32> to vector<8x1xi32>
    %508 = vector.broadcast %507 : vector<8x1xi32> to vector<8x64xi32>
    %509 = arith.cmpi eq, %4, %508 : vector<8x64xi32>
    %510 = vector.extract_strided_slice %3 {offsets = [0, 67], sizes = [8, 1], strides = [1, 1]} : vector<8x384xf32> to vector<8x1xf32>
    %511 = vector.shape_cast %510 : vector<8x1xf32> to vector<8x1xf32>
    %512 = vector.broadcast %511 : vector<8x1xf32> to vector<8x64xf32>
    %513 = arith.select %509, %512, %506 : vector<8x64xi1>, vector<8x64xf32>
    %514 = vector.extract_strided_slice %1 {offsets = [0, 66], sizes = [8, 1], strides = [1, 1]} : vector<8x384xi32> to vector<8x1xi32>
    %515 = vector.broadcast %514 : vector<8x1xi32> to vector<8x64xi32>
    %516 = arith.cmpi eq, %4, %515 : vector<8x64xi32>
    %517 = vector.extract_strided_slice %3 {offsets = [0, 66], sizes = [8, 1], strides = [1, 1]} : vector<8x384xf32> to vector<8x1xf32>
    %518 = vector.shape_cast %517 : vector<8x1xf32> to vector<8x1xf32>
    %519 = vector.broadcast %518 : vector<8x1xf32> to vector<8x64xf32>
    %520 = arith.select %516, %519, %513 : vector<8x64xi1>, vector<8x64xf32>
    %521 = vector.extract_strided_slice %1 {offsets = [0, 65], sizes = [8, 1], strides = [1, 1]} : vector<8x384xi32> to vector<8x1xi32>
    %522 = vector.broadcast %521 : vector<8x1xi32> to vector<8x64xi32>
    %523 = arith.cmpi eq, %4, %522 : vector<8x64xi32>
    %524 = vector.extract_strided_slice %3 {offsets = [0, 65], sizes = [8, 1], strides = [1, 1]} : vector<8x384xf32> to vector<8x1xf32>
    %525 = vector.shape_cast %524 : vector<8x1xf32> to vector<8x1xf32>
    %526 = vector.broadcast %525 : vector<8x1xf32> to vector<8x64xf32>
    %527 = arith.select %523, %526, %520 : vector<8x64xi1>, vector<8x64xf32>
    %528 = vector.extract_strided_slice %1 {offsets = [0, 64], sizes = [8, 1], strides = [1, 1]} : vector<8x384xi32> to vector<8x1xi32>
    %529 = vector.broadcast %528 : vector<8x1xi32> to vector<8x64xi32>
    %530 = arith.cmpi eq, %4, %529 : vector<8x64xi32>
    %531 = vector.extract_strided_slice %3 {offsets = [0, 64], sizes = [8, 1], strides = [1, 1]} : vector<8x384xf32> to vector<8x1xf32>
    %532 = vector.shape_cast %531 : vector<8x1xf32> to vector<8x1xf32>
    %533 = vector.broadcast %532 : vector<8x1xf32> to vector<8x64xf32>
    %534 = arith.select %530, %533, %527 : vector<8x64xi1>, vector<8x64xf32>
    %535 = vector.extract_strided_slice %1 {offsets = [0, 79], sizes = [8, 1], strides = [1, 1]} : vector<8x384xi32> to vector<8x1xi32>
    %536 = vector.broadcast %535 : vector<8x1xi32> to vector<8x64xi32>
    %537 = arith.cmpi eq, %4, %536 : vector<8x64xi32>
    %538 = vector.extract_strided_slice %3 {offsets = [0, 79], sizes = [8, 1], strides = [1, 1]} : vector<8x384xf32> to vector<8x1xf32>
    %cst_22 = arith.constant 0.000000e+00 : f32
    %539 = vector.shape_cast %538 : vector<8x1xf32> to vector<8x1xf32>
    %540 = vector.broadcast %539 : vector<8x1xf32> to vector<8x64xf32>
    %541 = vector.broadcast %cst_22 : f32 to vector<8x64xf32>
    %542 = arith.select %537, %540, %541 : vector<8x64xi1>, vector<8x64xf32>
    %543 = vector.extract_strided_slice %1 {offsets = [0, 78], sizes = [8, 1], strides = [1, 1]} : vector<8x384xi32> to vector<8x1xi32>
    %544 = vector.broadcast %543 : vector<8x1xi32> to vector<8x64xi32>
    %545 = arith.cmpi eq, %4, %544 : vector<8x64xi32>
    %546 = vector.extract_strided_slice %3 {offsets = [0, 78], sizes = [8, 1], strides = [1, 1]} : vector<8x384xf32> to vector<8x1xf32>
    %547 = vector.shape_cast %546 : vector<8x1xf32> to vector<8x1xf32>
    %548 = vector.broadcast %547 : vector<8x1xf32> to vector<8x64xf32>
    %549 = arith.select %545, %548, %542 : vector<8x64xi1>, vector<8x64xf32>
    %550 = vector.extract_strided_slice %1 {offsets = [0, 77], sizes = [8, 1], strides = [1, 1]} : vector<8x384xi32> to vector<8x1xi32>
    %551 = vector.broadcast %550 : vector<8x1xi32> to vector<8x64xi32>
    %552 = arith.cmpi eq, %4, %551 : vector<8x64xi32>
    %553 = vector.extract_strided_slice %3 {offsets = [0, 77], sizes = [8, 1], strides = [1, 1]} : vector<8x384xf32> to vector<8x1xf32>
    %554 = vector.shape_cast %553 : vector<8x1xf32> to vector<8x1xf32>
    %555 = vector.broadcast %554 : vector<8x1xf32> to vector<8x64xf32>
    %556 = arith.select %552, %555, %549 : vector<8x64xi1>, vector<8x64xf32>
    %557 = vector.extract_strided_slice %1 {offsets = [0, 76], sizes = [8, 1], strides = [1, 1]} : vector<8x384xi32> to vector<8x1xi32>
    %558 = vector.broadcast %557 : vector<8x1xi32> to vector<8x64xi32>
    %559 = arith.cmpi eq, %4, %558 : vector<8x64xi32>
    %560 = vector.extract_strided_slice %3 {offsets = [0, 76], sizes = [8, 1], strides = [1, 1]} : vector<8x384xf32> to vector<8x1xf32>
    %561 = vector.shape_cast %560 : vector<8x1xf32> to vector<8x1xf32>
    %562 = vector.broadcast %561 : vector<8x1xf32> to vector<8x64xf32>
    %563 = arith.select %559, %562, %556 : vector<8x64xi1>, vector<8x64xf32>
    %564 = vector.extract_strided_slice %1 {offsets = [0, 75], sizes = [8, 1], strides = [1, 1]} : vector<8x384xi32> to vector<8x1xi32>
    %565 = vector.broadcast %564 : vector<8x1xi32> to vector<8x64xi32>
    %566 = arith.cmpi eq, %4, %565 : vector<8x64xi32>
    %567 = vector.extract_strided_slice %3 {offsets = [0, 75], sizes = [8, 1], strides = [1, 1]} : vector<8x384xf32> to vector<8x1xf32>
    %568 = vector.shape_cast %567 : vector<8x1xf32> to vector<8x1xf32>
    %569 = vector.broadcast %568 : vector<8x1xf32> to vector<8x64xf32>
    %570 = arith.select %566, %569, %563 : vector<8x64xi1>, vector<8x64xf32>
    %571 = vector.extract_strided_slice %1 {offsets = [0, 74], sizes = [8, 1], strides = [1, 1]} : vector<8x384xi32> to vector<8x1xi32>
    %572 = vector.broadcast %571 : vector<8x1xi32> to vector<8x64xi32>
    %573 = arith.cmpi eq, %4, %572 : vector<8x64xi32>
    %574 = vector.extract_strided_slice %3 {offsets = [0, 74], sizes = [8, 1], strides = [1, 1]} : vector<8x384xf32> to vector<8x1xf32>
    %575 = vector.shape_cast %574 : vector<8x1xf32> to vector<8x1xf32>
    %576 = vector.broadcast %575 : vector<8x1xf32> to vector<8x64xf32>
    %577 = arith.select %573, %576, %570 : vector<8x64xi1>, vector<8x64xf32>
    %578 = vector.extract_strided_slice %1 {offsets = [0, 73], sizes = [8, 1], strides = [1, 1]} : vector<8x384xi32> to vector<8x1xi32>
    %579 = vector.broadcast %578 : vector<8x1xi32> to vector<8x64xi32>
    %580 = arith.cmpi eq, %4, %579 : vector<8x64xi32>
    %581 = vector.extract_strided_slice %3 {offsets = [0, 73], sizes = [8, 1], strides = [1, 1]} : vector<8x384xf32> to vector<8x1xf32>
    %582 = vector.shape_cast %581 : vector<8x1xf32> to vector<8x1xf32>
    %583 = vector.broadcast %582 : vector<8x1xf32> to vector<8x64xf32>
    %584 = arith.select %580, %583, %577 : vector<8x64xi1>, vector<8x64xf32>
    %585 = vector.extract_strided_slice %1 {offsets = [0, 72], sizes = [8, 1], strides = [1, 1]} : vector<8x384xi32> to vector<8x1xi32>
    %586 = vector.broadcast %585 : vector<8x1xi32> to vector<8x64xi32>
    %587 = arith.cmpi eq, %4, %586 : vector<8x64xi32>
    %588 = vector.extract_strided_slice %3 {offsets = [0, 72], sizes = [8, 1], strides = [1, 1]} : vector<8x384xf32> to vector<8x1xf32>
    %589 = vector.shape_cast %588 : vector<8x1xf32> to vector<8x1xf32>
    %590 = vector.broadcast %589 : vector<8x1xf32> to vector<8x64xf32>
    %591 = arith.select %587, %590, %584 : vector<8x64xi1>, vector<8x64xf32>
    %592 = arith.addf %534, %591 : vector<8x64xf32>
    %593 = vector.extract_strided_slice %1 {offsets = [0, 87], sizes = [8, 1], strides = [1, 1]} : vector<8x384xi32> to vector<8x1xi32>
    %594 = vector.broadcast %593 : vector<8x1xi32> to vector<8x64xi32>
    %595 = arith.cmpi eq, %4, %594 : vector<8x64xi32>
    %596 = vector.extract_strided_slice %3 {offsets = [0, 87], sizes = [8, 1], strides = [1, 1]} : vector<8x384xf32> to vector<8x1xf32>
    %cst_23 = arith.constant 0.000000e+00 : f32
    %597 = vector.shape_cast %596 : vector<8x1xf32> to vector<8x1xf32>
    %598 = vector.broadcast %597 : vector<8x1xf32> to vector<8x64xf32>
    %599 = vector.broadcast %cst_23 : f32 to vector<8x64xf32>
    %600 = arith.select %595, %598, %599 : vector<8x64xi1>, vector<8x64xf32>
    %601 = vector.extract_strided_slice %1 {offsets = [0, 86], sizes = [8, 1], strides = [1, 1]} : vector<8x384xi32> to vector<8x1xi32>
    %602 = vector.broadcast %601 : vector<8x1xi32> to vector<8x64xi32>
    %603 = arith.cmpi eq, %4, %602 : vector<8x64xi32>
    %604 = vector.extract_strided_slice %3 {offsets = [0, 86], sizes = [8, 1], strides = [1, 1]} : vector<8x384xf32> to vector<8x1xf32>
    %605 = vector.shape_cast %604 : vector<8x1xf32> to vector<8x1xf32>
    %606 = vector.broadcast %605 : vector<8x1xf32> to vector<8x64xf32>
    %607 = arith.select %603, %606, %600 : vector<8x64xi1>, vector<8x64xf32>
    %608 = vector.extract_strided_slice %1 {offsets = [0, 85], sizes = [8, 1], strides = [1, 1]} : vector<8x384xi32> to vector<8x1xi32>
    %609 = vector.broadcast %608 : vector<8x1xi32> to vector<8x64xi32>
    %610 = arith.cmpi eq, %4, %609 : vector<8x64xi32>
    %611 = vector.extract_strided_slice %3 {offsets = [0, 85], sizes = [8, 1], strides = [1, 1]} : vector<8x384xf32> to vector<8x1xf32>
    %612 = vector.shape_cast %611 : vector<8x1xf32> to vector<8x1xf32>
    %613 = vector.broadcast %612 : vector<8x1xf32> to vector<8x64xf32>
    %614 = arith.select %610, %613, %607 : vector<8x64xi1>, vector<8x64xf32>
    %615 = vector.extract_strided_slice %1 {offsets = [0, 84], sizes = [8, 1], strides = [1, 1]} : vector<8x384xi32> to vector<8x1xi32>
    %616 = vector.broadcast %615 : vector<8x1xi32> to vector<8x64xi32>
    %617 = arith.cmpi eq, %4, %616 : vector<8x64xi32>
    %618 = vector.extract_strided_slice %3 {offsets = [0, 84], sizes = [8, 1], strides = [1, 1]} : vector<8x384xf32> to vector<8x1xf32>
    %619 = vector.shape_cast %618 : vector<8x1xf32> to vector<8x1xf32>
    %620 = vector.broadcast %619 : vector<8x1xf32> to vector<8x64xf32>
    %621 = arith.select %617, %620, %614 : vector<8x64xi1>, vector<8x64xf32>
    %622 = vector.extract_strided_slice %1 {offsets = [0, 83], sizes = [8, 1], strides = [1, 1]} : vector<8x384xi32> to vector<8x1xi32>
    %623 = vector.broadcast %622 : vector<8x1xi32> to vector<8x64xi32>
    %624 = arith.cmpi eq, %4, %623 : vector<8x64xi32>
    %625 = vector.extract_strided_slice %3 {offsets = [0, 83], sizes = [8, 1], strides = [1, 1]} : vector<8x384xf32> to vector<8x1xf32>
    %626 = vector.shape_cast %625 : vector<8x1xf32> to vector<8x1xf32>
    %627 = vector.broadcast %626 : vector<8x1xf32> to vector<8x64xf32>
    %628 = arith.select %624, %627, %621 : vector<8x64xi1>, vector<8x64xf32>
    %629 = vector.extract_strided_slice %1 {offsets = [0, 82], sizes = [8, 1], strides = [1, 1]} : vector<8x384xi32> to vector<8x1xi32>
    %630 = vector.broadcast %629 : vector<8x1xi32> to vector<8x64xi32>
    %631 = arith.cmpi eq, %4, %630 : vector<8x64xi32>
    %632 = vector.extract_strided_slice %3 {offsets = [0, 82], sizes = [8, 1], strides = [1, 1]} : vector<8x384xf32> to vector<8x1xf32>
    %633 = vector.shape_cast %632 : vector<8x1xf32> to vector<8x1xf32>
    %634 = vector.broadcast %633 : vector<8x1xf32> to vector<8x64xf32>
    %635 = arith.select %631, %634, %628 : vector<8x64xi1>, vector<8x64xf32>
    %636 = vector.extract_strided_slice %1 {offsets = [0, 81], sizes = [8, 1], strides = [1, 1]} : vector<8x384xi32> to vector<8x1xi32>
    %637 = vector.broadcast %636 : vector<8x1xi32> to vector<8x64xi32>
    %638 = arith.cmpi eq, %4, %637 : vector<8x64xi32>
    %639 = vector.extract_strided_slice %3 {offsets = [0, 81], sizes = [8, 1], strides = [1, 1]} : vector<8x384xf32> to vector<8x1xf32>
    %640 = vector.shape_cast %639 : vector<8x1xf32> to vector<8x1xf32>
    %641 = vector.broadcast %640 : vector<8x1xf32> to vector<8x64xf32>
    %642 = arith.select %638, %641, %635 : vector<8x64xi1>, vector<8x64xf32>
    %643 = vector.extract_strided_slice %1 {offsets = [0, 80], sizes = [8, 1], strides = [1, 1]} : vector<8x384xi32> to vector<8x1xi32>
    %644 = vector.broadcast %643 : vector<8x1xi32> to vector<8x64xi32>
    %645 = arith.cmpi eq, %4, %644 : vector<8x64xi32>
    %646 = vector.extract_strided_slice %3 {offsets = [0, 80], sizes = [8, 1], strides = [1, 1]} : vector<8x384xf32> to vector<8x1xf32>
    %647 = vector.shape_cast %646 : vector<8x1xf32> to vector<8x1xf32>
    %648 = vector.broadcast %647 : vector<8x1xf32> to vector<8x64xf32>
    %649 = arith.select %645, %648, %642 : vector<8x64xi1>, vector<8x64xf32>
    %650 = arith.addf %592, %649 : vector<8x64xf32>
    %651 = vector.extract_strided_slice %1 {offsets = [0, 95], sizes = [8, 1], strides = [1, 1]} : vector<8x384xi32> to vector<8x1xi32>
    %652 = vector.broadcast %651 : vector<8x1xi32> to vector<8x64xi32>
    %653 = arith.cmpi eq, %4, %652 : vector<8x64xi32>
    %654 = vector.extract_strided_slice %3 {offsets = [0, 95], sizes = [8, 1], strides = [1, 1]} : vector<8x384xf32> to vector<8x1xf32>
    %cst_24 = arith.constant 0.000000e+00 : f32
    %655 = vector.shape_cast %654 : vector<8x1xf32> to vector<8x1xf32>
    %656 = vector.broadcast %655 : vector<8x1xf32> to vector<8x64xf32>
    %657 = vector.broadcast %cst_24 : f32 to vector<8x64xf32>
    %658 = arith.select %653, %656, %657 : vector<8x64xi1>, vector<8x64xf32>
    %659 = vector.extract_strided_slice %1 {offsets = [0, 94], sizes = [8, 1], strides = [1, 1]} : vector<8x384xi32> to vector<8x1xi32>
    %660 = vector.broadcast %659 : vector<8x1xi32> to vector<8x64xi32>
    %661 = arith.cmpi eq, %4, %660 : vector<8x64xi32>
    %662 = vector.extract_strided_slice %3 {offsets = [0, 94], sizes = [8, 1], strides = [1, 1]} : vector<8x384xf32> to vector<8x1xf32>
    %663 = vector.shape_cast %662 : vector<8x1xf32> to vector<8x1xf32>
    %664 = vector.broadcast %663 : vector<8x1xf32> to vector<8x64xf32>
    %665 = arith.select %661, %664, %658 : vector<8x64xi1>, vector<8x64xf32>
    %666 = vector.extract_strided_slice %1 {offsets = [0, 93], sizes = [8, 1], strides = [1, 1]} : vector<8x384xi32> to vector<8x1xi32>
    %667 = vector.broadcast %666 : vector<8x1xi32> to vector<8x64xi32>
    %668 = arith.cmpi eq, %4, %667 : vector<8x64xi32>
    %669 = vector.extract_strided_slice %3 {offsets = [0, 93], sizes = [8, 1], strides = [1, 1]} : vector<8x384xf32> to vector<8x1xf32>
    %670 = vector.shape_cast %669 : vector<8x1xf32> to vector<8x1xf32>
    %671 = vector.broadcast %670 : vector<8x1xf32> to vector<8x64xf32>
    %672 = arith.select %668, %671, %665 : vector<8x64xi1>, vector<8x64xf32>
    %673 = vector.extract_strided_slice %1 {offsets = [0, 92], sizes = [8, 1], strides = [1, 1]} : vector<8x384xi32> to vector<8x1xi32>
    %674 = vector.broadcast %673 : vector<8x1xi32> to vector<8x64xi32>
    %675 = arith.cmpi eq, %4, %674 : vector<8x64xi32>
    %676 = vector.extract_strided_slice %3 {offsets = [0, 92], sizes = [8, 1], strides = [1, 1]} : vector<8x384xf32> to vector<8x1xf32>
    %677 = vector.shape_cast %676 : vector<8x1xf32> to vector<8x1xf32>
    %678 = vector.broadcast %677 : vector<8x1xf32> to vector<8x64xf32>
    %679 = arith.select %675, %678, %672 : vector<8x64xi1>, vector<8x64xf32>
    %680 = vector.extract_strided_slice %1 {offsets = [0, 91], sizes = [8, 1], strides = [1, 1]} : vector<8x384xi32> to vector<8x1xi32>
    %681 = vector.broadcast %680 : vector<8x1xi32> to vector<8x64xi32>
    %682 = arith.cmpi eq, %4, %681 : vector<8x64xi32>
    %683 = vector.extract_strided_slice %3 {offsets = [0, 91], sizes = [8, 1], strides = [1, 1]} : vector<8x384xf32> to vector<8x1xf32>
    %684 = vector.shape_cast %683 : vector<8x1xf32> to vector<8x1xf32>
    %685 = vector.broadcast %684 : vector<8x1xf32> to vector<8x64xf32>
    %686 = arith.select %682, %685, %679 : vector<8x64xi1>, vector<8x64xf32>
    %687 = vector.extract_strided_slice %1 {offsets = [0, 90], sizes = [8, 1], strides = [1, 1]} : vector<8x384xi32> to vector<8x1xi32>
    %688 = vector.broadcast %687 : vector<8x1xi32> to vector<8x64xi32>
    %689 = arith.cmpi eq, %4, %688 : vector<8x64xi32>
    %690 = vector.extract_strided_slice %3 {offsets = [0, 90], sizes = [8, 1], strides = [1, 1]} : vector<8x384xf32> to vector<8x1xf32>
    %691 = vector.shape_cast %690 : vector<8x1xf32> to vector<8x1xf32>
    %692 = vector.broadcast %691 : vector<8x1xf32> to vector<8x64xf32>
    %693 = arith.select %689, %692, %686 : vector<8x64xi1>, vector<8x64xf32>
    %694 = vector.extract_strided_slice %1 {offsets = [0, 89], sizes = [8, 1], strides = [1, 1]} : vector<8x384xi32> to vector<8x1xi32>
    %695 = vector.broadcast %694 : vector<8x1xi32> to vector<8x64xi32>
    %696 = arith.cmpi eq, %4, %695 : vector<8x64xi32>
    %697 = vector.extract_strided_slice %3 {offsets = [0, 89], sizes = [8, 1], strides = [1, 1]} : vector<8x384xf32> to vector<8x1xf32>
    %698 = vector.shape_cast %697 : vector<8x1xf32> to vector<8x1xf32>
    %699 = vector.broadcast %698 : vector<8x1xf32> to vector<8x64xf32>
    %700 = arith.select %696, %699, %693 : vector<8x64xi1>, vector<8x64xf32>
    %701 = vector.extract_strided_slice %1 {offsets = [0, 88], sizes = [8, 1], strides = [1, 1]} : vector<8x384xi32> to vector<8x1xi32>
    %702 = vector.broadcast %701 : vector<8x1xi32> to vector<8x64xi32>
    %703 = arith.cmpi eq, %4, %702 : vector<8x64xi32>
    %704 = vector.extract_strided_slice %3 {offsets = [0, 88], sizes = [8, 1], strides = [1, 1]} : vector<8x384xf32> to vector<8x1xf32>
    %705 = vector.shape_cast %704 : vector<8x1xf32> to vector<8x1xf32>
    %706 = vector.broadcast %705 : vector<8x1xf32> to vector<8x64xf32>
    %707 = arith.select %703, %706, %700 : vector<8x64xi1>, vector<8x64xf32>
    %708 = arith.addf %650, %707 : vector<8x64xf32>
    %c0_25 = arith.constant 0 : index
    %c0_26 = arith.constant 0 : index
    %c8 = arith.constant 8 : index
    %709 = vector.load %arg4[%c0_25, %c0_26, %c8] : memref<1x72x48xf32, #tpu.memory_space<vmem>>, vector<1x64x8xf32>
    %710 = vector.shape_cast %709 : vector<1x64x8xf32> to vector<64x8xf32>
    %cst_27 = arith.constant dense<0.000000e+00> : vector<8x8xf32>
    %711 = tpu.matmul %708, %710, %cst_27 {dimension_numbers = #tpu.dot_dimension_numbers<[1], [0], [0], [1], [0, 0, 1, 1], [], []>} : vector<8x64xf32>, vector<64x8xf32>, vector<8x8xf32> -> vector<8x8xf32>
    %712 = arith.addf %477, %711 : vector<8x8xf32>
    %713 = vector.extract_strided_slice %1 {offsets = [0, 103], sizes = [8, 1], strides = [1, 1]} : vector<8x384xi32> to vector<8x1xi32>
    %714 = vector.broadcast %713 : vector<8x1xi32> to vector<8x8xi32>
    %715 = arith.cmpi eq, %5, %714 : vector<8x8xi32>
    %716 = vector.extract_strided_slice %3 {offsets = [0, 103], sizes = [8, 1], strides = [1, 1]} : vector<8x384xf32> to vector<8x1xf32>
    %cst_28 = arith.constant 0.000000e+00 : f32
    %717 = vector.shape_cast %716 : vector<8x1xf32> to vector<8x1xf32>
    %718 = vector.broadcast %717 : vector<8x1xf32> to vector<8x8xf32>
    %719 = vector.broadcast %cst_28 : f32 to vector<8x8xf32>
    %720 = arith.select %715, %718, %719 : vector<8x8xi1>, vector<8x8xf32>
    %721 = vector.extract_strided_slice %1 {offsets = [0, 102], sizes = [8, 1], strides = [1, 1]} : vector<8x384xi32> to vector<8x1xi32>
    %722 = vector.broadcast %721 : vector<8x1xi32> to vector<8x8xi32>
    %723 = arith.cmpi eq, %5, %722 : vector<8x8xi32>
    %724 = vector.extract_strided_slice %3 {offsets = [0, 102], sizes = [8, 1], strides = [1, 1]} : vector<8x384xf32> to vector<8x1xf32>
    %725 = vector.shape_cast %724 : vector<8x1xf32> to vector<8x1xf32>
    %726 = vector.broadcast %725 : vector<8x1xf32> to vector<8x8xf32>
    %727 = arith.select %723, %726, %720 : vector<8x8xi1>, vector<8x8xf32>
    %728 = vector.extract_strided_slice %1 {offsets = [0, 101], sizes = [8, 1], strides = [1, 1]} : vector<8x384xi32> to vector<8x1xi32>
    %729 = vector.broadcast %728 : vector<8x1xi32> to vector<8x8xi32>
    %730 = arith.cmpi eq, %5, %729 : vector<8x8xi32>
    %731 = vector.extract_strided_slice %3 {offsets = [0, 101], sizes = [8, 1], strides = [1, 1]} : vector<8x384xf32> to vector<8x1xf32>
    %732 = vector.shape_cast %731 : vector<8x1xf32> to vector<8x1xf32>
    %733 = vector.broadcast %732 : vector<8x1xf32> to vector<8x8xf32>
    %734 = arith.select %730, %733, %727 : vector<8x8xi1>, vector<8x8xf32>
    %735 = vector.extract_strided_slice %1 {offsets = [0, 100], sizes = [8, 1], strides = [1, 1]} : vector<8x384xi32> to vector<8x1xi32>
    %736 = vector.broadcast %735 : vector<8x1xi32> to vector<8x8xi32>
    %737 = arith.cmpi eq, %5, %736 : vector<8x8xi32>
    %738 = vector.extract_strided_slice %3 {offsets = [0, 100], sizes = [8, 1], strides = [1, 1]} : vector<8x384xf32> to vector<8x1xf32>
    %739 = vector.shape_cast %738 : vector<8x1xf32> to vector<8x1xf32>
    %740 = vector.broadcast %739 : vector<8x1xf32> to vector<8x8xf32>
    %741 = arith.select %737, %740, %734 : vector<8x8xi1>, vector<8x8xf32>
    %742 = vector.extract_strided_slice %1 {offsets = [0, 99], sizes = [8, 1], strides = [1, 1]} : vector<8x384xi32> to vector<8x1xi32>
    %743 = vector.broadcast %742 : vector<8x1xi32> to vector<8x8xi32>
    %744 = arith.cmpi eq, %5, %743 : vector<8x8xi32>
    %745 = vector.extract_strided_slice %3 {offsets = [0, 99], sizes = [8, 1], strides = [1, 1]} : vector<8x384xf32> to vector<8x1xf32>
    %746 = vector.shape_cast %745 : vector<8x1xf32> to vector<8x1xf32>
    %747 = vector.broadcast %746 : vector<8x1xf32> to vector<8x8xf32>
    %748 = arith.select %744, %747, %741 : vector<8x8xi1>, vector<8x8xf32>
    %749 = vector.extract_strided_slice %1 {offsets = [0, 98], sizes = [8, 1], strides = [1, 1]} : vector<8x384xi32> to vector<8x1xi32>
    %750 = vector.broadcast %749 : vector<8x1xi32> to vector<8x8xi32>
    %751 = arith.cmpi eq, %5, %750 : vector<8x8xi32>
    %752 = vector.extract_strided_slice %3 {offsets = [0, 98], sizes = [8, 1], strides = [1, 1]} : vector<8x384xf32> to vector<8x1xf32>
    %753 = vector.shape_cast %752 : vector<8x1xf32> to vector<8x1xf32>
    %754 = vector.broadcast %753 : vector<8x1xf32> to vector<8x8xf32>
    %755 = arith.select %751, %754, %748 : vector<8x8xi1>, vector<8x8xf32>
    %756 = vector.extract_strided_slice %1 {offsets = [0, 97], sizes = [8, 1], strides = [1, 1]} : vector<8x384xi32> to vector<8x1xi32>
    %757 = vector.broadcast %756 : vector<8x1xi32> to vector<8x8xi32>
    %758 = arith.cmpi eq, %5, %757 : vector<8x8xi32>
    %759 = vector.extract_strided_slice %3 {offsets = [0, 97], sizes = [8, 1], strides = [1, 1]} : vector<8x384xf32> to vector<8x1xf32>
    %760 = vector.shape_cast %759 : vector<8x1xf32> to vector<8x1xf32>
    %761 = vector.broadcast %760 : vector<8x1xf32> to vector<8x8xf32>
    %762 = arith.select %758, %761, %755 : vector<8x8xi1>, vector<8x8xf32>
    %763 = vector.extract_strided_slice %1 {offsets = [0, 96], sizes = [8, 1], strides = [1, 1]} : vector<8x384xi32> to vector<8x1xi32>
    %764 = vector.broadcast %763 : vector<8x1xi32> to vector<8x8xi32>
    %765 = arith.cmpi eq, %5, %764 : vector<8x8xi32>
    %766 = vector.extract_strided_slice %3 {offsets = [0, 96], sizes = [8, 1], strides = [1, 1]} : vector<8x384xf32> to vector<8x1xf32>
    %767 = vector.shape_cast %766 : vector<8x1xf32> to vector<8x1xf32>
    %768 = vector.broadcast %767 : vector<8x1xf32> to vector<8x8xf32>
    %769 = arith.select %765, %768, %762 : vector<8x8xi1>, vector<8x8xf32>
    %770 = vector.extract_strided_slice %1 {offsets = [0, 111], sizes = [8, 1], strides = [1, 1]} : vector<8x384xi32> to vector<8x1xi32>
    %771 = vector.broadcast %770 : vector<8x1xi32> to vector<8x8xi32>
    %772 = arith.cmpi eq, %5, %771 : vector<8x8xi32>
    %773 = vector.extract_strided_slice %3 {offsets = [0, 111], sizes = [8, 1], strides = [1, 1]} : vector<8x384xf32> to vector<8x1xf32>
    %cst_29 = arith.constant 0.000000e+00 : f32
    %774 = vector.shape_cast %773 : vector<8x1xf32> to vector<8x1xf32>
    %775 = vector.broadcast %774 : vector<8x1xf32> to vector<8x8xf32>
    %776 = vector.broadcast %cst_29 : f32 to vector<8x8xf32>
    %777 = arith.select %772, %775, %776 : vector<8x8xi1>, vector<8x8xf32>
    %778 = vector.extract_strided_slice %1 {offsets = [0, 110], sizes = [8, 1], strides = [1, 1]} : vector<8x384xi32> to vector<8x1xi32>
    %779 = vector.broadcast %778 : vector<8x1xi32> to vector<8x8xi32>
    %780 = arith.cmpi eq, %5, %779 : vector<8x8xi32>
    %781 = vector.extract_strided_slice %3 {offsets = [0, 110], sizes = [8, 1], strides = [1, 1]} : vector<8x384xf32> to vector<8x1xf32>
    %782 = vector.shape_cast %781 : vector<8x1xf32> to vector<8x1xf32>
    %783 = vector.broadcast %782 : vector<8x1xf32> to vector<8x8xf32>
    %784 = arith.select %780, %783, %777 : vector<8x8xi1>, vector<8x8xf32>
    %785 = vector.extract_strided_slice %1 {offsets = [0, 109], sizes = [8, 1], strides = [1, 1]} : vector<8x384xi32> to vector<8x1xi32>
    %786 = vector.broadcast %785 : vector<8x1xi32> to vector<8x8xi32>
    %787 = arith.cmpi eq, %5, %786 : vector<8x8xi32>
    %788 = vector.extract_strided_slice %3 {offsets = [0, 109], sizes = [8, 1], strides = [1, 1]} : vector<8x384xf32> to vector<8x1xf32>
    %789 = vector.shape_cast %788 : vector<8x1xf32> to vector<8x1xf32>
    %790 = vector.broadcast %789 : vector<8x1xf32> to vector<8x8xf32>
    %791 = arith.select %787, %790, %784 : vector<8x8xi1>, vector<8x8xf32>
    %792 = vector.extract_strided_slice %1 {offsets = [0, 108], sizes = [8, 1], strides = [1, 1]} : vector<8x384xi32> to vector<8x1xi32>
    %793 = vector.broadcast %792 : vector<8x1xi32> to vector<8x8xi32>
    %794 = arith.cmpi eq, %5, %793 : vector<8x8xi32>
    %795 = vector.extract_strided_slice %3 {offsets = [0, 108], sizes = [8, 1], strides = [1, 1]} : vector<8x384xf32> to vector<8x1xf32>
    %796 = vector.shape_cast %795 : vector<8x1xf32> to vector<8x1xf32>
    %797 = vector.broadcast %796 : vector<8x1xf32> to vector<8x8xf32>
    %798 = arith.select %794, %797, %791 : vector<8x8xi1>, vector<8x8xf32>
    %799 = vector.extract_strided_slice %1 {offsets = [0, 107], sizes = [8, 1], strides = [1, 1]} : vector<8x384xi32> to vector<8x1xi32>
    %800 = vector.broadcast %799 : vector<8x1xi32> to vector<8x8xi32>
    %801 = arith.cmpi eq, %5, %800 : vector<8x8xi32>
    %802 = vector.extract_strided_slice %3 {offsets = [0, 107], sizes = [8, 1], strides = [1, 1]} : vector<8x384xf32> to vector<8x1xf32>
    %803 = vector.shape_cast %802 : vector<8x1xf32> to vector<8x1xf32>
    %804 = vector.broadcast %803 : vector<8x1xf32> to vector<8x8xf32>
    %805 = arith.select %801, %804, %798 : vector<8x8xi1>, vector<8x8xf32>
    %806 = vector.extract_strided_slice %1 {offsets = [0, 106], sizes = [8, 1], strides = [1, 1]} : vector<8x384xi32> to vector<8x1xi32>
    %807 = vector.broadcast %806 : vector<8x1xi32> to vector<8x8xi32>
    %808 = arith.cmpi eq, %5, %807 : vector<8x8xi32>
    %809 = vector.extract_strided_slice %3 {offsets = [0, 106], sizes = [8, 1], strides = [1, 1]} : vector<8x384xf32> to vector<8x1xf32>
    %810 = vector.shape_cast %809 : vector<8x1xf32> to vector<8x1xf32>
    %811 = vector.broadcast %810 : vector<8x1xf32> to vector<8x8xf32>
    %812 = arith.select %808, %811, %805 : vector<8x8xi1>, vector<8x8xf32>
    %813 = vector.extract_strided_slice %1 {offsets = [0, 105], sizes = [8, 1], strides = [1, 1]} : vector<8x384xi32> to vector<8x1xi32>
    %814 = vector.broadcast %813 : vector<8x1xi32> to vector<8x8xi32>
    %815 = arith.cmpi eq, %5, %814 : vector<8x8xi32>
    %816 = vector.extract_strided_slice %3 {offsets = [0, 105], sizes = [8, 1], strides = [1, 1]} : vector<8x384xf32> to vector<8x1xf32>
    %817 = vector.shape_cast %816 : vector<8x1xf32> to vector<8x1xf32>
    %818 = vector.broadcast %817 : vector<8x1xf32> to vector<8x8xf32>
    %819 = arith.select %815, %818, %812 : vector<8x8xi1>, vector<8x8xf32>
    %820 = vector.extract_strided_slice %1 {offsets = [0, 104], sizes = [8, 1], strides = [1, 1]} : vector<8x384xi32> to vector<8x1xi32>
    %821 = vector.broadcast %820 : vector<8x1xi32> to vector<8x8xi32>
    %822 = arith.cmpi eq, %5, %821 : vector<8x8xi32>
    %823 = vector.extract_strided_slice %3 {offsets = [0, 104], sizes = [8, 1], strides = [1, 1]} : vector<8x384xf32> to vector<8x1xf32>
    %824 = vector.shape_cast %823 : vector<8x1xf32> to vector<8x1xf32>
    %825 = vector.broadcast %824 : vector<8x1xf32> to vector<8x8xf32>
    %826 = arith.select %822, %825, %819 : vector<8x8xi1>, vector<8x8xf32>
    %827 = arith.addf %769, %826 : vector<8x8xf32>
    %828 = vector.extract_strided_slice %1 {offsets = [0, 119], sizes = [8, 1], strides = [1, 1]} : vector<8x384xi32> to vector<8x1xi32>
    %829 = vector.broadcast %828 : vector<8x1xi32> to vector<8x8xi32>
    %830 = arith.cmpi eq, %5, %829 : vector<8x8xi32>
    %831 = vector.extract_strided_slice %3 {offsets = [0, 119], sizes = [8, 1], strides = [1, 1]} : vector<8x384xf32> to vector<8x1xf32>
    %cst_30 = arith.constant 0.000000e+00 : f32
    %832 = vector.shape_cast %831 : vector<8x1xf32> to vector<8x1xf32>
    %833 = vector.broadcast %832 : vector<8x1xf32> to vector<8x8xf32>
    %834 = vector.broadcast %cst_30 : f32 to vector<8x8xf32>
    %835 = arith.select %830, %833, %834 : vector<8x8xi1>, vector<8x8xf32>
    %836 = vector.extract_strided_slice %1 {offsets = [0, 118], sizes = [8, 1], strides = [1, 1]} : vector<8x384xi32> to vector<8x1xi32>
    %837 = vector.broadcast %836 : vector<8x1xi32> to vector<8x8xi32>
    %838 = arith.cmpi eq, %5, %837 : vector<8x8xi32>
    %839 = vector.extract_strided_slice %3 {offsets = [0, 118], sizes = [8, 1], strides = [1, 1]} : vector<8x384xf32> to vector<8x1xf32>
    %840 = vector.shape_cast %839 : vector<8x1xf32> to vector<8x1xf32>
    %841 = vector.broadcast %840 : vector<8x1xf32> to vector<8x8xf32>
    %842 = arith.select %838, %841, %835 : vector<8x8xi1>, vector<8x8xf32>
    %843 = vector.extract_strided_slice %1 {offsets = [0, 117], sizes = [8, 1], strides = [1, 1]} : vector<8x384xi32> to vector<8x1xi32>
    %844 = vector.broadcast %843 : vector<8x1xi32> to vector<8x8xi32>
    %845 = arith.cmpi eq, %5, %844 : vector<8x8xi32>
    %846 = vector.extract_strided_slice %3 {offsets = [0, 117], sizes = [8, 1], strides = [1, 1]} : vector<8x384xf32> to vector<8x1xf32>
    %847 = vector.shape_cast %846 : vector<8x1xf32> to vector<8x1xf32>
    %848 = vector.broadcast %847 : vector<8x1xf32> to vector<8x8xf32>
    %849 = arith.select %845, %848, %842 : vector<8x8xi1>, vector<8x8xf32>
    %850 = vector.extract_strided_slice %1 {offsets = [0, 116], sizes = [8, 1], strides = [1, 1]} : vector<8x384xi32> to vector<8x1xi32>
    %851 = vector.broadcast %850 : vector<8x1xi32> to vector<8x8xi32>
    %852 = arith.cmpi eq, %5, %851 : vector<8x8xi32>
    %853 = vector.extract_strided_slice %3 {offsets = [0, 116], sizes = [8, 1], strides = [1, 1]} : vector<8x384xf32> to vector<8x1xf32>
    %854 = vector.shape_cast %853 : vector<8x1xf32> to vector<8x1xf32>
    %855 = vector.broadcast %854 : vector<8x1xf32> to vector<8x8xf32>
    %856 = arith.select %852, %855, %849 : vector<8x8xi1>, vector<8x8xf32>
    %857 = vector.extract_strided_slice %1 {offsets = [0, 115], sizes = [8, 1], strides = [1, 1]} : vector<8x384xi32> to vector<8x1xi32>
    %858 = vector.broadcast %857 : vector<8x1xi32> to vector<8x8xi32>
    %859 = arith.cmpi eq, %5, %858 : vector<8x8xi32>
    %860 = vector.extract_strided_slice %3 {offsets = [0, 115], sizes = [8, 1], strides = [1, 1]} : vector<8x384xf32> to vector<8x1xf32>
    %861 = vector.shape_cast %860 : vector<8x1xf32> to vector<8x1xf32>
    %862 = vector.broadcast %861 : vector<8x1xf32> to vector<8x8xf32>
    %863 = arith.select %859, %862, %856 : vector<8x8xi1>, vector<8x8xf32>
    %864 = vector.extract_strided_slice %1 {offsets = [0, 114], sizes = [8, 1], strides = [1, 1]} : vector<8x384xi32> to vector<8x1xi32>
    %865 = vector.broadcast %864 : vector<8x1xi32> to vector<8x8xi32>
    %866 = arith.cmpi eq, %5, %865 : vector<8x8xi32>
    %867 = vector.extract_strided_slice %3 {offsets = [0, 114], sizes = [8, 1], strides = [1, 1]} : vector<8x384xf32> to vector<8x1xf32>
    %868 = vector.shape_cast %867 : vector<8x1xf32> to vector<8x1xf32>
    %869 = vector.broadcast %868 : vector<8x1xf32> to vector<8x8xf32>
    %870 = arith.select %866, %869, %863 : vector<8x8xi1>, vector<8x8xf32>
    %871 = vector.extract_strided_slice %1 {offsets = [0, 113], sizes = [8, 1], strides = [1, 1]} : vector<8x384xi32> to vector<8x1xi32>
    %872 = vector.broadcast %871 : vector<8x1xi32> to vector<8x8xi32>
    %873 = arith.cmpi eq, %5, %872 : vector<8x8xi32>
    %874 = vector.extract_strided_slice %3 {offsets = [0, 113], sizes = [8, 1], strides = [1, 1]} : vector<8x384xf32> to vector<8x1xf32>
    %875 = vector.shape_cast %874 : vector<8x1xf32> to vector<8x1xf32>
    %876 = vector.broadcast %875 : vector<8x1xf32> to vector<8x8xf32>
    %877 = arith.select %873, %876, %870 : vector<8x8xi1>, vector<8x8xf32>
    %878 = vector.extract_strided_slice %1 {offsets = [0, 112], sizes = [8, 1], strides = [1, 1]} : vector<8x384xi32> to vector<8x1xi32>
    %879 = vector.broadcast %878 : vector<8x1xi32> to vector<8x8xi32>
    %880 = arith.cmpi eq, %5, %879 : vector<8x8xi32>
    %881 = vector.extract_strided_slice %3 {offsets = [0, 112], sizes = [8, 1], strides = [1, 1]} : vector<8x384xf32> to vector<8x1xf32>
    %882 = vector.shape_cast %881 : vector<8x1xf32> to vector<8x1xf32>
    %883 = vector.broadcast %882 : vector<8x1xf32> to vector<8x8xf32>
    %884 = arith.select %880, %883, %877 : vector<8x8xi1>, vector<8x8xf32>
    %885 = arith.addf %827, %884 : vector<8x8xf32>
    %886 = vector.extract_strided_slice %1 {offsets = [0, 127], sizes = [8, 1], strides = [1, 1]} : vector<8x384xi32> to vector<8x1xi32>
    %887 = vector.broadcast %886 : vector<8x1xi32> to vector<8x8xi32>
    %888 = arith.cmpi eq, %5, %887 : vector<8x8xi32>
    %889 = vector.extract_strided_slice %3 {offsets = [0, 127], sizes = [8, 1], strides = [1, 1]} : vector<8x384xf32> to vector<8x1xf32>
    %cst_31 = arith.constant 0.000000e+00 : f32
    %890 = vector.shape_cast %889 : vector<8x1xf32> to vector<8x1xf32>
    %891 = vector.broadcast %890 : vector<8x1xf32> to vector<8x8xf32>
    %892 = vector.broadcast %cst_31 : f32 to vector<8x8xf32>
    %893 = arith.select %888, %891, %892 : vector<8x8xi1>, vector<8x8xf32>
    %894 = vector.extract_strided_slice %1 {offsets = [0, 126], sizes = [8, 1], strides = [1, 1]} : vector<8x384xi32> to vector<8x1xi32>
    %895 = vector.broadcast %894 : vector<8x1xi32> to vector<8x8xi32>
    %896 = arith.cmpi eq, %5, %895 : vector<8x8xi32>
    %897 = vector.extract_strided_slice %3 {offsets = [0, 126], sizes = [8, 1], strides = [1, 1]} : vector<8x384xf32> to vector<8x1xf32>
    %898 = vector.shape_cast %897 : vector<8x1xf32> to vector<8x1xf32>
    %899 = vector.broadcast %898 : vector<8x1xf32> to vector<8x8xf32>
    %900 = arith.select %896, %899, %893 : vector<8x8xi1>, vector<8x8xf32>
    %901 = vector.extract_strided_slice %1 {offsets = [0, 125], sizes = [8, 1], strides = [1, 1]} : vector<8x384xi32> to vector<8x1xi32>
    %902 = vector.broadcast %901 : vector<8x1xi32> to vector<8x8xi32>
    %903 = arith.cmpi eq, %5, %902 : vector<8x8xi32>
    %904 = vector.extract_strided_slice %3 {offsets = [0, 125], sizes = [8, 1], strides = [1, 1]} : vector<8x384xf32> to vector<8x1xf32>
    %905 = vector.shape_cast %904 : vector<8x1xf32> to vector<8x1xf32>
    %906 = vector.broadcast %905 : vector<8x1xf32> to vector<8x8xf32>
    %907 = arith.select %903, %906, %900 : vector<8x8xi1>, vector<8x8xf32>
    %908 = vector.extract_strided_slice %1 {offsets = [0, 124], sizes = [8, 1], strides = [1, 1]} : vector<8x384xi32> to vector<8x1xi32>
    %909 = vector.broadcast %908 : vector<8x1xi32> to vector<8x8xi32>
    %910 = arith.cmpi eq, %5, %909 : vector<8x8xi32>
    %911 = vector.extract_strided_slice %3 {offsets = [0, 124], sizes = [8, 1], strides = [1, 1]} : vector<8x384xf32> to vector<8x1xf32>
    %912 = vector.shape_cast %911 : vector<8x1xf32> to vector<8x1xf32>
    %913 = vector.broadcast %912 : vector<8x1xf32> to vector<8x8xf32>
    %914 = arith.select %910, %913, %907 : vector<8x8xi1>, vector<8x8xf32>
    %915 = vector.extract_strided_slice %1 {offsets = [0, 123], sizes = [8, 1], strides = [1, 1]} : vector<8x384xi32> to vector<8x1xi32>
    %916 = vector.broadcast %915 : vector<8x1xi32> to vector<8x8xi32>
    %917 = arith.cmpi eq, %5, %916 : vector<8x8xi32>
    %918 = vector.extract_strided_slice %3 {offsets = [0, 123], sizes = [8, 1], strides = [1, 1]} : vector<8x384xf32> to vector<8x1xf32>
    %919 = vector.shape_cast %918 : vector<8x1xf32> to vector<8x1xf32>
    %920 = vector.broadcast %919 : vector<8x1xf32> to vector<8x8xf32>
    %921 = arith.select %917, %920, %914 : vector<8x8xi1>, vector<8x8xf32>
    %922 = vector.extract_strided_slice %1 {offsets = [0, 122], sizes = [8, 1], strides = [1, 1]} : vector<8x384xi32> to vector<8x1xi32>
    %923 = vector.broadcast %922 : vector<8x1xi32> to vector<8x8xi32>
    %924 = arith.cmpi eq, %5, %923 : vector<8x8xi32>
    %925 = vector.extract_strided_slice %3 {offsets = [0, 122], sizes = [8, 1], strides = [1, 1]} : vector<8x384xf32> to vector<8x1xf32>
    %926 = vector.shape_cast %925 : vector<8x1xf32> to vector<8x1xf32>
    %927 = vector.broadcast %926 : vector<8x1xf32> to vector<8x8xf32>
    %928 = arith.select %924, %927, %921 : vector<8x8xi1>, vector<8x8xf32>
    %929 = vector.extract_strided_slice %1 {offsets = [0, 121], sizes = [8, 1], strides = [1, 1]} : vector<8x384xi32> to vector<8x1xi32>
    %930 = vector.broadcast %929 : vector<8x1xi32> to vector<8x8xi32>
    %931 = arith.cmpi eq, %5, %930 : vector<8x8xi32>
    %932 = vector.extract_strided_slice %3 {offsets = [0, 121], sizes = [8, 1], strides = [1, 1]} : vector<8x384xf32> to vector<8x1xf32>
    %933 = vector.shape_cast %932 : vector<8x1xf32> to vector<8x1xf32>
    %934 = vector.broadcast %933 : vector<8x1xf32> to vector<8x8xf32>
    %935 = arith.select %931, %934, %928 : vector<8x8xi1>, vector<8x8xf32>
    %936 = vector.extract_strided_slice %1 {offsets = [0, 120], sizes = [8, 1], strides = [1, 1]} : vector<8x384xi32> to vector<8x1xi32>
    %937 = vector.broadcast %936 : vector<8x1xi32> to vector<8x8xi32>
    %938 = arith.cmpi eq, %5, %937 : vector<8x8xi32>
    %939 = vector.extract_strided_slice %3 {offsets = [0, 120], sizes = [8, 1], strides = [1, 1]} : vector<8x384xf32> to vector<8x1xf32>
    %940 = vector.shape_cast %939 : vector<8x1xf32> to vector<8x1xf32>
    %941 = vector.broadcast %940 : vector<8x1xf32> to vector<8x8xf32>
    %942 = arith.select %938, %941, %935 : vector<8x8xi1>, vector<8x8xf32>
    %943 = arith.addf %885, %942 : vector<8x8xf32>
    %c0_32 = arith.constant 0 : index
    %c64_33 = arith.constant 64 : index
    %c8_34 = arith.constant 8 : index
    %944 = vector.load %arg4[%c0_32, %c64_33, %c8_34] : memref<1x72x48xf32, #tpu.memory_space<vmem>>, vector<1x8x8xf32>
    %945 = vector.shape_cast %944 : vector<1x8x8xf32> to vector<8x8xf32>
    %cst_35 = arith.constant dense<0.000000e+00> : vector<8x8xf32>
    %946 = tpu.matmul %943, %945, %cst_35 {dimension_numbers = #tpu.dot_dimension_numbers<[1], [0], [0], [1], [0, 0, 1, 1], [], []>} : vector<8x8xf32>, vector<8x8xf32>, vector<8x8xf32> -> vector<8x8xf32>
    %947 = arith.addf %712, %946 : vector<8x8xf32>
    %cst_36 = arith.constant 0.000000e+00 : f32
    %948 = vector.broadcast %cst_36 : f32 to vector<8x8xf32>
    %949 = vector.extract_strided_slice %1 {offsets = [0, 135], sizes = [8, 1], strides = [1, 1]} : vector<8x384xi32> to vector<8x1xi32>
    %950 = vector.broadcast %949 : vector<8x1xi32> to vector<8x64xi32>
    %951 = arith.cmpi eq, %4, %950 : vector<8x64xi32>
    %952 = vector.extract_strided_slice %3 {offsets = [0, 135], sizes = [8, 1], strides = [1, 1]} : vector<8x384xf32> to vector<8x1xf32>
    %cst_37 = arith.constant 0.000000e+00 : f32
    %953 = vector.shape_cast %952 : vector<8x1xf32> to vector<8x1xf32>
    %954 = vector.broadcast %953 : vector<8x1xf32> to vector<8x64xf32>
    %955 = vector.broadcast %cst_37 : f32 to vector<8x64xf32>
    %956 = arith.select %951, %954, %955 : vector<8x64xi1>, vector<8x64xf32>
    %957 = vector.extract_strided_slice %1 {offsets = [0, 134], sizes = [8, 1], strides = [1, 1]} : vector<8x384xi32> to vector<8x1xi32>
    %958 = vector.broadcast %957 : vector<8x1xi32> to vector<8x64xi32>
    %959 = arith.cmpi eq, %4, %958 : vector<8x64xi32>
    %960 = vector.extract_strided_slice %3 {offsets = [0, 134], sizes = [8, 1], strides = [1, 1]} : vector<8x384xf32> to vector<8x1xf32>
    %961 = vector.shape_cast %960 : vector<8x1xf32> to vector<8x1xf32>
    %962 = vector.broadcast %961 : vector<8x1xf32> to vector<8x64xf32>
    %963 = arith.select %959, %962, %956 : vector<8x64xi1>, vector<8x64xf32>
    %964 = vector.extract_strided_slice %1 {offsets = [0, 133], sizes = [8, 1], strides = [1, 1]} : vector<8x384xi32> to vector<8x1xi32>
    %965 = vector.broadcast %964 : vector<8x1xi32> to vector<8x64xi32>
    %966 = arith.cmpi eq, %4, %965 : vector<8x64xi32>
    %967 = vector.extract_strided_slice %3 {offsets = [0, 133], sizes = [8, 1], strides = [1, 1]} : vector<8x384xf32> to vector<8x1xf32>
    %968 = vector.shape_cast %967 : vector<8x1xf32> to vector<8x1xf32>
    %969 = vector.broadcast %968 : vector<8x1xf32> to vector<8x64xf32>
    %970 = arith.select %966, %969, %963 : vector<8x64xi1>, vector<8x64xf32>
    %971 = vector.extract_strided_slice %1 {offsets = [0, 132], sizes = [8, 1], strides = [1, 1]} : vector<8x384xi32> to vector<8x1xi32>
    %972 = vector.broadcast %971 : vector<8x1xi32> to vector<8x64xi32>
    %973 = arith.cmpi eq, %4, %972 : vector<8x64xi32>
    %974 = vector.extract_strided_slice %3 {offsets = [0, 132], sizes = [8, 1], strides = [1, 1]} : vector<8x384xf32> to vector<8x1xf32>
    %975 = vector.shape_cast %974 : vector<8x1xf32> to vector<8x1xf32>
    %976 = vector.broadcast %975 : vector<8x1xf32> to vector<8x64xf32>
    %977 = arith.select %973, %976, %970 : vector<8x64xi1>, vector<8x64xf32>
    %978 = vector.extract_strided_slice %1 {offsets = [0, 131], sizes = [8, 1], strides = [1, 1]} : vector<8x384xi32> to vector<8x1xi32>
    %979 = vector.broadcast %978 : vector<8x1xi32> to vector<8x64xi32>
    %980 = arith.cmpi eq, %4, %979 : vector<8x64xi32>
    %981 = vector.extract_strided_slice %3 {offsets = [0, 131], sizes = [8, 1], strides = [1, 1]} : vector<8x384xf32> to vector<8x1xf32>
    %982 = vector.shape_cast %981 : vector<8x1xf32> to vector<8x1xf32>
    %983 = vector.broadcast %982 : vector<8x1xf32> to vector<8x64xf32>
    %984 = arith.select %980, %983, %977 : vector<8x64xi1>, vector<8x64xf32>
    %985 = vector.extract_strided_slice %1 {offsets = [0, 130], sizes = [8, 1], strides = [1, 1]} : vector<8x384xi32> to vector<8x1xi32>
    %986 = vector.broadcast %985 : vector<8x1xi32> to vector<8x64xi32>
    %987 = arith.cmpi eq, %4, %986 : vector<8x64xi32>
    %988 = vector.extract_strided_slice %3 {offsets = [0, 130], sizes = [8, 1], strides = [1, 1]} : vector<8x384xf32> to vector<8x1xf32>
    %989 = vector.shape_cast %988 : vector<8x1xf32> to vector<8x1xf32>
    %990 = vector.broadcast %989 : vector<8x1xf32> to vector<8x64xf32>
    %991 = arith.select %987, %990, %984 : vector<8x64xi1>, vector<8x64xf32>
    %992 = vector.extract_strided_slice %1 {offsets = [0, 129], sizes = [8, 1], strides = [1, 1]} : vector<8x384xi32> to vector<8x1xi32>
    %993 = vector.broadcast %992 : vector<8x1xi32> to vector<8x64xi32>
    %994 = arith.cmpi eq, %4, %993 : vector<8x64xi32>
    %995 = vector.extract_strided_slice %3 {offsets = [0, 129], sizes = [8, 1], strides = [1, 1]} : vector<8x384xf32> to vector<8x1xf32>
    %996 = vector.shape_cast %995 : vector<8x1xf32> to vector<8x1xf32>
    %997 = vector.broadcast %996 : vector<8x1xf32> to vector<8x64xf32>
    %998 = arith.select %994, %997, %991 : vector<8x64xi1>, vector<8x64xf32>
    %999 = vector.extract_strided_slice %1 {offsets = [0, 128], sizes = [8, 1], strides = [1, 1]} : vector<8x384xi32> to vector<8x1xi32>
    %1000 = vector.broadcast %999 : vector<8x1xi32> to vector<8x64xi32>
    %1001 = arith.cmpi eq, %4, %1000 : vector<8x64xi32>
    %1002 = vector.extract_strided_slice %3 {offsets = [0, 128], sizes = [8, 1], strides = [1, 1]} : vector<8x384xf32> to vector<8x1xf32>
    %1003 = vector.shape_cast %1002 : vector<8x1xf32> to vector<8x1xf32>
    %1004 = vector.broadcast %1003 : vector<8x1xf32> to vector<8x64xf32>
    %1005 = arith.select %1001, %1004, %998 : vector<8x64xi1>, vector<8x64xf32>
    %1006 = vector.extract_strided_slice %1 {offsets = [0, 143], sizes = [8, 1], strides = [1, 1]} : vector<8x384xi32> to vector<8x1xi32>
    %1007 = vector.broadcast %1006 : vector<8x1xi32> to vector<8x64xi32>
    %1008 = arith.cmpi eq, %4, %1007 : vector<8x64xi32>
    %1009 = vector.extract_strided_slice %3 {offsets = [0, 143], sizes = [8, 1], strides = [1, 1]} : vector<8x384xf32> to vector<8x1xf32>
    %cst_38 = arith.constant 0.000000e+00 : f32
    %1010 = vector.shape_cast %1009 : vector<8x1xf32> to vector<8x1xf32>
    %1011 = vector.broadcast %1010 : vector<8x1xf32> to vector<8x64xf32>
    %1012 = vector.broadcast %cst_38 : f32 to vector<8x64xf32>
    %1013 = arith.select %1008, %1011, %1012 : vector<8x64xi1>, vector<8x64xf32>
    %1014 = vector.extract_strided_slice %1 {offsets = [0, 142], sizes = [8, 1], strides = [1, 1]} : vector<8x384xi32> to vector<8x1xi32>
    %1015 = vector.broadcast %1014 : vector<8x1xi32> to vector<8x64xi32>
    %1016 = arith.cmpi eq, %4, %1015 : vector<8x64xi32>
    %1017 = vector.extract_strided_slice %3 {offsets = [0, 142], sizes = [8, 1], strides = [1, 1]} : vector<8x384xf32> to vector<8x1xf32>
    %1018 = vector.shape_cast %1017 : vector<8x1xf32> to vector<8x1xf32>
    %1019 = vector.broadcast %1018 : vector<8x1xf32> to vector<8x64xf32>
    %1020 = arith.select %1016, %1019, %1013 : vector<8x64xi1>, vector<8x64xf32>
    %1021 = vector.extract_strided_slice %1 {offsets = [0, 141], sizes = [8, 1], strides = [1, 1]} : vector<8x384xi32> to vector<8x1xi32>
    %1022 = vector.broadcast %1021 : vector<8x1xi32> to vector<8x64xi32>
    %1023 = arith.cmpi eq, %4, %1022 : vector<8x64xi32>
    %1024 = vector.extract_strided_slice %3 {offsets = [0, 141], sizes = [8, 1], strides = [1, 1]} : vector<8x384xf32> to vector<8x1xf32>
    %1025 = vector.shape_cast %1024 : vector<8x1xf32> to vector<8x1xf32>
    %1026 = vector.broadcast %1025 : vector<8x1xf32> to vector<8x64xf32>
    %1027 = arith.select %1023, %1026, %1020 : vector<8x64xi1>, vector<8x64xf32>
    %1028 = vector.extract_strided_slice %1 {offsets = [0, 140], sizes = [8, 1], strides = [1, 1]} : vector<8x384xi32> to vector<8x1xi32>
    %1029 = vector.broadcast %1028 : vector<8x1xi32> to vector<8x64xi32>
    %1030 = arith.cmpi eq, %4, %1029 : vector<8x64xi32>
    %1031 = vector.extract_strided_slice %3 {offsets = [0, 140], sizes = [8, 1], strides = [1, 1]} : vector<8x384xf32> to vector<8x1xf32>
    %1032 = vector.shape_cast %1031 : vector<8x1xf32> to vector<8x1xf32>
    %1033 = vector.broadcast %1032 : vector<8x1xf32> to vector<8x64xf32>
    %1034 = arith.select %1030, %1033, %1027 : vector<8x64xi1>, vector<8x64xf32>
    %1035 = vector.extract_strided_slice %1 {offsets = [0, 139], sizes = [8, 1], strides = [1, 1]} : vector<8x384xi32> to vector<8x1xi32>
    %1036 = vector.broadcast %1035 : vector<8x1xi32> to vector<8x64xi32>
    %1037 = arith.cmpi eq, %4, %1036 : vector<8x64xi32>
    %1038 = vector.extract_strided_slice %3 {offsets = [0, 139], sizes = [8, 1], strides = [1, 1]} : vector<8x384xf32> to vector<8x1xf32>
    %1039 = vector.shape_cast %1038 : vector<8x1xf32> to vector<8x1xf32>
    %1040 = vector.broadcast %1039 : vector<8x1xf32> to vector<8x64xf32>
    %1041 = arith.select %1037, %1040, %1034 : vector<8x64xi1>, vector<8x64xf32>
    %1042 = vector.extract_strided_slice %1 {offsets = [0, 138], sizes = [8, 1], strides = [1, 1]} : vector<8x384xi32> to vector<8x1xi32>
    %1043 = vector.broadcast %1042 : vector<8x1xi32> to vector<8x64xi32>
    %1044 = arith.cmpi eq, %4, %1043 : vector<8x64xi32>
    %1045 = vector.extract_strided_slice %3 {offsets = [0, 138], sizes = [8, 1], strides = [1, 1]} : vector<8x384xf32> to vector<8x1xf32>
    %1046 = vector.shape_cast %1045 : vector<8x1xf32> to vector<8x1xf32>
    %1047 = vector.broadcast %1046 : vector<8x1xf32> to vector<8x64xf32>
    %1048 = arith.select %1044, %1047, %1041 : vector<8x64xi1>, vector<8x64xf32>
    %1049 = vector.extract_strided_slice %1 {offsets = [0, 137], sizes = [8, 1], strides = [1, 1]} : vector<8x384xi32> to vector<8x1xi32>
    %1050 = vector.broadcast %1049 : vector<8x1xi32> to vector<8x64xi32>
    %1051 = arith.cmpi eq, %4, %1050 : vector<8x64xi32>
    %1052 = vector.extract_strided_slice %3 {offsets = [0, 137], sizes = [8, 1], strides = [1, 1]} : vector<8x384xf32> to vector<8x1xf32>
    %1053 = vector.shape_cast %1052 : vector<8x1xf32> to vector<8x1xf32>
    %1054 = vector.broadcast %1053 : vector<8x1xf32> to vector<8x64xf32>
    %1055 = arith.select %1051, %1054, %1048 : vector<8x64xi1>, vector<8x64xf32>
    %1056 = vector.extract_strided_slice %1 {offsets = [0, 136], sizes = [8, 1], strides = [1, 1]} : vector<8x384xi32> to vector<8x1xi32>
    %1057 = vector.broadcast %1056 : vector<8x1xi32> to vector<8x64xi32>
    %1058 = arith.cmpi eq, %4, %1057 : vector<8x64xi32>
    %1059 = vector.extract_strided_slice %3 {offsets = [0, 136], sizes = [8, 1], strides = [1, 1]} : vector<8x384xf32> to vector<8x1xf32>
    %1060 = vector.shape_cast %1059 : vector<8x1xf32> to vector<8x1xf32>
    %1061 = vector.broadcast %1060 : vector<8x1xf32> to vector<8x64xf32>
    %1062 = arith.select %1058, %1061, %1055 : vector<8x64xi1>, vector<8x64xf32>
    %1063 = arith.addf %1005, %1062 : vector<8x64xf32>
    %1064 = vector.extract_strided_slice %1 {offsets = [0, 151], sizes = [8, 1], strides = [1, 1]} : vector<8x384xi32> to vector<8x1xi32>
    %1065 = vector.broadcast %1064 : vector<8x1xi32> to vector<8x64xi32>
    %1066 = arith.cmpi eq, %4, %1065 : vector<8x64xi32>
    %1067 = vector.extract_strided_slice %3 {offsets = [0, 151], sizes = [8, 1], strides = [1, 1]} : vector<8x384xf32> to vector<8x1xf32>
    %cst_39 = arith.constant 0.000000e+00 : f32
    %1068 = vector.shape_cast %1067 : vector<8x1xf32> to vector<8x1xf32>
    %1069 = vector.broadcast %1068 : vector<8x1xf32> to vector<8x64xf32>
    %1070 = vector.broadcast %cst_39 : f32 to vector<8x64xf32>
    %1071 = arith.select %1066, %1069, %1070 : vector<8x64xi1>, vector<8x64xf32>
    %1072 = vector.extract_strided_slice %1 {offsets = [0, 150], sizes = [8, 1], strides = [1, 1]} : vector<8x384xi32> to vector<8x1xi32>
    %1073 = vector.broadcast %1072 : vector<8x1xi32> to vector<8x64xi32>
    %1074 = arith.cmpi eq, %4, %1073 : vector<8x64xi32>
    %1075 = vector.extract_strided_slice %3 {offsets = [0, 150], sizes = [8, 1], strides = [1, 1]} : vector<8x384xf32> to vector<8x1xf32>
    %1076 = vector.shape_cast %1075 : vector<8x1xf32> to vector<8x1xf32>
    %1077 = vector.broadcast %1076 : vector<8x1xf32> to vector<8x64xf32>
    %1078 = arith.select %1074, %1077, %1071 : vector<8x64xi1>, vector<8x64xf32>
    %1079 = vector.extract_strided_slice %1 {offsets = [0, 149], sizes = [8, 1], strides = [1, 1]} : vector<8x384xi32> to vector<8x1xi32>
    %1080 = vector.broadcast %1079 : vector<8x1xi32> to vector<8x64xi32>
    %1081 = arith.cmpi eq, %4, %1080 : vector<8x64xi32>
    %1082 = vector.extract_strided_slice %3 {offsets = [0, 149], sizes = [8, 1], strides = [1, 1]} : vector<8x384xf32> to vector<8x1xf32>
    %1083 = vector.shape_cast %1082 : vector<8x1xf32> to vector<8x1xf32>
    %1084 = vector.broadcast %1083 : vector<8x1xf32> to vector<8x64xf32>
    %1085 = arith.select %1081, %1084, %1078 : vector<8x64xi1>, vector<8x64xf32>
    %1086 = vector.extract_strided_slice %1 {offsets = [0, 148], sizes = [8, 1], strides = [1, 1]} : vector<8x384xi32> to vector<8x1xi32>
    %1087 = vector.broadcast %1086 : vector<8x1xi32> to vector<8x64xi32>
    %1088 = arith.cmpi eq, %4, %1087 : vector<8x64xi32>
    %1089 = vector.extract_strided_slice %3 {offsets = [0, 148], sizes = [8, 1], strides = [1, 1]} : vector<8x384xf32> to vector<8x1xf32>
    %1090 = vector.shape_cast %1089 : vector<8x1xf32> to vector<8x1xf32>
    %1091 = vector.broadcast %1090 : vector<8x1xf32> to vector<8x64xf32>
    %1092 = arith.select %1088, %1091, %1085 : vector<8x64xi1>, vector<8x64xf32>
    %1093 = vector.extract_strided_slice %1 {offsets = [0, 147], sizes = [8, 1], strides = [1, 1]} : vector<8x384xi32> to vector<8x1xi32>
    %1094 = vector.broadcast %1093 : vector<8x1xi32> to vector<8x64xi32>
    %1095 = arith.cmpi eq, %4, %1094 : vector<8x64xi32>
    %1096 = vector.extract_strided_slice %3 {offsets = [0, 147], sizes = [8, 1], strides = [1, 1]} : vector<8x384xf32> to vector<8x1xf32>
    %1097 = vector.shape_cast %1096 : vector<8x1xf32> to vector<8x1xf32>
    %1098 = vector.broadcast %1097 : vector<8x1xf32> to vector<8x64xf32>
    %1099 = arith.select %1095, %1098, %1092 : vector<8x64xi1>, vector<8x64xf32>
    %1100 = vector.extract_strided_slice %1 {offsets = [0, 146], sizes = [8, 1], strides = [1, 1]} : vector<8x384xi32> to vector<8x1xi32>
    %1101 = vector.broadcast %1100 : vector<8x1xi32> to vector<8x64xi32>
    %1102 = arith.cmpi eq, %4, %1101 : vector<8x64xi32>
    %1103 = vector.extract_strided_slice %3 {offsets = [0, 146], sizes = [8, 1], strides = [1, 1]} : vector<8x384xf32> to vector<8x1xf32>
    %1104 = vector.shape_cast %1103 : vector<8x1xf32> to vector<8x1xf32>
    %1105 = vector.broadcast %1104 : vector<8x1xf32> to vector<8x64xf32>
    %1106 = arith.select %1102, %1105, %1099 : vector<8x64xi1>, vector<8x64xf32>
    %1107 = vector.extract_strided_slice %1 {offsets = [0, 145], sizes = [8, 1], strides = [1, 1]} : vector<8x384xi32> to vector<8x1xi32>
    %1108 = vector.broadcast %1107 : vector<8x1xi32> to vector<8x64xi32>
    %1109 = arith.cmpi eq, %4, %1108 : vector<8x64xi32>
    %1110 = vector.extract_strided_slice %3 {offsets = [0, 145], sizes = [8, 1], strides = [1, 1]} : vector<8x384xf32> to vector<8x1xf32>
    %1111 = vector.shape_cast %1110 : vector<8x1xf32> to vector<8x1xf32>
    %1112 = vector.broadcast %1111 : vector<8x1xf32> to vector<8x64xf32>
    %1113 = arith.select %1109, %1112, %1106 : vector<8x64xi1>, vector<8x64xf32>
    %1114 = vector.extract_strided_slice %1 {offsets = [0, 144], sizes = [8, 1], strides = [1, 1]} : vector<8x384xi32> to vector<8x1xi32>
    %1115 = vector.broadcast %1114 : vector<8x1xi32> to vector<8x64xi32>
    %1116 = arith.cmpi eq, %4, %1115 : vector<8x64xi32>
    %1117 = vector.extract_strided_slice %3 {offsets = [0, 144], sizes = [8, 1], strides = [1, 1]} : vector<8x384xf32> to vector<8x1xf32>
    %1118 = vector.shape_cast %1117 : vector<8x1xf32> to vector<8x1xf32>
    %1119 = vector.broadcast %1118 : vector<8x1xf32> to vector<8x64xf32>
    %1120 = arith.select %1116, %1119, %1113 : vector<8x64xi1>, vector<8x64xf32>
    %1121 = arith.addf %1063, %1120 : vector<8x64xf32>
    %1122 = vector.extract_strided_slice %1 {offsets = [0, 159], sizes = [8, 1], strides = [1, 1]} : vector<8x384xi32> to vector<8x1xi32>
    %1123 = vector.broadcast %1122 : vector<8x1xi32> to vector<8x64xi32>
    %1124 = arith.cmpi eq, %4, %1123 : vector<8x64xi32>
    %1125 = vector.extract_strided_slice %3 {offsets = [0, 159], sizes = [8, 1], strides = [1, 1]} : vector<8x384xf32> to vector<8x1xf32>
    %cst_40 = arith.constant 0.000000e+00 : f32
    %1126 = vector.shape_cast %1125 : vector<8x1xf32> to vector<8x1xf32>
    %1127 = vector.broadcast %1126 : vector<8x1xf32> to vector<8x64xf32>
    %1128 = vector.broadcast %cst_40 : f32 to vector<8x64xf32>
    %1129 = arith.select %1124, %1127, %1128 : vector<8x64xi1>, vector<8x64xf32>
    %1130 = vector.extract_strided_slice %1 {offsets = [0, 158], sizes = [8, 1], strides = [1, 1]} : vector<8x384xi32> to vector<8x1xi32>
    %1131 = vector.broadcast %1130 : vector<8x1xi32> to vector<8x64xi32>
    %1132 = arith.cmpi eq, %4, %1131 : vector<8x64xi32>
    %1133 = vector.extract_strided_slice %3 {offsets = [0, 158], sizes = [8, 1], strides = [1, 1]} : vector<8x384xf32> to vector<8x1xf32>
    %1134 = vector.shape_cast %1133 : vector<8x1xf32> to vector<8x1xf32>
    %1135 = vector.broadcast %1134 : vector<8x1xf32> to vector<8x64xf32>
    %1136 = arith.select %1132, %1135, %1129 : vector<8x64xi1>, vector<8x64xf32>
    %1137 = vector.extract_strided_slice %1 {offsets = [0, 157], sizes = [8, 1], strides = [1, 1]} : vector<8x384xi32> to vector<8x1xi32>
    %1138 = vector.broadcast %1137 : vector<8x1xi32> to vector<8x64xi32>
    %1139 = arith.cmpi eq, %4, %1138 : vector<8x64xi32>
    %1140 = vector.extract_strided_slice %3 {offsets = [0, 157], sizes = [8, 1], strides = [1, 1]} : vector<8x384xf32> to vector<8x1xf32>
    %1141 = vector.shape_cast %1140 : vector<8x1xf32> to vector<8x1xf32>
    %1142 = vector.broadcast %1141 : vector<8x1xf32> to vector<8x64xf32>
    %1143 = arith.select %1139, %1142, %1136 : vector<8x64xi1>, vector<8x64xf32>
    %1144 = vector.extract_strided_slice %1 {offsets = [0, 156], sizes = [8, 1], strides = [1, 1]} : vector<8x384xi32> to vector<8x1xi32>
    %1145 = vector.broadcast %1144 : vector<8x1xi32> to vector<8x64xi32>
    %1146 = arith.cmpi eq, %4, %1145 : vector<8x64xi32>
    %1147 = vector.extract_strided_slice %3 {offsets = [0, 156], sizes = [8, 1], strides = [1, 1]} : vector<8x384xf32> to vector<8x1xf32>
    %1148 = vector.shape_cast %1147 : vector<8x1xf32> to vector<8x1xf32>
    %1149 = vector.broadcast %1148 : vector<8x1xf32> to vector<8x64xf32>
    %1150 = arith.select %1146, %1149, %1143 : vector<8x64xi1>, vector<8x64xf32>
    %1151 = vector.extract_strided_slice %1 {offsets = [0, 155], sizes = [8, 1], strides = [1, 1]} : vector<8x384xi32> to vector<8x1xi32>
    %1152 = vector.broadcast %1151 : vector<8x1xi32> to vector<8x64xi32>
    %1153 = arith.cmpi eq, %4, %1152 : vector<8x64xi32>
    %1154 = vector.extract_strided_slice %3 {offsets = [0, 155], sizes = [8, 1], strides = [1, 1]} : vector<8x384xf32> to vector<8x1xf32>
    %1155 = vector.shape_cast %1154 : vector<8x1xf32> to vector<8x1xf32>
    %1156 = vector.broadcast %1155 : vector<8x1xf32> to vector<8x64xf32>
    %1157 = arith.select %1153, %1156, %1150 : vector<8x64xi1>, vector<8x64xf32>
    %1158 = vector.extract_strided_slice %1 {offsets = [0, 154], sizes = [8, 1], strides = [1, 1]} : vector<8x384xi32> to vector<8x1xi32>
    %1159 = vector.broadcast %1158 : vector<8x1xi32> to vector<8x64xi32>
    %1160 = arith.cmpi eq, %4, %1159 : vector<8x64xi32>
    %1161 = vector.extract_strided_slice %3 {offsets = [0, 154], sizes = [8, 1], strides = [1, 1]} : vector<8x384xf32> to vector<8x1xf32>
    %1162 = vector.shape_cast %1161 : vector<8x1xf32> to vector<8x1xf32>
    %1163 = vector.broadcast %1162 : vector<8x1xf32> to vector<8x64xf32>
    %1164 = arith.select %1160, %1163, %1157 : vector<8x64xi1>, vector<8x64xf32>
    %1165 = vector.extract_strided_slice %1 {offsets = [0, 153], sizes = [8, 1], strides = [1, 1]} : vector<8x384xi32> to vector<8x1xi32>
    %1166 = vector.broadcast %1165 : vector<8x1xi32> to vector<8x64xi32>
    %1167 = arith.cmpi eq, %4, %1166 : vector<8x64xi32>
    %1168 = vector.extract_strided_slice %3 {offsets = [0, 153], sizes = [8, 1], strides = [1, 1]} : vector<8x384xf32> to vector<8x1xf32>
    %1169 = vector.shape_cast %1168 : vector<8x1xf32> to vector<8x1xf32>
    %1170 = vector.broadcast %1169 : vector<8x1xf32> to vector<8x64xf32>
    %1171 = arith.select %1167, %1170, %1164 : vector<8x64xi1>, vector<8x64xf32>
    %1172 = vector.extract_strided_slice %1 {offsets = [0, 152], sizes = [8, 1], strides = [1, 1]} : vector<8x384xi32> to vector<8x1xi32>
    %1173 = vector.broadcast %1172 : vector<8x1xi32> to vector<8x64xi32>
    %1174 = arith.cmpi eq, %4, %1173 : vector<8x64xi32>
    %1175 = vector.extract_strided_slice %3 {offsets = [0, 152], sizes = [8, 1], strides = [1, 1]} : vector<8x384xf32> to vector<8x1xf32>
    %1176 = vector.shape_cast %1175 : vector<8x1xf32> to vector<8x1xf32>
    %1177 = vector.broadcast %1176 : vector<8x1xf32> to vector<8x64xf32>
    %1178 = arith.select %1174, %1177, %1171 : vector<8x64xi1>, vector<8x64xf32>
    %1179 = arith.addf %1121, %1178 : vector<8x64xf32>
    %c0_41 = arith.constant 0 : index
    %c0_42 = arith.constant 0 : index
    %c16 = arith.constant 16 : index
    %1180 = vector.load %arg4[%c0_41, %c0_42, %c16] : memref<1x72x48xf32, #tpu.memory_space<vmem>>, vector<1x64x8xf32>
    %1181 = vector.shape_cast %1180 : vector<1x64x8xf32> to vector<64x8xf32>
    %cst_43 = arith.constant dense<0.000000e+00> : vector<8x8xf32>
    %1182 = tpu.matmul %1179, %1181, %cst_43 {dimension_numbers = #tpu.dot_dimension_numbers<[1], [0], [0], [1], [0, 0, 1, 1], [], []>} : vector<8x64xf32>, vector<64x8xf32>, vector<8x8xf32> -> vector<8x8xf32>
    %1183 = arith.addf %948, %1182 : vector<8x8xf32>
    %1184 = vector.extract_strided_slice %1 {offsets = [0, 167], sizes = [8, 1], strides = [1, 1]} : vector<8x384xi32> to vector<8x1xi32>
    %1185 = vector.broadcast %1184 : vector<8x1xi32> to vector<8x8xi32>
    %1186 = arith.cmpi eq, %5, %1185 : vector<8x8xi32>
    %1187 = vector.extract_strided_slice %3 {offsets = [0, 167], sizes = [8, 1], strides = [1, 1]} : vector<8x384xf32> to vector<8x1xf32>
    %cst_44 = arith.constant 0.000000e+00 : f32
    %1188 = vector.shape_cast %1187 : vector<8x1xf32> to vector<8x1xf32>
    %1189 = vector.broadcast %1188 : vector<8x1xf32> to vector<8x8xf32>
    %1190 = vector.broadcast %cst_44 : f32 to vector<8x8xf32>
    %1191 = arith.select %1186, %1189, %1190 : vector<8x8xi1>, vector<8x8xf32>
    %1192 = vector.extract_strided_slice %1 {offsets = [0, 166], sizes = [8, 1], strides = [1, 1]} : vector<8x384xi32> to vector<8x1xi32>
    %1193 = vector.broadcast %1192 : vector<8x1xi32> to vector<8x8xi32>
    %1194 = arith.cmpi eq, %5, %1193 : vector<8x8xi32>
    %1195 = vector.extract_strided_slice %3 {offsets = [0, 166], sizes = [8, 1], strides = [1, 1]} : vector<8x384xf32> to vector<8x1xf32>
    %1196 = vector.shape_cast %1195 : vector<8x1xf32> to vector<8x1xf32>
    %1197 = vector.broadcast %1196 : vector<8x1xf32> to vector<8x8xf32>
    %1198 = arith.select %1194, %1197, %1191 : vector<8x8xi1>, vector<8x8xf32>
    %1199 = vector.extract_strided_slice %1 {offsets = [0, 165], sizes = [8, 1], strides = [1, 1]} : vector<8x384xi32> to vector<8x1xi32>
    %1200 = vector.broadcast %1199 : vector<8x1xi32> to vector<8x8xi32>
    %1201 = arith.cmpi eq, %5, %1200 : vector<8x8xi32>
    %1202 = vector.extract_strided_slice %3 {offsets = [0, 165], sizes = [8, 1], strides = [1, 1]} : vector<8x384xf32> to vector<8x1xf32>
    %1203 = vector.shape_cast %1202 : vector<8x1xf32> to vector<8x1xf32>
    %1204 = vector.broadcast %1203 : vector<8x1xf32> to vector<8x8xf32>
    %1205 = arith.select %1201, %1204, %1198 : vector<8x8xi1>, vector<8x8xf32>
    %1206 = vector.extract_strided_slice %1 {offsets = [0, 164], sizes = [8, 1], strides = [1, 1]} : vector<8x384xi32> to vector<8x1xi32>
    %1207 = vector.broadcast %1206 : vector<8x1xi32> to vector<8x8xi32>
    %1208 = arith.cmpi eq, %5, %1207 : vector<8x8xi32>
    %1209 = vector.extract_strided_slice %3 {offsets = [0, 164], sizes = [8, 1], strides = [1, 1]} : vector<8x384xf32> to vector<8x1xf32>
    %1210 = vector.shape_cast %1209 : vector<8x1xf32> to vector<8x1xf32>
    %1211 = vector.broadcast %1210 : vector<8x1xf32> to vector<8x8xf32>
    %1212 = arith.select %1208, %1211, %1205 : vector<8x8xi1>, vector<8x8xf32>
    %1213 = vector.extract_strided_slice %1 {offsets = [0, 163], sizes = [8, 1], strides = [1, 1]} : vector<8x384xi32> to vector<8x1xi32>
    %1214 = vector.broadcast %1213 : vector<8x1xi32> to vector<8x8xi32>
    %1215 = arith.cmpi eq, %5, %1214 : vector<8x8xi32>
    %1216 = vector.extract_strided_slice %3 {offsets = [0, 163], sizes = [8, 1], strides = [1, 1]} : vector<8x384xf32> to vector<8x1xf32>
    %1217 = vector.shape_cast %1216 : vector<8x1xf32> to vector<8x1xf32>
    %1218 = vector.broadcast %1217 : vector<8x1xf32> to vector<8x8xf32>
    %1219 = arith.select %1215, %1218, %1212 : vector<8x8xi1>, vector<8x8xf32>
    %1220 = vector.extract_strided_slice %1 {offsets = [0, 162], sizes = [8, 1], strides = [1, 1]} : vector<8x384xi32> to vector<8x1xi32>
    %1221 = vector.broadcast %1220 : vector<8x1xi32> to vector<8x8xi32>
    %1222 = arith.cmpi eq, %5, %1221 : vector<8x8xi32>
    %1223 = vector.extract_strided_slice %3 {offsets = [0, 162], sizes = [8, 1], strides = [1, 1]} : vector<8x384xf32> to vector<8x1xf32>
    %1224 = vector.shape_cast %1223 : vector<8x1xf32> to vector<8x1xf32>
    %1225 = vector.broadcast %1224 : vector<8x1xf32> to vector<8x8xf32>
    %1226 = arith.select %1222, %1225, %1219 : vector<8x8xi1>, vector<8x8xf32>
    %1227 = vector.extract_strided_slice %1 {offsets = [0, 161], sizes = [8, 1], strides = [1, 1]} : vector<8x384xi32> to vector<8x1xi32>
    %1228 = vector.broadcast %1227 : vector<8x1xi32> to vector<8x8xi32>
    %1229 = arith.cmpi eq, %5, %1228 : vector<8x8xi32>
    %1230 = vector.extract_strided_slice %3 {offsets = [0, 161], sizes = [8, 1], strides = [1, 1]} : vector<8x384xf32> to vector<8x1xf32>
    %1231 = vector.shape_cast %1230 : vector<8x1xf32> to vector<8x1xf32>
    %1232 = vector.broadcast %1231 : vector<8x1xf32> to vector<8x8xf32>
    %1233 = arith.select %1229, %1232, %1226 : vector<8x8xi1>, vector<8x8xf32>
    %1234 = vector.extract_strided_slice %1 {offsets = [0, 160], sizes = [8, 1], strides = [1, 1]} : vector<8x384xi32> to vector<8x1xi32>
    %1235 = vector.broadcast %1234 : vector<8x1xi32> to vector<8x8xi32>
    %1236 = arith.cmpi eq, %5, %1235 : vector<8x8xi32>
    %1237 = vector.extract_strided_slice %3 {offsets = [0, 160], sizes = [8, 1], strides = [1, 1]} : vector<8x384xf32> to vector<8x1xf32>
    %1238 = vector.shape_cast %1237 : vector<8x1xf32> to vector<8x1xf32>
    %1239 = vector.broadcast %1238 : vector<8x1xf32> to vector<8x8xf32>
    %1240 = arith.select %1236, %1239, %1233 : vector<8x8xi1>, vector<8x8xf32>
    %1241 = vector.extract_strided_slice %1 {offsets = [0, 175], sizes = [8, 1], strides = [1, 1]} : vector<8x384xi32> to vector<8x1xi32>
    %1242 = vector.broadcast %1241 : vector<8x1xi32> to vector<8x8xi32>
    %1243 = arith.cmpi eq, %5, %1242 : vector<8x8xi32>
    %1244 = vector.extract_strided_slice %3 {offsets = [0, 175], sizes = [8, 1], strides = [1, 1]} : vector<8x384xf32> to vector<8x1xf32>
    %cst_45 = arith.constant 0.000000e+00 : f32
    %1245 = vector.shape_cast %1244 : vector<8x1xf32> to vector<8x1xf32>
    %1246 = vector.broadcast %1245 : vector<8x1xf32> to vector<8x8xf32>
    %1247 = vector.broadcast %cst_45 : f32 to vector<8x8xf32>
    %1248 = arith.select %1243, %1246, %1247 : vector<8x8xi1>, vector<8x8xf32>
    %1249 = vector.extract_strided_slice %1 {offsets = [0, 174], sizes = [8, 1], strides = [1, 1]} : vector<8x384xi32> to vector<8x1xi32>
    %1250 = vector.broadcast %1249 : vector<8x1xi32> to vector<8x8xi32>
    %1251 = arith.cmpi eq, %5, %1250 : vector<8x8xi32>
    %1252 = vector.extract_strided_slice %3 {offsets = [0, 174], sizes = [8, 1], strides = [1, 1]} : vector<8x384xf32> to vector<8x1xf32>
    %1253 = vector.shape_cast %1252 : vector<8x1xf32> to vector<8x1xf32>
    %1254 = vector.broadcast %1253 : vector<8x1xf32> to vector<8x8xf32>
    %1255 = arith.select %1251, %1254, %1248 : vector<8x8xi1>, vector<8x8xf32>
    %1256 = vector.extract_strided_slice %1 {offsets = [0, 173], sizes = [8, 1], strides = [1, 1]} : vector<8x384xi32> to vector<8x1xi32>
    %1257 = vector.broadcast %1256 : vector<8x1xi32> to vector<8x8xi32>
    %1258 = arith.cmpi eq, %5, %1257 : vector<8x8xi32>
    %1259 = vector.extract_strided_slice %3 {offsets = [0, 173], sizes = [8, 1], strides = [1, 1]} : vector<8x384xf32> to vector<8x1xf32>
    %1260 = vector.shape_cast %1259 : vector<8x1xf32> to vector<8x1xf32>
    %1261 = vector.broadcast %1260 : vector<8x1xf32> to vector<8x8xf32>
    %1262 = arith.select %1258, %1261, %1255 : vector<8x8xi1>, vector<8x8xf32>
    %1263 = vector.extract_strided_slice %1 {offsets = [0, 172], sizes = [8, 1], strides = [1, 1]} : vector<8x384xi32> to vector<8x1xi32>
    %1264 = vector.broadcast %1263 : vector<8x1xi32> to vector<8x8xi32>
    %1265 = arith.cmpi eq, %5, %1264 : vector<8x8xi32>
    %1266 = vector.extract_strided_slice %3 {offsets = [0, 172], sizes = [8, 1], strides = [1, 1]} : vector<8x384xf32> to vector<8x1xf32>
    %1267 = vector.shape_cast %1266 : vector<8x1xf32> to vector<8x1xf32>
    %1268 = vector.broadcast %1267 : vector<8x1xf32> to vector<8x8xf32>
    %1269 = arith.select %1265, %1268, %1262 : vector<8x8xi1>, vector<8x8xf32>
    %1270 = vector.extract_strided_slice %1 {offsets = [0, 171], sizes = [8, 1], strides = [1, 1]} : vector<8x384xi32> to vector<8x1xi32>
    %1271 = vector.broadcast %1270 : vector<8x1xi32> to vector<8x8xi32>
    %1272 = arith.cmpi eq, %5, %1271 : vector<8x8xi32>
    %1273 = vector.extract_strided_slice %3 {offsets = [0, 171], sizes = [8, 1], strides = [1, 1]} : vector<8x384xf32> to vector<8x1xf32>
    %1274 = vector.shape_cast %1273 : vector<8x1xf32> to vector<8x1xf32>
    %1275 = vector.broadcast %1274 : vector<8x1xf32> to vector<8x8xf32>
    %1276 = arith.select %1272, %1275, %1269 : vector<8x8xi1>, vector<8x8xf32>
    %1277 = vector.extract_strided_slice %1 {offsets = [0, 170], sizes = [8, 1], strides = [1, 1]} : vector<8x384xi32> to vector<8x1xi32>
    %1278 = vector.broadcast %1277 : vector<8x1xi32> to vector<8x8xi32>
    %1279 = arith.cmpi eq, %5, %1278 : vector<8x8xi32>
    %1280 = vector.extract_strided_slice %3 {offsets = [0, 170], sizes = [8, 1], strides = [1, 1]} : vector<8x384xf32> to vector<8x1xf32>
    %1281 = vector.shape_cast %1280 : vector<8x1xf32> to vector<8x1xf32>
    %1282 = vector.broadcast %1281 : vector<8x1xf32> to vector<8x8xf32>
    %1283 = arith.select %1279, %1282, %1276 : vector<8x8xi1>, vector<8x8xf32>
    %1284 = vector.extract_strided_slice %1 {offsets = [0, 169], sizes = [8, 1], strides = [1, 1]} : vector<8x384xi32> to vector<8x1xi32>
    %1285 = vector.broadcast %1284 : vector<8x1xi32> to vector<8x8xi32>
    %1286 = arith.cmpi eq, %5, %1285 : vector<8x8xi32>
    %1287 = vector.extract_strided_slice %3 {offsets = [0, 169], sizes = [8, 1], strides = [1, 1]} : vector<8x384xf32> to vector<8x1xf32>
    %1288 = vector.shape_cast %1287 : vector<8x1xf32> to vector<8x1xf32>
    %1289 = vector.broadcast %1288 : vector<8x1xf32> to vector<8x8xf32>
    %1290 = arith.select %1286, %1289, %1283 : vector<8x8xi1>, vector<8x8xf32>
    %1291 = vector.extract_strided_slice %1 {offsets = [0, 168], sizes = [8, 1], strides = [1, 1]} : vector<8x384xi32> to vector<8x1xi32>
    %1292 = vector.broadcast %1291 : vector<8x1xi32> to vector<8x8xi32>
    %1293 = arith.cmpi eq, %5, %1292 : vector<8x8xi32>
    %1294 = vector.extract_strided_slice %3 {offsets = [0, 168], sizes = [8, 1], strides = [1, 1]} : vector<8x384xf32> to vector<8x1xf32>
    %1295 = vector.shape_cast %1294 : vector<8x1xf32> to vector<8x1xf32>
    %1296 = vector.broadcast %1295 : vector<8x1xf32> to vector<8x8xf32>
    %1297 = arith.select %1293, %1296, %1290 : vector<8x8xi1>, vector<8x8xf32>
    %1298 = arith.addf %1240, %1297 : vector<8x8xf32>
    %1299 = vector.extract_strided_slice %1 {offsets = [0, 183], sizes = [8, 1], strides = [1, 1]} : vector<8x384xi32> to vector<8x1xi32>
    %1300 = vector.broadcast %1299 : vector<8x1xi32> to vector<8x8xi32>
    %1301 = arith.cmpi eq, %5, %1300 : vector<8x8xi32>
    %1302 = vector.extract_strided_slice %3 {offsets = [0, 183], sizes = [8, 1], strides = [1, 1]} : vector<8x384xf32> to vector<8x1xf32>
    %cst_46 = arith.constant 0.000000e+00 : f32
    %1303 = vector.shape_cast %1302 : vector<8x1xf32> to vector<8x1xf32>
    %1304 = vector.broadcast %1303 : vector<8x1xf32> to vector<8x8xf32>
    %1305 = vector.broadcast %cst_46 : f32 to vector<8x8xf32>
    %1306 = arith.select %1301, %1304, %1305 : vector<8x8xi1>, vector<8x8xf32>
    %1307 = vector.extract_strided_slice %1 {offsets = [0, 182], sizes = [8, 1], strides = [1, 1]} : vector<8x384xi32> to vector<8x1xi32>
    %1308 = vector.broadcast %1307 : vector<8x1xi32> to vector<8x8xi32>
    %1309 = arith.cmpi eq, %5, %1308 : vector<8x8xi32>
    %1310 = vector.extract_strided_slice %3 {offsets = [0, 182], sizes = [8, 1], strides = [1, 1]} : vector<8x384xf32> to vector<8x1xf32>
    %1311 = vector.shape_cast %1310 : vector<8x1xf32> to vector<8x1xf32>
    %1312 = vector.broadcast %1311 : vector<8x1xf32> to vector<8x8xf32>
    %1313 = arith.select %1309, %1312, %1306 : vector<8x8xi1>, vector<8x8xf32>
    %1314 = vector.extract_strided_slice %1 {offsets = [0, 181], sizes = [8, 1], strides = [1, 1]} : vector<8x384xi32> to vector<8x1xi32>
    %1315 = vector.broadcast %1314 : vector<8x1xi32> to vector<8x8xi32>
    %1316 = arith.cmpi eq, %5, %1315 : vector<8x8xi32>
    %1317 = vector.extract_strided_slice %3 {offsets = [0, 181], sizes = [8, 1], strides = [1, 1]} : vector<8x384xf32> to vector<8x1xf32>
    %1318 = vector.shape_cast %1317 : vector<8x1xf32> to vector<8x1xf32>
    %1319 = vector.broadcast %1318 : vector<8x1xf32> to vector<8x8xf32>
    %1320 = arith.select %1316, %1319, %1313 : vector<8x8xi1>, vector<8x8xf32>
    %1321 = vector.extract_strided_slice %1 {offsets = [0, 180], sizes = [8, 1], strides = [1, 1]} : vector<8x384xi32> to vector<8x1xi32>
    %1322 = vector.broadcast %1321 : vector<8x1xi32> to vector<8x8xi32>
    %1323 = arith.cmpi eq, %5, %1322 : vector<8x8xi32>
    %1324 = vector.extract_strided_slice %3 {offsets = [0, 180], sizes = [8, 1], strides = [1, 1]} : vector<8x384xf32> to vector<8x1xf32>
    %1325 = vector.shape_cast %1324 : vector<8x1xf32> to vector<8x1xf32>
    %1326 = vector.broadcast %1325 : vector<8x1xf32> to vector<8x8xf32>
    %1327 = arith.select %1323, %1326, %1320 : vector<8x8xi1>, vector<8x8xf32>
    %1328 = vector.extract_strided_slice %1 {offsets = [0, 179], sizes = [8, 1], strides = [1, 1]} : vector<8x384xi32> to vector<8x1xi32>
    %1329 = vector.broadcast %1328 : vector<8x1xi32> to vector<8x8xi32>
    %1330 = arith.cmpi eq, %5, %1329 : vector<8x8xi32>
    %1331 = vector.extract_strided_slice %3 {offsets = [0, 179], sizes = [8, 1], strides = [1, 1]} : vector<8x384xf32> to vector<8x1xf32>
    %1332 = vector.shape_cast %1331 : vector<8x1xf32> to vector<8x1xf32>
    %1333 = vector.broadcast %1332 : vector<8x1xf32> to vector<8x8xf32>
    %1334 = arith.select %1330, %1333, %1327 : vector<8x8xi1>, vector<8x8xf32>
    %1335 = vector.extract_strided_slice %1 {offsets = [0, 178], sizes = [8, 1], strides = [1, 1]} : vector<8x384xi32> to vector<8x1xi32>
    %1336 = vector.broadcast %1335 : vector<8x1xi32> to vector<8x8xi32>
    %1337 = arith.cmpi eq, %5, %1336 : vector<8x8xi32>
    %1338 = vector.extract_strided_slice %3 {offsets = [0, 178], sizes = [8, 1], strides = [1, 1]} : vector<8x384xf32> to vector<8x1xf32>
    %1339 = vector.shape_cast %1338 : vector<8x1xf32> to vector<8x1xf32>
    %1340 = vector.broadcast %1339 : vector<8x1xf32> to vector<8x8xf32>
    %1341 = arith.select %1337, %1340, %1334 : vector<8x8xi1>, vector<8x8xf32>
    %1342 = vector.extract_strided_slice %1 {offsets = [0, 177], sizes = [8, 1], strides = [1, 1]} : vector<8x384xi32> to vector<8x1xi32>
    %1343 = vector.broadcast %1342 : vector<8x1xi32> to vector<8x8xi32>
    %1344 = arith.cmpi eq, %5, %1343 : vector<8x8xi32>
    %1345 = vector.extract_strided_slice %3 {offsets = [0, 177], sizes = [8, 1], strides = [1, 1]} : vector<8x384xf32> to vector<8x1xf32>
    %1346 = vector.shape_cast %1345 : vector<8x1xf32> to vector<8x1xf32>
    %1347 = vector.broadcast %1346 : vector<8x1xf32> to vector<8x8xf32>
    %1348 = arith.select %1344, %1347, %1341 : vector<8x8xi1>, vector<8x8xf32>
    %1349 = vector.extract_strided_slice %1 {offsets = [0, 176], sizes = [8, 1], strides = [1, 1]} : vector<8x384xi32> to vector<8x1xi32>
    %1350 = vector.broadcast %1349 : vector<8x1xi32> to vector<8x8xi32>
    %1351 = arith.cmpi eq, %5, %1350 : vector<8x8xi32>
    %1352 = vector.extract_strided_slice %3 {offsets = [0, 176], sizes = [8, 1], strides = [1, 1]} : vector<8x384xf32> to vector<8x1xf32>
    %1353 = vector.shape_cast %1352 : vector<8x1xf32> to vector<8x1xf32>
    %1354 = vector.broadcast %1353 : vector<8x1xf32> to vector<8x8xf32>
    %1355 = arith.select %1351, %1354, %1348 : vector<8x8xi1>, vector<8x8xf32>
    %1356 = arith.addf %1298, %1355 : vector<8x8xf32>
    %1357 = vector.extract_strided_slice %1 {offsets = [0, 191], sizes = [8, 1], strides = [1, 1]} : vector<8x384xi32> to vector<8x1xi32>
    %1358 = vector.broadcast %1357 : vector<8x1xi32> to vector<8x8xi32>
    %1359 = arith.cmpi eq, %5, %1358 : vector<8x8xi32>
    %1360 = vector.extract_strided_slice %3 {offsets = [0, 191], sizes = [8, 1], strides = [1, 1]} : vector<8x384xf32> to vector<8x1xf32>
    %cst_47 = arith.constant 0.000000e+00 : f32
    %1361 = vector.shape_cast %1360 : vector<8x1xf32> to vector<8x1xf32>
    %1362 = vector.broadcast %1361 : vector<8x1xf32> to vector<8x8xf32>
    %1363 = vector.broadcast %cst_47 : f32 to vector<8x8xf32>
    %1364 = arith.select %1359, %1362, %1363 : vector<8x8xi1>, vector<8x8xf32>
    %1365 = vector.extract_strided_slice %1 {offsets = [0, 190], sizes = [8, 1], strides = [1, 1]} : vector<8x384xi32> to vector<8x1xi32>
    %1366 = vector.broadcast %1365 : vector<8x1xi32> to vector<8x8xi32>
    %1367 = arith.cmpi eq, %5, %1366 : vector<8x8xi32>
    %1368 = vector.extract_strided_slice %3 {offsets = [0, 190], sizes = [8, 1], strides = [1, 1]} : vector<8x384xf32> to vector<8x1xf32>
    %1369 = vector.shape_cast %1368 : vector<8x1xf32> to vector<8x1xf32>
    %1370 = vector.broadcast %1369 : vector<8x1xf32> to vector<8x8xf32>
    %1371 = arith.select %1367, %1370, %1364 : vector<8x8xi1>, vector<8x8xf32>
    %1372 = vector.extract_strided_slice %1 {offsets = [0, 189], sizes = [8, 1], strides = [1, 1]} : vector<8x384xi32> to vector<8x1xi32>
    %1373 = vector.broadcast %1372 : vector<8x1xi32> to vector<8x8xi32>
    %1374 = arith.cmpi eq, %5, %1373 : vector<8x8xi32>
    %1375 = vector.extract_strided_slice %3 {offsets = [0, 189], sizes = [8, 1], strides = [1, 1]} : vector<8x384xf32> to vector<8x1xf32>
    %1376 = vector.shape_cast %1375 : vector<8x1xf32> to vector<8x1xf32>
    %1377 = vector.broadcast %1376 : vector<8x1xf32> to vector<8x8xf32>
    %1378 = arith.select %1374, %1377, %1371 : vector<8x8xi1>, vector<8x8xf32>
    %1379 = vector.extract_strided_slice %1 {offsets = [0, 188], sizes = [8, 1], strides = [1, 1]} : vector<8x384xi32> to vector<8x1xi32>
    %1380 = vector.broadcast %1379 : vector<8x1xi32> to vector<8x8xi32>
    %1381 = arith.cmpi eq, %5, %1380 : vector<8x8xi32>
    %1382 = vector.extract_strided_slice %3 {offsets = [0, 188], sizes = [8, 1], strides = [1, 1]} : vector<8x384xf32> to vector<8x1xf32>
    %1383 = vector.shape_cast %1382 : vector<8x1xf32> to vector<8x1xf32>
    %1384 = vector.broadcast %1383 : vector<8x1xf32> to vector<8x8xf32>
    %1385 = arith.select %1381, %1384, %1378 : vector<8x8xi1>, vector<8x8xf32>
    %1386 = vector.extract_strided_slice %1 {offsets = [0, 187], sizes = [8, 1], strides = [1, 1]} : vector<8x384xi32> to vector<8x1xi32>
    %1387 = vector.broadcast %1386 : vector<8x1xi32> to vector<8x8xi32>
    %1388 = arith.cmpi eq, %5, %1387 : vector<8x8xi32>
    %1389 = vector.extract_strided_slice %3 {offsets = [0, 187], sizes = [8, 1], strides = [1, 1]} : vector<8x384xf32> to vector<8x1xf32>
    %1390 = vector.shape_cast %1389 : vector<8x1xf32> to vector<8x1xf32>
    %1391 = vector.broadcast %1390 : vector<8x1xf32> to vector<8x8xf32>
    %1392 = arith.select %1388, %1391, %1385 : vector<8x8xi1>, vector<8x8xf32>
    %1393 = vector.extract_strided_slice %1 {offsets = [0, 186], sizes = [8, 1], strides = [1, 1]} : vector<8x384xi32> to vector<8x1xi32>
    %1394 = vector.broadcast %1393 : vector<8x1xi32> to vector<8x8xi32>
    %1395 = arith.cmpi eq, %5, %1394 : vector<8x8xi32>
    %1396 = vector.extract_strided_slice %3 {offsets = [0, 186], sizes = [8, 1], strides = [1, 1]} : vector<8x384xf32> to vector<8x1xf32>
    %1397 = vector.shape_cast %1396 : vector<8x1xf32> to vector<8x1xf32>
    %1398 = vector.broadcast %1397 : vector<8x1xf32> to vector<8x8xf32>
    %1399 = arith.select %1395, %1398, %1392 : vector<8x8xi1>, vector<8x8xf32>
    %1400 = vector.extract_strided_slice %1 {offsets = [0, 185], sizes = [8, 1], strides = [1, 1]} : vector<8x384xi32> to vector<8x1xi32>
    %1401 = vector.broadcast %1400 : vector<8x1xi32> to vector<8x8xi32>
    %1402 = arith.cmpi eq, %5, %1401 : vector<8x8xi32>
    %1403 = vector.extract_strided_slice %3 {offsets = [0, 185], sizes = [8, 1], strides = [1, 1]} : vector<8x384xf32> to vector<8x1xf32>
    %1404 = vector.shape_cast %1403 : vector<8x1xf32> to vector<8x1xf32>
    %1405 = vector.broadcast %1404 : vector<8x1xf32> to vector<8x8xf32>
    %1406 = arith.select %1402, %1405, %1399 : vector<8x8xi1>, vector<8x8xf32>
    %1407 = vector.extract_strided_slice %1 {offsets = [0, 184], sizes = [8, 1], strides = [1, 1]} : vector<8x384xi32> to vector<8x1xi32>
    %1408 = vector.broadcast %1407 : vector<8x1xi32> to vector<8x8xi32>
    %1409 = arith.cmpi eq, %5, %1408 : vector<8x8xi32>
    %1410 = vector.extract_strided_slice %3 {offsets = [0, 184], sizes = [8, 1], strides = [1, 1]} : vector<8x384xf32> to vector<8x1xf32>
    %1411 = vector.shape_cast %1410 : vector<8x1xf32> to vector<8x1xf32>
    %1412 = vector.broadcast %1411 : vector<8x1xf32> to vector<8x8xf32>
    %1413 = arith.select %1409, %1412, %1406 : vector<8x8xi1>, vector<8x8xf32>
    %1414 = arith.addf %1356, %1413 : vector<8x8xf32>
    %c0_48 = arith.constant 0 : index
    %c64_49 = arith.constant 64 : index
    %c16_50 = arith.constant 16 : index
    %1415 = vector.load %arg4[%c0_48, %c64_49, %c16_50] : memref<1x72x48xf32, #tpu.memory_space<vmem>>, vector<1x8x8xf32>
    %1416 = vector.shape_cast %1415 : vector<1x8x8xf32> to vector<8x8xf32>
    %cst_51 = arith.constant dense<0.000000e+00> : vector<8x8xf32>
    %1417 = tpu.matmul %1414, %1416, %cst_51 {dimension_numbers = #tpu.dot_dimension_numbers<[1], [0], [0], [1], [0, 0, 1, 1], [], []>} : vector<8x8xf32>, vector<8x8xf32>, vector<8x8xf32> -> vector<8x8xf32>
    %1418 = arith.addf %1183, %1417 : vector<8x8xf32>
    %cst_52 = arith.constant 0.000000e+00 : f32
    %1419 = vector.broadcast %cst_52 : f32 to vector<8x8xf32>
    %1420 = vector.extract_strided_slice %1 {offsets = [0, 199], sizes = [8, 1], strides = [1, 1]} : vector<8x384xi32> to vector<8x1xi32>
    %1421 = vector.broadcast %1420 : vector<8x1xi32> to vector<8x64xi32>
    %1422 = arith.cmpi eq, %4, %1421 : vector<8x64xi32>
    %1423 = vector.extract_strided_slice %3 {offsets = [0, 199], sizes = [8, 1], strides = [1, 1]} : vector<8x384xf32> to vector<8x1xf32>
    %cst_53 = arith.constant 0.000000e+00 : f32
    %1424 = vector.shape_cast %1423 : vector<8x1xf32> to vector<8x1xf32>
    %1425 = vector.broadcast %1424 : vector<8x1xf32> to vector<8x64xf32>
    %1426 = vector.broadcast %cst_53 : f32 to vector<8x64xf32>
    %1427 = arith.select %1422, %1425, %1426 : vector<8x64xi1>, vector<8x64xf32>
    %1428 = vector.extract_strided_slice %1 {offsets = [0, 198], sizes = [8, 1], strides = [1, 1]} : vector<8x384xi32> to vector<8x1xi32>
    %1429 = vector.broadcast %1428 : vector<8x1xi32> to vector<8x64xi32>
    %1430 = arith.cmpi eq, %4, %1429 : vector<8x64xi32>
    %1431 = vector.extract_strided_slice %3 {offsets = [0, 198], sizes = [8, 1], strides = [1, 1]} : vector<8x384xf32> to vector<8x1xf32>
    %1432 = vector.shape_cast %1431 : vector<8x1xf32> to vector<8x1xf32>
    %1433 = vector.broadcast %1432 : vector<8x1xf32> to vector<8x64xf32>
    %1434 = arith.select %1430, %1433, %1427 : vector<8x64xi1>, vector<8x64xf32>
    %1435 = vector.extract_strided_slice %1 {offsets = [0, 197], sizes = [8, 1], strides = [1, 1]} : vector<8x384xi32> to vector<8x1xi32>
    %1436 = vector.broadcast %1435 : vector<8x1xi32> to vector<8x64xi32>
    %1437 = arith.cmpi eq, %4, %1436 : vector<8x64xi32>
    %1438 = vector.extract_strided_slice %3 {offsets = [0, 197], sizes = [8, 1], strides = [1, 1]} : vector<8x384xf32> to vector<8x1xf32>
    %1439 = vector.shape_cast %1438 : vector<8x1xf32> to vector<8x1xf32>
    %1440 = vector.broadcast %1439 : vector<8x1xf32> to vector<8x64xf32>
    %1441 = arith.select %1437, %1440, %1434 : vector<8x64xi1>, vector<8x64xf32>
    %1442 = vector.extract_strided_slice %1 {offsets = [0, 196], sizes = [8, 1], strides = [1, 1]} : vector<8x384xi32> to vector<8x1xi32>
    %1443 = vector.broadcast %1442 : vector<8x1xi32> to vector<8x64xi32>
    %1444 = arith.cmpi eq, %4, %1443 : vector<8x64xi32>
    %1445 = vector.extract_strided_slice %3 {offsets = [0, 196], sizes = [8, 1], strides = [1, 1]} : vector<8x384xf32> to vector<8x1xf32>
    %1446 = vector.shape_cast %1445 : vector<8x1xf32> to vector<8x1xf32>
    %1447 = vector.broadcast %1446 : vector<8x1xf32> to vector<8x64xf32>
    %1448 = arith.select %1444, %1447, %1441 : vector<8x64xi1>, vector<8x64xf32>
    %1449 = vector.extract_strided_slice %1 {offsets = [0, 195], sizes = [8, 1], strides = [1, 1]} : vector<8x384xi32> to vector<8x1xi32>
    %1450 = vector.broadcast %1449 : vector<8x1xi32> to vector<8x64xi32>
    %1451 = arith.cmpi eq, %4, %1450 : vector<8x64xi32>
    %1452 = vector.extract_strided_slice %3 {offsets = [0, 195], sizes = [8, 1], strides = [1, 1]} : vector<8x384xf32> to vector<8x1xf32>
    %1453 = vector.shape_cast %1452 : vector<8x1xf32> to vector<8x1xf32>
    %1454 = vector.broadcast %1453 : vector<8x1xf32> to vector<8x64xf32>
    %1455 = arith.select %1451, %1454, %1448 : vector<8x64xi1>, vector<8x64xf32>
    %1456 = vector.extract_strided_slice %1 {offsets = [0, 194], sizes = [8, 1], strides = [1, 1]} : vector<8x384xi32> to vector<8x1xi32>
    %1457 = vector.broadcast %1456 : vector<8x1xi32> to vector<8x64xi32>
    %1458 = arith.cmpi eq, %4, %1457 : vector<8x64xi32>
    %1459 = vector.extract_strided_slice %3 {offsets = [0, 194], sizes = [8, 1], strides = [1, 1]} : vector<8x384xf32> to vector<8x1xf32>
    %1460 = vector.shape_cast %1459 : vector<8x1xf32> to vector<8x1xf32>
    %1461 = vector.broadcast %1460 : vector<8x1xf32> to vector<8x64xf32>
    %1462 = arith.select %1458, %1461, %1455 : vector<8x64xi1>, vector<8x64xf32>
    %1463 = vector.extract_strided_slice %1 {offsets = [0, 193], sizes = [8, 1], strides = [1, 1]} : vector<8x384xi32> to vector<8x1xi32>
    %1464 = vector.broadcast %1463 : vector<8x1xi32> to vector<8x64xi32>
    %1465 = arith.cmpi eq, %4, %1464 : vector<8x64xi32>
    %1466 = vector.extract_strided_slice %3 {offsets = [0, 193], sizes = [8, 1], strides = [1, 1]} : vector<8x384xf32> to vector<8x1xf32>
    %1467 = vector.shape_cast %1466 : vector<8x1xf32> to vector<8x1xf32>
    %1468 = vector.broadcast %1467 : vector<8x1xf32> to vector<8x64xf32>
    %1469 = arith.select %1465, %1468, %1462 : vector<8x64xi1>, vector<8x64xf32>
    %1470 = vector.extract_strided_slice %1 {offsets = [0, 192], sizes = [8, 1], strides = [1, 1]} : vector<8x384xi32> to vector<8x1xi32>
    %1471 = vector.broadcast %1470 : vector<8x1xi32> to vector<8x64xi32>
    %1472 = arith.cmpi eq, %4, %1471 : vector<8x64xi32>
    %1473 = vector.extract_strided_slice %3 {offsets = [0, 192], sizes = [8, 1], strides = [1, 1]} : vector<8x384xf32> to vector<8x1xf32>
    %1474 = vector.shape_cast %1473 : vector<8x1xf32> to vector<8x1xf32>
    %1475 = vector.broadcast %1474 : vector<8x1xf32> to vector<8x64xf32>
    %1476 = arith.select %1472, %1475, %1469 : vector<8x64xi1>, vector<8x64xf32>
    %1477 = vector.extract_strided_slice %1 {offsets = [0, 207], sizes = [8, 1], strides = [1, 1]} : vector<8x384xi32> to vector<8x1xi32>
    %1478 = vector.broadcast %1477 : vector<8x1xi32> to vector<8x64xi32>
    %1479 = arith.cmpi eq, %4, %1478 : vector<8x64xi32>
    %1480 = vector.extract_strided_slice %3 {offsets = [0, 207], sizes = [8, 1], strides = [1, 1]} : vector<8x384xf32> to vector<8x1xf32>
    %cst_54 = arith.constant 0.000000e+00 : f32
    %1481 = vector.shape_cast %1480 : vector<8x1xf32> to vector<8x1xf32>
    %1482 = vector.broadcast %1481 : vector<8x1xf32> to vector<8x64xf32>
    %1483 = vector.broadcast %cst_54 : f32 to vector<8x64xf32>
    %1484 = arith.select %1479, %1482, %1483 : vector<8x64xi1>, vector<8x64xf32>
    %1485 = vector.extract_strided_slice %1 {offsets = [0, 206], sizes = [8, 1], strides = [1, 1]} : vector<8x384xi32> to vector<8x1xi32>
    %1486 = vector.broadcast %1485 : vector<8x1xi32> to vector<8x64xi32>
    %1487 = arith.cmpi eq, %4, %1486 : vector<8x64xi32>
    %1488 = vector.extract_strided_slice %3 {offsets = [0, 206], sizes = [8, 1], strides = [1, 1]} : vector<8x384xf32> to vector<8x1xf32>
    %1489 = vector.shape_cast %1488 : vector<8x1xf32> to vector<8x1xf32>
    %1490 = vector.broadcast %1489 : vector<8x1xf32> to vector<8x64xf32>
    %1491 = arith.select %1487, %1490, %1484 : vector<8x64xi1>, vector<8x64xf32>
    %1492 = vector.extract_strided_slice %1 {offsets = [0, 205], sizes = [8, 1], strides = [1, 1]} : vector<8x384xi32> to vector<8x1xi32>
    %1493 = vector.broadcast %1492 : vector<8x1xi32> to vector<8x64xi32>
    %1494 = arith.cmpi eq, %4, %1493 : vector<8x64xi32>
    %1495 = vector.extract_strided_slice %3 {offsets = [0, 205], sizes = [8, 1], strides = [1, 1]} : vector<8x384xf32> to vector<8x1xf32>
    %1496 = vector.shape_cast %1495 : vector<8x1xf32> to vector<8x1xf32>
    %1497 = vector.broadcast %1496 : vector<8x1xf32> to vector<8x64xf32>
    %1498 = arith.select %1494, %1497, %1491 : vector<8x64xi1>, vector<8x64xf32>
    %1499 = vector.extract_strided_slice %1 {offsets = [0, 204], sizes = [8, 1], strides = [1, 1]} : vector<8x384xi32> to vector<8x1xi32>
    %1500 = vector.broadcast %1499 : vector<8x1xi32> to vector<8x64xi32>
    %1501 = arith.cmpi eq, %4, %1500 : vector<8x64xi32>
    %1502 = vector.extract_strided_slice %3 {offsets = [0, 204], sizes = [8, 1], strides = [1, 1]} : vector<8x384xf32> to vector<8x1xf32>
    %1503 = vector.shape_cast %1502 : vector<8x1xf32> to vector<8x1xf32>
    %1504 = vector.broadcast %1503 : vector<8x1xf32> to vector<8x64xf32>
    %1505 = arith.select %1501, %1504, %1498 : vector<8x64xi1>, vector<8x64xf32>
    %1506 = vector.extract_strided_slice %1 {offsets = [0, 203], sizes = [8, 1], strides = [1, 1]} : vector<8x384xi32> to vector<8x1xi32>
    %1507 = vector.broadcast %1506 : vector<8x1xi32> to vector<8x64xi32>
    %1508 = arith.cmpi eq, %4, %1507 : vector<8x64xi32>
    %1509 = vector.extract_strided_slice %3 {offsets = [0, 203], sizes = [8, 1], strides = [1, 1]} : vector<8x384xf32> to vector<8x1xf32>
    %1510 = vector.shape_cast %1509 : vector<8x1xf32> to vector<8x1xf32>
    %1511 = vector.broadcast %1510 : vector<8x1xf32> to vector<8x64xf32>
    %1512 = arith.select %1508, %1511, %1505 : vector<8x64xi1>, vector<8x64xf32>
    %1513 = vector.extract_strided_slice %1 {offsets = [0, 202], sizes = [8, 1], strides = [1, 1]} : vector<8x384xi32> to vector<8x1xi32>
    %1514 = vector.broadcast %1513 : vector<8x1xi32> to vector<8x64xi32>
    %1515 = arith.cmpi eq, %4, %1514 : vector<8x64xi32>
    %1516 = vector.extract_strided_slice %3 {offsets = [0, 202], sizes = [8, 1], strides = [1, 1]} : vector<8x384xf32> to vector<8x1xf32>
    %1517 = vector.shape_cast %1516 : vector<8x1xf32> to vector<8x1xf32>
    %1518 = vector.broadcast %1517 : vector<8x1xf32> to vector<8x64xf32>
    %1519 = arith.select %1515, %1518, %1512 : vector<8x64xi1>, vector<8x64xf32>
    %1520 = vector.extract_strided_slice %1 {offsets = [0, 201], sizes = [8, 1], strides = [1, 1]} : vector<8x384xi32> to vector<8x1xi32>
    %1521 = vector.broadcast %1520 : vector<8x1xi32> to vector<8x64xi32>
    %1522 = arith.cmpi eq, %4, %1521 : vector<8x64xi32>
    %1523 = vector.extract_strided_slice %3 {offsets = [0, 201], sizes = [8, 1], strides = [1, 1]} : vector<8x384xf32> to vector<8x1xf32>
    %1524 = vector.shape_cast %1523 : vector<8x1xf32> to vector<8x1xf32>
    %1525 = vector.broadcast %1524 : vector<8x1xf32> to vector<8x64xf32>
    %1526 = arith.select %1522, %1525, %1519 : vector<8x64xi1>, vector<8x64xf32>
    %1527 = vector.extract_strided_slice %1 {offsets = [0, 200], sizes = [8, 1], strides = [1, 1]} : vector<8x384xi32> to vector<8x1xi32>
    %1528 = vector.broadcast %1527 : vector<8x1xi32> to vector<8x64xi32>
    %1529 = arith.cmpi eq, %4, %1528 : vector<8x64xi32>
    %1530 = vector.extract_strided_slice %3 {offsets = [0, 200], sizes = [8, 1], strides = [1, 1]} : vector<8x384xf32> to vector<8x1xf32>
    %1531 = vector.shape_cast %1530 : vector<8x1xf32> to vector<8x1xf32>
    %1532 = vector.broadcast %1531 : vector<8x1xf32> to vector<8x64xf32>
    %1533 = arith.select %1529, %1532, %1526 : vector<8x64xi1>, vector<8x64xf32>
    %1534 = arith.addf %1476, %1533 : vector<8x64xf32>
    %1535 = vector.extract_strided_slice %1 {offsets = [0, 215], sizes = [8, 1], strides = [1, 1]} : vector<8x384xi32> to vector<8x1xi32>
    %1536 = vector.broadcast %1535 : vector<8x1xi32> to vector<8x64xi32>
    %1537 = arith.cmpi eq, %4, %1536 : vector<8x64xi32>
    %1538 = vector.extract_strided_slice %3 {offsets = [0, 215], sizes = [8, 1], strides = [1, 1]} : vector<8x384xf32> to vector<8x1xf32>
    %cst_55 = arith.constant 0.000000e+00 : f32
    %1539 = vector.shape_cast %1538 : vector<8x1xf32> to vector<8x1xf32>
    %1540 = vector.broadcast %1539 : vector<8x1xf32> to vector<8x64xf32>
    %1541 = vector.broadcast %cst_55 : f32 to vector<8x64xf32>
    %1542 = arith.select %1537, %1540, %1541 : vector<8x64xi1>, vector<8x64xf32>
    %1543 = vector.extract_strided_slice %1 {offsets = [0, 214], sizes = [8, 1], strides = [1, 1]} : vector<8x384xi32> to vector<8x1xi32>
    %1544 = vector.broadcast %1543 : vector<8x1xi32> to vector<8x64xi32>
    %1545 = arith.cmpi eq, %4, %1544 : vector<8x64xi32>
    %1546 = vector.extract_strided_slice %3 {offsets = [0, 214], sizes = [8, 1], strides = [1, 1]} : vector<8x384xf32> to vector<8x1xf32>
    %1547 = vector.shape_cast %1546 : vector<8x1xf32> to vector<8x1xf32>
    %1548 = vector.broadcast %1547 : vector<8x1xf32> to vector<8x64xf32>
    %1549 = arith.select %1545, %1548, %1542 : vector<8x64xi1>, vector<8x64xf32>
    %1550 = vector.extract_strided_slice %1 {offsets = [0, 213], sizes = [8, 1], strides = [1, 1]} : vector<8x384xi32> to vector<8x1xi32>
    %1551 = vector.broadcast %1550 : vector<8x1xi32> to vector<8x64xi32>
    %1552 = arith.cmpi eq, %4, %1551 : vector<8x64xi32>
    %1553 = vector.extract_strided_slice %3 {offsets = [0, 213], sizes = [8, 1], strides = [1, 1]} : vector<8x384xf32> to vector<8x1xf32>
    %1554 = vector.shape_cast %1553 : vector<8x1xf32> to vector<8x1xf32>
    %1555 = vector.broadcast %1554 : vector<8x1xf32> to vector<8x64xf32>
    %1556 = arith.select %1552, %1555, %1549 : vector<8x64xi1>, vector<8x64xf32>
    %1557 = vector.extract_strided_slice %1 {offsets = [0, 212], sizes = [8, 1], strides = [1, 1]} : vector<8x384xi32> to vector<8x1xi32>
    %1558 = vector.broadcast %1557 : vector<8x1xi32> to vector<8x64xi32>
    %1559 = arith.cmpi eq, %4, %1558 : vector<8x64xi32>
    %1560 = vector.extract_strided_slice %3 {offsets = [0, 212], sizes = [8, 1], strides = [1, 1]} : vector<8x384xf32> to vector<8x1xf32>
    %1561 = vector.shape_cast %1560 : vector<8x1xf32> to vector<8x1xf32>
    %1562 = vector.broadcast %1561 : vector<8x1xf32> to vector<8x64xf32>
    %1563 = arith.select %1559, %1562, %1556 : vector<8x64xi1>, vector<8x64xf32>
    %1564 = vector.extract_strided_slice %1 {offsets = [0, 211], sizes = [8, 1], strides = [1, 1]} : vector<8x384xi32> to vector<8x1xi32>
    %1565 = vector.broadcast %1564 : vector<8x1xi32> to vector<8x64xi32>
    %1566 = arith.cmpi eq, %4, %1565 : vector<8x64xi32>
    %1567 = vector.extract_strided_slice %3 {offsets = [0, 211], sizes = [8, 1], strides = [1, 1]} : vector<8x384xf32> to vector<8x1xf32>
    %1568 = vector.shape_cast %1567 : vector<8x1xf32> to vector<8x1xf32>
    %1569 = vector.broadcast %1568 : vector<8x1xf32> to vector<8x64xf32>
    %1570 = arith.select %1566, %1569, %1563 : vector<8x64xi1>, vector<8x64xf32>
    %1571 = vector.extract_strided_slice %1 {offsets = [0, 210], sizes = [8, 1], strides = [1, 1]} : vector<8x384xi32> to vector<8x1xi32>
    %1572 = vector.broadcast %1571 : vector<8x1xi32> to vector<8x64xi32>
    %1573 = arith.cmpi eq, %4, %1572 : vector<8x64xi32>
    %1574 = vector.extract_strided_slice %3 {offsets = [0, 210], sizes = [8, 1], strides = [1, 1]} : vector<8x384xf32> to vector<8x1xf32>
    %1575 = vector.shape_cast %1574 : vector<8x1xf32> to vector<8x1xf32>
    %1576 = vector.broadcast %1575 : vector<8x1xf32> to vector<8x64xf32>
    %1577 = arith.select %1573, %1576, %1570 : vector<8x64xi1>, vector<8x64xf32>
    %1578 = vector.extract_strided_slice %1 {offsets = [0, 209], sizes = [8, 1], strides = [1, 1]} : vector<8x384xi32> to vector<8x1xi32>
    %1579 = vector.broadcast %1578 : vector<8x1xi32> to vector<8x64xi32>
    %1580 = arith.cmpi eq, %4, %1579 : vector<8x64xi32>
    %1581 = vector.extract_strided_slice %3 {offsets = [0, 209], sizes = [8, 1], strides = [1, 1]} : vector<8x384xf32> to vector<8x1xf32>
    %1582 = vector.shape_cast %1581 : vector<8x1xf32> to vector<8x1xf32>
    %1583 = vector.broadcast %1582 : vector<8x1xf32> to vector<8x64xf32>
    %1584 = arith.select %1580, %1583, %1577 : vector<8x64xi1>, vector<8x64xf32>
    %1585 = vector.extract_strided_slice %1 {offsets = [0, 208], sizes = [8, 1], strides = [1, 1]} : vector<8x384xi32> to vector<8x1xi32>
    %1586 = vector.broadcast %1585 : vector<8x1xi32> to vector<8x64xi32>
    %1587 = arith.cmpi eq, %4, %1586 : vector<8x64xi32>
    %1588 = vector.extract_strided_slice %3 {offsets = [0, 208], sizes = [8, 1], strides = [1, 1]} : vector<8x384xf32> to vector<8x1xf32>
    %1589 = vector.shape_cast %1588 : vector<8x1xf32> to vector<8x1xf32>
    %1590 = vector.broadcast %1589 : vector<8x1xf32> to vector<8x64xf32>
    %1591 = arith.select %1587, %1590, %1584 : vector<8x64xi1>, vector<8x64xf32>
    %1592 = arith.addf %1534, %1591 : vector<8x64xf32>
    %1593 = vector.extract_strided_slice %1 {offsets = [0, 223], sizes = [8, 1], strides = [1, 1]} : vector<8x384xi32> to vector<8x1xi32>
    %1594 = vector.broadcast %1593 : vector<8x1xi32> to vector<8x64xi32>
    %1595 = arith.cmpi eq, %4, %1594 : vector<8x64xi32>
    %1596 = vector.extract_strided_slice %3 {offsets = [0, 223], sizes = [8, 1], strides = [1, 1]} : vector<8x384xf32> to vector<8x1xf32>
    %cst_56 = arith.constant 0.000000e+00 : f32
    %1597 = vector.shape_cast %1596 : vector<8x1xf32> to vector<8x1xf32>
    %1598 = vector.broadcast %1597 : vector<8x1xf32> to vector<8x64xf32>
    %1599 = vector.broadcast %cst_56 : f32 to vector<8x64xf32>
    %1600 = arith.select %1595, %1598, %1599 : vector<8x64xi1>, vector<8x64xf32>
    %1601 = vector.extract_strided_slice %1 {offsets = [0, 222], sizes = [8, 1], strides = [1, 1]} : vector<8x384xi32> to vector<8x1xi32>
    %1602 = vector.broadcast %1601 : vector<8x1xi32> to vector<8x64xi32>
    %1603 = arith.cmpi eq, %4, %1602 : vector<8x64xi32>
    %1604 = vector.extract_strided_slice %3 {offsets = [0, 222], sizes = [8, 1], strides = [1, 1]} : vector<8x384xf32> to vector<8x1xf32>
    %1605 = vector.shape_cast %1604 : vector<8x1xf32> to vector<8x1xf32>
    %1606 = vector.broadcast %1605 : vector<8x1xf32> to vector<8x64xf32>
    %1607 = arith.select %1603, %1606, %1600 : vector<8x64xi1>, vector<8x64xf32>
    %1608 = vector.extract_strided_slice %1 {offsets = [0, 221], sizes = [8, 1], strides = [1, 1]} : vector<8x384xi32> to vector<8x1xi32>
    %1609 = vector.broadcast %1608 : vector<8x1xi32> to vector<8x64xi32>
    %1610 = arith.cmpi eq, %4, %1609 : vector<8x64xi32>
    %1611 = vector.extract_strided_slice %3 {offsets = [0, 221], sizes = [8, 1], strides = [1, 1]} : vector<8x384xf32> to vector<8x1xf32>
    %1612 = vector.shape_cast %1611 : vector<8x1xf32> to vector<8x1xf32>
    %1613 = vector.broadcast %1612 : vector<8x1xf32> to vector<8x64xf32>
    %1614 = arith.select %1610, %1613, %1607 : vector<8x64xi1>, vector<8x64xf32>
    %1615 = vector.extract_strided_slice %1 {offsets = [0, 220], sizes = [8, 1], strides = [1, 1]} : vector<8x384xi32> to vector<8x1xi32>
    %1616 = vector.broadcast %1615 : vector<8x1xi32> to vector<8x64xi32>
    %1617 = arith.cmpi eq, %4, %1616 : vector<8x64xi32>
    %1618 = vector.extract_strided_slice %3 {offsets = [0, 220], sizes = [8, 1], strides = [1, 1]} : vector<8x384xf32> to vector<8x1xf32>
    %1619 = vector.shape_cast %1618 : vector<8x1xf32> to vector<8x1xf32>
    %1620 = vector.broadcast %1619 : vector<8x1xf32> to vector<8x64xf32>
    %1621 = arith.select %1617, %1620, %1614 : vector<8x64xi1>, vector<8x64xf32>
    %1622 = vector.extract_strided_slice %1 {offsets = [0, 219], sizes = [8, 1], strides = [1, 1]} : vector<8x384xi32> to vector<8x1xi32>
    %1623 = vector.broadcast %1622 : vector<8x1xi32> to vector<8x64xi32>
    %1624 = arith.cmpi eq, %4, %1623 : vector<8x64xi32>
    %1625 = vector.extract_strided_slice %3 {offsets = [0, 219], sizes = [8, 1], strides = [1, 1]} : vector<8x384xf32> to vector<8x1xf32>
    %1626 = vector.shape_cast %1625 : vector<8x1xf32> to vector<8x1xf32>
    %1627 = vector.broadcast %1626 : vector<8x1xf32> to vector<8x64xf32>
    %1628 = arith.select %1624, %1627, %1621 : vector<8x64xi1>, vector<8x64xf32>
    %1629 = vector.extract_strided_slice %1 {offsets = [0, 218], sizes = [8, 1], strides = [1, 1]} : vector<8x384xi32> to vector<8x1xi32>
    %1630 = vector.broadcast %1629 : vector<8x1xi32> to vector<8x64xi32>
    %1631 = arith.cmpi eq, %4, %1630 : vector<8x64xi32>
    %1632 = vector.extract_strided_slice %3 {offsets = [0, 218], sizes = [8, 1], strides = [1, 1]} : vector<8x384xf32> to vector<8x1xf32>
    %1633 = vector.shape_cast %1632 : vector<8x1xf32> to vector<8x1xf32>
    %1634 = vector.broadcast %1633 : vector<8x1xf32> to vector<8x64xf32>
    %1635 = arith.select %1631, %1634, %1628 : vector<8x64xi1>, vector<8x64xf32>
    %1636 = vector.extract_strided_slice %1 {offsets = [0, 217], sizes = [8, 1], strides = [1, 1]} : vector<8x384xi32> to vector<8x1xi32>
    %1637 = vector.broadcast %1636 : vector<8x1xi32> to vector<8x64xi32>
    %1638 = arith.cmpi eq, %4, %1637 : vector<8x64xi32>
    %1639 = vector.extract_strided_slice %3 {offsets = [0, 217], sizes = [8, 1], strides = [1, 1]} : vector<8x384xf32> to vector<8x1xf32>
    %1640 = vector.shape_cast %1639 : vector<8x1xf32> to vector<8x1xf32>
    %1641 = vector.broadcast %1640 : vector<8x1xf32> to vector<8x64xf32>
    %1642 = arith.select %1638, %1641, %1635 : vector<8x64xi1>, vector<8x64xf32>
    %1643 = vector.extract_strided_slice %1 {offsets = [0, 216], sizes = [8, 1], strides = [1, 1]} : vector<8x384xi32> to vector<8x1xi32>
    %1644 = vector.broadcast %1643 : vector<8x1xi32> to vector<8x64xi32>
    %1645 = arith.cmpi eq, %4, %1644 : vector<8x64xi32>
    %1646 = vector.extract_strided_slice %3 {offsets = [0, 216], sizes = [8, 1], strides = [1, 1]} : vector<8x384xf32> to vector<8x1xf32>
    %1647 = vector.shape_cast %1646 : vector<8x1xf32> to vector<8x1xf32>
    %1648 = vector.broadcast %1647 : vector<8x1xf32> to vector<8x64xf32>
    %1649 = arith.select %1645, %1648, %1642 : vector<8x64xi1>, vector<8x64xf32>
    %1650 = arith.addf %1592, %1649 : vector<8x64xf32>
    %c0_57 = arith.constant 0 : index
    %c0_58 = arith.constant 0 : index
    %c24 = arith.constant 24 : index
    %1651 = vector.load %arg4[%c0_57, %c0_58, %c24] : memref<1x72x48xf32, #tpu.memory_space<vmem>>, vector<1x64x8xf32>
    %1652 = vector.shape_cast %1651 : vector<1x64x8xf32> to vector<64x8xf32>
    %cst_59 = arith.constant dense<0.000000e+00> : vector<8x8xf32>
    %1653 = tpu.matmul %1650, %1652, %cst_59 {dimension_numbers = #tpu.dot_dimension_numbers<[1], [0], [0], [1], [0, 0, 1, 1], [], []>} : vector<8x64xf32>, vector<64x8xf32>, vector<8x8xf32> -> vector<8x8xf32>
    %1654 = arith.addf %1419, %1653 : vector<8x8xf32>
    %1655 = vector.extract_strided_slice %1 {offsets = [0, 231], sizes = [8, 1], strides = [1, 1]} : vector<8x384xi32> to vector<8x1xi32>
    %1656 = vector.broadcast %1655 : vector<8x1xi32> to vector<8x8xi32>
    %1657 = arith.cmpi eq, %5, %1656 : vector<8x8xi32>
    %1658 = vector.extract_strided_slice %3 {offsets = [0, 231], sizes = [8, 1], strides = [1, 1]} : vector<8x384xf32> to vector<8x1xf32>
    %cst_60 = arith.constant 0.000000e+00 : f32
    %1659 = vector.shape_cast %1658 : vector<8x1xf32> to vector<8x1xf32>
    %1660 = vector.broadcast %1659 : vector<8x1xf32> to vector<8x8xf32>
    %1661 = vector.broadcast %cst_60 : f32 to vector<8x8xf32>
    %1662 = arith.select %1657, %1660, %1661 : vector<8x8xi1>, vector<8x8xf32>
    %1663 = vector.extract_strided_slice %1 {offsets = [0, 230], sizes = [8, 1], strides = [1, 1]} : vector<8x384xi32> to vector<8x1xi32>
    %1664 = vector.broadcast %1663 : vector<8x1xi32> to vector<8x8xi32>
    %1665 = arith.cmpi eq, %5, %1664 : vector<8x8xi32>
    %1666 = vector.extract_strided_slice %3 {offsets = [0, 230], sizes = [8, 1], strides = [1, 1]} : vector<8x384xf32> to vector<8x1xf32>
    %1667 = vector.shape_cast %1666 : vector<8x1xf32> to vector<8x1xf32>
    %1668 = vector.broadcast %1667 : vector<8x1xf32> to vector<8x8xf32>
    %1669 = arith.select %1665, %1668, %1662 : vector<8x8xi1>, vector<8x8xf32>
    %1670 = vector.extract_strided_slice %1 {offsets = [0, 229], sizes = [8, 1], strides = [1, 1]} : vector<8x384xi32> to vector<8x1xi32>
    %1671 = vector.broadcast %1670 : vector<8x1xi32> to vector<8x8xi32>
    %1672 = arith.cmpi eq, %5, %1671 : vector<8x8xi32>
    %1673 = vector.extract_strided_slice %3 {offsets = [0, 229], sizes = [8, 1], strides = [1, 1]} : vector<8x384xf32> to vector<8x1xf32>
    %1674 = vector.shape_cast %1673 : vector<8x1xf32> to vector<8x1xf32>
    %1675 = vector.broadcast %1674 : vector<8x1xf32> to vector<8x8xf32>
    %1676 = arith.select %1672, %1675, %1669 : vector<8x8xi1>, vector<8x8xf32>
    %1677 = vector.extract_strided_slice %1 {offsets = [0, 228], sizes = [8, 1], strides = [1, 1]} : vector<8x384xi32> to vector<8x1xi32>
    %1678 = vector.broadcast %1677 : vector<8x1xi32> to vector<8x8xi32>
    %1679 = arith.cmpi eq, %5, %1678 : vector<8x8xi32>
    %1680 = vector.extract_strided_slice %3 {offsets = [0, 228], sizes = [8, 1], strides = [1, 1]} : vector<8x384xf32> to vector<8x1xf32>
    %1681 = vector.shape_cast %1680 : vector<8x1xf32> to vector<8x1xf32>
    %1682 = vector.broadcast %1681 : vector<8x1xf32> to vector<8x8xf32>
    %1683 = arith.select %1679, %1682, %1676 : vector<8x8xi1>, vector<8x8xf32>
    %1684 = vector.extract_strided_slice %1 {offsets = [0, 227], sizes = [8, 1], strides = [1, 1]} : vector<8x384xi32> to vector<8x1xi32>
    %1685 = vector.broadcast %1684 : vector<8x1xi32> to vector<8x8xi32>
    %1686 = arith.cmpi eq, %5, %1685 : vector<8x8xi32>
    %1687 = vector.extract_strided_slice %3 {offsets = [0, 227], sizes = [8, 1], strides = [1, 1]} : vector<8x384xf32> to vector<8x1xf32>
    %1688 = vector.shape_cast %1687 : vector<8x1xf32> to vector<8x1xf32>
    %1689 = vector.broadcast %1688 : vector<8x1xf32> to vector<8x8xf32>
    %1690 = arith.select %1686, %1689, %1683 : vector<8x8xi1>, vector<8x8xf32>
    %1691 = vector.extract_strided_slice %1 {offsets = [0, 226], sizes = [8, 1], strides = [1, 1]} : vector<8x384xi32> to vector<8x1xi32>
    %1692 = vector.broadcast %1691 : vector<8x1xi32> to vector<8x8xi32>
    %1693 = arith.cmpi eq, %5, %1692 : vector<8x8xi32>
    %1694 = vector.extract_strided_slice %3 {offsets = [0, 226], sizes = [8, 1], strides = [1, 1]} : vector<8x384xf32> to vector<8x1xf32>
    %1695 = vector.shape_cast %1694 : vector<8x1xf32> to vector<8x1xf32>
    %1696 = vector.broadcast %1695 : vector<8x1xf32> to vector<8x8xf32>
    %1697 = arith.select %1693, %1696, %1690 : vector<8x8xi1>, vector<8x8xf32>
    %1698 = vector.extract_strided_slice %1 {offsets = [0, 225], sizes = [8, 1], strides = [1, 1]} : vector<8x384xi32> to vector<8x1xi32>
    %1699 = vector.broadcast %1698 : vector<8x1xi32> to vector<8x8xi32>
    %1700 = arith.cmpi eq, %5, %1699 : vector<8x8xi32>
    %1701 = vector.extract_strided_slice %3 {offsets = [0, 225], sizes = [8, 1], strides = [1, 1]} : vector<8x384xf32> to vector<8x1xf32>
    %1702 = vector.shape_cast %1701 : vector<8x1xf32> to vector<8x1xf32>
    %1703 = vector.broadcast %1702 : vector<8x1xf32> to vector<8x8xf32>
    %1704 = arith.select %1700, %1703, %1697 : vector<8x8xi1>, vector<8x8xf32>
    %1705 = vector.extract_strided_slice %1 {offsets = [0, 224], sizes = [8, 1], strides = [1, 1]} : vector<8x384xi32> to vector<8x1xi32>
    %1706 = vector.broadcast %1705 : vector<8x1xi32> to vector<8x8xi32>
    %1707 = arith.cmpi eq, %5, %1706 : vector<8x8xi32>
    %1708 = vector.extract_strided_slice %3 {offsets = [0, 224], sizes = [8, 1], strides = [1, 1]} : vector<8x384xf32> to vector<8x1xf32>
    %1709 = vector.shape_cast %1708 : vector<8x1xf32> to vector<8x1xf32>
    %1710 = vector.broadcast %1709 : vector<8x1xf32> to vector<8x8xf32>
    %1711 = arith.select %1707, %1710, %1704 : vector<8x8xi1>, vector<8x8xf32>
    %1712 = vector.extract_strided_slice %1 {offsets = [0, 239], sizes = [8, 1], strides = [1, 1]} : vector<8x384xi32> to vector<8x1xi32>
    %1713 = vector.broadcast %1712 : vector<8x1xi32> to vector<8x8xi32>
    %1714 = arith.cmpi eq, %5, %1713 : vector<8x8xi32>
    %1715 = vector.extract_strided_slice %3 {offsets = [0, 239], sizes = [8, 1], strides = [1, 1]} : vector<8x384xf32> to vector<8x1xf32>
    %cst_61 = arith.constant 0.000000e+00 : f32
    %1716 = vector.shape_cast %1715 : vector<8x1xf32> to vector<8x1xf32>
    %1717 = vector.broadcast %1716 : vector<8x1xf32> to vector<8x8xf32>
    %1718 = vector.broadcast %cst_61 : f32 to vector<8x8xf32>
    %1719 = arith.select %1714, %1717, %1718 : vector<8x8xi1>, vector<8x8xf32>
    %1720 = vector.extract_strided_slice %1 {offsets = [0, 238], sizes = [8, 1], strides = [1, 1]} : vector<8x384xi32> to vector<8x1xi32>
    %1721 = vector.broadcast %1720 : vector<8x1xi32> to vector<8x8xi32>
    %1722 = arith.cmpi eq, %5, %1721 : vector<8x8xi32>
    %1723 = vector.extract_strided_slice %3 {offsets = [0, 238], sizes = [8, 1], strides = [1, 1]} : vector<8x384xf32> to vector<8x1xf32>
    %1724 = vector.shape_cast %1723 : vector<8x1xf32> to vector<8x1xf32>
    %1725 = vector.broadcast %1724 : vector<8x1xf32> to vector<8x8xf32>
    %1726 = arith.select %1722, %1725, %1719 : vector<8x8xi1>, vector<8x8xf32>
    %1727 = vector.extract_strided_slice %1 {offsets = [0, 237], sizes = [8, 1], strides = [1, 1]} : vector<8x384xi32> to vector<8x1xi32>
    %1728 = vector.broadcast %1727 : vector<8x1xi32> to vector<8x8xi32>
    %1729 = arith.cmpi eq, %5, %1728 : vector<8x8xi32>
    %1730 = vector.extract_strided_slice %3 {offsets = [0, 237], sizes = [8, 1], strides = [1, 1]} : vector<8x384xf32> to vector<8x1xf32>
    %1731 = vector.shape_cast %1730 : vector<8x1xf32> to vector<8x1xf32>
    %1732 = vector.broadcast %1731 : vector<8x1xf32> to vector<8x8xf32>
    %1733 = arith.select %1729, %1732, %1726 : vector<8x8xi1>, vector<8x8xf32>
    %1734 = vector.extract_strided_slice %1 {offsets = [0, 236], sizes = [8, 1], strides = [1, 1]} : vector<8x384xi32> to vector<8x1xi32>
    %1735 = vector.broadcast %1734 : vector<8x1xi32> to vector<8x8xi32>
    %1736 = arith.cmpi eq, %5, %1735 : vector<8x8xi32>
    %1737 = vector.extract_strided_slice %3 {offsets = [0, 236], sizes = [8, 1], strides = [1, 1]} : vector<8x384xf32> to vector<8x1xf32>
    %1738 = vector.shape_cast %1737 : vector<8x1xf32> to vector<8x1xf32>
    %1739 = vector.broadcast %1738 : vector<8x1xf32> to vector<8x8xf32>
    %1740 = arith.select %1736, %1739, %1733 : vector<8x8xi1>, vector<8x8xf32>
    %1741 = vector.extract_strided_slice %1 {offsets = [0, 235], sizes = [8, 1], strides = [1, 1]} : vector<8x384xi32> to vector<8x1xi32>
    %1742 = vector.broadcast %1741 : vector<8x1xi32> to vector<8x8xi32>
    %1743 = arith.cmpi eq, %5, %1742 : vector<8x8xi32>
    %1744 = vector.extract_strided_slice %3 {offsets = [0, 235], sizes = [8, 1], strides = [1, 1]} : vector<8x384xf32> to vector<8x1xf32>
    %1745 = vector.shape_cast %1744 : vector<8x1xf32> to vector<8x1xf32>
    %1746 = vector.broadcast %1745 : vector<8x1xf32> to vector<8x8xf32>
    %1747 = arith.select %1743, %1746, %1740 : vector<8x8xi1>, vector<8x8xf32>
    %1748 = vector.extract_strided_slice %1 {offsets = [0, 234], sizes = [8, 1], strides = [1, 1]} : vector<8x384xi32> to vector<8x1xi32>
    %1749 = vector.broadcast %1748 : vector<8x1xi32> to vector<8x8xi32>
    %1750 = arith.cmpi eq, %5, %1749 : vector<8x8xi32>
    %1751 = vector.extract_strided_slice %3 {offsets = [0, 234], sizes = [8, 1], strides = [1, 1]} : vector<8x384xf32> to vector<8x1xf32>
    %1752 = vector.shape_cast %1751 : vector<8x1xf32> to vector<8x1xf32>
    %1753 = vector.broadcast %1752 : vector<8x1xf32> to vector<8x8xf32>
    %1754 = arith.select %1750, %1753, %1747 : vector<8x8xi1>, vector<8x8xf32>
    %1755 = vector.extract_strided_slice %1 {offsets = [0, 233], sizes = [8, 1], strides = [1, 1]} : vector<8x384xi32> to vector<8x1xi32>
    %1756 = vector.broadcast %1755 : vector<8x1xi32> to vector<8x8xi32>
    %1757 = arith.cmpi eq, %5, %1756 : vector<8x8xi32>
    %1758 = vector.extract_strided_slice %3 {offsets = [0, 233], sizes = [8, 1], strides = [1, 1]} : vector<8x384xf32> to vector<8x1xf32>
    %1759 = vector.shape_cast %1758 : vector<8x1xf32> to vector<8x1xf32>
    %1760 = vector.broadcast %1759 : vector<8x1xf32> to vector<8x8xf32>
    %1761 = arith.select %1757, %1760, %1754 : vector<8x8xi1>, vector<8x8xf32>
    %1762 = vector.extract_strided_slice %1 {offsets = [0, 232], sizes = [8, 1], strides = [1, 1]} : vector<8x384xi32> to vector<8x1xi32>
    %1763 = vector.broadcast %1762 : vector<8x1xi32> to vector<8x8xi32>
    %1764 = arith.cmpi eq, %5, %1763 : vector<8x8xi32>
    %1765 = vector.extract_strided_slice %3 {offsets = [0, 232], sizes = [8, 1], strides = [1, 1]} : vector<8x384xf32> to vector<8x1xf32>
    %1766 = vector.shape_cast %1765 : vector<8x1xf32> to vector<8x1xf32>
    %1767 = vector.broadcast %1766 : vector<8x1xf32> to vector<8x8xf32>
    %1768 = arith.select %1764, %1767, %1761 : vector<8x8xi1>, vector<8x8xf32>
    %1769 = arith.addf %1711, %1768 : vector<8x8xf32>
    %1770 = vector.extract_strided_slice %1 {offsets = [0, 247], sizes = [8, 1], strides = [1, 1]} : vector<8x384xi32> to vector<8x1xi32>
    %1771 = vector.broadcast %1770 : vector<8x1xi32> to vector<8x8xi32>
    %1772 = arith.cmpi eq, %5, %1771 : vector<8x8xi32>
    %1773 = vector.extract_strided_slice %3 {offsets = [0, 247], sizes = [8, 1], strides = [1, 1]} : vector<8x384xf32> to vector<8x1xf32>
    %cst_62 = arith.constant 0.000000e+00 : f32
    %1774 = vector.shape_cast %1773 : vector<8x1xf32> to vector<8x1xf32>
    %1775 = vector.broadcast %1774 : vector<8x1xf32> to vector<8x8xf32>
    %1776 = vector.broadcast %cst_62 : f32 to vector<8x8xf32>
    %1777 = arith.select %1772, %1775, %1776 : vector<8x8xi1>, vector<8x8xf32>
    %1778 = vector.extract_strided_slice %1 {offsets = [0, 246], sizes = [8, 1], strides = [1, 1]} : vector<8x384xi32> to vector<8x1xi32>
    %1779 = vector.broadcast %1778 : vector<8x1xi32> to vector<8x8xi32>
    %1780 = arith.cmpi eq, %5, %1779 : vector<8x8xi32>
    %1781 = vector.extract_strided_slice %3 {offsets = [0, 246], sizes = [8, 1], strides = [1, 1]} : vector<8x384xf32> to vector<8x1xf32>
    %1782 = vector.shape_cast %1781 : vector<8x1xf32> to vector<8x1xf32>
    %1783 = vector.broadcast %1782 : vector<8x1xf32> to vector<8x8xf32>
    %1784 = arith.select %1780, %1783, %1777 : vector<8x8xi1>, vector<8x8xf32>
    %1785 = vector.extract_strided_slice %1 {offsets = [0, 245], sizes = [8, 1], strides = [1, 1]} : vector<8x384xi32> to vector<8x1xi32>
    %1786 = vector.broadcast %1785 : vector<8x1xi32> to vector<8x8xi32>
    %1787 = arith.cmpi eq, %5, %1786 : vector<8x8xi32>
    %1788 = vector.extract_strided_slice %3 {offsets = [0, 245], sizes = [8, 1], strides = [1, 1]} : vector<8x384xf32> to vector<8x1xf32>
    %1789 = vector.shape_cast %1788 : vector<8x1xf32> to vector<8x1xf32>
    %1790 = vector.broadcast %1789 : vector<8x1xf32> to vector<8x8xf32>
    %1791 = arith.select %1787, %1790, %1784 : vector<8x8xi1>, vector<8x8xf32>
    %1792 = vector.extract_strided_slice %1 {offsets = [0, 244], sizes = [8, 1], strides = [1, 1]} : vector<8x384xi32> to vector<8x1xi32>
    %1793 = vector.broadcast %1792 : vector<8x1xi32> to vector<8x8xi32>
    %1794 = arith.cmpi eq, %5, %1793 : vector<8x8xi32>
    %1795 = vector.extract_strided_slice %3 {offsets = [0, 244], sizes = [8, 1], strides = [1, 1]} : vector<8x384xf32> to vector<8x1xf32>
    %1796 = vector.shape_cast %1795 : vector<8x1xf32> to vector<8x1xf32>
    %1797 = vector.broadcast %1796 : vector<8x1xf32> to vector<8x8xf32>
    %1798 = arith.select %1794, %1797, %1791 : vector<8x8xi1>, vector<8x8xf32>
    %1799 = vector.extract_strided_slice %1 {offsets = [0, 243], sizes = [8, 1], strides = [1, 1]} : vector<8x384xi32> to vector<8x1xi32>
    %1800 = vector.broadcast %1799 : vector<8x1xi32> to vector<8x8xi32>
    %1801 = arith.cmpi eq, %5, %1800 : vector<8x8xi32>
    %1802 = vector.extract_strided_slice %3 {offsets = [0, 243], sizes = [8, 1], strides = [1, 1]} : vector<8x384xf32> to vector<8x1xf32>
    %1803 = vector.shape_cast %1802 : vector<8x1xf32> to vector<8x1xf32>
    %1804 = vector.broadcast %1803 : vector<8x1xf32> to vector<8x8xf32>
    %1805 = arith.select %1801, %1804, %1798 : vector<8x8xi1>, vector<8x8xf32>
    %1806 = vector.extract_strided_slice %1 {offsets = [0, 242], sizes = [8, 1], strides = [1, 1]} : vector<8x384xi32> to vector<8x1xi32>
    %1807 = vector.broadcast %1806 : vector<8x1xi32> to vector<8x8xi32>
    %1808 = arith.cmpi eq, %5, %1807 : vector<8x8xi32>
    %1809 = vector.extract_strided_slice %3 {offsets = [0, 242], sizes = [8, 1], strides = [1, 1]} : vector<8x384xf32> to vector<8x1xf32>
    %1810 = vector.shape_cast %1809 : vector<8x1xf32> to vector<8x1xf32>
    %1811 = vector.broadcast %1810 : vector<8x1xf32> to vector<8x8xf32>
    %1812 = arith.select %1808, %1811, %1805 : vector<8x8xi1>, vector<8x8xf32>
    %1813 = vector.extract_strided_slice %1 {offsets = [0, 241], sizes = [8, 1], strides = [1, 1]} : vector<8x384xi32> to vector<8x1xi32>
    %1814 = vector.broadcast %1813 : vector<8x1xi32> to vector<8x8xi32>
    %1815 = arith.cmpi eq, %5, %1814 : vector<8x8xi32>
    %1816 = vector.extract_strided_slice %3 {offsets = [0, 241], sizes = [8, 1], strides = [1, 1]} : vector<8x384xf32> to vector<8x1xf32>
    %1817 = vector.shape_cast %1816 : vector<8x1xf32> to vector<8x1xf32>
    %1818 = vector.broadcast %1817 : vector<8x1xf32> to vector<8x8xf32>
    %1819 = arith.select %1815, %1818, %1812 : vector<8x8xi1>, vector<8x8xf32>
    %1820 = vector.extract_strided_slice %1 {offsets = [0, 240], sizes = [8, 1], strides = [1, 1]} : vector<8x384xi32> to vector<8x1xi32>
    %1821 = vector.broadcast %1820 : vector<8x1xi32> to vector<8x8xi32>
    %1822 = arith.cmpi eq, %5, %1821 : vector<8x8xi32>
    %1823 = vector.extract_strided_slice %3 {offsets = [0, 240], sizes = [8, 1], strides = [1, 1]} : vector<8x384xf32> to vector<8x1xf32>
    %1824 = vector.shape_cast %1823 : vector<8x1xf32> to vector<8x1xf32>
    %1825 = vector.broadcast %1824 : vector<8x1xf32> to vector<8x8xf32>
    %1826 = arith.select %1822, %1825, %1819 : vector<8x8xi1>, vector<8x8xf32>
    %1827 = arith.addf %1769, %1826 : vector<8x8xf32>
    %1828 = vector.extract_strided_slice %1 {offsets = [0, 255], sizes = [8, 1], strides = [1, 1]} : vector<8x384xi32> to vector<8x1xi32>
    %1829 = vector.broadcast %1828 : vector<8x1xi32> to vector<8x8xi32>
    %1830 = arith.cmpi eq, %5, %1829 : vector<8x8xi32>
    %1831 = vector.extract_strided_slice %3 {offsets = [0, 255], sizes = [8, 1], strides = [1, 1]} : vector<8x384xf32> to vector<8x1xf32>
    %cst_63 = arith.constant 0.000000e+00 : f32
    %1832 = vector.shape_cast %1831 : vector<8x1xf32> to vector<8x1xf32>
    %1833 = vector.broadcast %1832 : vector<8x1xf32> to vector<8x8xf32>
    %1834 = vector.broadcast %cst_63 : f32 to vector<8x8xf32>
    %1835 = arith.select %1830, %1833, %1834 : vector<8x8xi1>, vector<8x8xf32>
    %1836 = vector.extract_strided_slice %1 {offsets = [0, 254], sizes = [8, 1], strides = [1, 1]} : vector<8x384xi32> to vector<8x1xi32>
    %1837 = vector.broadcast %1836 : vector<8x1xi32> to vector<8x8xi32>
    %1838 = arith.cmpi eq, %5, %1837 : vector<8x8xi32>
    %1839 = vector.extract_strided_slice %3 {offsets = [0, 254], sizes = [8, 1], strides = [1, 1]} : vector<8x384xf32> to vector<8x1xf32>
    %1840 = vector.shape_cast %1839 : vector<8x1xf32> to vector<8x1xf32>
    %1841 = vector.broadcast %1840 : vector<8x1xf32> to vector<8x8xf32>
    %1842 = arith.select %1838, %1841, %1835 : vector<8x8xi1>, vector<8x8xf32>
    %1843 = vector.extract_strided_slice %1 {offsets = [0, 253], sizes = [8, 1], strides = [1, 1]} : vector<8x384xi32> to vector<8x1xi32>
    %1844 = vector.broadcast %1843 : vector<8x1xi32> to vector<8x8xi32>
    %1845 = arith.cmpi eq, %5, %1844 : vector<8x8xi32>
    %1846 = vector.extract_strided_slice %3 {offsets = [0, 253], sizes = [8, 1], strides = [1, 1]} : vector<8x384xf32> to vector<8x1xf32>
    %1847 = vector.shape_cast %1846 : vector<8x1xf32> to vector<8x1xf32>
    %1848 = vector.broadcast %1847 : vector<8x1xf32> to vector<8x8xf32>
    %1849 = arith.select %1845, %1848, %1842 : vector<8x8xi1>, vector<8x8xf32>
    %1850 = vector.extract_strided_slice %1 {offsets = [0, 252], sizes = [8, 1], strides = [1, 1]} : vector<8x384xi32> to vector<8x1xi32>
    %1851 = vector.broadcast %1850 : vector<8x1xi32> to vector<8x8xi32>
    %1852 = arith.cmpi eq, %5, %1851 : vector<8x8xi32>
    %1853 = vector.extract_strided_slice %3 {offsets = [0, 252], sizes = [8, 1], strides = [1, 1]} : vector<8x384xf32> to vector<8x1xf32>
    %1854 = vector.shape_cast %1853 : vector<8x1xf32> to vector<8x1xf32>
    %1855 = vector.broadcast %1854 : vector<8x1xf32> to vector<8x8xf32>
    %1856 = arith.select %1852, %1855, %1849 : vector<8x8xi1>, vector<8x8xf32>
    %1857 = vector.extract_strided_slice %1 {offsets = [0, 251], sizes = [8, 1], strides = [1, 1]} : vector<8x384xi32> to vector<8x1xi32>
    %1858 = vector.broadcast %1857 : vector<8x1xi32> to vector<8x8xi32>
    %1859 = arith.cmpi eq, %5, %1858 : vector<8x8xi32>
    %1860 = vector.extract_strided_slice %3 {offsets = [0, 251], sizes = [8, 1], strides = [1, 1]} : vector<8x384xf32> to vector<8x1xf32>
    %1861 = vector.shape_cast %1860 : vector<8x1xf32> to vector<8x1xf32>
    %1862 = vector.broadcast %1861 : vector<8x1xf32> to vector<8x8xf32>
    %1863 = arith.select %1859, %1862, %1856 : vector<8x8xi1>, vector<8x8xf32>
    %1864 = vector.extract_strided_slice %1 {offsets = [0, 250], sizes = [8, 1], strides = [1, 1]} : vector<8x384xi32> to vector<8x1xi32>
    %1865 = vector.broadcast %1864 : vector<8x1xi32> to vector<8x8xi32>
    %1866 = arith.cmpi eq, %5, %1865 : vector<8x8xi32>
    %1867 = vector.extract_strided_slice %3 {offsets = [0, 250], sizes = [8, 1], strides = [1, 1]} : vector<8x384xf32> to vector<8x1xf32>
    %1868 = vector.shape_cast %1867 : vector<8x1xf32> to vector<8x1xf32>
    %1869 = vector.broadcast %1868 : vector<8x1xf32> to vector<8x8xf32>
    %1870 = arith.select %1866, %1869, %1863 : vector<8x8xi1>, vector<8x8xf32>
    %1871 = vector.extract_strided_slice %1 {offsets = [0, 249], sizes = [8, 1], strides = [1, 1]} : vector<8x384xi32> to vector<8x1xi32>
    %1872 = vector.broadcast %1871 : vector<8x1xi32> to vector<8x8xi32>
    %1873 = arith.cmpi eq, %5, %1872 : vector<8x8xi32>
    %1874 = vector.extract_strided_slice %3 {offsets = [0, 249], sizes = [8, 1], strides = [1, 1]} : vector<8x384xf32> to vector<8x1xf32>
    %1875 = vector.shape_cast %1874 : vector<8x1xf32> to vector<8x1xf32>
    %1876 = vector.broadcast %1875 : vector<8x1xf32> to vector<8x8xf32>
    %1877 = arith.select %1873, %1876, %1870 : vector<8x8xi1>, vector<8x8xf32>
    %1878 = vector.extract_strided_slice %1 {offsets = [0, 248], sizes = [8, 1], strides = [1, 1]} : vector<8x384xi32> to vector<8x1xi32>
    %1879 = vector.broadcast %1878 : vector<8x1xi32> to vector<8x8xi32>
    %1880 = arith.cmpi eq, %5, %1879 : vector<8x8xi32>
    %1881 = vector.extract_strided_slice %3 {offsets = [0, 248], sizes = [8, 1], strides = [1, 1]} : vector<8x384xf32> to vector<8x1xf32>
    %1882 = vector.shape_cast %1881 : vector<8x1xf32> to vector<8x1xf32>
    %1883 = vector.broadcast %1882 : vector<8x1xf32> to vector<8x8xf32>
    %1884 = arith.select %1880, %1883, %1877 : vector<8x8xi1>, vector<8x8xf32>
    %1885 = arith.addf %1827, %1884 : vector<8x8xf32>
    %c0_64 = arith.constant 0 : index
    %c64_65 = arith.constant 64 : index
    %c24_66 = arith.constant 24 : index
    %1886 = vector.load %arg4[%c0_64, %c64_65, %c24_66] : memref<1x72x48xf32, #tpu.memory_space<vmem>>, vector<1x8x8xf32>
    %1887 = vector.shape_cast %1886 : vector<1x8x8xf32> to vector<8x8xf32>
    %cst_67 = arith.constant dense<0.000000e+00> : vector<8x8xf32>
    %1888 = tpu.matmul %1885, %1887, %cst_67 {dimension_numbers = #tpu.dot_dimension_numbers<[1], [0], [0], [1], [0, 0, 1, 1], [], []>} : vector<8x8xf32>, vector<8x8xf32>, vector<8x8xf32> -> vector<8x8xf32>
    %1889 = arith.addf %1654, %1888 : vector<8x8xf32>
    %cst_68 = arith.constant 0.000000e+00 : f32
    %1890 = vector.broadcast %cst_68 : f32 to vector<8x8xf32>
    %1891 = vector.extract_strided_slice %1 {offsets = [0, 263], sizes = [8, 1], strides = [1, 1]} : vector<8x384xi32> to vector<8x1xi32>
    %1892 = vector.broadcast %1891 : vector<8x1xi32> to vector<8x64xi32>
    %1893 = arith.cmpi eq, %4, %1892 : vector<8x64xi32>
    %1894 = vector.extract_strided_slice %3 {offsets = [0, 263], sizes = [8, 1], strides = [1, 1]} : vector<8x384xf32> to vector<8x1xf32>
    %cst_69 = arith.constant 0.000000e+00 : f32
    %1895 = vector.shape_cast %1894 : vector<8x1xf32> to vector<8x1xf32>
    %1896 = vector.broadcast %1895 : vector<8x1xf32> to vector<8x64xf32>
    %1897 = vector.broadcast %cst_69 : f32 to vector<8x64xf32>
    %1898 = arith.select %1893, %1896, %1897 : vector<8x64xi1>, vector<8x64xf32>
    %1899 = vector.extract_strided_slice %1 {offsets = [0, 262], sizes = [8, 1], strides = [1, 1]} : vector<8x384xi32> to vector<8x1xi32>
    %1900 = vector.broadcast %1899 : vector<8x1xi32> to vector<8x64xi32>
    %1901 = arith.cmpi eq, %4, %1900 : vector<8x64xi32>
    %1902 = vector.extract_strided_slice %3 {offsets = [0, 262], sizes = [8, 1], strides = [1, 1]} : vector<8x384xf32> to vector<8x1xf32>
    %1903 = vector.shape_cast %1902 : vector<8x1xf32> to vector<8x1xf32>
    %1904 = vector.broadcast %1903 : vector<8x1xf32> to vector<8x64xf32>
    %1905 = arith.select %1901, %1904, %1898 : vector<8x64xi1>, vector<8x64xf32>
    %1906 = vector.extract_strided_slice %1 {offsets = [0, 261], sizes = [8, 1], strides = [1, 1]} : vector<8x384xi32> to vector<8x1xi32>
    %1907 = vector.broadcast %1906 : vector<8x1xi32> to vector<8x64xi32>
    %1908 = arith.cmpi eq, %4, %1907 : vector<8x64xi32>
    %1909 = vector.extract_strided_slice %3 {offsets = [0, 261], sizes = [8, 1], strides = [1, 1]} : vector<8x384xf32> to vector<8x1xf32>
    %1910 = vector.shape_cast %1909 : vector<8x1xf32> to vector<8x1xf32>
    %1911 = vector.broadcast %1910 : vector<8x1xf32> to vector<8x64xf32>
    %1912 = arith.select %1908, %1911, %1905 : vector<8x64xi1>, vector<8x64xf32>
    %1913 = vector.extract_strided_slice %1 {offsets = [0, 260], sizes = [8, 1], strides = [1, 1]} : vector<8x384xi32> to vector<8x1xi32>
    %1914 = vector.broadcast %1913 : vector<8x1xi32> to vector<8x64xi32>
    %1915 = arith.cmpi eq, %4, %1914 : vector<8x64xi32>
    %1916 = vector.extract_strided_slice %3 {offsets = [0, 260], sizes = [8, 1], strides = [1, 1]} : vector<8x384xf32> to vector<8x1xf32>
    %1917 = vector.shape_cast %1916 : vector<8x1xf32> to vector<8x1xf32>
    %1918 = vector.broadcast %1917 : vector<8x1xf32> to vector<8x64xf32>
    %1919 = arith.select %1915, %1918, %1912 : vector<8x64xi1>, vector<8x64xf32>
    %1920 = vector.extract_strided_slice %1 {offsets = [0, 259], sizes = [8, 1], strides = [1, 1]} : vector<8x384xi32> to vector<8x1xi32>
    %1921 = vector.broadcast %1920 : vector<8x1xi32> to vector<8x64xi32>
    %1922 = arith.cmpi eq, %4, %1921 : vector<8x64xi32>
    %1923 = vector.extract_strided_slice %3 {offsets = [0, 259], sizes = [8, 1], strides = [1, 1]} : vector<8x384xf32> to vector<8x1xf32>
    %1924 = vector.shape_cast %1923 : vector<8x1xf32> to vector<8x1xf32>
    %1925 = vector.broadcast %1924 : vector<8x1xf32> to vector<8x64xf32>
    %1926 = arith.select %1922, %1925, %1919 : vector<8x64xi1>, vector<8x64xf32>
    %1927 = vector.extract_strided_slice %1 {offsets = [0, 258], sizes = [8, 1], strides = [1, 1]} : vector<8x384xi32> to vector<8x1xi32>
    %1928 = vector.broadcast %1927 : vector<8x1xi32> to vector<8x64xi32>
    %1929 = arith.cmpi eq, %4, %1928 : vector<8x64xi32>
    %1930 = vector.extract_strided_slice %3 {offsets = [0, 258], sizes = [8, 1], strides = [1, 1]} : vector<8x384xf32> to vector<8x1xf32>
    %1931 = vector.shape_cast %1930 : vector<8x1xf32> to vector<8x1xf32>
    %1932 = vector.broadcast %1931 : vector<8x1xf32> to vector<8x64xf32>
    %1933 = arith.select %1929, %1932, %1926 : vector<8x64xi1>, vector<8x64xf32>
    %1934 = vector.extract_strided_slice %1 {offsets = [0, 257], sizes = [8, 1], strides = [1, 1]} : vector<8x384xi32> to vector<8x1xi32>
    %1935 = vector.broadcast %1934 : vector<8x1xi32> to vector<8x64xi32>
    %1936 = arith.cmpi eq, %4, %1935 : vector<8x64xi32>
    %1937 = vector.extract_strided_slice %3 {offsets = [0, 257], sizes = [8, 1], strides = [1, 1]} : vector<8x384xf32> to vector<8x1xf32>
    %1938 = vector.shape_cast %1937 : vector<8x1xf32> to vector<8x1xf32>
    %1939 = vector.broadcast %1938 : vector<8x1xf32> to vector<8x64xf32>
    %1940 = arith.select %1936, %1939, %1933 : vector<8x64xi1>, vector<8x64xf32>
    %1941 = vector.extract_strided_slice %1 {offsets = [0, 256], sizes = [8, 1], strides = [1, 1]} : vector<8x384xi32> to vector<8x1xi32>
    %1942 = vector.broadcast %1941 : vector<8x1xi32> to vector<8x64xi32>
    %1943 = arith.cmpi eq, %4, %1942 : vector<8x64xi32>
    %1944 = vector.extract_strided_slice %3 {offsets = [0, 256], sizes = [8, 1], strides = [1, 1]} : vector<8x384xf32> to vector<8x1xf32>
    %1945 = vector.shape_cast %1944 : vector<8x1xf32> to vector<8x1xf32>
    %1946 = vector.broadcast %1945 : vector<8x1xf32> to vector<8x64xf32>
    %1947 = arith.select %1943, %1946, %1940 : vector<8x64xi1>, vector<8x64xf32>
    %1948 = vector.extract_strided_slice %1 {offsets = [0, 271], sizes = [8, 1], strides = [1, 1]} : vector<8x384xi32> to vector<8x1xi32>
    %1949 = vector.broadcast %1948 : vector<8x1xi32> to vector<8x64xi32>
    %1950 = arith.cmpi eq, %4, %1949 : vector<8x64xi32>
    %1951 = vector.extract_strided_slice %3 {offsets = [0, 271], sizes = [8, 1], strides = [1, 1]} : vector<8x384xf32> to vector<8x1xf32>
    %cst_70 = arith.constant 0.000000e+00 : f32
    %1952 = vector.shape_cast %1951 : vector<8x1xf32> to vector<8x1xf32>
    %1953 = vector.broadcast %1952 : vector<8x1xf32> to vector<8x64xf32>
    %1954 = vector.broadcast %cst_70 : f32 to vector<8x64xf32>
    %1955 = arith.select %1950, %1953, %1954 : vector<8x64xi1>, vector<8x64xf32>
    %1956 = vector.extract_strided_slice %1 {offsets = [0, 270], sizes = [8, 1], strides = [1, 1]} : vector<8x384xi32> to vector<8x1xi32>
    %1957 = vector.broadcast %1956 : vector<8x1xi32> to vector<8x64xi32>
    %1958 = arith.cmpi eq, %4, %1957 : vector<8x64xi32>
    %1959 = vector.extract_strided_slice %3 {offsets = [0, 270], sizes = [8, 1], strides = [1, 1]} : vector<8x384xf32> to vector<8x1xf32>
    %1960 = vector.shape_cast %1959 : vector<8x1xf32> to vector<8x1xf32>
    %1961 = vector.broadcast %1960 : vector<8x1xf32> to vector<8x64xf32>
    %1962 = arith.select %1958, %1961, %1955 : vector<8x64xi1>, vector<8x64xf32>
    %1963 = vector.extract_strided_slice %1 {offsets = [0, 269], sizes = [8, 1], strides = [1, 1]} : vector<8x384xi32> to vector<8x1xi32>
    %1964 = vector.broadcast %1963 : vector<8x1xi32> to vector<8x64xi32>
    %1965 = arith.cmpi eq, %4, %1964 : vector<8x64xi32>
    %1966 = vector.extract_strided_slice %3 {offsets = [0, 269], sizes = [8, 1], strides = [1, 1]} : vector<8x384xf32> to vector<8x1xf32>
    %1967 = vector.shape_cast %1966 : vector<8x1xf32> to vector<8x1xf32>
    %1968 = vector.broadcast %1967 : vector<8x1xf32> to vector<8x64xf32>
    %1969 = arith.select %1965, %1968, %1962 : vector<8x64xi1>, vector<8x64xf32>
    %1970 = vector.extract_strided_slice %1 {offsets = [0, 268], sizes = [8, 1], strides = [1, 1]} : vector<8x384xi32> to vector<8x1xi32>
    %1971 = vector.broadcast %1970 : vector<8x1xi32> to vector<8x64xi32>
    %1972 = arith.cmpi eq, %4, %1971 : vector<8x64xi32>
    %1973 = vector.extract_strided_slice %3 {offsets = [0, 268], sizes = [8, 1], strides = [1, 1]} : vector<8x384xf32> to vector<8x1xf32>
    %1974 = vector.shape_cast %1973 : vector<8x1xf32> to vector<8x1xf32>
    %1975 = vector.broadcast %1974 : vector<8x1xf32> to vector<8x64xf32>
    %1976 = arith.select %1972, %1975, %1969 : vector<8x64xi1>, vector<8x64xf32>
    %1977 = vector.extract_strided_slice %1 {offsets = [0, 267], sizes = [8, 1], strides = [1, 1]} : vector<8x384xi32> to vector<8x1xi32>
    %1978 = vector.broadcast %1977 : vector<8x1xi32> to vector<8x64xi32>
    %1979 = arith.cmpi eq, %4, %1978 : vector<8x64xi32>
    %1980 = vector.extract_strided_slice %3 {offsets = [0, 267], sizes = [8, 1], strides = [1, 1]} : vector<8x384xf32> to vector<8x1xf32>
    %1981 = vector.shape_cast %1980 : vector<8x1xf32> to vector<8x1xf32>
    %1982 = vector.broadcast %1981 : vector<8x1xf32> to vector<8x64xf32>
    %1983 = arith.select %1979, %1982, %1976 : vector<8x64xi1>, vector<8x64xf32>
    %1984 = vector.extract_strided_slice %1 {offsets = [0, 266], sizes = [8, 1], strides = [1, 1]} : vector<8x384xi32> to vector<8x1xi32>
    %1985 = vector.broadcast %1984 : vector<8x1xi32> to vector<8x64xi32>
    %1986 = arith.cmpi eq, %4, %1985 : vector<8x64xi32>
    %1987 = vector.extract_strided_slice %3 {offsets = [0, 266], sizes = [8, 1], strides = [1, 1]} : vector<8x384xf32> to vector<8x1xf32>
    %1988 = vector.shape_cast %1987 : vector<8x1xf32> to vector<8x1xf32>
    %1989 = vector.broadcast %1988 : vector<8x1xf32> to vector<8x64xf32>
    %1990 = arith.select %1986, %1989, %1983 : vector<8x64xi1>, vector<8x64xf32>
    %1991 = vector.extract_strided_slice %1 {offsets = [0, 265], sizes = [8, 1], strides = [1, 1]} : vector<8x384xi32> to vector<8x1xi32>
    %1992 = vector.broadcast %1991 : vector<8x1xi32> to vector<8x64xi32>
    %1993 = arith.cmpi eq, %4, %1992 : vector<8x64xi32>
    %1994 = vector.extract_strided_slice %3 {offsets = [0, 265], sizes = [8, 1], strides = [1, 1]} : vector<8x384xf32> to vector<8x1xf32>
    %1995 = vector.shape_cast %1994 : vector<8x1xf32> to vector<8x1xf32>
    %1996 = vector.broadcast %1995 : vector<8x1xf32> to vector<8x64xf32>
    %1997 = arith.select %1993, %1996, %1990 : vector<8x64xi1>, vector<8x64xf32>
    %1998 = vector.extract_strided_slice %1 {offsets = [0, 264], sizes = [8, 1], strides = [1, 1]} : vector<8x384xi32> to vector<8x1xi32>
    %1999 = vector.broadcast %1998 : vector<8x1xi32> to vector<8x64xi32>
    %2000 = arith.cmpi eq, %4, %1999 : vector<8x64xi32>
    %2001 = vector.extract_strided_slice %3 {offsets = [0, 264], sizes = [8, 1], strides = [1, 1]} : vector<8x384xf32> to vector<8x1xf32>
    %2002 = vector.shape_cast %2001 : vector<8x1xf32> to vector<8x1xf32>
    %2003 = vector.broadcast %2002 : vector<8x1xf32> to vector<8x64xf32>
    %2004 = arith.select %2000, %2003, %1997 : vector<8x64xi1>, vector<8x64xf32>
    %2005 = arith.addf %1947, %2004 : vector<8x64xf32>
    %2006 = vector.extract_strided_slice %1 {offsets = [0, 279], sizes = [8, 1], strides = [1, 1]} : vector<8x384xi32> to vector<8x1xi32>
    %2007 = vector.broadcast %2006 : vector<8x1xi32> to vector<8x64xi32>
    %2008 = arith.cmpi eq, %4, %2007 : vector<8x64xi32>
    %2009 = vector.extract_strided_slice %3 {offsets = [0, 279], sizes = [8, 1], strides = [1, 1]} : vector<8x384xf32> to vector<8x1xf32>
    %cst_71 = arith.constant 0.000000e+00 : f32
    %2010 = vector.shape_cast %2009 : vector<8x1xf32> to vector<8x1xf32>
    %2011 = vector.broadcast %2010 : vector<8x1xf32> to vector<8x64xf32>
    %2012 = vector.broadcast %cst_71 : f32 to vector<8x64xf32>
    %2013 = arith.select %2008, %2011, %2012 : vector<8x64xi1>, vector<8x64xf32>
    %2014 = vector.extract_strided_slice %1 {offsets = [0, 278], sizes = [8, 1], strides = [1, 1]} : vector<8x384xi32> to vector<8x1xi32>
    %2015 = vector.broadcast %2014 : vector<8x1xi32> to vector<8x64xi32>
    %2016 = arith.cmpi eq, %4, %2015 : vector<8x64xi32>
    %2017 = vector.extract_strided_slice %3 {offsets = [0, 278], sizes = [8, 1], strides = [1, 1]} : vector<8x384xf32> to vector<8x1xf32>
    %2018 = vector.shape_cast %2017 : vector<8x1xf32> to vector<8x1xf32>
    %2019 = vector.broadcast %2018 : vector<8x1xf32> to vector<8x64xf32>
    %2020 = arith.select %2016, %2019, %2013 : vector<8x64xi1>, vector<8x64xf32>
    %2021 = vector.extract_strided_slice %1 {offsets = [0, 277], sizes = [8, 1], strides = [1, 1]} : vector<8x384xi32> to vector<8x1xi32>
    %2022 = vector.broadcast %2021 : vector<8x1xi32> to vector<8x64xi32>
    %2023 = arith.cmpi eq, %4, %2022 : vector<8x64xi32>
    %2024 = vector.extract_strided_slice %3 {offsets = [0, 277], sizes = [8, 1], strides = [1, 1]} : vector<8x384xf32> to vector<8x1xf32>
    %2025 = vector.shape_cast %2024 : vector<8x1xf32> to vector<8x1xf32>
    %2026 = vector.broadcast %2025 : vector<8x1xf32> to vector<8x64xf32>
    %2027 = arith.select %2023, %2026, %2020 : vector<8x64xi1>, vector<8x64xf32>
    %2028 = vector.extract_strided_slice %1 {offsets = [0, 276], sizes = [8, 1], strides = [1, 1]} : vector<8x384xi32> to vector<8x1xi32>
    %2029 = vector.broadcast %2028 : vector<8x1xi32> to vector<8x64xi32>
    %2030 = arith.cmpi eq, %4, %2029 : vector<8x64xi32>
    %2031 = vector.extract_strided_slice %3 {offsets = [0, 276], sizes = [8, 1], strides = [1, 1]} : vector<8x384xf32> to vector<8x1xf32>
    %2032 = vector.shape_cast %2031 : vector<8x1xf32> to vector<8x1xf32>
    %2033 = vector.broadcast %2032 : vector<8x1xf32> to vector<8x64xf32>
    %2034 = arith.select %2030, %2033, %2027 : vector<8x64xi1>, vector<8x64xf32>
    %2035 = vector.extract_strided_slice %1 {offsets = [0, 275], sizes = [8, 1], strides = [1, 1]} : vector<8x384xi32> to vector<8x1xi32>
    %2036 = vector.broadcast %2035 : vector<8x1xi32> to vector<8x64xi32>
    %2037 = arith.cmpi eq, %4, %2036 : vector<8x64xi32>
    %2038 = vector.extract_strided_slice %3 {offsets = [0, 275], sizes = [8, 1], strides = [1, 1]} : vector<8x384xf32> to vector<8x1xf32>
    %2039 = vector.shape_cast %2038 : vector<8x1xf32> to vector<8x1xf32>
    %2040 = vector.broadcast %2039 : vector<8x1xf32> to vector<8x64xf32>
    %2041 = arith.select %2037, %2040, %2034 : vector<8x64xi1>, vector<8x64xf32>
    %2042 = vector.extract_strided_slice %1 {offsets = [0, 274], sizes = [8, 1], strides = [1, 1]} : vector<8x384xi32> to vector<8x1xi32>
    %2043 = vector.broadcast %2042 : vector<8x1xi32> to vector<8x64xi32>
    %2044 = arith.cmpi eq, %4, %2043 : vector<8x64xi32>
    %2045 = vector.extract_strided_slice %3 {offsets = [0, 274], sizes = [8, 1], strides = [1, 1]} : vector<8x384xf32> to vector<8x1xf32>
    %2046 = vector.shape_cast %2045 : vector<8x1xf32> to vector<8x1xf32>
    %2047 = vector.broadcast %2046 : vector<8x1xf32> to vector<8x64xf32>
    %2048 = arith.select %2044, %2047, %2041 : vector<8x64xi1>, vector<8x64xf32>
    %2049 = vector.extract_strided_slice %1 {offsets = [0, 273], sizes = [8, 1], strides = [1, 1]} : vector<8x384xi32> to vector<8x1xi32>
    %2050 = vector.broadcast %2049 : vector<8x1xi32> to vector<8x64xi32>
    %2051 = arith.cmpi eq, %4, %2050 : vector<8x64xi32>
    %2052 = vector.extract_strided_slice %3 {offsets = [0, 273], sizes = [8, 1], strides = [1, 1]} : vector<8x384xf32> to vector<8x1xf32>
    %2053 = vector.shape_cast %2052 : vector<8x1xf32> to vector<8x1xf32>
    %2054 = vector.broadcast %2053 : vector<8x1xf32> to vector<8x64xf32>
    %2055 = arith.select %2051, %2054, %2048 : vector<8x64xi1>, vector<8x64xf32>
    %2056 = vector.extract_strided_slice %1 {offsets = [0, 272], sizes = [8, 1], strides = [1, 1]} : vector<8x384xi32> to vector<8x1xi32>
    %2057 = vector.broadcast %2056 : vector<8x1xi32> to vector<8x64xi32>
    %2058 = arith.cmpi eq, %4, %2057 : vector<8x64xi32>
    %2059 = vector.extract_strided_slice %3 {offsets = [0, 272], sizes = [8, 1], strides = [1, 1]} : vector<8x384xf32> to vector<8x1xf32>
    %2060 = vector.shape_cast %2059 : vector<8x1xf32> to vector<8x1xf32>
    %2061 = vector.broadcast %2060 : vector<8x1xf32> to vector<8x64xf32>
    %2062 = arith.select %2058, %2061, %2055 : vector<8x64xi1>, vector<8x64xf32>
    %2063 = arith.addf %2005, %2062 : vector<8x64xf32>
    %2064 = vector.extract_strided_slice %1 {offsets = [0, 287], sizes = [8, 1], strides = [1, 1]} : vector<8x384xi32> to vector<8x1xi32>
    %2065 = vector.broadcast %2064 : vector<8x1xi32> to vector<8x64xi32>
    %2066 = arith.cmpi eq, %4, %2065 : vector<8x64xi32>
    %2067 = vector.extract_strided_slice %3 {offsets = [0, 287], sizes = [8, 1], strides = [1, 1]} : vector<8x384xf32> to vector<8x1xf32>
    %cst_72 = arith.constant 0.000000e+00 : f32
    %2068 = vector.shape_cast %2067 : vector<8x1xf32> to vector<8x1xf32>
    %2069 = vector.broadcast %2068 : vector<8x1xf32> to vector<8x64xf32>
    %2070 = vector.broadcast %cst_72 : f32 to vector<8x64xf32>
    %2071 = arith.select %2066, %2069, %2070 : vector<8x64xi1>, vector<8x64xf32>
    %2072 = vector.extract_strided_slice %1 {offsets = [0, 286], sizes = [8, 1], strides = [1, 1]} : vector<8x384xi32> to vector<8x1xi32>
    %2073 = vector.broadcast %2072 : vector<8x1xi32> to vector<8x64xi32>
    %2074 = arith.cmpi eq, %4, %2073 : vector<8x64xi32>
    %2075 = vector.extract_strided_slice %3 {offsets = [0, 286], sizes = [8, 1], strides = [1, 1]} : vector<8x384xf32> to vector<8x1xf32>
    %2076 = vector.shape_cast %2075 : vector<8x1xf32> to vector<8x1xf32>
    %2077 = vector.broadcast %2076 : vector<8x1xf32> to vector<8x64xf32>
    %2078 = arith.select %2074, %2077, %2071 : vector<8x64xi1>, vector<8x64xf32>
    %2079 = vector.extract_strided_slice %1 {offsets = [0, 285], sizes = [8, 1], strides = [1, 1]} : vector<8x384xi32> to vector<8x1xi32>
    %2080 = vector.broadcast %2079 : vector<8x1xi32> to vector<8x64xi32>
    %2081 = arith.cmpi eq, %4, %2080 : vector<8x64xi32>
    %2082 = vector.extract_strided_slice %3 {offsets = [0, 285], sizes = [8, 1], strides = [1, 1]} : vector<8x384xf32> to vector<8x1xf32>
    %2083 = vector.shape_cast %2082 : vector<8x1xf32> to vector<8x1xf32>
    %2084 = vector.broadcast %2083 : vector<8x1xf32> to vector<8x64xf32>
    %2085 = arith.select %2081, %2084, %2078 : vector<8x64xi1>, vector<8x64xf32>
    %2086 = vector.extract_strided_slice %1 {offsets = [0, 284], sizes = [8, 1], strides = [1, 1]} : vector<8x384xi32> to vector<8x1xi32>
    %2087 = vector.broadcast %2086 : vector<8x1xi32> to vector<8x64xi32>
    %2088 = arith.cmpi eq, %4, %2087 : vector<8x64xi32>
    %2089 = vector.extract_strided_slice %3 {offsets = [0, 284], sizes = [8, 1], strides = [1, 1]} : vector<8x384xf32> to vector<8x1xf32>
    %2090 = vector.shape_cast %2089 : vector<8x1xf32> to vector<8x1xf32>
    %2091 = vector.broadcast %2090 : vector<8x1xf32> to vector<8x64xf32>
    %2092 = arith.select %2088, %2091, %2085 : vector<8x64xi1>, vector<8x64xf32>
    %2093 = vector.extract_strided_slice %1 {offsets = [0, 283], sizes = [8, 1], strides = [1, 1]} : vector<8x384xi32> to vector<8x1xi32>
    %2094 = vector.broadcast %2093 : vector<8x1xi32> to vector<8x64xi32>
    %2095 = arith.cmpi eq, %4, %2094 : vector<8x64xi32>
    %2096 = vector.extract_strided_slice %3 {offsets = [0, 283], sizes = [8, 1], strides = [1, 1]} : vector<8x384xf32> to vector<8x1xf32>
    %2097 = vector.shape_cast %2096 : vector<8x1xf32> to vector<8x1xf32>
    %2098 = vector.broadcast %2097 : vector<8x1xf32> to vector<8x64xf32>
    %2099 = arith.select %2095, %2098, %2092 : vector<8x64xi1>, vector<8x64xf32>
    %2100 = vector.extract_strided_slice %1 {offsets = [0, 282], sizes = [8, 1], strides = [1, 1]} : vector<8x384xi32> to vector<8x1xi32>
    %2101 = vector.broadcast %2100 : vector<8x1xi32> to vector<8x64xi32>
    %2102 = arith.cmpi eq, %4, %2101 : vector<8x64xi32>
    %2103 = vector.extract_strided_slice %3 {offsets = [0, 282], sizes = [8, 1], strides = [1, 1]} : vector<8x384xf32> to vector<8x1xf32>
    %2104 = vector.shape_cast %2103 : vector<8x1xf32> to vector<8x1xf32>
    %2105 = vector.broadcast %2104 : vector<8x1xf32> to vector<8x64xf32>
    %2106 = arith.select %2102, %2105, %2099 : vector<8x64xi1>, vector<8x64xf32>
    %2107 = vector.extract_strided_slice %1 {offsets = [0, 281], sizes = [8, 1], strides = [1, 1]} : vector<8x384xi32> to vector<8x1xi32>
    %2108 = vector.broadcast %2107 : vector<8x1xi32> to vector<8x64xi32>
    %2109 = arith.cmpi eq, %4, %2108 : vector<8x64xi32>
    %2110 = vector.extract_strided_slice %3 {offsets = [0, 281], sizes = [8, 1], strides = [1, 1]} : vector<8x384xf32> to vector<8x1xf32>
    %2111 = vector.shape_cast %2110 : vector<8x1xf32> to vector<8x1xf32>
    %2112 = vector.broadcast %2111 : vector<8x1xf32> to vector<8x64xf32>
    %2113 = arith.select %2109, %2112, %2106 : vector<8x64xi1>, vector<8x64xf32>
    %2114 = vector.extract_strided_slice %1 {offsets = [0, 280], sizes = [8, 1], strides = [1, 1]} : vector<8x384xi32> to vector<8x1xi32>
    %2115 = vector.broadcast %2114 : vector<8x1xi32> to vector<8x64xi32>
    %2116 = arith.cmpi eq, %4, %2115 : vector<8x64xi32>
    %2117 = vector.extract_strided_slice %3 {offsets = [0, 280], sizes = [8, 1], strides = [1, 1]} : vector<8x384xf32> to vector<8x1xf32>
    %2118 = vector.shape_cast %2117 : vector<8x1xf32> to vector<8x1xf32>
    %2119 = vector.broadcast %2118 : vector<8x1xf32> to vector<8x64xf32>
    %2120 = arith.select %2116, %2119, %2113 : vector<8x64xi1>, vector<8x64xf32>
    %2121 = arith.addf %2063, %2120 : vector<8x64xf32>
    %c0_73 = arith.constant 0 : index
    %c0_74 = arith.constant 0 : index
    %c32 = arith.constant 32 : index
    %2122 = vector.load %arg4[%c0_73, %c0_74, %c32] : memref<1x72x48xf32, #tpu.memory_space<vmem>>, vector<1x64x8xf32>
    %2123 = vector.shape_cast %2122 : vector<1x64x8xf32> to vector<64x8xf32>
    %cst_75 = arith.constant dense<0.000000e+00> : vector<8x8xf32>
    %2124 = tpu.matmul %2121, %2123, %cst_75 {dimension_numbers = #tpu.dot_dimension_numbers<[1], [0], [0], [1], [0, 0, 1, 1], [], []>} : vector<8x64xf32>, vector<64x8xf32>, vector<8x8xf32> -> vector<8x8xf32>
    %2125 = arith.addf %1890, %2124 : vector<8x8xf32>
    %2126 = vector.extract_strided_slice %1 {offsets = [0, 295], sizes = [8, 1], strides = [1, 1]} : vector<8x384xi32> to vector<8x1xi32>
    %2127 = vector.broadcast %2126 : vector<8x1xi32> to vector<8x8xi32>
    %2128 = arith.cmpi eq, %5, %2127 : vector<8x8xi32>
    %2129 = vector.extract_strided_slice %3 {offsets = [0, 295], sizes = [8, 1], strides = [1, 1]} : vector<8x384xf32> to vector<8x1xf32>
    %cst_76 = arith.constant 0.000000e+00 : f32
    %2130 = vector.shape_cast %2129 : vector<8x1xf32> to vector<8x1xf32>
    %2131 = vector.broadcast %2130 : vector<8x1xf32> to vector<8x8xf32>
    %2132 = vector.broadcast %cst_76 : f32 to vector<8x8xf32>
    %2133 = arith.select %2128, %2131, %2132 : vector<8x8xi1>, vector<8x8xf32>
    %2134 = vector.extract_strided_slice %1 {offsets = [0, 294], sizes = [8, 1], strides = [1, 1]} : vector<8x384xi32> to vector<8x1xi32>
    %2135 = vector.broadcast %2134 : vector<8x1xi32> to vector<8x8xi32>
    %2136 = arith.cmpi eq, %5, %2135 : vector<8x8xi32>
    %2137 = vector.extract_strided_slice %3 {offsets = [0, 294], sizes = [8, 1], strides = [1, 1]} : vector<8x384xf32> to vector<8x1xf32>
    %2138 = vector.shape_cast %2137 : vector<8x1xf32> to vector<8x1xf32>
    %2139 = vector.broadcast %2138 : vector<8x1xf32> to vector<8x8xf32>
    %2140 = arith.select %2136, %2139, %2133 : vector<8x8xi1>, vector<8x8xf32>
    %2141 = vector.extract_strided_slice %1 {offsets = [0, 293], sizes = [8, 1], strides = [1, 1]} : vector<8x384xi32> to vector<8x1xi32>
    %2142 = vector.broadcast %2141 : vector<8x1xi32> to vector<8x8xi32>
    %2143 = arith.cmpi eq, %5, %2142 : vector<8x8xi32>
    %2144 = vector.extract_strided_slice %3 {offsets = [0, 293], sizes = [8, 1], strides = [1, 1]} : vector<8x384xf32> to vector<8x1xf32>
    %2145 = vector.shape_cast %2144 : vector<8x1xf32> to vector<8x1xf32>
    %2146 = vector.broadcast %2145 : vector<8x1xf32> to vector<8x8xf32>
    %2147 = arith.select %2143, %2146, %2140 : vector<8x8xi1>, vector<8x8xf32>
    %2148 = vector.extract_strided_slice %1 {offsets = [0, 292], sizes = [8, 1], strides = [1, 1]} : vector<8x384xi32> to vector<8x1xi32>
    %2149 = vector.broadcast %2148 : vector<8x1xi32> to vector<8x8xi32>
    %2150 = arith.cmpi eq, %5, %2149 : vector<8x8xi32>
    %2151 = vector.extract_strided_slice %3 {offsets = [0, 292], sizes = [8, 1], strides = [1, 1]} : vector<8x384xf32> to vector<8x1xf32>
    %2152 = vector.shape_cast %2151 : vector<8x1xf32> to vector<8x1xf32>
    %2153 = vector.broadcast %2152 : vector<8x1xf32> to vector<8x8xf32>
    %2154 = arith.select %2150, %2153, %2147 : vector<8x8xi1>, vector<8x8xf32>
    %2155 = vector.extract_strided_slice %1 {offsets = [0, 291], sizes = [8, 1], strides = [1, 1]} : vector<8x384xi32> to vector<8x1xi32>
    %2156 = vector.broadcast %2155 : vector<8x1xi32> to vector<8x8xi32>
    %2157 = arith.cmpi eq, %5, %2156 : vector<8x8xi32>
    %2158 = vector.extract_strided_slice %3 {offsets = [0, 291], sizes = [8, 1], strides = [1, 1]} : vector<8x384xf32> to vector<8x1xf32>
    %2159 = vector.shape_cast %2158 : vector<8x1xf32> to vector<8x1xf32>
    %2160 = vector.broadcast %2159 : vector<8x1xf32> to vector<8x8xf32>
    %2161 = arith.select %2157, %2160, %2154 : vector<8x8xi1>, vector<8x8xf32>
    %2162 = vector.extract_strided_slice %1 {offsets = [0, 290], sizes = [8, 1], strides = [1, 1]} : vector<8x384xi32> to vector<8x1xi32>
    %2163 = vector.broadcast %2162 : vector<8x1xi32> to vector<8x8xi32>
    %2164 = arith.cmpi eq, %5, %2163 : vector<8x8xi32>
    %2165 = vector.extract_strided_slice %3 {offsets = [0, 290], sizes = [8, 1], strides = [1, 1]} : vector<8x384xf32> to vector<8x1xf32>
    %2166 = vector.shape_cast %2165 : vector<8x1xf32> to vector<8x1xf32>
    %2167 = vector.broadcast %2166 : vector<8x1xf32> to vector<8x8xf32>
    %2168 = arith.select %2164, %2167, %2161 : vector<8x8xi1>, vector<8x8xf32>
    %2169 = vector.extract_strided_slice %1 {offsets = [0, 289], sizes = [8, 1], strides = [1, 1]} : vector<8x384xi32> to vector<8x1xi32>
    %2170 = vector.broadcast %2169 : vector<8x1xi32> to vector<8x8xi32>
    %2171 = arith.cmpi eq, %5, %2170 : vector<8x8xi32>
    %2172 = vector.extract_strided_slice %3 {offsets = [0, 289], sizes = [8, 1], strides = [1, 1]} : vector<8x384xf32> to vector<8x1xf32>
    %2173 = vector.shape_cast %2172 : vector<8x1xf32> to vector<8x1xf32>
    %2174 = vector.broadcast %2173 : vector<8x1xf32> to vector<8x8xf32>
    %2175 = arith.select %2171, %2174, %2168 : vector<8x8xi1>, vector<8x8xf32>
    %2176 = vector.extract_strided_slice %1 {offsets = [0, 288], sizes = [8, 1], strides = [1, 1]} : vector<8x384xi32> to vector<8x1xi32>
    %2177 = vector.broadcast %2176 : vector<8x1xi32> to vector<8x8xi32>
    %2178 = arith.cmpi eq, %5, %2177 : vector<8x8xi32>
    %2179 = vector.extract_strided_slice %3 {offsets = [0, 288], sizes = [8, 1], strides = [1, 1]} : vector<8x384xf32> to vector<8x1xf32>
    %2180 = vector.shape_cast %2179 : vector<8x1xf32> to vector<8x1xf32>
    %2181 = vector.broadcast %2180 : vector<8x1xf32> to vector<8x8xf32>
    %2182 = arith.select %2178, %2181, %2175 : vector<8x8xi1>, vector<8x8xf32>
    %2183 = vector.extract_strided_slice %1 {offsets = [0, 303], sizes = [8, 1], strides = [1, 1]} : vector<8x384xi32> to vector<8x1xi32>
    %2184 = vector.broadcast %2183 : vector<8x1xi32> to vector<8x8xi32>
    %2185 = arith.cmpi eq, %5, %2184 : vector<8x8xi32>
    %2186 = vector.extract_strided_slice %3 {offsets = [0, 303], sizes = [8, 1], strides = [1, 1]} : vector<8x384xf32> to vector<8x1xf32>
    %cst_77 = arith.constant 0.000000e+00 : f32
    %2187 = vector.shape_cast %2186 : vector<8x1xf32> to vector<8x1xf32>
    %2188 = vector.broadcast %2187 : vector<8x1xf32> to vector<8x8xf32>
    %2189 = vector.broadcast %cst_77 : f32 to vector<8x8xf32>
    %2190 = arith.select %2185, %2188, %2189 : vector<8x8xi1>, vector<8x8xf32>
    %2191 = vector.extract_strided_slice %1 {offsets = [0, 302], sizes = [8, 1], strides = [1, 1]} : vector<8x384xi32> to vector<8x1xi32>
    %2192 = vector.broadcast %2191 : vector<8x1xi32> to vector<8x8xi32>
    %2193 = arith.cmpi eq, %5, %2192 : vector<8x8xi32>
    %2194 = vector.extract_strided_slice %3 {offsets = [0, 302], sizes = [8, 1], strides = [1, 1]} : vector<8x384xf32> to vector<8x1xf32>
    %2195 = vector.shape_cast %2194 : vector<8x1xf32> to vector<8x1xf32>
    %2196 = vector.broadcast %2195 : vector<8x1xf32> to vector<8x8xf32>
    %2197 = arith.select %2193, %2196, %2190 : vector<8x8xi1>, vector<8x8xf32>
    %2198 = vector.extract_strided_slice %1 {offsets = [0, 301], sizes = [8, 1], strides = [1, 1]} : vector<8x384xi32> to vector<8x1xi32>
    %2199 = vector.broadcast %2198 : vector<8x1xi32> to vector<8x8xi32>
    %2200 = arith.cmpi eq, %5, %2199 : vector<8x8xi32>
    %2201 = vector.extract_strided_slice %3 {offsets = [0, 301], sizes = [8, 1], strides = [1, 1]} : vector<8x384xf32> to vector<8x1xf32>
    %2202 = vector.shape_cast %2201 : vector<8x1xf32> to vector<8x1xf32>
    %2203 = vector.broadcast %2202 : vector<8x1xf32> to vector<8x8xf32>
    %2204 = arith.select %2200, %2203, %2197 : vector<8x8xi1>, vector<8x8xf32>
    %2205 = vector.extract_strided_slice %1 {offsets = [0, 300], sizes = [8, 1], strides = [1, 1]} : vector<8x384xi32> to vector<8x1xi32>
    %2206 = vector.broadcast %2205 : vector<8x1xi32> to vector<8x8xi32>
    %2207 = arith.cmpi eq, %5, %2206 : vector<8x8xi32>
    %2208 = vector.extract_strided_slice %3 {offsets = [0, 300], sizes = [8, 1], strides = [1, 1]} : vector<8x384xf32> to vector<8x1xf32>
    %2209 = vector.shape_cast %2208 : vector<8x1xf32> to vector<8x1xf32>
    %2210 = vector.broadcast %2209 : vector<8x1xf32> to vector<8x8xf32>
    %2211 = arith.select %2207, %2210, %2204 : vector<8x8xi1>, vector<8x8xf32>
    %2212 = vector.extract_strided_slice %1 {offsets = [0, 299], sizes = [8, 1], strides = [1, 1]} : vector<8x384xi32> to vector<8x1xi32>
    %2213 = vector.broadcast %2212 : vector<8x1xi32> to vector<8x8xi32>
    %2214 = arith.cmpi eq, %5, %2213 : vector<8x8xi32>
    %2215 = vector.extract_strided_slice %3 {offsets = [0, 299], sizes = [8, 1], strides = [1, 1]} : vector<8x384xf32> to vector<8x1xf32>
    %2216 = vector.shape_cast %2215 : vector<8x1xf32> to vector<8x1xf32>
    %2217 = vector.broadcast %2216 : vector<8x1xf32> to vector<8x8xf32>
    %2218 = arith.select %2214, %2217, %2211 : vector<8x8xi1>, vector<8x8xf32>
    %2219 = vector.extract_strided_slice %1 {offsets = [0, 298], sizes = [8, 1], strides = [1, 1]} : vector<8x384xi32> to vector<8x1xi32>
    %2220 = vector.broadcast %2219 : vector<8x1xi32> to vector<8x8xi32>
    %2221 = arith.cmpi eq, %5, %2220 : vector<8x8xi32>
    %2222 = vector.extract_strided_slice %3 {offsets = [0, 298], sizes = [8, 1], strides = [1, 1]} : vector<8x384xf32> to vector<8x1xf32>
    %2223 = vector.shape_cast %2222 : vector<8x1xf32> to vector<8x1xf32>
    %2224 = vector.broadcast %2223 : vector<8x1xf32> to vector<8x8xf32>
    %2225 = arith.select %2221, %2224, %2218 : vector<8x8xi1>, vector<8x8xf32>
    %2226 = vector.extract_strided_slice %1 {offsets = [0, 297], sizes = [8, 1], strides = [1, 1]} : vector<8x384xi32> to vector<8x1xi32>
    %2227 = vector.broadcast %2226 : vector<8x1xi32> to vector<8x8xi32>
    %2228 = arith.cmpi eq, %5, %2227 : vector<8x8xi32>
    %2229 = vector.extract_strided_slice %3 {offsets = [0, 297], sizes = [8, 1], strides = [1, 1]} : vector<8x384xf32> to vector<8x1xf32>
    %2230 = vector.shape_cast %2229 : vector<8x1xf32> to vector<8x1xf32>
    %2231 = vector.broadcast %2230 : vector<8x1xf32> to vector<8x8xf32>
    %2232 = arith.select %2228, %2231, %2225 : vector<8x8xi1>, vector<8x8xf32>
    %2233 = vector.extract_strided_slice %1 {offsets = [0, 296], sizes = [8, 1], strides = [1, 1]} : vector<8x384xi32> to vector<8x1xi32>
    %2234 = vector.broadcast %2233 : vector<8x1xi32> to vector<8x8xi32>
    %2235 = arith.cmpi eq, %5, %2234 : vector<8x8xi32>
    %2236 = vector.extract_strided_slice %3 {offsets = [0, 296], sizes = [8, 1], strides = [1, 1]} : vector<8x384xf32> to vector<8x1xf32>
    %2237 = vector.shape_cast %2236 : vector<8x1xf32> to vector<8x1xf32>
    %2238 = vector.broadcast %2237 : vector<8x1xf32> to vector<8x8xf32>
    %2239 = arith.select %2235, %2238, %2232 : vector<8x8xi1>, vector<8x8xf32>
    %2240 = arith.addf %2182, %2239 : vector<8x8xf32>
    %2241 = vector.extract_strided_slice %1 {offsets = [0, 311], sizes = [8, 1], strides = [1, 1]} : vector<8x384xi32> to vector<8x1xi32>
    %2242 = vector.broadcast %2241 : vector<8x1xi32> to vector<8x8xi32>
    %2243 = arith.cmpi eq, %5, %2242 : vector<8x8xi32>
    %2244 = vector.extract_strided_slice %3 {offsets = [0, 311], sizes = [8, 1], strides = [1, 1]} : vector<8x384xf32> to vector<8x1xf32>
    %cst_78 = arith.constant 0.000000e+00 : f32
    %2245 = vector.shape_cast %2244 : vector<8x1xf32> to vector<8x1xf32>
    %2246 = vector.broadcast %2245 : vector<8x1xf32> to vector<8x8xf32>
    %2247 = vector.broadcast %cst_78 : f32 to vector<8x8xf32>
    %2248 = arith.select %2243, %2246, %2247 : vector<8x8xi1>, vector<8x8xf32>
    %2249 = vector.extract_strided_slice %1 {offsets = [0, 310], sizes = [8, 1], strides = [1, 1]} : vector<8x384xi32> to vector<8x1xi32>
    %2250 = vector.broadcast %2249 : vector<8x1xi32> to vector<8x8xi32>
    %2251 = arith.cmpi eq, %5, %2250 : vector<8x8xi32>
    %2252 = vector.extract_strided_slice %3 {offsets = [0, 310], sizes = [8, 1], strides = [1, 1]} : vector<8x384xf32> to vector<8x1xf32>
    %2253 = vector.shape_cast %2252 : vector<8x1xf32> to vector<8x1xf32>
    %2254 = vector.broadcast %2253 : vector<8x1xf32> to vector<8x8xf32>
    %2255 = arith.select %2251, %2254, %2248 : vector<8x8xi1>, vector<8x8xf32>
    %2256 = vector.extract_strided_slice %1 {offsets = [0, 309], sizes = [8, 1], strides = [1, 1]} : vector<8x384xi32> to vector<8x1xi32>
    %2257 = vector.broadcast %2256 : vector<8x1xi32> to vector<8x8xi32>
    %2258 = arith.cmpi eq, %5, %2257 : vector<8x8xi32>
    %2259 = vector.extract_strided_slice %3 {offsets = [0, 309], sizes = [8, 1], strides = [1, 1]} : vector<8x384xf32> to vector<8x1xf32>
    %2260 = vector.shape_cast %2259 : vector<8x1xf32> to vector<8x1xf32>
    %2261 = vector.broadcast %2260 : vector<8x1xf32> to vector<8x8xf32>
    %2262 = arith.select %2258, %2261, %2255 : vector<8x8xi1>, vector<8x8xf32>
    %2263 = vector.extract_strided_slice %1 {offsets = [0, 308], sizes = [8, 1], strides = [1, 1]} : vector<8x384xi32> to vector<8x1xi32>
    %2264 = vector.broadcast %2263 : vector<8x1xi32> to vector<8x8xi32>
    %2265 = arith.cmpi eq, %5, %2264 : vector<8x8xi32>
    %2266 = vector.extract_strided_slice %3 {offsets = [0, 308], sizes = [8, 1], strides = [1, 1]} : vector<8x384xf32> to vector<8x1xf32>
    %2267 = vector.shape_cast %2266 : vector<8x1xf32> to vector<8x1xf32>
    %2268 = vector.broadcast %2267 : vector<8x1xf32> to vector<8x8xf32>
    %2269 = arith.select %2265, %2268, %2262 : vector<8x8xi1>, vector<8x8xf32>
    %2270 = vector.extract_strided_slice %1 {offsets = [0, 307], sizes = [8, 1], strides = [1, 1]} : vector<8x384xi32> to vector<8x1xi32>
    %2271 = vector.broadcast %2270 : vector<8x1xi32> to vector<8x8xi32>
    %2272 = arith.cmpi eq, %5, %2271 : vector<8x8xi32>
    %2273 = vector.extract_strided_slice %3 {offsets = [0, 307], sizes = [8, 1], strides = [1, 1]} : vector<8x384xf32> to vector<8x1xf32>
    %2274 = vector.shape_cast %2273 : vector<8x1xf32> to vector<8x1xf32>
    %2275 = vector.broadcast %2274 : vector<8x1xf32> to vector<8x8xf32>
    %2276 = arith.select %2272, %2275, %2269 : vector<8x8xi1>, vector<8x8xf32>
    %2277 = vector.extract_strided_slice %1 {offsets = [0, 306], sizes = [8, 1], strides = [1, 1]} : vector<8x384xi32> to vector<8x1xi32>
    %2278 = vector.broadcast %2277 : vector<8x1xi32> to vector<8x8xi32>
    %2279 = arith.cmpi eq, %5, %2278 : vector<8x8xi32>
    %2280 = vector.extract_strided_slice %3 {offsets = [0, 306], sizes = [8, 1], strides = [1, 1]} : vector<8x384xf32> to vector<8x1xf32>
    %2281 = vector.shape_cast %2280 : vector<8x1xf32> to vector<8x1xf32>
    %2282 = vector.broadcast %2281 : vector<8x1xf32> to vector<8x8xf32>
    %2283 = arith.select %2279, %2282, %2276 : vector<8x8xi1>, vector<8x8xf32>
    %2284 = vector.extract_strided_slice %1 {offsets = [0, 305], sizes = [8, 1], strides = [1, 1]} : vector<8x384xi32> to vector<8x1xi32>
    %2285 = vector.broadcast %2284 : vector<8x1xi32> to vector<8x8xi32>
    %2286 = arith.cmpi eq, %5, %2285 : vector<8x8xi32>
    %2287 = vector.extract_strided_slice %3 {offsets = [0, 305], sizes = [8, 1], strides = [1, 1]} : vector<8x384xf32> to vector<8x1xf32>
    %2288 = vector.shape_cast %2287 : vector<8x1xf32> to vector<8x1xf32>
    %2289 = vector.broadcast %2288 : vector<8x1xf32> to vector<8x8xf32>
    %2290 = arith.select %2286, %2289, %2283 : vector<8x8xi1>, vector<8x8xf32>
    %2291 = vector.extract_strided_slice %1 {offsets = [0, 304], sizes = [8, 1], strides = [1, 1]} : vector<8x384xi32> to vector<8x1xi32>
    %2292 = vector.broadcast %2291 : vector<8x1xi32> to vector<8x8xi32>
    %2293 = arith.cmpi eq, %5, %2292 : vector<8x8xi32>
    %2294 = vector.extract_strided_slice %3 {offsets = [0, 304], sizes = [8, 1], strides = [1, 1]} : vector<8x384xf32> to vector<8x1xf32>
    %2295 = vector.shape_cast %2294 : vector<8x1xf32> to vector<8x1xf32>
    %2296 = vector.broadcast %2295 : vector<8x1xf32> to vector<8x8xf32>
    %2297 = arith.select %2293, %2296, %2290 : vector<8x8xi1>, vector<8x8xf32>
    %2298 = arith.addf %2240, %2297 : vector<8x8xf32>
    %2299 = vector.extract_strided_slice %1 {offsets = [0, 319], sizes = [8, 1], strides = [1, 1]} : vector<8x384xi32> to vector<8x1xi32>
    %2300 = vector.broadcast %2299 : vector<8x1xi32> to vector<8x8xi32>
    %2301 = arith.cmpi eq, %5, %2300 : vector<8x8xi32>
    %2302 = vector.extract_strided_slice %3 {offsets = [0, 319], sizes = [8, 1], strides = [1, 1]} : vector<8x384xf32> to vector<8x1xf32>
    %cst_79 = arith.constant 0.000000e+00 : f32
    %2303 = vector.shape_cast %2302 : vector<8x1xf32> to vector<8x1xf32>
    %2304 = vector.broadcast %2303 : vector<8x1xf32> to vector<8x8xf32>
    %2305 = vector.broadcast %cst_79 : f32 to vector<8x8xf32>
    %2306 = arith.select %2301, %2304, %2305 : vector<8x8xi1>, vector<8x8xf32>
    %2307 = vector.extract_strided_slice %1 {offsets = [0, 318], sizes = [8, 1], strides = [1, 1]} : vector<8x384xi32> to vector<8x1xi32>
    %2308 = vector.broadcast %2307 : vector<8x1xi32> to vector<8x8xi32>
    %2309 = arith.cmpi eq, %5, %2308 : vector<8x8xi32>
    %2310 = vector.extract_strided_slice %3 {offsets = [0, 318], sizes = [8, 1], strides = [1, 1]} : vector<8x384xf32> to vector<8x1xf32>
    %2311 = vector.shape_cast %2310 : vector<8x1xf32> to vector<8x1xf32>
    %2312 = vector.broadcast %2311 : vector<8x1xf32> to vector<8x8xf32>
    %2313 = arith.select %2309, %2312, %2306 : vector<8x8xi1>, vector<8x8xf32>
    %2314 = vector.extract_strided_slice %1 {offsets = [0, 317], sizes = [8, 1], strides = [1, 1]} : vector<8x384xi32> to vector<8x1xi32>
    %2315 = vector.broadcast %2314 : vector<8x1xi32> to vector<8x8xi32>
    %2316 = arith.cmpi eq, %5, %2315 : vector<8x8xi32>
    %2317 = vector.extract_strided_slice %3 {offsets = [0, 317], sizes = [8, 1], strides = [1, 1]} : vector<8x384xf32> to vector<8x1xf32>
    %2318 = vector.shape_cast %2317 : vector<8x1xf32> to vector<8x1xf32>
    %2319 = vector.broadcast %2318 : vector<8x1xf32> to vector<8x8xf32>
    %2320 = arith.select %2316, %2319, %2313 : vector<8x8xi1>, vector<8x8xf32>
    %2321 = vector.extract_strided_slice %1 {offsets = [0, 316], sizes = [8, 1], strides = [1, 1]} : vector<8x384xi32> to vector<8x1xi32>
    %2322 = vector.broadcast %2321 : vector<8x1xi32> to vector<8x8xi32>
    %2323 = arith.cmpi eq, %5, %2322 : vector<8x8xi32>
    %2324 = vector.extract_strided_slice %3 {offsets = [0, 316], sizes = [8, 1], strides = [1, 1]} : vector<8x384xf32> to vector<8x1xf32>
    %2325 = vector.shape_cast %2324 : vector<8x1xf32> to vector<8x1xf32>
    %2326 = vector.broadcast %2325 : vector<8x1xf32> to vector<8x8xf32>
    %2327 = arith.select %2323, %2326, %2320 : vector<8x8xi1>, vector<8x8xf32>
    %2328 = vector.extract_strided_slice %1 {offsets = [0, 315], sizes = [8, 1], strides = [1, 1]} : vector<8x384xi32> to vector<8x1xi32>
    %2329 = vector.broadcast %2328 : vector<8x1xi32> to vector<8x8xi32>
    %2330 = arith.cmpi eq, %5, %2329 : vector<8x8xi32>
    %2331 = vector.extract_strided_slice %3 {offsets = [0, 315], sizes = [8, 1], strides = [1, 1]} : vector<8x384xf32> to vector<8x1xf32>
    %2332 = vector.shape_cast %2331 : vector<8x1xf32> to vector<8x1xf32>
    %2333 = vector.broadcast %2332 : vector<8x1xf32> to vector<8x8xf32>
    %2334 = arith.select %2330, %2333, %2327 : vector<8x8xi1>, vector<8x8xf32>
    %2335 = vector.extract_strided_slice %1 {offsets = [0, 314], sizes = [8, 1], strides = [1, 1]} : vector<8x384xi32> to vector<8x1xi32>
    %2336 = vector.broadcast %2335 : vector<8x1xi32> to vector<8x8xi32>
    %2337 = arith.cmpi eq, %5, %2336 : vector<8x8xi32>
    %2338 = vector.extract_strided_slice %3 {offsets = [0, 314], sizes = [8, 1], strides = [1, 1]} : vector<8x384xf32> to vector<8x1xf32>
    %2339 = vector.shape_cast %2338 : vector<8x1xf32> to vector<8x1xf32>
    %2340 = vector.broadcast %2339 : vector<8x1xf32> to vector<8x8xf32>
    %2341 = arith.select %2337, %2340, %2334 : vector<8x8xi1>, vector<8x8xf32>
    %2342 = vector.extract_strided_slice %1 {offsets = [0, 313], sizes = [8, 1], strides = [1, 1]} : vector<8x384xi32> to vector<8x1xi32>
    %2343 = vector.broadcast %2342 : vector<8x1xi32> to vector<8x8xi32>
    %2344 = arith.cmpi eq, %5, %2343 : vector<8x8xi32>
    %2345 = vector.extract_strided_slice %3 {offsets = [0, 313], sizes = [8, 1], strides = [1, 1]} : vector<8x384xf32> to vector<8x1xf32>
    %2346 = vector.shape_cast %2345 : vector<8x1xf32> to vector<8x1xf32>
    %2347 = vector.broadcast %2346 : vector<8x1xf32> to vector<8x8xf32>
    %2348 = arith.select %2344, %2347, %2341 : vector<8x8xi1>, vector<8x8xf32>
    %2349 = vector.extract_strided_slice %1 {offsets = [0, 312], sizes = [8, 1], strides = [1, 1]} : vector<8x384xi32> to vector<8x1xi32>
    %2350 = vector.broadcast %2349 : vector<8x1xi32> to vector<8x8xi32>
    %2351 = arith.cmpi eq, %5, %2350 : vector<8x8xi32>
    %2352 = vector.extract_strided_slice %3 {offsets = [0, 312], sizes = [8, 1], strides = [1, 1]} : vector<8x384xf32> to vector<8x1xf32>
    %2353 = vector.shape_cast %2352 : vector<8x1xf32> to vector<8x1xf32>
    %2354 = vector.broadcast %2353 : vector<8x1xf32> to vector<8x8xf32>
    %2355 = arith.select %2351, %2354, %2348 : vector<8x8xi1>, vector<8x8xf32>
    %2356 = arith.addf %2298, %2355 : vector<8x8xf32>
    %c0_80 = arith.constant 0 : index
    %c64_81 = arith.constant 64 : index
    %c32_82 = arith.constant 32 : index
    %2357 = vector.load %arg4[%c0_80, %c64_81, %c32_82] : memref<1x72x48xf32, #tpu.memory_space<vmem>>, vector<1x8x8xf32>
    %2358 = vector.shape_cast %2357 : vector<1x8x8xf32> to vector<8x8xf32>
    %cst_83 = arith.constant dense<0.000000e+00> : vector<8x8xf32>
    %2359 = tpu.matmul %2356, %2358, %cst_83 {dimension_numbers = #tpu.dot_dimension_numbers<[1], [0], [0], [1], [0, 0, 1, 1], [], []>} : vector<8x8xf32>, vector<8x8xf32>, vector<8x8xf32> -> vector<8x8xf32>
    %2360 = arith.addf %2125, %2359 : vector<8x8xf32>
    %cst_84 = arith.constant 0.000000e+00 : f32
    %2361 = vector.broadcast %cst_84 : f32 to vector<8x8xf32>
    %2362 = vector.extract_strided_slice %1 {offsets = [0, 327], sizes = [8, 1], strides = [1, 1]} : vector<8x384xi32> to vector<8x1xi32>
    %2363 = vector.broadcast %2362 : vector<8x1xi32> to vector<8x64xi32>
    %2364 = arith.cmpi eq, %4, %2363 : vector<8x64xi32>
    %2365 = vector.extract_strided_slice %3 {offsets = [0, 327], sizes = [8, 1], strides = [1, 1]} : vector<8x384xf32> to vector<8x1xf32>
    %cst_85 = arith.constant 0.000000e+00 : f32
    %2366 = vector.shape_cast %2365 : vector<8x1xf32> to vector<8x1xf32>
    %2367 = vector.broadcast %2366 : vector<8x1xf32> to vector<8x64xf32>
    %2368 = vector.broadcast %cst_85 : f32 to vector<8x64xf32>
    %2369 = arith.select %2364, %2367, %2368 : vector<8x64xi1>, vector<8x64xf32>
    %2370 = vector.extract_strided_slice %1 {offsets = [0, 326], sizes = [8, 1], strides = [1, 1]} : vector<8x384xi32> to vector<8x1xi32>
    %2371 = vector.broadcast %2370 : vector<8x1xi32> to vector<8x64xi32>
    %2372 = arith.cmpi eq, %4, %2371 : vector<8x64xi32>
    %2373 = vector.extract_strided_slice %3 {offsets = [0, 326], sizes = [8, 1], strides = [1, 1]} : vector<8x384xf32> to vector<8x1xf32>
    %2374 = vector.shape_cast %2373 : vector<8x1xf32> to vector<8x1xf32>
    %2375 = vector.broadcast %2374 : vector<8x1xf32> to vector<8x64xf32>
    %2376 = arith.select %2372, %2375, %2369 : vector<8x64xi1>, vector<8x64xf32>
    %2377 = vector.extract_strided_slice %1 {offsets = [0, 325], sizes = [8, 1], strides = [1, 1]} : vector<8x384xi32> to vector<8x1xi32>
    %2378 = vector.broadcast %2377 : vector<8x1xi32> to vector<8x64xi32>
    %2379 = arith.cmpi eq, %4, %2378 : vector<8x64xi32>
    %2380 = vector.extract_strided_slice %3 {offsets = [0, 325], sizes = [8, 1], strides = [1, 1]} : vector<8x384xf32> to vector<8x1xf32>
    %2381 = vector.shape_cast %2380 : vector<8x1xf32> to vector<8x1xf32>
    %2382 = vector.broadcast %2381 : vector<8x1xf32> to vector<8x64xf32>
    %2383 = arith.select %2379, %2382, %2376 : vector<8x64xi1>, vector<8x64xf32>
    %2384 = vector.extract_strided_slice %1 {offsets = [0, 324], sizes = [8, 1], strides = [1, 1]} : vector<8x384xi32> to vector<8x1xi32>
    %2385 = vector.broadcast %2384 : vector<8x1xi32> to vector<8x64xi32>
    %2386 = arith.cmpi eq, %4, %2385 : vector<8x64xi32>
    %2387 = vector.extract_strided_slice %3 {offsets = [0, 324], sizes = [8, 1], strides = [1, 1]} : vector<8x384xf32> to vector<8x1xf32>
    %2388 = vector.shape_cast %2387 : vector<8x1xf32> to vector<8x1xf32>
    %2389 = vector.broadcast %2388 : vector<8x1xf32> to vector<8x64xf32>
    %2390 = arith.select %2386, %2389, %2383 : vector<8x64xi1>, vector<8x64xf32>
    %2391 = vector.extract_strided_slice %1 {offsets = [0, 323], sizes = [8, 1], strides = [1, 1]} : vector<8x384xi32> to vector<8x1xi32>
    %2392 = vector.broadcast %2391 : vector<8x1xi32> to vector<8x64xi32>
    %2393 = arith.cmpi eq, %4, %2392 : vector<8x64xi32>
    %2394 = vector.extract_strided_slice %3 {offsets = [0, 323], sizes = [8, 1], strides = [1, 1]} : vector<8x384xf32> to vector<8x1xf32>
    %2395 = vector.shape_cast %2394 : vector<8x1xf32> to vector<8x1xf32>
    %2396 = vector.broadcast %2395 : vector<8x1xf32> to vector<8x64xf32>
    %2397 = arith.select %2393, %2396, %2390 : vector<8x64xi1>, vector<8x64xf32>
    %2398 = vector.extract_strided_slice %1 {offsets = [0, 322], sizes = [8, 1], strides = [1, 1]} : vector<8x384xi32> to vector<8x1xi32>
    %2399 = vector.broadcast %2398 : vector<8x1xi32> to vector<8x64xi32>
    %2400 = arith.cmpi eq, %4, %2399 : vector<8x64xi32>
    %2401 = vector.extract_strided_slice %3 {offsets = [0, 322], sizes = [8, 1], strides = [1, 1]} : vector<8x384xf32> to vector<8x1xf32>
    %2402 = vector.shape_cast %2401 : vector<8x1xf32> to vector<8x1xf32>
    %2403 = vector.broadcast %2402 : vector<8x1xf32> to vector<8x64xf32>
    %2404 = arith.select %2400, %2403, %2397 : vector<8x64xi1>, vector<8x64xf32>
    %2405 = vector.extract_strided_slice %1 {offsets = [0, 321], sizes = [8, 1], strides = [1, 1]} : vector<8x384xi32> to vector<8x1xi32>
    %2406 = vector.broadcast %2405 : vector<8x1xi32> to vector<8x64xi32>
    %2407 = arith.cmpi eq, %4, %2406 : vector<8x64xi32>
    %2408 = vector.extract_strided_slice %3 {offsets = [0, 321], sizes = [8, 1], strides = [1, 1]} : vector<8x384xf32> to vector<8x1xf32>
    %2409 = vector.shape_cast %2408 : vector<8x1xf32> to vector<8x1xf32>
    %2410 = vector.broadcast %2409 : vector<8x1xf32> to vector<8x64xf32>
    %2411 = arith.select %2407, %2410, %2404 : vector<8x64xi1>, vector<8x64xf32>
    %2412 = vector.extract_strided_slice %1 {offsets = [0, 320], sizes = [8, 1], strides = [1, 1]} : vector<8x384xi32> to vector<8x1xi32>
    %2413 = vector.broadcast %2412 : vector<8x1xi32> to vector<8x64xi32>
    %2414 = arith.cmpi eq, %4, %2413 : vector<8x64xi32>
    %2415 = vector.extract_strided_slice %3 {offsets = [0, 320], sizes = [8, 1], strides = [1, 1]} : vector<8x384xf32> to vector<8x1xf32>
    %2416 = vector.shape_cast %2415 : vector<8x1xf32> to vector<8x1xf32>
    %2417 = vector.broadcast %2416 : vector<8x1xf32> to vector<8x64xf32>
    %2418 = arith.select %2414, %2417, %2411 : vector<8x64xi1>, vector<8x64xf32>
    %2419 = vector.extract_strided_slice %1 {offsets = [0, 335], sizes = [8, 1], strides = [1, 1]} : vector<8x384xi32> to vector<8x1xi32>
    %2420 = vector.broadcast %2419 : vector<8x1xi32> to vector<8x64xi32>
    %2421 = arith.cmpi eq, %4, %2420 : vector<8x64xi32>
    %2422 = vector.extract_strided_slice %3 {offsets = [0, 335], sizes = [8, 1], strides = [1, 1]} : vector<8x384xf32> to vector<8x1xf32>
    %cst_86 = arith.constant 0.000000e+00 : f32
    %2423 = vector.shape_cast %2422 : vector<8x1xf32> to vector<8x1xf32>
    %2424 = vector.broadcast %2423 : vector<8x1xf32> to vector<8x64xf32>
    %2425 = vector.broadcast %cst_86 : f32 to vector<8x64xf32>
    %2426 = arith.select %2421, %2424, %2425 : vector<8x64xi1>, vector<8x64xf32>
    %2427 = vector.extract_strided_slice %1 {offsets = [0, 334], sizes = [8, 1], strides = [1, 1]} : vector<8x384xi32> to vector<8x1xi32>
    %2428 = vector.broadcast %2427 : vector<8x1xi32> to vector<8x64xi32>
    %2429 = arith.cmpi eq, %4, %2428 : vector<8x64xi32>
    %2430 = vector.extract_strided_slice %3 {offsets = [0, 334], sizes = [8, 1], strides = [1, 1]} : vector<8x384xf32> to vector<8x1xf32>
    %2431 = vector.shape_cast %2430 : vector<8x1xf32> to vector<8x1xf32>
    %2432 = vector.broadcast %2431 : vector<8x1xf32> to vector<8x64xf32>
    %2433 = arith.select %2429, %2432, %2426 : vector<8x64xi1>, vector<8x64xf32>
    %2434 = vector.extract_strided_slice %1 {offsets = [0, 333], sizes = [8, 1], strides = [1, 1]} : vector<8x384xi32> to vector<8x1xi32>
    %2435 = vector.broadcast %2434 : vector<8x1xi32> to vector<8x64xi32>
    %2436 = arith.cmpi eq, %4, %2435 : vector<8x64xi32>
    %2437 = vector.extract_strided_slice %3 {offsets = [0, 333], sizes = [8, 1], strides = [1, 1]} : vector<8x384xf32> to vector<8x1xf32>
    %2438 = vector.shape_cast %2437 : vector<8x1xf32> to vector<8x1xf32>
    %2439 = vector.broadcast %2438 : vector<8x1xf32> to vector<8x64xf32>
    %2440 = arith.select %2436, %2439, %2433 : vector<8x64xi1>, vector<8x64xf32>
    %2441 = vector.extract_strided_slice %1 {offsets = [0, 332], sizes = [8, 1], strides = [1, 1]} : vector<8x384xi32> to vector<8x1xi32>
    %2442 = vector.broadcast %2441 : vector<8x1xi32> to vector<8x64xi32>
    %2443 = arith.cmpi eq, %4, %2442 : vector<8x64xi32>
    %2444 = vector.extract_strided_slice %3 {offsets = [0, 332], sizes = [8, 1], strides = [1, 1]} : vector<8x384xf32> to vector<8x1xf32>
    %2445 = vector.shape_cast %2444 : vector<8x1xf32> to vector<8x1xf32>
    %2446 = vector.broadcast %2445 : vector<8x1xf32> to vector<8x64xf32>
    %2447 = arith.select %2443, %2446, %2440 : vector<8x64xi1>, vector<8x64xf32>
    %2448 = vector.extract_strided_slice %1 {offsets = [0, 331], sizes = [8, 1], strides = [1, 1]} : vector<8x384xi32> to vector<8x1xi32>
    %2449 = vector.broadcast %2448 : vector<8x1xi32> to vector<8x64xi32>
    %2450 = arith.cmpi eq, %4, %2449 : vector<8x64xi32>
    %2451 = vector.extract_strided_slice %3 {offsets = [0, 331], sizes = [8, 1], strides = [1, 1]} : vector<8x384xf32> to vector<8x1xf32>
    %2452 = vector.shape_cast %2451 : vector<8x1xf32> to vector<8x1xf32>
    %2453 = vector.broadcast %2452 : vector<8x1xf32> to vector<8x64xf32>
    %2454 = arith.select %2450, %2453, %2447 : vector<8x64xi1>, vector<8x64xf32>
    %2455 = vector.extract_strided_slice %1 {offsets = [0, 330], sizes = [8, 1], strides = [1, 1]} : vector<8x384xi32> to vector<8x1xi32>
    %2456 = vector.broadcast %2455 : vector<8x1xi32> to vector<8x64xi32>
    %2457 = arith.cmpi eq, %4, %2456 : vector<8x64xi32>
    %2458 = vector.extract_strided_slice %3 {offsets = [0, 330], sizes = [8, 1], strides = [1, 1]} : vector<8x384xf32> to vector<8x1xf32>
    %2459 = vector.shape_cast %2458 : vector<8x1xf32> to vector<8x1xf32>
    %2460 = vector.broadcast %2459 : vector<8x1xf32> to vector<8x64xf32>
    %2461 = arith.select %2457, %2460, %2454 : vector<8x64xi1>, vector<8x64xf32>
    %2462 = vector.extract_strided_slice %1 {offsets = [0, 329], sizes = [8, 1], strides = [1, 1]} : vector<8x384xi32> to vector<8x1xi32>
    %2463 = vector.broadcast %2462 : vector<8x1xi32> to vector<8x64xi32>
    %2464 = arith.cmpi eq, %4, %2463 : vector<8x64xi32>
    %2465 = vector.extract_strided_slice %3 {offsets = [0, 329], sizes = [8, 1], strides = [1, 1]} : vector<8x384xf32> to vector<8x1xf32>
    %2466 = vector.shape_cast %2465 : vector<8x1xf32> to vector<8x1xf32>
    %2467 = vector.broadcast %2466 : vector<8x1xf32> to vector<8x64xf32>
    %2468 = arith.select %2464, %2467, %2461 : vector<8x64xi1>, vector<8x64xf32>
    %2469 = vector.extract_strided_slice %1 {offsets = [0, 328], sizes = [8, 1], strides = [1, 1]} : vector<8x384xi32> to vector<8x1xi32>
    %2470 = vector.broadcast %2469 : vector<8x1xi32> to vector<8x64xi32>
    %2471 = arith.cmpi eq, %4, %2470 : vector<8x64xi32>
    %2472 = vector.extract_strided_slice %3 {offsets = [0, 328], sizes = [8, 1], strides = [1, 1]} : vector<8x384xf32> to vector<8x1xf32>
    %2473 = vector.shape_cast %2472 : vector<8x1xf32> to vector<8x1xf32>
    %2474 = vector.broadcast %2473 : vector<8x1xf32> to vector<8x64xf32>
    %2475 = arith.select %2471, %2474, %2468 : vector<8x64xi1>, vector<8x64xf32>
    %2476 = arith.addf %2418, %2475 : vector<8x64xf32>
    %2477 = vector.extract_strided_slice %1 {offsets = [0, 343], sizes = [8, 1], strides = [1, 1]} : vector<8x384xi32> to vector<8x1xi32>
    %2478 = vector.broadcast %2477 : vector<8x1xi32> to vector<8x64xi32>
    %2479 = arith.cmpi eq, %4, %2478 : vector<8x64xi32>
    %2480 = vector.extract_strided_slice %3 {offsets = [0, 343], sizes = [8, 1], strides = [1, 1]} : vector<8x384xf32> to vector<8x1xf32>
    %cst_87 = arith.constant 0.000000e+00 : f32
    %2481 = vector.shape_cast %2480 : vector<8x1xf32> to vector<8x1xf32>
    %2482 = vector.broadcast %2481 : vector<8x1xf32> to vector<8x64xf32>
    %2483 = vector.broadcast %cst_87 : f32 to vector<8x64xf32>
    %2484 = arith.select %2479, %2482, %2483 : vector<8x64xi1>, vector<8x64xf32>
    %2485 = vector.extract_strided_slice %1 {offsets = [0, 342], sizes = [8, 1], strides = [1, 1]} : vector<8x384xi32> to vector<8x1xi32>
    %2486 = vector.broadcast %2485 : vector<8x1xi32> to vector<8x64xi32>
    %2487 = arith.cmpi eq, %4, %2486 : vector<8x64xi32>
    %2488 = vector.extract_strided_slice %3 {offsets = [0, 342], sizes = [8, 1], strides = [1, 1]} : vector<8x384xf32> to vector<8x1xf32>
    %2489 = vector.shape_cast %2488 : vector<8x1xf32> to vector<8x1xf32>
    %2490 = vector.broadcast %2489 : vector<8x1xf32> to vector<8x64xf32>
    %2491 = arith.select %2487, %2490, %2484 : vector<8x64xi1>, vector<8x64xf32>
    %2492 = vector.extract_strided_slice %1 {offsets = [0, 341], sizes = [8, 1], strides = [1, 1]} : vector<8x384xi32> to vector<8x1xi32>
    %2493 = vector.broadcast %2492 : vector<8x1xi32> to vector<8x64xi32>
    %2494 = arith.cmpi eq, %4, %2493 : vector<8x64xi32>
    %2495 = vector.extract_strided_slice %3 {offsets = [0, 341], sizes = [8, 1], strides = [1, 1]} : vector<8x384xf32> to vector<8x1xf32>
    %2496 = vector.shape_cast %2495 : vector<8x1xf32> to vector<8x1xf32>
    %2497 = vector.broadcast %2496 : vector<8x1xf32> to vector<8x64xf32>
    %2498 = arith.select %2494, %2497, %2491 : vector<8x64xi1>, vector<8x64xf32>
    %2499 = vector.extract_strided_slice %1 {offsets = [0, 340], sizes = [8, 1], strides = [1, 1]} : vector<8x384xi32> to vector<8x1xi32>
    %2500 = vector.broadcast %2499 : vector<8x1xi32> to vector<8x64xi32>
    %2501 = arith.cmpi eq, %4, %2500 : vector<8x64xi32>
    %2502 = vector.extract_strided_slice %3 {offsets = [0, 340], sizes = [8, 1], strides = [1, 1]} : vector<8x384xf32> to vector<8x1xf32>
    %2503 = vector.shape_cast %2502 : vector<8x1xf32> to vector<8x1xf32>
    %2504 = vector.broadcast %2503 : vector<8x1xf32> to vector<8x64xf32>
    %2505 = arith.select %2501, %2504, %2498 : vector<8x64xi1>, vector<8x64xf32>
    %2506 = vector.extract_strided_slice %1 {offsets = [0, 339], sizes = [8, 1], strides = [1, 1]} : vector<8x384xi32> to vector<8x1xi32>
    %2507 = vector.broadcast %2506 : vector<8x1xi32> to vector<8x64xi32>
    %2508 = arith.cmpi eq, %4, %2507 : vector<8x64xi32>
    %2509 = vector.extract_strided_slice %3 {offsets = [0, 339], sizes = [8, 1], strides = [1, 1]} : vector<8x384xf32> to vector<8x1xf32>
    %2510 = vector.shape_cast %2509 : vector<8x1xf32> to vector<8x1xf32>
    %2511 = vector.broadcast %2510 : vector<8x1xf32> to vector<8x64xf32>
    %2512 = arith.select %2508, %2511, %2505 : vector<8x64xi1>, vector<8x64xf32>
    %2513 = vector.extract_strided_slice %1 {offsets = [0, 338], sizes = [8, 1], strides = [1, 1]} : vector<8x384xi32> to vector<8x1xi32>
    %2514 = vector.broadcast %2513 : vector<8x1xi32> to vector<8x64xi32>
    %2515 = arith.cmpi eq, %4, %2514 : vector<8x64xi32>
    %2516 = vector.extract_strided_slice %3 {offsets = [0, 338], sizes = [8, 1], strides = [1, 1]} : vector<8x384xf32> to vector<8x1xf32>
    %2517 = vector.shape_cast %2516 : vector<8x1xf32> to vector<8x1xf32>
    %2518 = vector.broadcast %2517 : vector<8x1xf32> to vector<8x64xf32>
    %2519 = arith.select %2515, %2518, %2512 : vector<8x64xi1>, vector<8x64xf32>
    %2520 = vector.extract_strided_slice %1 {offsets = [0, 337], sizes = [8, 1], strides = [1, 1]} : vector<8x384xi32> to vector<8x1xi32>
    %2521 = vector.broadcast %2520 : vector<8x1xi32> to vector<8x64xi32>
    %2522 = arith.cmpi eq, %4, %2521 : vector<8x64xi32>
    %2523 = vector.extract_strided_slice %3 {offsets = [0, 337], sizes = [8, 1], strides = [1, 1]} : vector<8x384xf32> to vector<8x1xf32>
    %2524 = vector.shape_cast %2523 : vector<8x1xf32> to vector<8x1xf32>
    %2525 = vector.broadcast %2524 : vector<8x1xf32> to vector<8x64xf32>
    %2526 = arith.select %2522, %2525, %2519 : vector<8x64xi1>, vector<8x64xf32>
    %2527 = vector.extract_strided_slice %1 {offsets = [0, 336], sizes = [8, 1], strides = [1, 1]} : vector<8x384xi32> to vector<8x1xi32>
    %2528 = vector.broadcast %2527 : vector<8x1xi32> to vector<8x64xi32>
    %2529 = arith.cmpi eq, %4, %2528 : vector<8x64xi32>
    %2530 = vector.extract_strided_slice %3 {offsets = [0, 336], sizes = [8, 1], strides = [1, 1]} : vector<8x384xf32> to vector<8x1xf32>
    %2531 = vector.shape_cast %2530 : vector<8x1xf32> to vector<8x1xf32>
    %2532 = vector.broadcast %2531 : vector<8x1xf32> to vector<8x64xf32>
    %2533 = arith.select %2529, %2532, %2526 : vector<8x64xi1>, vector<8x64xf32>
    %2534 = arith.addf %2476, %2533 : vector<8x64xf32>
    %2535 = vector.extract_strided_slice %1 {offsets = [0, 351], sizes = [8, 1], strides = [1, 1]} : vector<8x384xi32> to vector<8x1xi32>
    %2536 = vector.broadcast %2535 : vector<8x1xi32> to vector<8x64xi32>
    %2537 = arith.cmpi eq, %4, %2536 : vector<8x64xi32>
    %2538 = vector.extract_strided_slice %3 {offsets = [0, 351], sizes = [8, 1], strides = [1, 1]} : vector<8x384xf32> to vector<8x1xf32>
    %cst_88 = arith.constant 0.000000e+00 : f32
    %2539 = vector.shape_cast %2538 : vector<8x1xf32> to vector<8x1xf32>
    %2540 = vector.broadcast %2539 : vector<8x1xf32> to vector<8x64xf32>
    %2541 = vector.broadcast %cst_88 : f32 to vector<8x64xf32>
    %2542 = arith.select %2537, %2540, %2541 : vector<8x64xi1>, vector<8x64xf32>
    %2543 = vector.extract_strided_slice %1 {offsets = [0, 350], sizes = [8, 1], strides = [1, 1]} : vector<8x384xi32> to vector<8x1xi32>
    %2544 = vector.broadcast %2543 : vector<8x1xi32> to vector<8x64xi32>
    %2545 = arith.cmpi eq, %4, %2544 : vector<8x64xi32>
    %2546 = vector.extract_strided_slice %3 {offsets = [0, 350], sizes = [8, 1], strides = [1, 1]} : vector<8x384xf32> to vector<8x1xf32>
    %2547 = vector.shape_cast %2546 : vector<8x1xf32> to vector<8x1xf32>
    %2548 = vector.broadcast %2547 : vector<8x1xf32> to vector<8x64xf32>
    %2549 = arith.select %2545, %2548, %2542 : vector<8x64xi1>, vector<8x64xf32>
    %2550 = vector.extract_strided_slice %1 {offsets = [0, 349], sizes = [8, 1], strides = [1, 1]} : vector<8x384xi32> to vector<8x1xi32>
    %2551 = vector.broadcast %2550 : vector<8x1xi32> to vector<8x64xi32>
    %2552 = arith.cmpi eq, %4, %2551 : vector<8x64xi32>
    %2553 = vector.extract_strided_slice %3 {offsets = [0, 349], sizes = [8, 1], strides = [1, 1]} : vector<8x384xf32> to vector<8x1xf32>
    %2554 = vector.shape_cast %2553 : vector<8x1xf32> to vector<8x1xf32>
    %2555 = vector.broadcast %2554 : vector<8x1xf32> to vector<8x64xf32>
    %2556 = arith.select %2552, %2555, %2549 : vector<8x64xi1>, vector<8x64xf32>
    %2557 = vector.extract_strided_slice %1 {offsets = [0, 348], sizes = [8, 1], strides = [1, 1]} : vector<8x384xi32> to vector<8x1xi32>
    %2558 = vector.broadcast %2557 : vector<8x1xi32> to vector<8x64xi32>
    %2559 = arith.cmpi eq, %4, %2558 : vector<8x64xi32>
    %2560 = vector.extract_strided_slice %3 {offsets = [0, 348], sizes = [8, 1], strides = [1, 1]} : vector<8x384xf32> to vector<8x1xf32>
    %2561 = vector.shape_cast %2560 : vector<8x1xf32> to vector<8x1xf32>
    %2562 = vector.broadcast %2561 : vector<8x1xf32> to vector<8x64xf32>
    %2563 = arith.select %2559, %2562, %2556 : vector<8x64xi1>, vector<8x64xf32>
    %2564 = vector.extract_strided_slice %1 {offsets = [0, 347], sizes = [8, 1], strides = [1, 1]} : vector<8x384xi32> to vector<8x1xi32>
    %2565 = vector.broadcast %2564 : vector<8x1xi32> to vector<8x64xi32>
    %2566 = arith.cmpi eq, %4, %2565 : vector<8x64xi32>
    %2567 = vector.extract_strided_slice %3 {offsets = [0, 347], sizes = [8, 1], strides = [1, 1]} : vector<8x384xf32> to vector<8x1xf32>
    %2568 = vector.shape_cast %2567 : vector<8x1xf32> to vector<8x1xf32>
    %2569 = vector.broadcast %2568 : vector<8x1xf32> to vector<8x64xf32>
    %2570 = arith.select %2566, %2569, %2563 : vector<8x64xi1>, vector<8x64xf32>
    %2571 = vector.extract_strided_slice %1 {offsets = [0, 346], sizes = [8, 1], strides = [1, 1]} : vector<8x384xi32> to vector<8x1xi32>
    %2572 = vector.broadcast %2571 : vector<8x1xi32> to vector<8x64xi32>
    %2573 = arith.cmpi eq, %4, %2572 : vector<8x64xi32>
    %2574 = vector.extract_strided_slice %3 {offsets = [0, 346], sizes = [8, 1], strides = [1, 1]} : vector<8x384xf32> to vector<8x1xf32>
    %2575 = vector.shape_cast %2574 : vector<8x1xf32> to vector<8x1xf32>
    %2576 = vector.broadcast %2575 : vector<8x1xf32> to vector<8x64xf32>
    %2577 = arith.select %2573, %2576, %2570 : vector<8x64xi1>, vector<8x64xf32>
    %2578 = vector.extract_strided_slice %1 {offsets = [0, 345], sizes = [8, 1], strides = [1, 1]} : vector<8x384xi32> to vector<8x1xi32>
    %2579 = vector.broadcast %2578 : vector<8x1xi32> to vector<8x64xi32>
    %2580 = arith.cmpi eq, %4, %2579 : vector<8x64xi32>
    %2581 = vector.extract_strided_slice %3 {offsets = [0, 345], sizes = [8, 1], strides = [1, 1]} : vector<8x384xf32> to vector<8x1xf32>
    %2582 = vector.shape_cast %2581 : vector<8x1xf32> to vector<8x1xf32>
    %2583 = vector.broadcast %2582 : vector<8x1xf32> to vector<8x64xf32>
    %2584 = arith.select %2580, %2583, %2577 : vector<8x64xi1>, vector<8x64xf32>
    %2585 = vector.extract_strided_slice %1 {offsets = [0, 344], sizes = [8, 1], strides = [1, 1]} : vector<8x384xi32> to vector<8x1xi32>
    %2586 = vector.broadcast %2585 : vector<8x1xi32> to vector<8x64xi32>
    %2587 = arith.cmpi eq, %4, %2586 : vector<8x64xi32>
    %2588 = vector.extract_strided_slice %3 {offsets = [0, 344], sizes = [8, 1], strides = [1, 1]} : vector<8x384xf32> to vector<8x1xf32>
    %2589 = vector.shape_cast %2588 : vector<8x1xf32> to vector<8x1xf32>
    %2590 = vector.broadcast %2589 : vector<8x1xf32> to vector<8x64xf32>
    %2591 = arith.select %2587, %2590, %2584 : vector<8x64xi1>, vector<8x64xf32>
    %2592 = arith.addf %2534, %2591 : vector<8x64xf32>
    %c0_89 = arith.constant 0 : index
    %c0_90 = arith.constant 0 : index
    %c40 = arith.constant 40 : index
    %2593 = vector.load %arg4[%c0_89, %c0_90, %c40] : memref<1x72x48xf32, #tpu.memory_space<vmem>>, vector<1x64x8xf32>
    %2594 = vector.shape_cast %2593 : vector<1x64x8xf32> to vector<64x8xf32>
    %cst_91 = arith.constant dense<0.000000e+00> : vector<8x8xf32>
    %2595 = tpu.matmul %2592, %2594, %cst_91 {dimension_numbers = #tpu.dot_dimension_numbers<[1], [0], [0], [1], [0, 0, 1, 1], [], []>} : vector<8x64xf32>, vector<64x8xf32>, vector<8x8xf32> -> vector<8x8xf32>
    %2596 = arith.addf %2361, %2595 : vector<8x8xf32>
    %2597 = vector.extract_strided_slice %1 {offsets = [0, 359], sizes = [8, 1], strides = [1, 1]} : vector<8x384xi32> to vector<8x1xi32>
    %2598 = vector.broadcast %2597 : vector<8x1xi32> to vector<8x8xi32>
    %2599 = arith.cmpi eq, %5, %2598 : vector<8x8xi32>
    %2600 = vector.extract_strided_slice %3 {offsets = [0, 359], sizes = [8, 1], strides = [1, 1]} : vector<8x384xf32> to vector<8x1xf32>
    %cst_92 = arith.constant 0.000000e+00 : f32
    %2601 = vector.shape_cast %2600 : vector<8x1xf32> to vector<8x1xf32>
    %2602 = vector.broadcast %2601 : vector<8x1xf32> to vector<8x8xf32>
    %2603 = vector.broadcast %cst_92 : f32 to vector<8x8xf32>
    %2604 = arith.select %2599, %2602, %2603 : vector<8x8xi1>, vector<8x8xf32>
    %2605 = vector.extract_strided_slice %1 {offsets = [0, 358], sizes = [8, 1], strides = [1, 1]} : vector<8x384xi32> to vector<8x1xi32>
    %2606 = vector.broadcast %2605 : vector<8x1xi32> to vector<8x8xi32>
    %2607 = arith.cmpi eq, %5, %2606 : vector<8x8xi32>
    %2608 = vector.extract_strided_slice %3 {offsets = [0, 358], sizes = [8, 1], strides = [1, 1]} : vector<8x384xf32> to vector<8x1xf32>
    %2609 = vector.shape_cast %2608 : vector<8x1xf32> to vector<8x1xf32>
    %2610 = vector.broadcast %2609 : vector<8x1xf32> to vector<8x8xf32>
    %2611 = arith.select %2607, %2610, %2604 : vector<8x8xi1>, vector<8x8xf32>
    %2612 = vector.extract_strided_slice %1 {offsets = [0, 357], sizes = [8, 1], strides = [1, 1]} : vector<8x384xi32> to vector<8x1xi32>
    %2613 = vector.broadcast %2612 : vector<8x1xi32> to vector<8x8xi32>
    %2614 = arith.cmpi eq, %5, %2613 : vector<8x8xi32>
    %2615 = vector.extract_strided_slice %3 {offsets = [0, 357], sizes = [8, 1], strides = [1, 1]} : vector<8x384xf32> to vector<8x1xf32>
    %2616 = vector.shape_cast %2615 : vector<8x1xf32> to vector<8x1xf32>
    %2617 = vector.broadcast %2616 : vector<8x1xf32> to vector<8x8xf32>
    %2618 = arith.select %2614, %2617, %2611 : vector<8x8xi1>, vector<8x8xf32>
    %2619 = vector.extract_strided_slice %1 {offsets = [0, 356], sizes = [8, 1], strides = [1, 1]} : vector<8x384xi32> to vector<8x1xi32>
    %2620 = vector.broadcast %2619 : vector<8x1xi32> to vector<8x8xi32>
    %2621 = arith.cmpi eq, %5, %2620 : vector<8x8xi32>
    %2622 = vector.extract_strided_slice %3 {offsets = [0, 356], sizes = [8, 1], strides = [1, 1]} : vector<8x384xf32> to vector<8x1xf32>
    %2623 = vector.shape_cast %2622 : vector<8x1xf32> to vector<8x1xf32>
    %2624 = vector.broadcast %2623 : vector<8x1xf32> to vector<8x8xf32>
    %2625 = arith.select %2621, %2624, %2618 : vector<8x8xi1>, vector<8x8xf32>
    %2626 = vector.extract_strided_slice %1 {offsets = [0, 355], sizes = [8, 1], strides = [1, 1]} : vector<8x384xi32> to vector<8x1xi32>
    %2627 = vector.broadcast %2626 : vector<8x1xi32> to vector<8x8xi32>
    %2628 = arith.cmpi eq, %5, %2627 : vector<8x8xi32>
    %2629 = vector.extract_strided_slice %3 {offsets = [0, 355], sizes = [8, 1], strides = [1, 1]} : vector<8x384xf32> to vector<8x1xf32>
    %2630 = vector.shape_cast %2629 : vector<8x1xf32> to vector<8x1xf32>
    %2631 = vector.broadcast %2630 : vector<8x1xf32> to vector<8x8xf32>
    %2632 = arith.select %2628, %2631, %2625 : vector<8x8xi1>, vector<8x8xf32>
    %2633 = vector.extract_strided_slice %1 {offsets = [0, 354], sizes = [8, 1], strides = [1, 1]} : vector<8x384xi32> to vector<8x1xi32>
    %2634 = vector.broadcast %2633 : vector<8x1xi32> to vector<8x8xi32>
    %2635 = arith.cmpi eq, %5, %2634 : vector<8x8xi32>
    %2636 = vector.extract_strided_slice %3 {offsets = [0, 354], sizes = [8, 1], strides = [1, 1]} : vector<8x384xf32> to vector<8x1xf32>
    %2637 = vector.shape_cast %2636 : vector<8x1xf32> to vector<8x1xf32>
    %2638 = vector.broadcast %2637 : vector<8x1xf32> to vector<8x8xf32>
    %2639 = arith.select %2635, %2638, %2632 : vector<8x8xi1>, vector<8x8xf32>
    %2640 = vector.extract_strided_slice %1 {offsets = [0, 353], sizes = [8, 1], strides = [1, 1]} : vector<8x384xi32> to vector<8x1xi32>
    %2641 = vector.broadcast %2640 : vector<8x1xi32> to vector<8x8xi32>
    %2642 = arith.cmpi eq, %5, %2641 : vector<8x8xi32>
    %2643 = vector.extract_strided_slice %3 {offsets = [0, 353], sizes = [8, 1], strides = [1, 1]} : vector<8x384xf32> to vector<8x1xf32>
    %2644 = vector.shape_cast %2643 : vector<8x1xf32> to vector<8x1xf32>
    %2645 = vector.broadcast %2644 : vector<8x1xf32> to vector<8x8xf32>
    %2646 = arith.select %2642, %2645, %2639 : vector<8x8xi1>, vector<8x8xf32>
    %2647 = vector.extract_strided_slice %1 {offsets = [0, 352], sizes = [8, 1], strides = [1, 1]} : vector<8x384xi32> to vector<8x1xi32>
    %2648 = vector.broadcast %2647 : vector<8x1xi32> to vector<8x8xi32>
    %2649 = arith.cmpi eq, %5, %2648 : vector<8x8xi32>
    %2650 = vector.extract_strided_slice %3 {offsets = [0, 352], sizes = [8, 1], strides = [1, 1]} : vector<8x384xf32> to vector<8x1xf32>
    %2651 = vector.shape_cast %2650 : vector<8x1xf32> to vector<8x1xf32>
    %2652 = vector.broadcast %2651 : vector<8x1xf32> to vector<8x8xf32>
    %2653 = arith.select %2649, %2652, %2646 : vector<8x8xi1>, vector<8x8xf32>
    %2654 = vector.extract_strided_slice %1 {offsets = [0, 367], sizes = [8, 1], strides = [1, 1]} : vector<8x384xi32> to vector<8x1xi32>
    %2655 = vector.broadcast %2654 : vector<8x1xi32> to vector<8x8xi32>
    %2656 = arith.cmpi eq, %5, %2655 : vector<8x8xi32>
    %2657 = vector.extract_strided_slice %3 {offsets = [0, 367], sizes = [8, 1], strides = [1, 1]} : vector<8x384xf32> to vector<8x1xf32>
    %cst_93 = arith.constant 0.000000e+00 : f32
    %2658 = vector.shape_cast %2657 : vector<8x1xf32> to vector<8x1xf32>
    %2659 = vector.broadcast %2658 : vector<8x1xf32> to vector<8x8xf32>
    %2660 = vector.broadcast %cst_93 : f32 to vector<8x8xf32>
    %2661 = arith.select %2656, %2659, %2660 : vector<8x8xi1>, vector<8x8xf32>
    %2662 = vector.extract_strided_slice %1 {offsets = [0, 366], sizes = [8, 1], strides = [1, 1]} : vector<8x384xi32> to vector<8x1xi32>
    %2663 = vector.broadcast %2662 : vector<8x1xi32> to vector<8x8xi32>
    %2664 = arith.cmpi eq, %5, %2663 : vector<8x8xi32>
    %2665 = vector.extract_strided_slice %3 {offsets = [0, 366], sizes = [8, 1], strides = [1, 1]} : vector<8x384xf32> to vector<8x1xf32>
    %2666 = vector.shape_cast %2665 : vector<8x1xf32> to vector<8x1xf32>
    %2667 = vector.broadcast %2666 : vector<8x1xf32> to vector<8x8xf32>
    %2668 = arith.select %2664, %2667, %2661 : vector<8x8xi1>, vector<8x8xf32>
    %2669 = vector.extract_strided_slice %1 {offsets = [0, 365], sizes = [8, 1], strides = [1, 1]} : vector<8x384xi32> to vector<8x1xi32>
    %2670 = vector.broadcast %2669 : vector<8x1xi32> to vector<8x8xi32>
    %2671 = arith.cmpi eq, %5, %2670 : vector<8x8xi32>
    %2672 = vector.extract_strided_slice %3 {offsets = [0, 365], sizes = [8, 1], strides = [1, 1]} : vector<8x384xf32> to vector<8x1xf32>
    %2673 = vector.shape_cast %2672 : vector<8x1xf32> to vector<8x1xf32>
    %2674 = vector.broadcast %2673 : vector<8x1xf32> to vector<8x8xf32>
    %2675 = arith.select %2671, %2674, %2668 : vector<8x8xi1>, vector<8x8xf32>
    %2676 = vector.extract_strided_slice %1 {offsets = [0, 364], sizes = [8, 1], strides = [1, 1]} : vector<8x384xi32> to vector<8x1xi32>
    %2677 = vector.broadcast %2676 : vector<8x1xi32> to vector<8x8xi32>
    %2678 = arith.cmpi eq, %5, %2677 : vector<8x8xi32>
    %2679 = vector.extract_strided_slice %3 {offsets = [0, 364], sizes = [8, 1], strides = [1, 1]} : vector<8x384xf32> to vector<8x1xf32>
    %2680 = vector.shape_cast %2679 : vector<8x1xf32> to vector<8x1xf32>
    %2681 = vector.broadcast %2680 : vector<8x1xf32> to vector<8x8xf32>
    %2682 = arith.select %2678, %2681, %2675 : vector<8x8xi1>, vector<8x8xf32>
    %2683 = vector.extract_strided_slice %1 {offsets = [0, 363], sizes = [8, 1], strides = [1, 1]} : vector<8x384xi32> to vector<8x1xi32>
    %2684 = vector.broadcast %2683 : vector<8x1xi32> to vector<8x8xi32>
    %2685 = arith.cmpi eq, %5, %2684 : vector<8x8xi32>
    %2686 = vector.extract_strided_slice %3 {offsets = [0, 363], sizes = [8, 1], strides = [1, 1]} : vector<8x384xf32> to vector<8x1xf32>
    %2687 = vector.shape_cast %2686 : vector<8x1xf32> to vector<8x1xf32>
    %2688 = vector.broadcast %2687 : vector<8x1xf32> to vector<8x8xf32>
    %2689 = arith.select %2685, %2688, %2682 : vector<8x8xi1>, vector<8x8xf32>
    %2690 = vector.extract_strided_slice %1 {offsets = [0, 362], sizes = [8, 1], strides = [1, 1]} : vector<8x384xi32> to vector<8x1xi32>
    %2691 = vector.broadcast %2690 : vector<8x1xi32> to vector<8x8xi32>
    %2692 = arith.cmpi eq, %5, %2691 : vector<8x8xi32>
    %2693 = vector.extract_strided_slice %3 {offsets = [0, 362], sizes = [8, 1], strides = [1, 1]} : vector<8x384xf32> to vector<8x1xf32>
    %2694 = vector.shape_cast %2693 : vector<8x1xf32> to vector<8x1xf32>
    %2695 = vector.broadcast %2694 : vector<8x1xf32> to vector<8x8xf32>
    %2696 = arith.select %2692, %2695, %2689 : vector<8x8xi1>, vector<8x8xf32>
    %2697 = vector.extract_strided_slice %1 {offsets = [0, 361], sizes = [8, 1], strides = [1, 1]} : vector<8x384xi32> to vector<8x1xi32>
    %2698 = vector.broadcast %2697 : vector<8x1xi32> to vector<8x8xi32>
    %2699 = arith.cmpi eq, %5, %2698 : vector<8x8xi32>
    %2700 = vector.extract_strided_slice %3 {offsets = [0, 361], sizes = [8, 1], strides = [1, 1]} : vector<8x384xf32> to vector<8x1xf32>
    %2701 = vector.shape_cast %2700 : vector<8x1xf32> to vector<8x1xf32>
    %2702 = vector.broadcast %2701 : vector<8x1xf32> to vector<8x8xf32>
    %2703 = arith.select %2699, %2702, %2696 : vector<8x8xi1>, vector<8x8xf32>
    %2704 = vector.extract_strided_slice %1 {offsets = [0, 360], sizes = [8, 1], strides = [1, 1]} : vector<8x384xi32> to vector<8x1xi32>
    %2705 = vector.broadcast %2704 : vector<8x1xi32> to vector<8x8xi32>
    %2706 = arith.cmpi eq, %5, %2705 : vector<8x8xi32>
    %2707 = vector.extract_strided_slice %3 {offsets = [0, 360], sizes = [8, 1], strides = [1, 1]} : vector<8x384xf32> to vector<8x1xf32>
    %2708 = vector.shape_cast %2707 : vector<8x1xf32> to vector<8x1xf32>
    %2709 = vector.broadcast %2708 : vector<8x1xf32> to vector<8x8xf32>
    %2710 = arith.select %2706, %2709, %2703 : vector<8x8xi1>, vector<8x8xf32>
    %2711 = arith.addf %2653, %2710 : vector<8x8xf32>
    %2712 = vector.extract_strided_slice %1 {offsets = [0, 375], sizes = [8, 1], strides = [1, 1]} : vector<8x384xi32> to vector<8x1xi32>
    %2713 = vector.broadcast %2712 : vector<8x1xi32> to vector<8x8xi32>
    %2714 = arith.cmpi eq, %5, %2713 : vector<8x8xi32>
    %2715 = vector.extract_strided_slice %3 {offsets = [0, 375], sizes = [8, 1], strides = [1, 1]} : vector<8x384xf32> to vector<8x1xf32>
    %cst_94 = arith.constant 0.000000e+00 : f32
    %2716 = vector.shape_cast %2715 : vector<8x1xf32> to vector<8x1xf32>
    %2717 = vector.broadcast %2716 : vector<8x1xf32> to vector<8x8xf32>
    %2718 = vector.broadcast %cst_94 : f32 to vector<8x8xf32>
    %2719 = arith.select %2714, %2717, %2718 : vector<8x8xi1>, vector<8x8xf32>
    %2720 = vector.extract_strided_slice %1 {offsets = [0, 374], sizes = [8, 1], strides = [1, 1]} : vector<8x384xi32> to vector<8x1xi32>
    %2721 = vector.broadcast %2720 : vector<8x1xi32> to vector<8x8xi32>
    %2722 = arith.cmpi eq, %5, %2721 : vector<8x8xi32>
    %2723 = vector.extract_strided_slice %3 {offsets = [0, 374], sizes = [8, 1], strides = [1, 1]} : vector<8x384xf32> to vector<8x1xf32>
    %2724 = vector.shape_cast %2723 : vector<8x1xf32> to vector<8x1xf32>
    %2725 = vector.broadcast %2724 : vector<8x1xf32> to vector<8x8xf32>
    %2726 = arith.select %2722, %2725, %2719 : vector<8x8xi1>, vector<8x8xf32>
    %2727 = vector.extract_strided_slice %1 {offsets = [0, 373], sizes = [8, 1], strides = [1, 1]} : vector<8x384xi32> to vector<8x1xi32>
    %2728 = vector.broadcast %2727 : vector<8x1xi32> to vector<8x8xi32>
    %2729 = arith.cmpi eq, %5, %2728 : vector<8x8xi32>
    %2730 = vector.extract_strided_slice %3 {offsets = [0, 373], sizes = [8, 1], strides = [1, 1]} : vector<8x384xf32> to vector<8x1xf32>
    %2731 = vector.shape_cast %2730 : vector<8x1xf32> to vector<8x1xf32>
    %2732 = vector.broadcast %2731 : vector<8x1xf32> to vector<8x8xf32>
    %2733 = arith.select %2729, %2732, %2726 : vector<8x8xi1>, vector<8x8xf32>
    %2734 = vector.extract_strided_slice %1 {offsets = [0, 372], sizes = [8, 1], strides = [1, 1]} : vector<8x384xi32> to vector<8x1xi32>
    %2735 = vector.broadcast %2734 : vector<8x1xi32> to vector<8x8xi32>
    %2736 = arith.cmpi eq, %5, %2735 : vector<8x8xi32>
    %2737 = vector.extract_strided_slice %3 {offsets = [0, 372], sizes = [8, 1], strides = [1, 1]} : vector<8x384xf32> to vector<8x1xf32>
    %2738 = vector.shape_cast %2737 : vector<8x1xf32> to vector<8x1xf32>
    %2739 = vector.broadcast %2738 : vector<8x1xf32> to vector<8x8xf32>
    %2740 = arith.select %2736, %2739, %2733 : vector<8x8xi1>, vector<8x8xf32>
    %2741 = vector.extract_strided_slice %1 {offsets = [0, 371], sizes = [8, 1], strides = [1, 1]} : vector<8x384xi32> to vector<8x1xi32>
    %2742 = vector.broadcast %2741 : vector<8x1xi32> to vector<8x8xi32>
    %2743 = arith.cmpi eq, %5, %2742 : vector<8x8xi32>
    %2744 = vector.extract_strided_slice %3 {offsets = [0, 371], sizes = [8, 1], strides = [1, 1]} : vector<8x384xf32> to vector<8x1xf32>
    %2745 = vector.shape_cast %2744 : vector<8x1xf32> to vector<8x1xf32>
    %2746 = vector.broadcast %2745 : vector<8x1xf32> to vector<8x8xf32>
    %2747 = arith.select %2743, %2746, %2740 : vector<8x8xi1>, vector<8x8xf32>
    %2748 = vector.extract_strided_slice %1 {offsets = [0, 370], sizes = [8, 1], strides = [1, 1]} : vector<8x384xi32> to vector<8x1xi32>
    %2749 = vector.broadcast %2748 : vector<8x1xi32> to vector<8x8xi32>
    %2750 = arith.cmpi eq, %5, %2749 : vector<8x8xi32>
    %2751 = vector.extract_strided_slice %3 {offsets = [0, 370], sizes = [8, 1], strides = [1, 1]} : vector<8x384xf32> to vector<8x1xf32>
    %2752 = vector.shape_cast %2751 : vector<8x1xf32> to vector<8x1xf32>
    %2753 = vector.broadcast %2752 : vector<8x1xf32> to vector<8x8xf32>
    %2754 = arith.select %2750, %2753, %2747 : vector<8x8xi1>, vector<8x8xf32>
    %2755 = vector.extract_strided_slice %1 {offsets = [0, 369], sizes = [8, 1], strides = [1, 1]} : vector<8x384xi32> to vector<8x1xi32>
    %2756 = vector.broadcast %2755 : vector<8x1xi32> to vector<8x8xi32>
    %2757 = arith.cmpi eq, %5, %2756 : vector<8x8xi32>
    %2758 = vector.extract_strided_slice %3 {offsets = [0, 369], sizes = [8, 1], strides = [1, 1]} : vector<8x384xf32> to vector<8x1xf32>
    %2759 = vector.shape_cast %2758 : vector<8x1xf32> to vector<8x1xf32>
    %2760 = vector.broadcast %2759 : vector<8x1xf32> to vector<8x8xf32>
    %2761 = arith.select %2757, %2760, %2754 : vector<8x8xi1>, vector<8x8xf32>
    %2762 = vector.extract_strided_slice %1 {offsets = [0, 368], sizes = [8, 1], strides = [1, 1]} : vector<8x384xi32> to vector<8x1xi32>
    %2763 = vector.broadcast %2762 : vector<8x1xi32> to vector<8x8xi32>
    %2764 = arith.cmpi eq, %5, %2763 : vector<8x8xi32>
    %2765 = vector.extract_strided_slice %3 {offsets = [0, 368], sizes = [8, 1], strides = [1, 1]} : vector<8x384xf32> to vector<8x1xf32>
    %2766 = vector.shape_cast %2765 : vector<8x1xf32> to vector<8x1xf32>
    %2767 = vector.broadcast %2766 : vector<8x1xf32> to vector<8x8xf32>
    %2768 = arith.select %2764, %2767, %2761 : vector<8x8xi1>, vector<8x8xf32>
    %2769 = arith.addf %2711, %2768 : vector<8x8xf32>
    %2770 = vector.extract_strided_slice %1 {offsets = [0, 383], sizes = [8, 1], strides = [1, 1]} : vector<8x384xi32> to vector<8x1xi32>
    %2771 = vector.broadcast %2770 : vector<8x1xi32> to vector<8x8xi32>
    %2772 = arith.cmpi eq, %5, %2771 : vector<8x8xi32>
    %2773 = vector.extract_strided_slice %3 {offsets = [0, 383], sizes = [8, 1], strides = [1, 1]} : vector<8x384xf32> to vector<8x1xf32>
    %cst_95 = arith.constant 0.000000e+00 : f32
    %2774 = vector.shape_cast %2773 : vector<8x1xf32> to vector<8x1xf32>
    %2775 = vector.broadcast %2774 : vector<8x1xf32> to vector<8x8xf32>
    %2776 = vector.broadcast %cst_95 : f32 to vector<8x8xf32>
    %2777 = arith.select %2772, %2775, %2776 : vector<8x8xi1>, vector<8x8xf32>
    %2778 = vector.extract_strided_slice %1 {offsets = [0, 382], sizes = [8, 1], strides = [1, 1]} : vector<8x384xi32> to vector<8x1xi32>
    %2779 = vector.broadcast %2778 : vector<8x1xi32> to vector<8x8xi32>
    %2780 = arith.cmpi eq, %5, %2779 : vector<8x8xi32>
    %2781 = vector.extract_strided_slice %3 {offsets = [0, 382], sizes = [8, 1], strides = [1, 1]} : vector<8x384xf32> to vector<8x1xf32>
    %2782 = vector.shape_cast %2781 : vector<8x1xf32> to vector<8x1xf32>
    %2783 = vector.broadcast %2782 : vector<8x1xf32> to vector<8x8xf32>
    %2784 = arith.select %2780, %2783, %2777 : vector<8x8xi1>, vector<8x8xf32>
    %2785 = vector.extract_strided_slice %1 {offsets = [0, 381], sizes = [8, 1], strides = [1, 1]} : vector<8x384xi32> to vector<8x1xi32>
    %2786 = vector.broadcast %2785 : vector<8x1xi32> to vector<8x8xi32>
    %2787 = arith.cmpi eq, %5, %2786 : vector<8x8xi32>
    %2788 = vector.extract_strided_slice %3 {offsets = [0, 381], sizes = [8, 1], strides = [1, 1]} : vector<8x384xf32> to vector<8x1xf32>
    %2789 = vector.shape_cast %2788 : vector<8x1xf32> to vector<8x1xf32>
    %2790 = vector.broadcast %2789 : vector<8x1xf32> to vector<8x8xf32>
    %2791 = arith.select %2787, %2790, %2784 : vector<8x8xi1>, vector<8x8xf32>
    %2792 = vector.extract_strided_slice %1 {offsets = [0, 380], sizes = [8, 1], strides = [1, 1]} : vector<8x384xi32> to vector<8x1xi32>
    %2793 = vector.broadcast %2792 : vector<8x1xi32> to vector<8x8xi32>
    %2794 = arith.cmpi eq, %5, %2793 : vector<8x8xi32>
    %2795 = vector.extract_strided_slice %3 {offsets = [0, 380], sizes = [8, 1], strides = [1, 1]} : vector<8x384xf32> to vector<8x1xf32>
    %2796 = vector.shape_cast %2795 : vector<8x1xf32> to vector<8x1xf32>
    %2797 = vector.broadcast %2796 : vector<8x1xf32> to vector<8x8xf32>
    %2798 = arith.select %2794, %2797, %2791 : vector<8x8xi1>, vector<8x8xf32>
    %2799 = vector.extract_strided_slice %1 {offsets = [0, 379], sizes = [8, 1], strides = [1, 1]} : vector<8x384xi32> to vector<8x1xi32>
    %2800 = vector.broadcast %2799 : vector<8x1xi32> to vector<8x8xi32>
    %2801 = arith.cmpi eq, %5, %2800 : vector<8x8xi32>
    %2802 = vector.extract_strided_slice %3 {offsets = [0, 379], sizes = [8, 1], strides = [1, 1]} : vector<8x384xf32> to vector<8x1xf32>
    %2803 = vector.shape_cast %2802 : vector<8x1xf32> to vector<8x1xf32>
    %2804 = vector.broadcast %2803 : vector<8x1xf32> to vector<8x8xf32>
    %2805 = arith.select %2801, %2804, %2798 : vector<8x8xi1>, vector<8x8xf32>
    %2806 = vector.extract_strided_slice %1 {offsets = [0, 378], sizes = [8, 1], strides = [1, 1]} : vector<8x384xi32> to vector<8x1xi32>
    %2807 = vector.broadcast %2806 : vector<8x1xi32> to vector<8x8xi32>
    %2808 = arith.cmpi eq, %5, %2807 : vector<8x8xi32>
    %2809 = vector.extract_strided_slice %3 {offsets = [0, 378], sizes = [8, 1], strides = [1, 1]} : vector<8x384xf32> to vector<8x1xf32>
    %2810 = vector.shape_cast %2809 : vector<8x1xf32> to vector<8x1xf32>
    %2811 = vector.broadcast %2810 : vector<8x1xf32> to vector<8x8xf32>
    %2812 = arith.select %2808, %2811, %2805 : vector<8x8xi1>, vector<8x8xf32>
    %2813 = vector.extract_strided_slice %1 {offsets = [0, 377], sizes = [8, 1], strides = [1, 1]} : vector<8x384xi32> to vector<8x1xi32>
    %2814 = vector.broadcast %2813 : vector<8x1xi32> to vector<8x8xi32>
    %2815 = arith.cmpi eq, %5, %2814 : vector<8x8xi32>
    %2816 = vector.extract_strided_slice %3 {offsets = [0, 377], sizes = [8, 1], strides = [1, 1]} : vector<8x384xf32> to vector<8x1xf32>
    %2817 = vector.shape_cast %2816 : vector<8x1xf32> to vector<8x1xf32>
    %2818 = vector.broadcast %2817 : vector<8x1xf32> to vector<8x8xf32>
    %2819 = arith.select %2815, %2818, %2812 : vector<8x8xi1>, vector<8x8xf32>
    %2820 = vector.extract_strided_slice %1 {offsets = [0, 376], sizes = [8, 1], strides = [1, 1]} : vector<8x384xi32> to vector<8x1xi32>
    %2821 = vector.broadcast %2820 : vector<8x1xi32> to vector<8x8xi32>
    %2822 = arith.cmpi eq, %5, %2821 : vector<8x8xi32>
    %2823 = vector.extract_strided_slice %3 {offsets = [0, 376], sizes = [8, 1], strides = [1, 1]} : vector<8x384xf32> to vector<8x1xf32>
    %2824 = vector.shape_cast %2823 : vector<8x1xf32> to vector<8x1xf32>
    %2825 = vector.broadcast %2824 : vector<8x1xf32> to vector<8x8xf32>
    %2826 = arith.select %2822, %2825, %2819 : vector<8x8xi1>, vector<8x8xf32>
    %2827 = arith.addf %2769, %2826 : vector<8x8xf32>
    %c0_96 = arith.constant 0 : index
    %c64_97 = arith.constant 64 : index
    %c40_98 = arith.constant 40 : index
    %2828 = vector.load %arg4[%c0_96, %c64_97, %c40_98] : memref<1x72x48xf32, #tpu.memory_space<vmem>>, vector<1x8x8xf32>
    %2829 = vector.shape_cast %2828 : vector<1x8x8xf32> to vector<8x8xf32>
    %cst_99 = arith.constant dense<0.000000e+00> : vector<8x8xf32>
    %2830 = tpu.matmul %2827, %2829, %cst_99 {dimension_numbers = #tpu.dot_dimension_numbers<[1], [0], [0], [1], [0, 0, 1, 1], [], []>} : vector<8x8xf32>, vector<8x8xf32>, vector<8x8xf32> -> vector<8x8xf32>
    %2831 = arith.addf %2596, %2830 : vector<8x8xf32>
    %cst_100 = arith.constant 0.000000e+00 : f32
    %2832 = vector.broadcast %cst_100 : f32 to vector<8x80xf32>
    %2833 = tpu.concatenate %476, %947, %1418, %1889, %2360, %2831, %2832 in 1 : vector<8x8xf32>, vector<8x8xf32>, vector<8x8xf32>, vector<8x8xf32>, vector<8x8xf32>, vector<8x8xf32>, vector<8x80xf32> -> vector<8x128xf32>
    %c0_101 = arith.constant 0 : index
    %c0_102 = arith.constant 0 : index
    %c0_103 = arith.constant 0 : index
    %2834 = vector.load %arg5[%c0_101, %c0_102, %c0_103] : memref<1x8x128xf32, #tpu.memory_space<vmem>>, vector<1x8x128xf32>
    %2835 = vector.shape_cast %2834 : vector<1x8x128xf32> to vector<8x128xf32>
    %2836 = vector.shape_cast %2833 : vector<8x128xf32> to vector<1x8x128xf32>
    tpu.vector_store %arg5[%c0_101, %c0_102, %c0_103], %2836 {strides = array<i32>} : memref<1x8x128xf32, #tpu.memory_space<vmem>>, vector<1x8x128xf32>,
    return
  }
  func.func @transform_0(%arg0: i32, %arg1: i32) -> (i32, i32, i32) {
    %c0_i32 = arith.constant 0 : i32
    %c0_i32_0 = arith.constant 0 : i32
    return %arg0, %arg1, %c0_i32 : i32, i32, i32
  }
  func.func @transform_1(%arg0: i32, %arg1: i32) -> (i32, i32, i32) {
    %c0_i32 = arith.constant 0 : i32
    %c0_i32_0 = arith.constant 0 : i32
    return %arg0, %arg1, %c0_i32 : i32, i32, i32
  }
  func.func @transform_2(%arg0: i32, %arg1: i32) -> (i32, i32, i32) {
    %c0_i32 = arith.constant 0 : i32
    %c0_i32_0 = arith.constant 0 : i32
    %c0_i32_1 = arith.constant 0 : i32
    return %arg0, %c0_i32, %c0_i32_0 : i32, i32, i32
  }
  func.func @transform_3(%arg0: i32, %arg1: i32) -> (i32, i32, i32) {
    %c0_i32 = arith.constant 0 : i32
    %c0_i32_0 = arith.constant 0 : i32
    return %arg0, %arg1, %c0_i32 : i32, i32, i32
  }
}

</mosaic_0001>

<llo_original>
// kernel: tpu_custom_call.1
$region0: #{tpu_custom_call.1}
  #allocation0 [shape = 'u32[]', space=smem, size = 0x4, offset = 0x4, fixed_abs, tag = 'smem constant byte address 0x4 - core index']
  #allocation1 [shape = 'u32[144,128]{1,0:T(1,128)}', space=vmem, size = 0x12000, scoped, tag = 'internal scratch']
  %s0 = inlined_call_operand.vmem [shape: s32[2,16,384], index: 0, kind: input, shape index: {}]
  %s1 = inlined_call_operand.vmem [shape: f32[2,16,384], index: 1, kind: input, shape index: {}]
  %s2 = inlined_call_operand.vmem [shape: f32[2,72,48], index: 2, kind: input, shape index: {}]
  %s3 = inlined_call_operand.hbm [shape: f32[2,16,128], index: 3, kind: output, shape index: {}]
  %s4 = sld [smem:[#allocation0]]
  $region45: #{tpu_custom_call.1} parent=0
    _
  %s6 = ssub.s32 1, %s4
  %s7 = scalar_select 0, %s6, %s4
  $region1: #{tpu_custom_call.1} parent=0
    #allocation2 [shape = 'u8[8192]{0}', space=vmem, size = 0x2000, scoped, tag = 'output window, operand 0']
    #allocation3 [shape = 's32[2]{0}', space=sflag, size = 0x8, scoped, tag = 'scoped memory for tpu_custom_call.1']
    %8 = vsyncpa [#allocation3], 0
    %s9 = scalar_lea.sflag [#allocation3], 1
    %10 = vsyncpa %s9, 0
    loop: start=0, step=1, limit=6
    $region2: #{tpu_custom_call.1} parent=1 // loop_pre_header
      _
    $region3: #{tpu_custom_call.1} parent=1 // loop_header
      %s12 = sphi 0, %s16
      %p13 = scmp.ge.s32.totalorder %s12, 6
      %s19 = sphi 0, %s31
      %s20 = sphi 0, %s27
      %s21 = sphi 0, %s19
      %s22 = sphi 0, %s20
      %s23 = sphi 0, %s21
      %s24 = sphi 0, %s22
      %s36 = sphi 0, %s38
      %s39 = sphi 0, %s36
      %s40 = sphi 0, %s39
      %s56 = sphi 0, %s40
      %s64 = sphi 0, %s66
      %s67 = sphi 0, %s64
      %s68 = sphi 0, %s67
      %s84 = sphi 0, %s68
      %s90 = sphi 0, %s92
      %s93 = sphi 0, %s90
      %s94 = sphi 0, %s93
      %s110 = sphi 0, %s94
      %s118 = sphi 0, %s120
      %s121 = sphi 0, %s118
      %s122 = sphi 0, %s121
      %s138 = sphi 0, %s122
    $region4: #{tpu_custom_call.1} parent=1 // loop_header_branch
      %15 = sbr.rel (%p13) target = $region8
    $region5: #{tpu_custom_call.1} parent=1 // loop_body
      %s17 = ssub.s32 %s12, 1
      %s18 = ssub.s32 %s12, 2
      %s25 = sadd.s32 1, %s20
      %p26 = scmp.ge.s32.totalorder %s25, 2
      %s27 = scalar_select %p26, 0, %s25
      %s28 = sadd.s32 1, %s19
      %s29 = scalar_select %p26, %s28, %s19
      %p30 = scmp.ge.s32.totalorder %s29, 2
      %s31 = scalar_select %p30, 0, %s29
      %s32 = ssub.s32 %s19, %s31
      %s33 = ssub.s32 %s20, %s27
      %s34 = sor.u32 %s32, %s33
      %p35 = scmp.eq.s32.totalorder %s34, 0
      %s37 = sadd.s32 %s36, 1
      %s38 = scalar_select %p35, %s36, %s37
      %p41 = pneg %p35
      %p42 = scmp.eq.s32.totalorder %s12, 3
      %p43 = por %p41, %p42
      %p44 = scmp.ne.s32.totalorder %s36, %s39
      %p45 = scmp.eq.s32.totalorder %s12, 0
      %p46 = por %p44, %p45
      %p47 = scmp.ne.s32.totalorder %s36, %s39
      %p48 = scmp.eq.s32.totalorder %s17, 3
      %p49 = por %p47, %p48
      %p50 = scmp.ne.s32.totalorder %s39, %s40
      %p51 = scmp.eq.s32.totalorder %s17, 0
      %p52 = por %p50, %p51
      %p53 = scmp.ne.s32.totalorder %s39, %s40
      %p54 = scmp.eq.s32.totalorder %s18, 3
      %p55 = por %p53, %p54
      %p57 = scmp.ne.s32.totalorder %s40, %s56
      %p58 = scmp.eq.s32.totalorder %s18, 0
      %p59 = por %p57, %p58
      %s60 = ssub.s32 %s19, %s31
      %s61 = ssub.s32 %s20, %s27
      %s62 = sor.u32 %s60, %s61
      %p63 = scmp.eq.s32.totalorder %s62, 0
      %s65 = sadd.s32 %s64, 1
      %s66 = scalar_select %p63, %s64, %s65
      %p69 = pneg %p63
      %p70 = scmp.eq.s32.totalorder %s12, 3
      %p71 = por %p69, %p70
      %p72 = scmp.ne.s32.totalorder %s64, %s67
      %p73 = scmp.eq.s32.totalorder %s12, 0
      %p74 = por %p72, %p73
      %p75 = scmp.ne.s32.totalorder %s64, %s67
      %p76 = scmp.eq.s32.totalorder %s17, 3
      %p77 = por %p75, %p76
      %p78 = scmp.ne.s32.totalorder %s67, %s68
      %p79 = scmp.eq.s32.totalorder %s17, 0
      %p80 = por %p78, %p79
      %p81 = scmp.ne.s32.totalorder %s67, %s68
      %p82 = scmp.eq.s32.totalorder %s18, 3
      %p83 = por %p81, %p82
      %p85 = scmp.ne.s32.totalorder %s68, %s84
      %p86 = scmp.eq.s32.totalorder %s18, 0
      %p87 = por %p85, %p86
      %s88 = ssub.s32 %s19, %s31
      %p89 = scmp.eq.s32.totalorder %s88, 0
      %s91 = sadd.s32 %s90, 1
      %s92 = scalar_select %p89, %s90, %s91
      %p95 = pneg %p89
      %p96 = scmp.eq.s32.totalorder %s12, 3
      %p97 = por %p95, %p96
      %p98 = scmp.ne.s32.totalorder %s90, %s93
      %p99 = scmp.eq.s32.totalorder %s12, 0
      %p100 = por %p98, %p99
      %p101 = scmp.ne.s32.totalorder %s90, %s93
      %p102 = scmp.eq.s32.totalorder %s17, 3
      %p103 = por %p101, %p102
      %p104 = scmp.ne.s32.totalorder %s93, %s94
      %p105 = scmp.eq.s32.totalorder %s17, 0
      %p106 = por %p104, %p105
      %p107 = scmp.ne.s32.totalorder %s93, %s94
      %p108 = scmp.eq.s32.totalorder %s18, 3
      %p109 = por %p107, %p108
      %p111 = scmp.ne.s32.totalorder %s94, %s110
      %p112 = scmp.eq.s32.totalorder %s18, 0
      %p113 = por %p111, %p112
      %s114 = ssub.s32 %s19, %s31
      %s115 = ssub.s32 %s20, %s27
      %s116 = sor.u32 %s114, %s115
      %p117 = scmp.eq.s32.totalorder %s116, 0
      %s119 = sadd.s32 %s118, 1
      %s120 = scalar_select %p117, %s118, %s119
      %p123 = pneg %p117
      %p124 = scmp.eq.s32.totalorder %s12, 3
      %p125 = por %p123, %p124
      %p126 = scmp.ne.s32.totalorder %s118, %s121
      %p127 = scmp.eq.s32.totalorder %s12, 0
      %p128 = por %p126, %p127
      %p129 = scmp.ne.s32.totalorder %s118, %s121
      %p130 = scmp.eq.s32.totalorder %s17, 3
      %p131 = por %p129, %p130
      %p132 = scmp.ne.s32.totalorder %s121, %s122
      %p133 = scmp.eq.s32.totalorder %s17, 0
      %p134 = por %p132, %p133
      %p135 = scmp.ne.s32.totalorder %s121, %s122
      %p136 = scmp.eq.s32.totalorder %s18, 3
      %p137 = por %p135, %p136
      %p139 = scmp.ne.s32.totalorder %s122, %s138
      %p140 = scmp.eq.s32.totalorder %s18, 0
      %p141 = por %p139, %p140
      %p142 = scmp.le.s32.totalorder 1, %s12
      %p143 = scmp.lt.s32.totalorder %s12, 5
      %p144 = pnand %p142, %p143
      %p145 = pneg %p144
      // Predicated region
      $region9: #{tpu_custom_call.1} parent=5 // pred_check
        _
      $region10: #{tpu_custom_call.1} parent=5 // pred_check_branch
        %147 = sbr.rel (%p144) target = $region12
      $region11: #{tpu_custom_call.1} parent=5 // pred_region
        %s148 = ssub.s32 %s12, 1
      $region12: #{tpu_custom_call.1} parent=5 // pred_fallthru
        _
      %p149 = scmp.lt.s32.totalorder %s12, 4
      // Predicated region
      $region13: #{tpu_custom_call.1} parent=5 // pred_check
        %p150 = pneg %p149
      $region14: #{tpu_custom_call.1} parent=5 // pred_check_branch
        %152 = sbr.rel (%p150) target = $region16
      $region15: #{tpu_custom_call.1} parent=5 // pred_region
        // Predicated region
        $region17: #{tpu_custom_call.1} parent=15 // pred_check
          %p153 = pneg %p46
        $region18: #{tpu_custom_call.1} parent=15 // pred_check_branch
          %155 = sbr.rel (%p153) target = $region20
        $region19: #{tpu_custom_call.1} parent=15 // pred_region
          %p156 = scmp.lt.s32.totalorder %s19, 1
          %s157 = scalar_select %p156, %s19, 1
          %p158 = scmp.lt.s32.totalorder %s20, 1
          %s159 = scalar_select %p158, %s20, 1
          %s160 = smul.addr %s159, 3
          %s161 = smul.addr %s157, 6
          %s162 = sadd.s32 %s160, %s161
          %s163 = smul.addr %s162, 8
          %s164 = scalar_lea.vmem %s0, %s163
        $region20: #{tpu_custom_call.1} parent=15 // pred_fallthru
          _
        // Predicated region
        $region21: #{tpu_custom_call.1} parent=15 // pred_check
          %p165 = pneg %p74
        $region22: #{tpu_custom_call.1} parent=15 // pred_check_branch
          %167 = sbr.rel (%p165) target = $region24
        $region23: #{tpu_custom_call.1} parent=15 // pred_region
          %p168 = scmp.lt.s32.totalorder %s19, 1
          %s169 = scalar_select %p168, %s19, 1
          %p170 = scmp.lt.s32.totalorder %s20, 1
          %s171 = scalar_select %p170, %s20, 1
          %s172 = smul.addr %s171, 3
          %s173 = smul.addr %s169, 6
          %s174 = sadd.s32 %s172, %s173
          %s175 = smul.addr %s174, 8
          %s176 = scalar_lea.vmem %s1, %s175
        $region24: #{tpu_custom_call.1} parent=15 // pred_fallthru
          _
        // Predicated region
        $region25: #{tpu_custom_call.1} parent=15 // pred_check
          %p177 = pneg %p100
        $region26: #{tpu_custom_call.1} parent=15 // pred_check_branch
          %179 = sbr.rel (%p177) target = $region28
        $region27: #{tpu_custom_call.1} parent=15 // pred_region
          %p180 = scmp.lt.s32.totalorder %s19, 1
          %s181 = scalar_select %p180, %s19, 1
          %s182 = smul.addr %s181, 9
          %s183 = smul.addr %s182, 8
          %s184 = scalar_lea.vmem %s2, %s183
        $region28: #{tpu_custom_call.1} parent=15 // pred_fallthru
          _
      $region16: #{tpu_custom_call.1} parent=5 // pred_fallthru
        _
      %p185 = scmp.le.s32.totalorder 1, %s12
      %p186 = scmp.lt.s32.totalorder %s12, 5
      %p187 = pnand %p185, %p186
      %p188 = pneg %p187
      // Predicated region
      $region29: #{tpu_custom_call.1} parent=5 // pred_check
        _
      $region30: #{tpu_custom_call.1} parent=5 // pred_check_branch
        %190 = sbr.rel (%p187) target = $region32
      $region31: #{tpu_custom_call.1} parent=5 // pred_region
        %s191 = ssub.s32 %s12, 1
        %p192 = scmp.lt.s32.totalorder %s21, 1
        %s193 = scalar_select %p192, %s21, 1
        %p194 = scmp.lt.s32.totalorder %s22, 1
        %s195 = scalar_select %p194, %s22, 1
        %s196 = smul.addr %s195, 3
        %s197 = smul.addr %s193, 6
        %s198 = sadd.s32 %s196, %s197
        %s199 = smul.addr %s198, 8
        %s200 = scalar_lea.vmem %s0, %s199
        %p201 = pneg %p52
        %p202 = pneg %p49
        %p203 = scmp.lt.s32.totalorder %s21, 1
        %s204 = scalar_select %p203, %s21, 1
        %p205 = scmp.lt.s32.totalorder %s22, 1
        %s206 = scalar_select %p205, %s22, 1
        %s207 = smul.addr %s206, 3
        %s208 = smul.addr %s204, 6
        %s209 = sadd.s32 %s207, %s208
        %s210 = smul.addr %s209, 8
        %s211 = scalar_lea.vmem %s1, %s210
        %p212 = pneg %p80
        %p213 = pneg %p77
        %p214 = scmp.lt.s32.totalorder %s21, 1
        %s215 = scalar_select %p214, %s21, 1
        %s216 = smul.addr %s215, 9
        %s217 = smul.addr %s216, 8
        %s218 = scalar_lea.vmem %s2, %s217
        %p219 = pneg %p106
        %p220 = pneg %p103
        %p221 = pneg %p134
        %p222 = pneg %p131
        %s223 = sand.u32 %s121, 1
        %s224 = scalar_lea.sflag [#allocation3], %s223
        %s225 = sand.u32 %s121, 1
        %s226 = smul.addr %s225, 8
        %s227 = scalar_lea.vmem [#allocation2], %s226
        %p228 = scmp.lt.s32.totalorder %s21, 1
        %s229 = scalar_select %p228, %s21, 1
        %p230 = scmp.lt.s32.totalorder %s22, 1
        %s231 = scalar_select %p230, %s22, 1
        %s232 = smul.addr %s231, 3
        %s233 = smul.addr %s229, 6
        %s234 = sadd.s32 %s232, %s233
        %s235 = smul.addr %s234, 8
        %s236 = scalar_lea.vmem %s0, %s235
        %p237 = scmp.lt.s32.totalorder %s21, 1
        %s238 = scalar_select %p237, %s21, 1
        %p239 = scmp.lt.s32.totalorder %s22, 1
        %s240 = scalar_select %p239, %s22, 1
        %s241 = smul.addr %s240, 3
        %s242 = smul.addr %s238, 6
        %s243 = sadd.s32 %s241, %s242
        %s244 = smul.addr %s243, 8
        %s245 = scalar_lea.vmem %s1, %s244
        %p246 = scmp.lt.s32.totalorder %s21, 1
        %s247 = scalar_select %p246, %s21, 1
        %s248 = smul.addr %s247, 9
        %s249 = smul.addr %s248, 8
        %s250 = scalar_lea.vmem %s2, %s249
        %v251 = vld [vmem:[%s236] sm:$0xff]
        %v252 = vld [vmem:[%s236 + $0x8] sm:$0xff]
        %v253 = vld [vmem:[%s236 + $0x10] sm:$0xff]
        %v254 = vld [vmem:[%s245] sm:$0xff]
        %v255 = vld [vmem:[%s245 + $0x8] sm:$0xff]
        %v256 = vld [vmem:[%s245 + $0x10] sm:$0xff]
        %v257 = vlaneseq
        %v258 = vand.u32 %v257, 127
        %259 = vset.pattern.permute.xlu0 7
        %260 = vperm.xlu0 %259, %v251
        %v261 = vpop.permute.xlu0 %260
        %vm262 = vcmp.eq.s32.totalorder %v258, %v261
        %264 = vset.pattern.permute.xlu0 7
        %265 = vperm.xlu0 %264, %v254
        %v266 = vpop.permute.xlu0 %265
        %v268 = vsel %vm262, %v266, 0.0
        %269 = vset.pattern.permute.xlu0 6
        %270 = vperm.xlu0 %269, %v251
        %v271 = vpop.permute.xlu0 %270
        %vm272 = vcmp.eq.s32.totalorder %v258, %v271
        %273 = vset.pattern.permute.xlu0 6
        %274 = vperm.xlu0 %273, %v254
        %v275 = vpop.permute.xlu0 %274
        %v277 = vsel %vm272, %v275, %v268
        %278 = vset.pattern.permute.xlu0 5
        %279 = vperm.xlu0 %278, %v251
        %v280 = vpop.permute.xlu0 %279
        %vm281 = vcmp.eq.s32.totalorder %v258, %v280
        %282 = vset.pattern.permute.xlu0 5
        %283 = vperm.xlu0 %282, %v254
        %v284 = vpop.permute.xlu0 %283
        %v286 = vsel %vm281, %v284, %v277
        %287 = vset.pattern.permute.xlu0 4
        %288 = vperm.xlu0 %287, %v251
        %v289 = vpop.permute.xlu0 %288
        %vm290 = vcmp.eq.s32.totalorder %v258, %v289
        %291 = vset.pattern.permute.xlu0 4
        %292 = vperm.xlu0 %291, %v254
        %v293 = vpop.permute.xlu0 %292
        %v295 = vsel %vm290, %v293, %v286
        %296 = vset.pattern.permute.xlu0 3
        %297 = vperm.xlu0 %296, %v251
        %v298 = vpop.permute.xlu0 %297
        %vm299 = vcmp.eq.s32.totalorder %v258, %v298
        %300 = vset.pattern.permute.xlu0 3
        %301 = vperm.xlu0 %300, %v254
        %v302 = vpop.permute.xlu0 %301
        %v304 = vsel %vm299, %v302, %v295
        %305 = vset.pattern.permute.xlu0 2
        %306 = vperm.xlu0 %305, %v251
        %v307 = vpop.permute.xlu0 %306
        %vm308 = vcmp.eq.s32.totalorder %v258, %v307
        %309 = vset.pattern.permute.xlu0 2
        %310 = vperm.xlu0 %309, %v254
        %v311 = vpop.permute.xlu0 %310
        %v313 = vsel %vm308, %v311, %v304
        %314 = vset.pattern.permute.xlu0 1
        %315 = vperm.xlu0 %314, %v251
        %v316 = vpop.permute.xlu0 %315
        %vm317 = vcmp.eq.s32.totalorder %v258, %v316
        %318 = vset.pattern.permute.xlu0 1
        %319 = vperm.xlu0 %318, %v254
        %v320 = vpop.permute.xlu0 %319
        %v322 = vsel %vm317, %v320, %v313
        %323 = vset.pattern.permute.xlu0 0
        %324 = vperm.xlu0 %323, %v251
        %v325 = vpop.permute.xlu0 %324
        %vm326 = vcmp.eq.s32.totalorder %v258, %v325
        %327 = vset.pattern.permute.xlu0 0
        %328 = vperm.xlu0 %327, %v254
        %v329 = vpop.permute.xlu0 %328
        %v331 = vsel %vm326, %v329, %v322
        %332 = vset.pattern.permute.xlu0 15
        %333 = vperm.xlu0 %332, %v251
        %v334 = vpop.permute.xlu0 %333
        %vm335 = vcmp.eq.s32.totalorder %v258, %v334
        %336 = vset.pattern.permute.xlu0 15
        %337 = vperm.xlu0 %336, %v254
        %v338 = vpop.permute.xlu0 %337
        %v340 = vsel %vm335, %v338, 0.0
        %341 = vset.pattern.permute.xlu0 14
        %342 = vperm.xlu0 %341, %v251
        %v343 = vpop.permute.xlu0 %342
        %vm344 = vcmp.eq.s32.totalorder %v258, %v343
        %345 = vset.pattern.permute.xlu0 14
        %346 = vperm.xlu0 %345, %v254
        %v347 = vpop.permute.xlu0 %346
        %v349 = vsel %vm344, %v347, %v340
        %350 = vset.pattern.permute.xlu0 13
        %351 = vperm.xlu0 %350, %v251
        %v352 = vpop.permute.xlu0 %351
        %vm353 = vcmp.eq.s32.totalorder %v258, %v352
        %354 = vset.pattern.permute.xlu0 13
        %355 = vperm.xlu0 %354, %v254
        %v356 = vpop.permute.xlu0 %355
        %v358 = vsel %vm353, %v356, %v349
        %359 = vset.pattern.permute.xlu0 12
        %360 = vperm.xlu0 %359, %v251
        %v361 = vpop.permute.xlu0 %360
        %vm362 = vcmp.eq.s32.totalorder %v258, %v361
        %363 = vset.pattern.permute.xlu0 12
        %364 = vperm.xlu0 %363, %v254
        %v365 = vpop.permute.xlu0 %364
        %v367 = vsel %vm362, %v365, %v358
        %368 = vset.pattern.permute.xlu0 11
        %369 = vperm.xlu0 %368, %v251
        %v370 = vpop.permute.xlu0 %369
        %vm371 = vcmp.eq.s32.totalorder %v258, %v370
        %372 = vset.pattern.permute.xlu0 11
        %373 = vperm.xlu0 %372, %v254
        %v374 = vpop.permute.xlu0 %373
        %v376 = vsel %vm371, %v374, %v367
        %377 = vset.pattern.permute.xlu0 10
        %378 = vperm.xlu0 %377, %v251
        %v379 = vpop.permute.xlu0 %378
        %vm380 = vcmp.eq.s32.totalorder %v258, %v379
        %381 = vset.pattern.permute.xlu0 10
        %382 = vperm.xlu0 %381, %v254
        %v383 = vpop.permute.xlu0 %382
        %v385 = vsel %vm380, %v383, %v376
        %386 = vset.pattern.permute.xlu0 9
        %387 = vperm.xlu0 %386, %v251
        %v388 = vpop.permute.xlu0 %387
        %vm389 = vcmp.eq.s32.totalorder %v258, %v388
        %390 = vset.pattern.permute.xlu0 9
        %391 = vperm.xlu0 %390, %v254
        %v392 = vpop.permute.xlu0 %391
        %v394 = vsel %vm389, %v392, %v385
        %395 = vset.pattern.permute.xlu0 8
        %396 = vperm.xlu0 %395, %v251
        %v397 = vpop.permute.xlu0 %396
        %vm398 = vcmp.eq.s32.totalorder %v258, %v397
        %399 = vset.pattern.permute.xlu0 8
        %400 = vperm.xlu0 %399, %v254
        %v401 = vpop.permute.xlu0 %400
        %v403 = vsel %vm398, %v401, %v394
        %v404 = vadd.f32 %v331, %v403
        %405 = vset.pattern.permute.xlu0 23
        %406 = vperm.xlu0 %405, %v251
        %v407 = vpop.permute.xlu0 %406
        %vm408 = vcmp.eq.s32.totalorder %v258, %v407
        %409 = vset.pattern.permute.xlu0 23
        %410 = vperm.xlu0 %409, %v254
        %v411 = vpop.permute.xlu0 %410
        %v413 = vsel %vm408, %v411, 0.0
        %414 = vset.pattern.permute.xlu0 22
        %415 = vperm.xlu0 %414, %v251
        %v416 = vpop.permute.xlu0 %415
        %vm417 = vcmp.eq.s32.totalorder %v258, %v416
        %418 = vset.pattern.permute.xlu0 22
        %419 = vperm.xlu0 %418, %v254
        %v420 = vpop.permute.xlu0 %419
        %v422 = vsel %vm417, %v420, %v413
        %423 = vset.pattern.permute.xlu0 21
        %424 = vperm.xlu0 %423, %v251
        %v425 = vpop.permute.xlu0 %424
        %vm426 = vcmp.eq.s32.totalorder %v258, %v425
        %427 = vset.pattern.permute.xlu0 21
        %428 = vperm.xlu0 %427, %v254
        %v429 = vpop.permute.xlu0 %428
        %v431 = vsel %vm426, %v429, %v422
        %432 = vset.pattern.permute.xlu0 20
        %433 = vperm.xlu0 %432, %v251
        %v434 = vpop.permute.xlu0 %433
        %vm435 = vcmp.eq.s32.totalorder %v258, %v434
        %436 = vset.pattern.permute.xlu0 20
        %437 = vperm.xlu0 %436, %v254
        %v438 = vpop.permute.xlu0 %437
        %v440 = vsel %vm435, %v438, %v431
        %441 = vset.pattern.permute.xlu0 19
        %442 = vperm.xlu0 %441, %v251
        %v443 = vpop.permute.xlu0 %442
        %vm444 = vcmp.eq.s32.totalorder %v258, %v443
        %445 = vset.pattern.permute.xlu0 19
        %446 = vperm.xlu0 %445, %v254
        %v447 = vpop.permute.xlu0 %446
        %v449 = vsel %vm444, %v447, %v440
        %450 = vset.pattern.permute.xlu0 18
        %451 = vperm.xlu0 %450, %v251
        %v452 = vpop.permute.xlu0 %451
        %vm453 = vcmp.eq.s32.totalorder %v258, %v452
        %454 = vset.pattern.permute.xlu0 18
        %455 = vperm.xlu0 %454, %v254
        %v456 = vpop.permute.xlu0 %455
        %v458 = vsel %vm453, %v456, %v449
        %459 = vset.pattern.permute.xlu0 17
        %460 = vperm.xlu0 %459, %v251
        %v461 = vpop.permute.xlu0 %460
        %vm462 = vcmp.eq.s32.totalorder %v258, %v461
        %463 = vset.pattern.permute.xlu0 17
        %464 = vperm.xlu0 %463, %v254
        %v465 = vpop.permute.xlu0 %464
        %v467 = vsel %vm462, %v465, %v458
        %468 = vset.pattern.permute.xlu0 16
        %469 = vperm.xlu0 %468, %v251
        %v470 = vpop.permute.xlu0 %469
        %vm471 = vcmp.eq.s32.totalorder %v258, %v470
        %472 = vset.pattern.permute.xlu0 16
        %473 = vperm.xlu0 %472, %v254
        %v474 = vpop.permute.xlu0 %473
        %v476 = vsel %vm471, %v474, %v467
        %v477 = vadd.f32 %v404, %v476
        %478 = vset.pattern.permute.xlu0 31
        %479 = vperm.xlu0 %478, %v251
        %v480 = vpop.permute.xlu0 %479
        %vm481 = vcmp.eq.s32.totalorder %v258, %v480
        %482 = vset.pattern.permute.xlu0 31
        %483 = vperm.xlu0 %482, %v254
        %v484 = vpop.permute.xlu0 %483
        %v486 = vsel %vm481, %v484, 0.0
        %487 = vset.pattern.permute.xlu0 30
        %488 = vperm.xlu0 %487, %v251
        %v489 = vpop.permute.xlu0 %488
        %vm490 = vcmp.eq.s32.totalorder %v258, %v489
        %491 = vset.pattern.permute.xlu0 30
        %492 = vperm.xlu0 %491, %v254
        %v493 = vpop.permute.xlu0 %492
        %v495 = vsel %vm490, %v493, %v486
        %496 = vset.pattern.permute.xlu0 29
        %497 = vperm.xlu0 %496, %v251
        %v498 = vpop.permute.xlu0 %497
        %vm499 = vcmp.eq.s32.totalorder %v258, %v498
        %500 = vset.pattern.permute.xlu0 29
        %501 = vperm.xlu0 %500, %v254
        %v502 = vpop.permute.xlu0 %501
        %v504 = vsel %vm499, %v502, %v495
        %505 = vset.pattern.permute.xlu0 28
        %506 = vperm.xlu0 %505, %v251
        %v507 = vpop.permute.xlu0 %506
        %vm508 = vcmp.eq.s32.totalorder %v258, %v507
        %509 = vset.pattern.permute.xlu0 28
        %510 = vperm.xlu0 %509, %v254
        %v511 = vpop.permute.xlu0 %510
        %v513 = vsel %vm508, %v511, %v504
        %514 = vset.pattern.permute.xlu0 27
        %515 = vperm.xlu0 %514, %v251
        %v516 = vpop.permute.xlu0 %515
        %vm517 = vcmp.eq.s32.totalorder %v258, %v516
        %518 = vset.pattern.permute.xlu0 27
        %519 = vperm.xlu0 %518, %v254
        %v520 = vpop.permute.xlu0 %519
        %v522 = vsel %vm517, %v520, %v513
        %523 = vset.pattern.permute.xlu0 26
        %524 = vperm.xlu0 %523, %v251
        %v525 = vpop.permute.xlu0 %524
        %vm526 = vcmp.eq.s32.totalorder %v258, %v525
        %527 = vset.pattern.permute.xlu0 26
        %528 = vperm.xlu0 %527, %v254
        %v529 = vpop.permute.xlu0 %528
        %v531 = vsel %vm526, %v529, %v522
        %532 = vset.pattern.permute.xlu0 25
        %533 = vperm.xlu0 %532, %v251
        %v534 = vpop.permute.xlu0 %533
        %vm535 = vcmp.eq.s32.totalorder %v258, %v534
        %536 = vset.pattern.permute.xlu0 25
        %537 = vperm.xlu0 %536, %v254
        %v538 = vpop.permute.xlu0 %537
        %v540 = vsel %vm535, %v538, %v531
        %541 = vset.pattern.permute.xlu0 24
        %542 = vperm.xlu0 %541, %v251
        %v543 = vpop.permute.xlu0 %542
        %vm544 = vcmp.eq.s32.totalorder %v258, %v543
        %545 = vset.pattern.permute.xlu0 24
        %546 = vperm.xlu0 %545, %v254
        %v547 = vpop.permute.xlu0 %546
        %v549 = vsel %vm544, %v547, %v540
        %v550 = vadd.f32 %v477, %v549
        %v551 = vld [vmem:[%s250] sm:$0xff]
        %v552 = vld [vmem:[%s250 + $0x8] sm:$0xff]
        %v553 = vld [vmem:[%s250 + $0x10] sm:$0xff]
        %v554 = vld [vmem:[%s250 + $0x18] sm:$0xff]
        %v555 = vld [vmem:[%s250 + $0x20] sm:$0xff]
        %v556 = vld [vmem:[%s250 + $0x28] sm:$0xff]
        %v557 = vld [vmem:[%s250 + $0x30] sm:$0xff]
        %v558 = vld [vmem:[%s250 + $0x38] sm:$0xff]
        %559 = vset.pattern.permute.xlu0 39
        %560 = vperm.xlu0 %559, %v251
        %v561 = vpop.permute.xlu0 %560
        %vm562 = vcmp.eq.s32.totalorder %v258, %v561
        %563 = vset.pattern.permute.xlu0 39
        %564 = vperm.xlu0 %563, %v254
        %v565 = vpop.permute.xlu0 %564
        %v567 = vsel %vm562, %v565, 0.0
        %568 = vset.pattern.permute.xlu0 38
        %569 = vperm.xlu0 %568, %v251
        %v570 = vpop.permute.xlu0 %569
        %vm571 = vcmp.eq.s32.totalorder %v258, %v570
        %572 = vset.pattern.permute.xlu0 38
        %573 = vperm.xlu0 %572, %v254
        %v574 = vpop.permute.xlu0 %573
        %v576 = vsel %vm571, %v574, %v567
        %577 = vset.pattern.permute.xlu0 37
        %578 = vperm.xlu0 %577, %v251
        %v579 = vpop.permute.xlu0 %578
        %vm580 = vcmp.eq.s32.totalorder %v258, %v579
        %581 = vset.pattern.permute.xlu0 37
        %582 = vperm.xlu0 %581, %v254
        %v583 = vpop.permute.xlu0 %582
        %v585 = vsel %vm580, %v583, %v576
        %586 = vset.pattern.permute.xlu0 36
        %587 = vperm.xlu0 %586, %v251
        %v588 = vpop.permute.xlu0 %587
        %vm589 = vcmp.eq.s32.totalorder %v258, %v588
        %590 = vset.pattern.permute.xlu0 36
        %591 = vperm.xlu0 %590, %v254
        %v592 = vpop.permute.xlu0 %591
        %v594 = vsel %vm589, %v592, %v585
        %595 = vset.pattern.permute.xlu0 35
        %596 = vperm.xlu0 %595, %v251
        %v597 = vpop.permute.xlu0 %596
        %vm598 = vcmp.eq.s32.totalorder %v258, %v597
        %599 = vset.pattern.permute.xlu0 35
        %600 = vperm.xlu0 %599, %v254
        %v601 = vpop.permute.xlu0 %600
        %v603 = vsel %vm598, %v601, %v594
        %604 = vset.pattern.permute.xlu0 34
        %605 = vperm.xlu0 %604, %v251
        %v606 = vpop.permute.xlu0 %605
        %vm607 = vcmp.eq.s32.totalorder %v258, %v606
        %608 = vset.pattern.permute.xlu0 34
        %609 = vperm.xlu0 %608, %v254
        %v610 = vpop.permute.xlu0 %609
        %v612 = vsel %vm607, %v610, %v603
        %613 = vset.pattern.permute.xlu0 33
        %614 = vperm.xlu0 %613, %v251
        %v615 = vpop.permute.xlu0 %614
        %vm616 = vcmp.eq.s32.totalorder %v258, %v615
        %617 = vset.pattern.permute.xlu0 33
        %618 = vperm.xlu0 %617, %v254
        %v619 = vpop.permute.xlu0 %618
        %v621 = vsel %vm616, %v619, %v612
        %622 = vset.pattern.permute.xlu0 32
        %623 = vperm.xlu0 %622, %v251
        %v624 = vpop.permute.xlu0 %623
        %vm625 = vcmp.eq.s32.totalorder %v258, %v624
        %626 = vset.pattern.permute.xlu0 32
        %627 = vperm.xlu0 %626, %v254
        %v628 = vpop.permute.xlu0 %627
        %v630 = vsel %vm625, %v628, %v621
        %631 = vset.pattern.permute.xlu0 47
        %632 = vperm.xlu0 %631, %v251
        %v633 = vpop.permute.xlu0 %632
        %vm634 = vcmp.eq.s32.totalorder %v258, %v633
        %635 = vset.pattern.permute.xlu0 47
        %636 = vperm.xlu0 %635, %v254
        %v637 = vpop.permute.xlu0 %636
        %v639 = vsel %vm634, %v637, 0.0
        %640 = vset.pattern.permute.xlu0 46
        %641 = vperm.xlu0 %640, %v251
        %v642 = vpop.permute.xlu0 %641
        %vm643 = vcmp.eq.s32.totalorder %v258, %v642
        %644 = vset.pattern.permute.xlu0 46
        %645 = vperm.xlu0 %644, %v254
        %v646 = vpop.permute.xlu0 %645
        %v648 = vsel %vm643, %v646, %v639
        %649 = vset.pattern.permute.xlu0 45
        %650 = vperm.xlu0 %649, %v251
        %v651 = vpop.permute.xlu0 %650
        %vm652 = vcmp.eq.s32.totalorder %v258, %v651
        %653 = vset.pattern.permute.xlu0 45
        %654 = vperm.xlu0 %653, %v254
        %v655 = vpop.permute.xlu0 %654
        %v657 = vsel %vm652, %v655, %v648
        %658 = vset.pattern.permute.xlu0 44
        %659 = vperm.xlu0 %658, %v251
        %v660 = vpop.permute.xlu0 %659
        %vm661 = vcmp.eq.s32.totalorder %v258, %v660
        %662 = vset.pattern.permute.xlu0 44
        %663 = vperm.xlu0 %662, %v254
        %v664 = vpop.permute.xlu0 %663
        %v666 = vsel %vm661, %v664, %v657
        %667 = vset.pattern.permute.xlu0 43
        %668 = vperm.xlu0 %667, %v251
        %v669 = vpop.permute.xlu0 %668
        %vm670 = vcmp.eq.s32.totalorder %v258, %v669
        %671 = vset.pattern.permute.xlu0 43
        %672 = vperm.xlu0 %671, %v254
        %v673 = vpop.permute.xlu0 %672
        %v675 = vsel %vm670, %v673, %v666
        %676 = vset.pattern.permute.xlu0 42
        %677 = vperm.xlu0 %676, %v251
        %v678 = vpop.permute.xlu0 %677
        %vm679 = vcmp.eq.s32.totalorder %v258, %v678
        %680 = vset.pattern.permute.xlu0 42
        %681 = vperm.xlu0 %680, %v254
        %v682 = vpop.permute.xlu0 %681
        %v684 = vsel %vm679, %v682, %v675
        %685 = vset.pattern.permute.xlu0 41
        %686 = vperm.xlu0 %685, %v251
        %v687 = vpop.permute.xlu0 %686
        %vm688 = vcmp.eq.s32.totalorder %v258, %v687
        %689 = vset.pattern.permute.xlu0 41
        %690 = vperm.xlu0 %689, %v254
        %v691 = vpop.permute.xlu0 %690
        %v693 = vsel %vm688, %v691, %v684
        %694 = vset.pattern.permute.xlu0 40
        %695 = vperm.xlu0 %694, %v251
        %v696 = vpop.permute.xlu0 %695
        %vm697 = vcmp.eq.s32.totalorder %v258, %v696
        %698 = vset.pattern.permute.xlu0 40
        %699 = vperm.xlu0 %698, %v254
        %v700 = vpop.permute.xlu0 %699
        %v702 = vsel %vm697, %v700, %v693
        %v703 = vadd.f32 %v630, %v702
        %704 = vset.pattern.permute.xlu0 55
        %705 = vperm.xlu0 %704, %v251
        %v706 = vpop.permute.xlu0 %705
        %vm707 = vcmp.eq.s32.totalorder %v258, %v706
        %708 = vset.pattern.permute.xlu0 55
        %709 = vperm.xlu0 %708, %v254
        %v710 = vpop.permute.xlu0 %709
        %v712 = vsel %vm707, %v710, 0.0
        %713 = vset.pattern.permute.xlu0 54
        %714 = vperm.xlu0 %713, %v251
        %v715 = vpop.permute.xlu0 %714
        %vm716 = vcmp.eq.s32.totalorder %v258, %v715
        %717 = vset.pattern.permute.xlu0 54
        %718 = vperm.xlu0 %717, %v254
        %v719 = vpop.permute.xlu0 %718
        %v721 = vsel %vm716, %v719, %v712
        %722 = vset.pattern.permute.xlu0 53
        %723 = vperm.xlu0 %722, %v251
        %v724 = vpop.permute.xlu0 %723
        %vm725 = vcmp.eq.s32.totalorder %v258, %v724
        %726 = vset.pattern.permute.xlu0 53
        %727 = vperm.xlu0 %726, %v254
        %v728 = vpop.permute.xlu0 %727
        %v730 = vsel %vm725, %v728, %v721
        %731 = vset.pattern.permute.xlu0 52
        %732 = vperm.xlu0 %731, %v251
        %v733 = vpop.permute.xlu0 %732
        %vm734 = vcmp.eq.s32.totalorder %v258, %v733
        %735 = vset.pattern.permute.xlu0 52
        %736 = vperm.xlu0 %735, %v254
        %v737 = vpop.permute.xlu0 %736
        %v739 = vsel %vm734, %v737, %v730
        %740 = vset.pattern.permute.xlu0 51
        %741 = vperm.xlu0 %740, %v251
        %v742 = vpop.permute.xlu0 %741
        %vm743 = vcmp.eq.s32.totalorder %v258, %v742
        %744 = vset.pattern.permute.xlu0 51
        %745 = vperm.xlu0 %744, %v254
        %v746 = vpop.permute.xlu0 %745
        %v748 = vsel %vm743, %v746, %v739
        %749 = vset.pattern.permute.xlu0 50
        %750 = vperm.xlu0 %749, %v251
        %v751 = vpop.permute.xlu0 %750
        %vm752 = vcmp.eq.s32.totalorder %v258, %v751
        %753 = vset.pattern.permute.xlu0 50
        %754 = vperm.xlu0 %753, %v254
        %v755 = vpop.permute.xlu0 %754
        %v757 = vsel %vm752, %v755, %v748
        %758 = vset.pattern.permute.xlu0 49
        %759 = vperm.xlu0 %758, %v251
        %v760 = vpop.permute.xlu0 %759
        %vm761 = vcmp.eq.s32.totalorder %v258, %v760
        %762 = vset.pattern.permute.xlu0 49
        %763 = vperm.xlu0 %762, %v254
        %v764 = vpop.permute.xlu0 %763
        %v766 = vsel %vm761, %v764, %v757
        %767 = vset.pattern.permute.xlu0 48
        %768 = vperm.xlu0 %767, %v251
        %v769 = vpop.permute.xlu0 %768
        %vm770 = vcmp.eq.s32.totalorder %v258, %v769
        %771 = vset.pattern.permute.xlu0 48
        %772 = vperm.xlu0 %771, %v254
        %v773 = vpop.permute.xlu0 %772
        %v775 = vsel %vm770, %v773, %v766
        %v776 = vadd.f32 %v703, %v775
        %777 = vset.pattern.permute.xlu0 63
        %778 = vperm.xlu0 %777, %v251
        %v779 = vpop.permute.xlu0 %778
        %vm780 = vcmp.eq.s32.totalorder %v258, %v779
        %781 = vset.pattern.permute.xlu0 63
        %782 = vperm.xlu0 %781, %v254
        %v783 = vpop.permute.xlu0 %782
        %v785 = vsel %vm780, %v783, 0.0
        %786 = vset.pattern.permute.xlu0 62
        %787 = vperm.xlu0 %786, %v251
        %v788 = vpop.permute.xlu0 %787
        %vm789 = vcmp.eq.s32.totalorder %v258, %v788
        %790 = vset.pattern.permute.xlu0 62
        %791 = vperm.xlu0 %790, %v254
        %v792 = vpop.permute.xlu0 %791
        %v794 = vsel %vm789, %v792, %v785
        %795 = vset.pattern.permute.xlu0 61
        %796 = vperm.xlu0 %795, %v251
        %v797 = vpop.permute.xlu0 %796
        %vm798 = vcmp.eq.s32.totalorder %v258, %v797
        %799 = vset.pattern.permute.xlu0 61
        %800 = vperm.xlu0 %799, %v254
        %v801 = vpop.permute.xlu0 %800
        %v803 = vsel %vm798, %v801, %v794
        %804 = vset.pattern.permute.xlu0 60
        %805 = vperm.xlu0 %804, %v251
        %v806 = vpop.permute.xlu0 %805
        %vm807 = vcmp.eq.s32.totalorder %v258, %v806
        %808 = vset.pattern.permute.xlu0 60
        %809 = vperm.xlu0 %808, %v254
        %v810 = vpop.permute.xlu0 %809
        %v812 = vsel %vm807, %v810, %v803
        %813 = vset.pattern.permute.xlu0 59
        %814 = vperm.xlu0 %813, %v251
        %v815 = vpop.permute.xlu0 %814
        %vm816 = vcmp.eq.s32.totalorder %v258, %v815
        %817 = vset.pattern.permute.xlu0 59
        %818 = vperm.xlu0 %817, %v254
        %v819 = vpop.permute.xlu0 %818
        %v821 = vsel %vm816, %v819, %v812
        %822 = vset.pattern.permute.xlu0 58
        %823 = vperm.xlu0 %822, %v251
        %v824 = vpop.permute.xlu0 %823
        %vm825 = vcmp.eq.s32.totalorder %v258, %v824
        %826 = vset.pattern.permute.xlu0 58
        %827 = vperm.xlu0 %826, %v254
        %v828 = vpop.permute.xlu0 %827
        %v830 = vsel %vm825, %v828, %v821
        %831 = vset.pattern.permute.xlu0 57
        %832 = vperm.xlu0 %831, %v251
        %v833 = vpop.permute.xlu0 %832
        %vm834 = vcmp.eq.s32.totalorder %v258, %v833
        %835 = vset.pattern.permute.xlu0 57
        %836 = vperm.xlu0 %835, %v254
        %v837 = vpop.permute.xlu0 %836
        %v839 = vsel %vm834, %v837, %v830
        %840 = vset.pattern.permute.xlu0 56
        %841 = vperm.xlu0 %840, %v251
        %v842 = vpop.permute.xlu0 %841
        %vm843 = vcmp.eq.s32.totalorder %v258, %v842
        %844 = vset.pattern.permute.xlu0 56
        %845 = vperm.xlu0 %844, %v254
        %v846 = vpop.permute.xlu0 %845
        %v848 = vsel %vm843, %v846, %v839
        %v849 = vadd.f32 %v776, %v848
        %v850 = vld [vmem:[%s250 + $0x40] sm:$0xff]
        %vm851 = vcmask 64512
        %v853 = vsel %vm851, %v849, 0
        %855 = vmatprep.subr.mxu0 0.0
        %856 = vmatpush1.msra.mxu0 %v850
        %857 = vmatprep.subr.mxu0 0.0
        %858 = vmatpush1.msra.mxu0 0.0
        %859 = vmatprep.subr.mxu0 0.0
        %860 = vmatpush1.msra.mxu0 0.0
        %861 = vmatprep.subr.mxu0 0.0
        %862 = vmatpush1.msra.mxu0 0.0
        %863 = vmatprep.subr.mxu0 0.0
        %864 = vmatpush1.msra.mxu0 0.0
        %865 = vmatprep.subr.mxu0 0.0
        %866 = vmatpush1.msra.mxu0 0.0
        %867 = vmatprep.subr.mxu0 0.0
        %868 = vmatpush1.msra.mxu0 0.0
        %869 = vmatprep.subr.mxu0 0.0
        %870 = vmatpush1.msra.mxu0 0.0
        %871 = vmatprep.subr.mxu0 0.0
        %872 = vmatpush1.msra.mxu0 0.0
        %873 = vmatprep.subr.mxu0 0.0
        %874 = vmatpush1.msra.mxu0 0.0
        %875 = vmatprep.subr.mxu0 0.0
        %876 = vmatpush1.msra.mxu0 0.0
        %877 = vmatprep.subr.mxu0 0.0
        %878 = vmatpush1.msra.mxu0 0.0
        %879 = vmatprep.subr.mxu0 0.0
        %880 = vmatpush1.msra.mxu0 0.0
        %881 = vmatprep.subr.mxu0 0.0
        %882 = vmatpush1.msra.mxu0 0.0
        %883 = vmatprep.subr.mxu0 0.0
        %884 = vmatpush1.msra.mxu0 0.0
        %885 = vmatprep.subr.mxu0 0.0
        %886 = vmatpush1.msra.mxu0 0.0
        %887 = vmatprep.subr.mxu0 0.0
        %888 = vmatpush1.msra.mxu0 0.0
        %889 = vmatprep.subr.mxu0 0.0
        %890 = vmatpush1.msra.mxu0 0.0
        %891 = vmatprep.subr.mxu0 0.0
        %892 = vmatpush1.msra.mxu0 0.0
        %893 = vmatprep.subr.mxu0 0.0
        %894 = vmatpush1.msra.mxu0 0.0
        %895 = vmatprep.subr.mxu0 0.0
        %896 = vmatpush1.msra.mxu0 0.0
        %897 = vmatprep.subr.mxu0 0.0
        %898 = vmatpush1.msra.mxu0 0.0
        %899 = vmatprep.subr.mxu0 0.0
        %900 = vmatpush1.msra.mxu0 0.0
        %901 = vmatprep.subr.mxu0 0.0
        %902 = vmatpush1.msra.mxu0 0.0
        %903 = vmatprep.subr.mxu0 0.0
        %904 = vmatpush1.msra.mxu0 0.0
        %905 = vmatprep.subr.mxu0 0.0
        %906 = vmatpush1.msra.mxu0 0.0
        %907 = vmatprep.subr.mxu0 0.0
        %908 = vmatpush1.msra.mxu0 0.0
        %909 = vmatprep.subr.mxu0 0.0
        %910 = vmatpush1.msra.mxu0 0.0
        %911 = vmatprep.subr.mxu0 0.0
        %912 = vmatpush1.msra.mxu0 0.0
        %913 = vmatprep.subr.mxu0 0.0
        %914 = vmatpush1.msra.mxu0 0.0
        %915 = vmatprep.subr.mxu0 0.0
        %916 = vmatpush1.msra.mxu0 0.0
        %917 = vmatprep.subr.mxu0 0.0
        %918 = vmatpush1.msra.mxu0 0.0
        %919 = vmatprep.mubr.f32.mxu0 0.0
        %920 = vmatmul.mubr.f32.gmra.mrb[0].mxu0 %v853
        %v921 = vpop.f32.mrb[0].mxu0
        %v922 = vadd.f32 0.0, %v921
        %v923 = vpop.f32.mrb[0].mxu0
        %924 = vdwg.mxu0
        %vm925 = vcmask 523264
        %v927 = vsel %vm925, %v550, 0
        %929 = vmatprep.subr.mxu0 0.0
        %930 = vmatpush1.msra.mxu0 %v551
        %931 = vmatprep.subr.mxu0 0.0
        %932 = vmatpush1.msra.mxu0 %v552
        %933 = vmatprep.subr.mxu0 0.0
        %934 = vmatpush1.msra.mxu0 %v553
        %935 = vmatprep.subr.mxu0 0.0
        %936 = vmatpush1.msra.mxu0 %v554
        %937 = vmatprep.subr.mxu0 0.0
        %938 = vmatpush1.msra.mxu0 %v555
        %939 = vmatprep.subr.mxu0 0.0
        %940 = vmatpush1.msra.mxu0 %v556
        %941 = vmatprep.subr.mxu0 0.0
        %942 = vmatpush1.msra.mxu0 %v557
        %943 = vmatprep.subr.mxu0 0.0
        %944 = vmatpush1.msra.mxu0 %v558
        %945 = vmatprep.subr.mxu0 0.0
        %946 = vmatpush1.msra.mxu0 0.0
        %947 = vmatprep.subr.mxu0 0.0
        %948 = vmatpush1.msra.mxu0 0.0
        %949 = vmatprep.subr.mxu0 0.0
        %950 = vmatpush1.msra.mxu0 0.0
        %951 = vmatprep.subr.mxu0 0.0
        %952 = vmatpush1.msra.mxu0 0.0
        %953 = vmatprep.subr.mxu0 0.0
        %954 = vmatpush1.msra.mxu0 0.0
        %955 = vmatprep.subr.mxu0 0.0
        %956 = vmatpush1.msra.mxu0 0.0
        %957 = vmatprep.subr.mxu0 0.0
        %958 = vmatpush1.msra.mxu0 0.0
        %959 = vmatprep.subr.mxu0 0.0
        %960 = vmatpush1.msra.mxu0 0.0
        %961 = vmatprep.subr.mxu0 0.0
        %962 = vmatpush1.msra.mxu0 0.0
        %963 = vmatprep.subr.mxu0 0.0
        %964 = vmatpush1.msra.mxu0 0.0
        %965 = vmatprep.subr.mxu0 0.0
        %966 = vmatpush1.msra.mxu0 0.0
        %967 = vmatprep.subr.mxu0 0.0
        %968 = vmatpush1.msra.mxu0 0.0
        %969 = vmatprep.subr.mxu0 0.0
        %970 = vmatpush1.msra.mxu0 0.0
        %971 = vmatprep.subr.mxu0 0.0
        %972 = vmatpush1.msra.mxu0 0.0
        %973 = vmatprep.subr.mxu0 0.0
        %974 = vmatpush1.msra.mxu0 0.0
        %975 = vmatprep.subr.mxu0 0.0
        %976 = vmatpush1.msra.mxu0 0.0
        %977 = vmatprep.subr.mxu0 0.0
        %978 = vmatpush1.msra.mxu0 0.0
        %979 = vmatprep.subr.mxu0 0.0
        %980 = vmatpush1.msra.mxu0 0.0
        %981 = vmatprep.subr.mxu0 0.0
        %982 = vmatpush1.msra.mxu0 0.0
        %983 = vmatprep.subr.mxu0 0.0
        %984 = vmatpush1.msra.mxu0 0.0
        %985 = vmatprep.subr.mxu0 0.0
        %986 = vmatpush1.msra.mxu0 0.0
        %987 = vmatprep.subr.mxu0 0.0
        %988 = vmatpush1.msra.mxu0 0.0
        %989 = vmatprep.subr.mxu0 0.0
        %990 = vmatpush1.msra.mxu0 0.0
        %991 = vmatprep.subr.mxu0 0.0
        %992 = vmatpush1.msra.mxu0 0.0
        %993 = vmatprep.mubr.f32.mxu0 0.0
        %994 = vmatmul.mubr.f32.gmra.mrb[0].mxu0 %v927
        %v995 = vpop.f32.mrb[0].mxu0
        %v996 = vadd.f32 %v922, %v995
        %v997 = vpop.f32.mrb[0].mxu0
        %998 = vdwg.mxu0
        %999 = vset.pattern.permute.xlu0 71
        %1000 = vperm.xlu0 %999, %v251
        %v1001 = vpop.permute.xlu0 %1000
        %vm1002 = vcmp.eq.s32.totalorder %v258, %v1001
        %1003 = vset.pattern.permute.xlu0 71
        %1004 = vperm.xlu0 %1003, %v254
        %v1005 = vpop.permute.xlu0 %1004
        %v1007 = vsel %vm1002, %v1005, 0.0
        %1008 = vset.pattern.permute.xlu0 70
        %1009 = vperm.xlu0 %1008, %v251
        %v1010 = vpop.permute.xlu0 %1009
        %vm1011 = vcmp.eq.s32.totalorder %v258, %v1010
        %1012 = vset.pattern.permute.xlu0 70
        %1013 = vperm.xlu0 %1012, %v254
        %v1014 = vpop.permute.xlu0 %1013
        %v1016 = vsel %vm1011, %v1014, %v1007
        %1017 = vset.pattern.permute.xlu0 69
        %1018 = vperm.xlu0 %1017, %v251
        %v1019 = vpop.permute.xlu0 %1018
        %vm1020 = vcmp.eq.s32.totalorder %v258, %v1019
        %1021 = vset.pattern.permute.xlu0 69
        %1022 = vperm.xlu0 %1021, %v254
        %v1023 = vpop.permute.xlu0 %1022
        %v1025 = vsel %vm1020, %v1023, %v1016
        %1026 = vset.pattern.permute.xlu0 68
        %1027 = vperm.xlu0 %1026, %v251
        %v1028 = vpop.permute.xlu0 %1027
        %vm1029 = vcmp.eq.s32.totalorder %v258, %v1028
        %1030 = vset.pattern.permute.xlu0 68
        %1031 = vperm.xlu0 %1030, %v254
        %v1032 = vpop.permute.xlu0 %1031
        %v1034 = vsel %vm1029, %v1032, %v1025
        %1035 = vset.pattern.permute.xlu0 67
        %1036 = vperm.xlu0 %1035, %v251
        %v1037 = vpop.permute.xlu0 %1036
        %vm1038 = vcmp.eq.s32.totalorder %v258, %v1037
        %1039 = vset.pattern.permute.xlu0 67
        %1040 = vperm.xlu0 %1039, %v254
        %v1041 = vpop.permute.xlu0 %1040
        %v1043 = vsel %vm1038, %v1041, %v1034
        %1044 = vset.pattern.permute.xlu0 66
        %1045 = vperm.xlu0 %1044, %v251
        %v1046 = vpop.permute.xlu0 %1045
        %vm1047 = vcmp.eq.s32.totalorder %v258, %v1046
        %1048 = vset.pattern.permute.xlu0 66
        %1049 = vperm.xlu0 %1048, %v254
        %v1050 = vpop.permute.xlu0 %1049
        %v1052 = vsel %vm1047, %v1050, %v1043
        %1053 = vset.pattern.permute.xlu0 65
        %1054 = vperm.xlu0 %1053, %v251
        %v1055 = vpop.permute.xlu0 %1054
        %vm1056 = vcmp.eq.s32.totalorder %v258, %v1055
        %1057 = vset.pattern.permute.xlu0 65
        %1058 = vperm.xlu0 %1057, %v254
        %v1059 = vpop.permute.xlu0 %1058
        %v1061 = vsel %vm1056, %v1059, %v1052
        %1062 = vset.pattern.permute.xlu0 64
        %1063 = vperm.xlu0 %1062, %v251
        %v1064 = vpop.permute.xlu0 %1063
        %vm1065 = vcmp.eq.s32.totalorder %v258, %v1064
        %1066 = vset.pattern.permute.xlu0 64
        %1067 = vperm.xlu0 %1066, %v254
        %v1068 = vpop.permute.xlu0 %1067
        %v1070 = vsel %vm1065, %v1068, %v1061
        %1071 = vset.pattern.permute.xlu0 79
        %1072 = vperm.xlu0 %1071, %v251
        %v1073 = vpop.permute.xlu0 %1072
        %vm1074 = vcmp.eq.s32.totalorder %v258, %v1073
        %1075 = vset.pattern.permute.xlu0 79
        %1076 = vperm.xlu0 %1075, %v254
        %v1077 = vpop.permute.xlu0 %1076
        %v1079 = vsel %vm1074, %v1077, 0.0
        %1080 = vset.pattern.permute.xlu0 78
        %1081 = vperm.xlu0 %1080, %v251
        %v1082 = vpop.permute.xlu0 %1081
        %vm1083 = vcmp.eq.s32.totalorder %v258, %v1082
        %1084 = vset.pattern.permute.xlu0 78
        %1085 = vperm.xlu0 %1084, %v254
        %v1086 = vpop.permute.xlu0 %1085
        %v1088 = vsel %vm1083, %v1086, %v1079
        %1089 = vset.pattern.permute.xlu0 77
        %1090 = vperm.xlu0 %1089, %v251
        %v1091 = vpop.permute.xlu0 %1090
        %vm1092 = vcmp.eq.s32.totalorder %v258, %v1091
        %1093 = vset.pattern.permute.xlu0 77
        %1094 = vperm.xlu0 %1093, %v254
        %v1095 = vpop.permute.xlu0 %1094
        %v1097 = vsel %vm1092, %v1095, %v1088
        %1098 = vset.pattern.permute.xlu0 76
        %1099 = vperm.xlu0 %1098, %v251
        %v1100 = vpop.permute.xlu0 %1099
        %vm1101 = vcmp.eq.s32.totalorder %v258, %v1100
        %1102 = vset.pattern.permute.xlu0 76
        %1103 = vperm.xlu0 %1102, %v254
        %v1104 = vpop.permute.xlu0 %1103
        %v1106 = vsel %vm1101, %v1104, %v1097
        %1107 = vset.pattern.permute.xlu0 75
        %1108 = vperm.xlu0 %1107, %v251
        %v1109 = vpop.permute.xlu0 %1108
        %vm1110 = vcmp.eq.s32.totalorder %v258, %v1109
        %1111 = vset.pattern.permute.xlu0 75
        %1112 = vperm.xlu0 %1111, %v254
        %v1113 = vpop.permute.xlu0 %1112
        %v1115 = vsel %vm1110, %v1113, %v1106
        %1116 = vset.pattern.permute.xlu0 74
        %1117 = vperm.xlu0 %1116, %v251
        %v1118 = vpop.permute.xlu0 %1117
        %vm1119 = vcmp.eq.s32.totalorder %v258, %v1118
        %1120 = vset.pattern.permute.xlu0 74
        %1121 = vperm.xlu0 %1120, %v254
        %v1122 = vpop.permute.xlu0 %1121
        %v1124 = vsel %vm1119, %v1122, %v1115
        %1125 = vset.pattern.permute.xlu0 73
        %1126 = vperm.xlu0 %1125, %v251
        %v1127 = vpop.permute.xlu0 %1126
        %vm1128 = vcmp.eq.s32.totalorder %v258, %v1127
        %1129 = vset.pattern.permute.xlu0 73
        %1130 = vperm.xlu0 %1129, %v254
        %v1131 = vpop.permute.xlu0 %1130
        %v1133 = vsel %vm1128, %v1131, %v1124
        %1134 = vset.pattern.permute.xlu0 72
        %1135 = vperm.xlu0 %1134, %v251
        %v1136 = vpop.permute.xlu0 %1135
        %vm1137 = vcmp.eq.s32.totalorder %v258, %v1136
        %1138 = vset.pattern.permute.xlu0 72
        %1139 = vperm.xlu0 %1138, %v254
        %v1140 = vpop.permute.xlu0 %1139
        %v1142 = vsel %vm1137, %v1140, %v1133
        %v1143 = vadd.f32 %v1070, %v1142
        %1144 = vset.pattern.permute.xlu0 87
        %1145 = vperm.xlu0 %1144, %v251
        %v1146 = vpop.permute.xlu0 %1145
        %vm1147 = vcmp.eq.s32.totalorder %v258, %v1146
        %1148 = vset.pattern.permute.xlu0 87
        %1149 = vperm.xlu0 %1148, %v254
        %v1150 = vpop.permute.xlu0 %1149
        %v1152 = vsel %vm1147, %v1150, 0.0
        %1153 = vset.pattern.permute.xlu0 86
        %1154 = vperm.xlu0 %1153, %v251
        %v1155 = vpop.permute.xlu0 %1154
        %vm1156 = vcmp.eq.s32.totalorder %v258, %v1155
        %1157 = vset.pattern.permute.xlu0 86
        %1158 = vperm.xlu0 %1157, %v254
        %v1159 = vpop.permute.xlu0 %1158
        %v1161 = vsel %vm1156, %v1159, %v1152
        %1162 = vset.pattern.permute.xlu0 85
        %1163 = vperm.xlu0 %1162, %v251
        %v1164 = vpop.permute.xlu0 %1163
        %vm1165 = vcmp.eq.s32.totalorder %v258, %v1164
        %1166 = vset.pattern.permute.xlu0 85
        %1167 = vperm.xlu0 %1166, %v254
        %v1168 = vpop.permute.xlu0 %1167
        %v1170 = vsel %vm1165, %v1168, %v1161
        %1171 = vset.pattern.permute.xlu0 84
        %1172 = vperm.xlu0 %1171, %v251
        %v1173 = vpop.permute.xlu0 %1172
        %vm1174 = vcmp.eq.s32.totalorder %v258, %v1173
        %1175 = vset.pattern.permute.xlu0 84
        %1176 = vperm.xlu0 %1175, %v254
        %v1177 = vpop.permute.xlu0 %1176
        %v1179 = vsel %vm1174, %v1177, %v1170
        %1180 = vset.pattern.permute.xlu0 83
        %1181 = vperm.xlu0 %1180, %v251
        %v1182 = vpop.permute.xlu0 %1181
        %vm1183 = vcmp.eq.s32.totalorder %v258, %v1182
        %1184 = vset.pattern.permute.xlu0 83
        %1185 = vperm.xlu0 %1184, %v254
        %v1186 = vpop.permute.xlu0 %1185
        %v1188 = vsel %vm1183, %v1186, %v1179
        %1189 = vset.pattern.permute.xlu0 82
        %1190 = vperm.xlu0 %1189, %v251
        %v1191 = vpop.permute.xlu0 %1190
        %vm1192 = vcmp.eq.s32.totalorder %v258, %v1191
        %1193 = vset.pattern.permute.xlu0 82
        %1194 = vperm.xlu0 %1193, %v254
        %v1195 = vpop.permute.xlu0 %1194
        %v1197 = vsel %vm1192, %v1195, %v1188
        %1198 = vset.pattern.permute.xlu0 81
        %1199 = vperm.xlu0 %1198, %v251
        %v1200 = vpop.permute.xlu0 %1199
        %vm1201 = vcmp.eq.s32.totalorder %v258, %v1200
        %1202 = vset.pattern.permute.xlu0 81
        %1203 = vperm.xlu0 %1202, %v254
        %v1204 = vpop.permute.xlu0 %1203
        %v1206 = vsel %vm1201, %v1204, %v1197
        %1207 = vset.pattern.permute.xlu0 80
        %1208 = vperm.xlu0 %1207, %v251
        %v1209 = vpop.permute.xlu0 %1208
        %vm1210 = vcmp.eq.s32.totalorder %v258, %v1209
        %1211 = vset.pattern.permute.xlu0 80
        %1212 = vperm.xlu0 %1211, %v254
        %v1213 = vpop.permute.xlu0 %1212
        %v1215 = vsel %vm1210, %v1213, %v1206
        %v1216 = vadd.f32 %v1143, %v1215
        %1217 = vset.pattern.permute.xlu0 95
        %1218 = vperm.xlu0 %1217, %v251
        %v1219 = vpop.permute.xlu0 %1218
        %vm1220 = vcmp.eq.s32.totalorder %v258, %v1219
        %1221 = vset.pattern.permute.xlu0 95
        %1222 = vperm.xlu0 %1221, %v254
        %v1223 = vpop.permute.xlu0 %1222
        %v1225 = vsel %vm1220, %v1223, 0.0
        %1226 = vset.pattern.permute.xlu0 94
        %1227 = vperm.xlu0 %1226, %v251
        %v1228 = vpop.permute.xlu0 %1227
        %vm1229 = vcmp.eq.s32.totalorder %v258, %v1228
        %1230 = vset.pattern.permute.xlu0 94
        %1231 = vperm.xlu0 %1230, %v254
        %v1232 = vpop.permute.xlu0 %1231
        %v1234 = vsel %vm1229, %v1232, %v1225
        %1235 = vset.pattern.permute.xlu0 93
        %1236 = vperm.xlu0 %1235, %v251
        %v1237 = vpop.permute.xlu0 %1236
        %vm1238 = vcmp.eq.s32.totalorder %v258, %v1237
        %1239 = vset.pattern.permute.xlu0 93
        %1240 = vperm.xlu0 %1239, %v254
        %v1241 = vpop.permute.xlu0 %1240
        %v1243 = vsel %vm1238, %v1241, %v1234
        %1244 = vset.pattern.permute.xlu0 92
        %1245 = vperm.xlu0 %1244, %v251
        %v1246 = vpop.permute.xlu0 %1245
        %vm1247 = vcmp.eq.s32.totalorder %v258, %v1246
        %1248 = vset.pattern.permute.xlu0 92
        %1249 = vperm.xlu0 %1248, %v254
        %v1250 = vpop.permute.xlu0 %1249
        %v1252 = vsel %vm1247, %v1250, %v1243
        %1253 = vset.pattern.permute.xlu0 91
        %1254 = vperm.xlu0 %1253, %v251
        %v1255 = vpop.permute.xlu0 %1254
        %vm1256 = vcmp.eq.s32.totalorder %v258, %v1255
        %1257 = vset.pattern.permute.xlu0 91
        %1258 = vperm.xlu0 %1257, %v254
        %v1259 = vpop.permute.xlu0 %1258
        %v1261 = vsel %vm1256, %v1259, %v1252
        %1262 = vset.pattern.permute.xlu0 90
        %1263 = vperm.xlu0 %1262, %v251
        %v1264 = vpop.permute.xlu0 %1263
        %vm1265 = vcmp.eq.s32.totalorder %v258, %v1264
        %1266 = vset.pattern.permute.xlu0 90
        %1267 = vperm.xlu0 %1266, %v254
        %v1268 = vpop.permute.xlu0 %1267
        %v1270 = vsel %vm1265, %v1268, %v1261
        %1271 = vset.pattern.permute.xlu0 89
        %1272 = vperm.xlu0 %1271, %v251
        %v1273 = vpop.permute.xlu0 %1272
        %vm1274 = vcmp.eq.s32.totalorder %v258, %v1273
        %1275 = vset.pattern.permute.xlu0 89
        %1276 = vperm.xlu0 %1275, %v254
        %v1277 = vpop.permute.xlu0 %1276
        %v1279 = vsel %vm1274, %v1277, %v1270
        %1280 = vset.pattern.permute.xlu0 88
        %1281 = vperm.xlu0 %1280, %v251
        %v1282 = vpop.permute.xlu0 %1281
        %vm1283 = vcmp.eq.s32.totalorder %v258, %v1282
        %1284 = vset.pattern.permute.xlu0 88
        %1285 = vperm.xlu0 %1284, %v254
        %v1286 = vpop.permute.xlu0 %1285
        %v1288 = vsel %vm1283, %v1286, %v1279
        %v1289 = vadd.f32 %v1216, %v1288
        %1290 = vset.pattern.permute.xlu0 103
        %1291 = vperm.xlu0 %1290, %v251
        %v1292 = vpop.permute.xlu0 %1291
        %vm1293 = vcmp.eq.s32.totalorder %v258, %v1292
        %1294 = vset.pattern.permute.xlu0 103
        %1295 = vperm.xlu0 %1294, %v254
        %v1296 = vpop.permute.xlu0 %1295
        %v1298 = vsel %vm1293, %v1296, 0.0
        %1299 = vset.pattern.permute.xlu0 102
        %1300 = vperm.xlu0 %1299, %v251
        %v1301 = vpop.permute.xlu0 %1300
        %vm1302 = vcmp.eq.s32.totalorder %v258, %v1301
        %1303 = vset.pattern.permute.xlu0 102
        %1304 = vperm.xlu0 %1303, %v254
        %v1305 = vpop.permute.xlu0 %1304
        %v1307 = vsel %vm1302, %v1305, %v1298
        %1308 = vset.pattern.permute.xlu0 101
        %1309 = vperm.xlu0 %1308, %v251
        %v1310 = vpop.permute.xlu0 %1309
        %vm1311 = vcmp.eq.s32.totalorder %v258, %v1310
        %1312 = vset.pattern.permute.xlu0 101
        %1313 = vperm.xlu0 %1312, %v254
        %v1314 = vpop.permute.xlu0 %1313
        %v1316 = vsel %vm1311, %v1314, %v1307
        %1317 = vset.pattern.permute.xlu0 100
        %1318 = vperm.xlu0 %1317, %v251
        %v1319 = vpop.permute.xlu0 %1318
        %vm1320 = vcmp.eq.s32.totalorder %v258, %v1319
        %1321 = vset.pattern.permute.xlu0 100
        %1322 = vperm.xlu0 %1321, %v254
        %v1323 = vpop.permute.xlu0 %1322
        %v1325 = vsel %vm1320, %v1323, %v1316
        %1326 = vset.pattern.permute.xlu0 99
        %1327 = vperm.xlu0 %1326, %v251
        %v1328 = vpop.permute.xlu0 %1327
        %vm1329 = vcmp.eq.s32.totalorder %v258, %v1328
        %1330 = vset.pattern.permute.xlu0 99
        %1331 = vperm.xlu0 %1330, %v254
        %v1332 = vpop.permute.xlu0 %1331
        %v1334 = vsel %vm1329, %v1332, %v1325
        %1335 = vset.pattern.permute.xlu0 98
        %1336 = vperm.xlu0 %1335, %v251
        %v1337 = vpop.permute.xlu0 %1336
        %vm1338 = vcmp.eq.s32.totalorder %v258, %v1337
        %1339 = vset.pattern.permute.xlu0 98
        %1340 = vperm.xlu0 %1339, %v254
        %v1341 = vpop.permute.xlu0 %1340
        %v1343 = vsel %vm1338, %v1341, %v1334
        %1344 = vset.pattern.permute.xlu0 97
        %1345 = vperm.xlu0 %1344, %v251
        %v1346 = vpop.permute.xlu0 %1345
        %vm1347 = vcmp.eq.s32.totalorder %v258, %v1346
        %1348 = vset.pattern.permute.xlu0 97
        %1349 = vperm.xlu0 %1348, %v254
        %v1350 = vpop.permute.xlu0 %1349
        %v1352 = vsel %vm1347, %v1350, %v1343
        %1353 = vset.pattern.permute.xlu0 96
        %1354 = vperm.xlu0 %1353, %v251
        %v1355 = vpop.permute.xlu0 %1354
        %vm1356 = vcmp.eq.s32.totalorder %v258, %v1355
        %1357 = vset.pattern.permute.xlu0 96
        %1358 = vperm.xlu0 %1357, %v254
        %v1359 = vpop.permute.xlu0 %1358
        %v1361 = vsel %vm1356, %v1359, %v1352
        %1362 = vset.pattern.permute.xlu0 111
        %1363 = vperm.xlu0 %1362, %v251
        %v1364 = vpop.permute.xlu0 %1363
        %vm1365 = vcmp.eq.s32.totalorder %v258, %v1364
        %1366 = vset.pattern.permute.xlu0 111
        %1367 = vperm.xlu0 %1366, %v254
        %v1368 = vpop.permute.xlu0 %1367
        %v1370 = vsel %vm1365, %v1368, 0.0
        %1371 = vset.pattern.permute.xlu0 110
        %1372 = vperm.xlu0 %1371, %v251
        %v1373 = vpop.permute.xlu0 %1372
        %vm1374 = vcmp.eq.s32.totalorder %v258, %v1373
        %1375 = vset.pattern.permute.xlu0 110
        %1376 = vperm.xlu0 %1375, %v254
        %v1377 = vpop.permute.xlu0 %1376
        %v1379 = vsel %vm1374, %v1377, %v1370
        %1380 = vset.pattern.permute.xlu0 109
        %1381 = vperm.xlu0 %1380, %v251
        %v1382 = vpop.permute.xlu0 %1381
        %vm1383 = vcmp.eq.s32.totalorder %v258, %v1382
        %1384 = vset.pattern.permute.xlu0 109
        %1385 = vperm.xlu0 %1384, %v254
        %v1386 = vpop.permute.xlu0 %1385
        %v1388 = vsel %vm1383, %v1386, %v1379
        %1389 = vset.pattern.permute.xlu0 108
        %1390 = vperm.xlu0 %1389, %v251
        %v1391 = vpop.permute.xlu0 %1390
        %vm1392 = vcmp.eq.s32.totalorder %v258, %v1391
        %1393 = vset.pattern.permute.xlu0 108
        %1394 = vperm.xlu0 %1393, %v254
        %v1395 = vpop.permute.xlu0 %1394
        %v1397 = vsel %vm1392, %v1395, %v1388
        %1398 = vset.pattern.permute.xlu0 107
        %1399 = vperm.xlu0 %1398, %v251
        %v1400 = vpop.permute.xlu0 %1399
        %vm1401 = vcmp.eq.s32.totalorder %v258, %v1400
        %1402 = vset.pattern.permute.xlu0 107
        %1403 = vperm.xlu0 %1402, %v254
        %v1404 = vpop.permute.xlu0 %1403
        %v1406 = vsel %vm1401, %v1404, %v1397
        %1407 = vset.pattern.permute.xlu0 106
        %1408 = vperm.xlu0 %1407, %v251
        %v1409 = vpop.permute.xlu0 %1408
        %vm1410 = vcmp.eq.s32.totalorder %v258, %v1409
        %1411 = vset.pattern.permute.xlu0 106
        %1412 = vperm.xlu0 %1411, %v254
        %v1413 = vpop.permute.xlu0 %1412
        %v1415 = vsel %vm1410, %v1413, %v1406
        %1416 = vset.pattern.permute.xlu0 105
        %1417 = vperm.xlu0 %1416, %v251
        %v1418 = vpop.permute.xlu0 %1417
        %vm1419 = vcmp.eq.s32.totalorder %v258, %v1418
        %1420 = vset.pattern.permute.xlu0 105
        %1421 = vperm.xlu0 %1420, %v254
        %v1422 = vpop.permute.xlu0 %1421
        %v1424 = vsel %vm1419, %v1422, %v1415
        %1425 = vset.pattern.permute.xlu0 104
        %1426 = vperm.xlu0 %1425, %v251
        %v1427 = vpop.permute.xlu0 %1426
        %vm1428 = vcmp.eq.s32.totalorder %v258, %v1427
        %1429 = vset.pattern.permute.xlu0 104
        %1430 = vperm.xlu0 %1429, %v254
        %v1431 = vpop.permute.xlu0 %1430
        %v1433 = vsel %vm1428, %v1431, %v1424
        %v1434 = vadd.f32 %v1361, %v1433
        %1435 = vset.pattern.permute.xlu0 119
        %1436 = vperm.xlu0 %1435, %v251
        %v1437 = vpop.permute.xlu0 %1436
        %vm1438 = vcmp.eq.s32.totalorder %v258, %v1437
        %1439 = vset.pattern.permute.xlu0 119
        %1440 = vperm.xlu0 %1439, %v254
        %v1441 = vpop.permute.xlu0 %1440
        %v1443 = vsel %vm1438, %v1441, 0.0
        %1444 = vset.pattern.permute.xlu0 118
        %1445 = vperm.xlu0 %1444, %v251
        %v1446 = vpop.permute.xlu0 %1445
        %vm1447 = vcmp.eq.s32.totalorder %v258, %v1446
        %1448 = vset.pattern.permute.xlu0 118
        %1449 = vperm.xlu0 %1448, %v254
        %v1450 = vpop.permute.xlu0 %1449
        %v1452 = vsel %vm1447, %v1450, %v1443
        %1453 = vset.pattern.permute.xlu0 117
        %1454 = vperm.xlu0 %1453, %v251
        %v1455 = vpop.permute.xlu0 %1454
        %vm1456 = vcmp.eq.s32.totalorder %v258, %v1455
        %1457 = vset.pattern.permute.xlu0 117
        %1458 = vperm.xlu0 %1457, %v254
        %v1459 = vpop.permute.xlu0 %1458
        %v1461 = vsel %vm1456, %v1459, %v1452
        %1462 = vset.pattern.permute.xlu0 116
        %1463 = vperm.xlu0 %1462, %v251
        %v1464 = vpop.permute.xlu0 %1463
        %vm1465 = vcmp.eq.s32.totalorder %v258, %v1464
        %1466 = vset.pattern.permute.xlu0 116
        %1467 = vperm.xlu0 %1466, %v254
        %v1468 = vpop.permute.xlu0 %1467
        %v1470 = vsel %vm1465, %v1468, %v1461
        %1471 = vset.pattern.permute.xlu0 115
        %1472 = vperm.xlu0 %1471, %v251
        %v1473 = vpop.permute.xlu0 %1472
        %vm1474 = vcmp.eq.s32.totalorder %v258, %v1473
        %1475 = vset.pattern.permute.xlu0 115
        %1476 = vperm.xlu0 %1475, %v254
        %v1477 = vpop.permute.xlu0 %1476
        %v1479 = vsel %vm1474, %v1477, %v1470
        %1480 = vset.pattern.permute.xlu0 114
        %1481 = vperm.xlu0 %1480, %v251
        %v1482 = vpop.permute.xlu0 %1481
        %vm1483 = vcmp.eq.s32.totalorder %v258, %v1482
        %1484 = vset.pattern.permute.xlu0 114
        %1485 = vperm.xlu0 %1484, %v254
        %v1486 = vpop.permute.xlu0 %1485
        %v1488 = vsel %vm1483, %v1486, %v1479
        %1489 = vset.pattern.permute.xlu0 113
        %1490 = vperm.xlu0 %1489, %v251
        %v1491 = vpop.permute.xlu0 %1490
        %vm1492 = vcmp.eq.s32.totalorder %v258, %v1491
        %1493 = vset.pattern.permute.xlu0 113
        %1494 = vperm.xlu0 %1493, %v254
        %v1495 = vpop.permute.xlu0 %1494
        %v1497 = vsel %vm1492, %v1495, %v1488
        %1498 = vset.pattern.permute.xlu0 112
        %1499 = vperm.xlu0 %1498, %v251
        %v1500 = vpop.permute.xlu0 %1499
        %vm1501 = vcmp.eq.s32.totalorder %v258, %v1500
        %1502 = vset.pattern.permute.xlu0 112
        %1503 = vperm.xlu0 %1502, %v254
        %v1504 = vpop.permute.xlu0 %1503
        %v1506 = vsel %vm1501, %v1504, %v1497
        %v1507 = vadd.f32 %v1434, %v1506
        %1508 = vset.pattern.permute.xlu0 127
        %1509 = vperm.xlu0 %1508, %v251
        %v1510 = vpop.permute.xlu0 %1509
        %vm1511 = vcmp.eq.s32.totalorder %v258, %v1510
        %1512 = vset.pattern.permute.xlu0 127
        %1513 = vperm.xlu0 %1512, %v254
        %v1514 = vpop.permute.xlu0 %1513
        %v1516 = vsel %vm1511, %v1514, 0.0
        %1517 = vset.pattern.permute.xlu0 126
        %1518 = vperm.xlu0 %1517, %v251
        %v1519 = vpop.permute.xlu0 %1518
        %vm1520 = vcmp.eq.s32.totalorder %v258, %v1519
        %1521 = vset.pattern.permute.xlu0 126
        %1522 = vperm.xlu0 %1521, %v254
        %v1523 = vpop.permute.xlu0 %1522
        %v1525 = vsel %vm1520, %v1523, %v1516
        %1526 = vset.pattern.permute.xlu0 125
        %1527 = vperm.xlu0 %1526, %v251
        %v1528 = vpop.permute.xlu0 %1527
        %vm1529 = vcmp.eq.s32.totalorder %v258, %v1528
        %1530 = vset.pattern.permute.xlu0 125
        %1531 = vperm.xlu0 %1530, %v254
        %v1532 = vpop.permute.xlu0 %1531
        %v1534 = vsel %vm1529, %v1532, %v1525
        %1535 = vset.pattern.permute.xlu0 124
        %1536 = vperm.xlu0 %1535, %v251
        %v1537 = vpop.permute.xlu0 %1536
        %vm1538 = vcmp.eq.s32.totalorder %v258, %v1537
        %1539 = vset.pattern.permute.xlu0 124
        %1540 = vperm.xlu0 %1539, %v254
        %v1541 = vpop.permute.xlu0 %1540
        %v1543 = vsel %vm1538, %v1541, %v1534
        %1544 = vset.pattern.permute.xlu0 123
        %1545 = vperm.xlu0 %1544, %v251
        %v1546 = vpop.permute.xlu0 %1545
        %vm1547 = vcmp.eq.s32.totalorder %v258, %v1546
        %1548 = vset.pattern.permute.xlu0 123
        %1549 = vperm.xlu0 %1548, %v254
        %v1550 = vpop.permute.xlu0 %1549
        %v1552 = vsel %vm1547, %v1550, %v1543
        %1553 = vset.pattern.permute.xlu0 122
        %1554 = vperm.xlu0 %1553, %v251
        %v1555 = vpop.permute.xlu0 %1554
        %vm1556 = vcmp.eq.s32.totalorder %v258, %v1555
        %1557 = vset.pattern.permute.xlu0 122
        %1558 = vperm.xlu0 %1557, %v254
        %v1559 = vpop.permute.xlu0 %1558
        %v1561 = vsel %vm1556, %v1559, %v1552
        %1562 = vset.pattern.permute.xlu0 121
        %1563 = vperm.xlu0 %1562, %v251
        %v1564 = vpop.permute.xlu0 %1563
        %vm1565 = vcmp.eq.s32.totalorder %v258, %v1564
        %1566 = vset.pattern.permute.xlu0 121
        %1567 = vperm.xlu0 %1566, %v254
        %v1568 = vpop.permute.xlu0 %1567
        %v1570 = vsel %vm1565, %v1568, %v1561
        %1571 = vset.pattern.permute.xlu0 120
        %1572 = vperm.xlu0 %1571, %v251
        %v1573 = vpop.permute.xlu0 %1572
        %vm1574 = vcmp.eq.s32.totalorder %v258, %v1573
        %1575 = vset.pattern.permute.xlu0 120
        %1576 = vperm.xlu0 %1575, %v254
        %v1577 = vpop.permute.xlu0 %1576
        %v1579 = vsel %vm1574, %v1577, %v1570
        %v1580 = vadd.f32 %v1507, %v1579
        %1582 = vrot.lane.b32.xlu0 %v850, 120
        %v1583 = vpop.permute.xlu0 %1582
        %v1586 = vsel %vm851, %v1580, 0
        %1588 = vmatprep.subr.mxu0 0.0
        %1589 = vmatpush1.msra.mxu0 %v1583
        %1590 = vmatprep.subr.mxu0 0.0
        %1591 = vmatpush1.msra.mxu0 0.0
        %1592 = vmatprep.subr.mxu0 0.0
        %1593 = vmatpush1.msra.mxu0 0.0
        %1594 = vmatprep.subr.mxu0 0.0
        %1595 = vmatpush1.msra.mxu0 0.0
        %1596 = vmatprep.subr.mxu0 0.0
        %1597 = vmatpush1.msra.mxu0 0.0
        %1598 = vmatprep.subr.mxu0 0.0
        %1599 = vmatpush1.msra.mxu0 0.0
        %1600 = vmatprep.subr.mxu0 0.0
        %1601 = vmatpush1.msra.mxu0 0.0
        %1602 = vmatprep.subr.mxu0 0.0
        %1603 = vmatpush1.msra.mxu0 0.0
        %1604 = vmatprep.subr.mxu0 0.0
        %1605 = vmatpush1.msra.mxu0 0.0
        %1606 = vmatprep.subr.mxu0 0.0
        %1607 = vmatpush1.msra.mxu0 0.0
        %1608 = vmatprep.subr.mxu0 0.0
        %1609 = vmatpush1.msra.mxu0 0.0
        %1610 = vmatprep.subr.mxu0 0.0
        %1611 = vmatpush1.msra.mxu0 0.0
        %1612 = vmatprep.subr.mxu0 0.0
        %1613 = vmatpush1.msra.mxu0 0.0
        %1614 = vmatprep.subr.mxu0 0.0
        %1615 = vmatpush1.msra.mxu0 0.0
        %1616 = vmatprep.subr.mxu0 0.0
        %1617 = vmatpush1.msra.mxu0 0.0
        %1618 = vmatprep.subr.mxu0 0.0
        %1619 = vmatpush1.msra.mxu0 0.0
        %1620 = vmatprep.subr.mxu0 0.0
        %1621 = vmatpush1.msra.mxu0 0.0
        %1622 = vmatprep.subr.mxu0 0.0
        %1623 = vmatpush1.msra.mxu0 0.0
        %1624 = vmatprep.subr.mxu0 0.0
        %1625 = vmatpush1.msra.mxu0 0.0
        %1626 = vmatprep.subr.mxu0 0.0
        %1627 = vmatpush1.msra.mxu0 0.0
        %1628 = vmatprep.subr.mxu0 0.0
        %1629 = vmatpush1.msra.mxu0 0.0
        %1630 = vmatprep.subr.mxu0 0.0
        %1631 = vmatpush1.msra.mxu0 0.0
        %1632 = vmatprep.subr.mxu0 0.0
        %1633 = vmatpush1.msra.mxu0 0.0
        %1634 = vmatprep.subr.mxu0 0.0
        %1635 = vmatpush1.msra.mxu0 0.0
        %1636 = vmatprep.subr.mxu0 0.0
        %1637 = vmatpush1.msra.mxu0 0.0
        %1638 = vmatprep.subr.mxu0 0.0
        %1639 = vmatpush1.msra.mxu0 0.0
        %1640 = vmatprep.subr.mxu0 0.0
        %1641 = vmatpush1.msra.mxu0 0.0
        %1642 = vmatprep.subr.mxu0 0.0
        %1643 = vmatpush1.msra.mxu0 0.0
        %1644 = vmatprep.subr.mxu0 0.0
        %1645 = vmatpush1.msra.mxu0 0.0
        %1646 = vmatprep.subr.mxu0 0.0
        %1647 = vmatpush1.msra.mxu0 0.0
        %1648 = vmatprep.subr.mxu0 0.0
        %1649 = vmatpush1.msra.mxu0 0.0
        %1650 = vmatprep.subr.mxu0 0.0
        %1651 = vmatpush1.msra.mxu0 0.0
        %1652 = vmatprep.mubr.f32.mxu0 0.0
        %1653 = vmatmul.mubr.f32.gmra.mrb[0].mxu0 %v1586
        %v1654 = vpop.f32.mrb[0].mxu0
        %v1655 = vadd.f32 0.0, %v1654
        %v1656 = vpop.f32.mrb[0].mxu0
        %1657 = vdwg.mxu0
        %1666 = vrot.lane.b32.xlu0 %v551, 120
        %v1667 = vpop.permute.xlu0 %1666
        %1668 = vrot.lane.b32.xlu0 %v552, 120
        %v1669 = vpop.permute.xlu0 %1668
        %1670 = vrot.lane.b32.xlu0 %v553, 120
        %v1671 = vpop.permute.xlu0 %1670
        %1672 = vrot.lane.b32.xlu0 %v554, 120
        %v1673 = vpop.permute.xlu0 %1672
        %1674 = vrot.lane.b32.xlu0 %v555, 120
        %v1675 = vpop.permute.xlu0 %1674
        %1676 = vrot.lane.b32.xlu0 %v556, 120
        %v1677 = vpop.permute.xlu0 %1676
        %1678 = vrot.lane.b32.xlu0 %v557, 120
        %v1679 = vpop.permute.xlu0 %1678
        %1680 = vrot.lane.b32.xlu0 %v558, 120
        %v1681 = vpop.permute.xlu0 %1680
        %v1691 = vsel %vm925, %v1289, 0
        %1693 = vmatprep.subr.mxu0 0.0
        %1694 = vmatpush1.msra.mxu0 %v1667
        %1695 = vmatprep.subr.mxu0 0.0
        %1696 = vmatpush1.msra.mxu0 %v1669
        %1697 = vmatprep.subr.mxu0 0.0
        %1698 = vmatpush1.msra.mxu0 %v1671
        %1699 = vmatprep.subr.mxu0 0.0
        %1700 = vmatpush1.msra.mxu0 %v1673
        %1701 = vmatprep.subr.mxu0 0.0
        %1702 = vmatpush1.msra.mxu0 %v1675
        %1703 = vmatprep.subr.mxu0 0.0
        %1704 = vmatpush1.msra.mxu0 %v1677
        %1705 = vmatprep.subr.mxu0 0.0
        %1706 = vmatpush1.msra.mxu0 %v1679
        %1707 = vmatprep.subr.mxu0 0.0
        %1708 = vmatpush1.msra.mxu0 %v1681
        %1709 = vmatprep.subr.mxu0 0.0
        %1710 = vmatpush1.msra.mxu0 0.0
        %1711 = vmatprep.subr.mxu0 0.0
        %1712 = vmatpush1.msra.mxu0 0.0
        %1713 = vmatprep.subr.mxu0 0.0
        %1714 = vmatpush1.msra.mxu0 0.0
        %1715 = vmatprep.subr.mxu0 0.0
        %1716 = vmatpush1.msra.mxu0 0.0
        %1717 = vmatprep.subr.mxu0 0.0
        %1718 = vmatpush1.msra.mxu0 0.0
        %1719 = vmatprep.subr.mxu0 0.0
        %1720 = vmatpush1.msra.mxu0 0.0
        %1721 = vmatprep.subr.mxu0 0.0
        %1722 = vmatpush1.msra.mxu0 0.0
        %1723 = vmatprep.subr.mxu0 0.0
        %1724 = vmatpush1.msra.mxu0 0.0
        %1725 = vmatprep.subr.mxu0 0.0
        %1726 = vmatpush1.msra.mxu0 0.0
        %1727 = vmatprep.subr.mxu0 0.0
        %1728 = vmatpush1.msra.mxu0 0.0
        %1729 = vmatprep.subr.mxu0 0.0
        %1730 = vmatpush1.msra.mxu0 0.0
        %1731 = vmatprep.subr.mxu0 0.0
        %1732 = vmatpush1.msra.mxu0 0.0
        %1733 = vmatprep.subr.mxu0 0.0
        %1734 = vmatpush1.msra.mxu0 0.0
        %1735 = vmatprep.subr.mxu0 0.0
        %1736 = vmatpush1.msra.mxu0 0.0
        %1737 = vmatprep.subr.mxu0 0.0
        %1738 = vmatpush1.msra.mxu0 0.0
        %1739 = vmatprep.subr.mxu0 0.0
        %1740 = vmatpush1.msra.mxu0 0.0
        %1741 = vmatprep.subr.mxu0 0.0
        %1742 = vmatpush1.msra.mxu0 0.0
        %1743 = vmatprep.subr.mxu0 0.0
        %1744 = vmatpush1.msra.mxu0 0.0
        %1745 = vmatprep.subr.mxu0 0.0
        %1746 = vmatpush1.msra.mxu0 0.0
        %1747 = vmatprep.subr.mxu0 0.0
        %1748 = vmatpush1.msra.mxu0 0.0
        %1749 = vmatprep.subr.mxu0 0.0
        %1750 = vmatpush1.msra.mxu0 0.0
        %1751 = vmatprep.subr.mxu0 0.0
        %1752 = vmatpush1.msra.mxu0 0.0
        %1753 = vmatprep.subr.mxu0 0.0
        %1754 = vmatpush1.msra.mxu0 0.0
        %1755 = vmatprep.subr.mxu0 0.0
        %1756 = vmatpush1.msra.mxu0 0.0
        %1757 = vmatprep.mubr.f32.mxu0 0.0
        %1758 = vmatmul.mubr.f32.gmra.mrb[0].mxu0 %v1691
        %v1759 = vpop.f32.mrb[0].mxu0
        %v1760 = vadd.f32 %v1655, %v1759
        %v1761 = vpop.f32.mrb[0].mxu0
        %1762 = vdwg.mxu0
        %1763 = vset.pattern.permute.xlu0 7
        %1764 = vperm.xlu0 %1763, %v252
        %v1765 = vpop.permute.xlu0 %1764
        %vm1766 = vcmp.eq.s32.totalorder %v258, %v1765
        %1768 = vset.pattern.permute.xlu0 7
        %1769 = vperm.xlu0 %1768, %v255
        %v1770 = vpop.permute.xlu0 %1769
        %v1772 = vsel %vm1766, %v1770, 0.0
        %1773 = vset.pattern.permute.xlu0 6
        %1774 = vperm.xlu0 %1773, %v252
        %v1775 = vpop.permute.xlu0 %1774
        %vm1776 = vcmp.eq.s32.totalorder %v258, %v1775
        %1777 = vset.pattern.permute.xlu0 6
        %1778 = vperm.xlu0 %1777, %v255
        %v1779 = vpop.permute.xlu0 %1778
        %v1781 = vsel %vm1776, %v1779, %v1772
        %1782 = vset.pattern.permute.xlu0 5
        %1783 = vperm.xlu0 %1782, %v252
        %v1784 = vpop.permute.xlu0 %1783
        %vm1785 = vcmp.eq.s32.totalorder %v258, %v1784
        %1786 = vset.pattern.permute.xlu0 5
        %1787 = vperm.xlu0 %1786, %v255
        %v1788 = vpop.permute.xlu0 %1787
        %v1790 = vsel %vm1785, %v1788, %v1781
        %1791 = vset.pattern.permute.xlu0 4
        %1792 = vperm.xlu0 %1791, %v252
        %v1793 = vpop.permute.xlu0 %1792
        %vm1794 = vcmp.eq.s32.totalorder %v258, %v1793
        %1795 = vset.pattern.permute.xlu0 4
        %1796 = vperm.xlu0 %1795, %v255
        %v1797 = vpop.permute.xlu0 %1796
        %v1799 = vsel %vm1794, %v1797, %v1790
        %1800 = vset.pattern.permute.xlu0 3
        %1801 = vperm.xlu0 %1800, %v252
        %v1802 = vpop.permute.xlu0 %1801
        %vm1803 = vcmp.eq.s32.totalorder %v258, %v1802
        %1804 = vset.pattern.permute.xlu0 3
        %1805 = vperm.xlu0 %1804, %v255
        %v1806 = vpop.permute.xlu0 %1805
        %v1808 = vsel %vm1803, %v1806, %v1799
        %1809 = vset.pattern.permute.xlu0 2
        %1810 = vperm.xlu0 %1809, %v252
        %v1811 = vpop.permute.xlu0 %1810
        %vm1812 = vcmp.eq.s32.totalorder %v258, %v1811
        %1813 = vset.pattern.permute.xlu0 2
        %1814 = vperm.xlu0 %1813, %v255
        %v1815 = vpop.permute.xlu0 %1814
        %v1817 = vsel %vm1812, %v1815, %v1808
        %1818 = vset.pattern.permute.xlu0 1
        %1819 = vperm.xlu0 %1818, %v252
        %v1820 = vpop.permute.xlu0 %1819
        %vm1821 = vcmp.eq.s32.totalorder %v258, %v1820
        %1822 = vset.pattern.permute.xlu0 1
        %1823 = vperm.xlu0 %1822, %v255
        %v1824 = vpop.permute.xlu0 %1823
        %v1826 = vsel %vm1821, %v1824, %v1817
        %1827 = vset.pattern.permute.xlu0 0
        %1828 = vperm.xlu0 %1827, %v252
        %v1829 = vpop.permute.xlu0 %1828
        %vm1830 = vcmp.eq.s32.totalorder %v258, %v1829
        %1831 = vset.pattern.permute.xlu0 0
        %1832 = vperm.xlu0 %1831, %v255
        %v1833 = vpop.permute.xlu0 %1832
        %v1835 = vsel %vm1830, %v1833, %v1826
        %1836 = vset.pattern.permute.xlu0 15
        %1837 = vperm.xlu0 %1836, %v252
        %v1838 = vpop.permute.xlu0 %1837
        %vm1839 = vcmp.eq.s32.totalorder %v258, %v1838
        %1840 = vset.pattern.permute.xlu0 15
        %1841 = vperm.xlu0 %1840, %v255
        %v1842 = vpop.permute.xlu0 %1841
        %v1844 = vsel %vm1839, %v1842, 0.0
        %1845 = vset.pattern.permute.xlu0 14
        %1846 = vperm.xlu0 %1845, %v252
        %v1847 = vpop.permute.xlu0 %1846
        %vm1848 = vcmp.eq.s32.totalorder %v258, %v1847
        %1849 = vset.pattern.permute.xlu0 14
        %1850 = vperm.xlu0 %1849, %v255
        %v1851 = vpop.permute.xlu0 %1850
        %v1853 = vsel %vm1848, %v1851, %v1844
        %1854 = vset.pattern.permute.xlu0 13
        %1855 = vperm.xlu0 %1854, %v252
        %v1856 = vpop.permute.xlu0 %1855
        %vm1857 = vcmp.eq.s32.totalorder %v258, %v1856
        %1858 = vset.pattern.permute.xlu0 13
        %1859 = vperm.xlu0 %1858, %v255
        %v1860 = vpop.permute.xlu0 %1859
        %v1862 = vsel %vm1857, %v1860, %v1853
        %1863 = vset.pattern.permute.xlu0 12
        %1864 = vperm.xlu0 %1863, %v252
        %v1865 = vpop.permute.xlu0 %1864
        %vm1866 = vcmp.eq.s32.totalorder %v258, %v1865
        %1867 = vset.pattern.permute.xlu0 12
        %1868 = vperm.xlu0 %1867, %v255
        %v1869 = vpop.permute.xlu0 %1868
        %v1871 = vsel %vm1866, %v1869, %v1862
        %1872 = vset.pattern.permute.xlu0 11
        %1873 = vperm.xlu0 %1872, %v252
        %v1874 = vpop.permute.xlu0 %1873
        %vm1875 = vcmp.eq.s32.totalorder %v258, %v1874
        %1876 = vset.pattern.permute.xlu0 11
        %1877 = vperm.xlu0 %1876, %v255
        %v1878 = vpop.permute.xlu0 %1877
        %v1880 = vsel %vm1875, %v1878, %v1871
        %1881 = vset.pattern.permute.xlu0 10
        %1882 = vperm.xlu0 %1881, %v252
        %v1883 = vpop.permute.xlu0 %1882
        %vm1884 = vcmp.eq.s32.totalorder %v258, %v1883
        %1885 = vset.pattern.permute.xlu0 10
        %1886 = vperm.xlu0 %1885, %v255
        %v1887 = vpop.permute.xlu0 %1886
        %v1889 = vsel %vm1884, %v1887, %v1880
        %1890 = vset.pattern.permute.xlu0 9
        %1891 = vperm.xlu0 %1890, %v252
        %v1892 = vpop.permute.xlu0 %1891
        %vm1893 = vcmp.eq.s32.totalorder %v258, %v1892
        %1894 = vset.pattern.permute.xlu0 9
        %1895 = vperm.xlu0 %1894, %v255
        %v1896 = vpop.permute.xlu0 %1895
        %v1898 = vsel %vm1893, %v1896, %v1889
        %1899 = vset.pattern.permute.xlu0 8
        %1900 = vperm.xlu0 %1899, %v252
        %v1901 = vpop.permute.xlu0 %1900
        %vm1902 = vcmp.eq.s32.totalorder %v258, %v1901
        %1903 = vset.pattern.permute.xlu0 8
        %1904 = vperm.xlu0 %1903, %v255
        %v1905 = vpop.permute.xlu0 %1904
        %v1907 = vsel %vm1902, %v1905, %v1898
        %v1908 = vadd.f32 %v1835, %v1907
        %1909 = vset.pattern.permute.xlu0 23
        %1910 = vperm.xlu0 %1909, %v252
        %v1911 = vpop.permute.xlu0 %1910
        %vm1912 = vcmp.eq.s32.totalorder %v258, %v1911
        %1913 = vset.pattern.permute.xlu0 23
        %1914 = vperm.xlu0 %1913, %v255
        %v1915 = vpop.permute.xlu0 %1914
        %v1917 = vsel %vm1912, %v1915, 0.0
        %1918 = vset.pattern.permute.xlu0 22
        %1919 = vperm.xlu0 %1918, %v252
        %v1920 = vpop.permute.xlu0 %1919
        %vm1921 = vcmp.eq.s32.totalorder %v258, %v1920
        %1922 = vset.pattern.permute.xlu0 22
        %1923 = vperm.xlu0 %1922, %v255
        %v1924 = vpop.permute.xlu0 %1923
        %v1926 = vsel %vm1921, %v1924, %v1917
        %1927 = vset.pattern.permute.xlu0 21
        %1928 = vperm.xlu0 %1927, %v252
        %v1929 = vpop.permute.xlu0 %1928
        %vm1930 = vcmp.eq.s32.totalorder %v258, %v1929
        %1931 = vset.pattern.permute.xlu0 21
        %1932 = vperm.xlu0 %1931, %v255
        %v1933 = vpop.permute.xlu0 %1932
        %v1935 = vsel %vm1930, %v1933, %v1926
        %1936 = vset.pattern.permute.xlu0 20
        %1937 = vperm.xlu0 %1936, %v252
        %v1938 = vpop.permute.xlu0 %1937
        %vm1939 = vcmp.eq.s32.totalorder %v258, %v1938
        %1940 = vset.pattern.permute.xlu0 20
        %1941 = vperm.xlu0 %1940, %v255
        %v1942 = vpop.permute.xlu0 %1941
        %v1944 = vsel %vm1939, %v1942, %v1935
        %1945 = vset.pattern.permute.xlu0 19
        %1946 = vperm.xlu0 %1945, %v252
        %v1947 = vpop.permute.xlu0 %1946
        %vm1948 = vcmp.eq.s32.totalorder %v258, %v1947
        %1949 = vset.pattern.permute.xlu0 19
        %1950 = vperm.xlu0 %1949, %v255
        %v1951 = vpop.permute.xlu0 %1950
        %v1953 = vsel %vm1948, %v1951, %v1944
        %1954 = vset.pattern.permute.xlu0 18
        %1955 = vperm.xlu0 %1954, %v252
        %v1956 = vpop.permute.xlu0 %1955
        %vm1957 = vcmp.eq.s32.totalorder %v258, %v1956
        %1958 = vset.pattern.permute.xlu0 18
        %1959 = vperm.xlu0 %1958, %v255
        %v1960 = vpop.permute.xlu0 %1959
        %v1962 = vsel %vm1957, %v1960, %v1953
        %1963 = vset.pattern.permute.xlu0 17
        %1964 = vperm.xlu0 %1963, %v252
        %v1965 = vpop.permute.xlu0 %1964
        %vm1966 = vcmp.eq.s32.totalorder %v258, %v1965
        %1967 = vset.pattern.permute.xlu0 17
        %1968 = vperm.xlu0 %1967, %v255
        %v1969 = vpop.permute.xlu0 %1968
        %v1971 = vsel %vm1966, %v1969, %v1962
        %1972 = vset.pattern.permute.xlu0 16
        %1973 = vperm.xlu0 %1972, %v252
        %v1974 = vpop.permute.xlu0 %1973
        %vm1975 = vcmp.eq.s32.totalorder %v258, %v1974
        %1976 = vset.pattern.permute.xlu0 16
        %1977 = vperm.xlu0 %1976, %v255
        %v1978 = vpop.permute.xlu0 %1977
        %v1980 = vsel %vm1975, %v1978, %v1971
        %v1981 = vadd.f32 %v1908, %v1980
        %1982 = vset.pattern.permute.xlu0 31
        %1983 = vperm.xlu0 %1982, %v252
        %v1984 = vpop.permute.xlu0 %1983
        %vm1985 = vcmp.eq.s32.totalorder %v258, %v1984
        %1986 = vset.pattern.permute.xlu0 31
        %1987 = vperm.xlu0 %1986, %v255
        %v1988 = vpop.permute.xlu0 %1987
        %v1990 = vsel %vm1985, %v1988, 0.0
        %1991 = vset.pattern.permute.xlu0 30
        %1992 = vperm.xlu0 %1991, %v252
        %v1993 = vpop.permute.xlu0 %1992
        %vm1994 = vcmp.eq.s32.totalorder %v258, %v1993
        %1995 = vset.pattern.permute.xlu0 30
        %1996 = vperm.xlu0 %1995, %v255
        %v1997 = vpop.permute.xlu0 %1996
        %v1999 = vsel %vm1994, %v1997, %v1990
        %2000 = vset.pattern.permute.xlu0 29
        %2001 = vperm.xlu0 %2000, %v252
        %v2002 = vpop.permute.xlu0 %2001
        %vm2003 = vcmp.eq.s32.totalorder %v258, %v2002
        %2004 = vset.pattern.permute.xlu0 29
        %2005 = vperm.xlu0 %2004, %v255
        %v2006 = vpop.permute.xlu0 %2005
        %v2008 = vsel %vm2003, %v2006, %v1999
        %2009 = vset.pattern.permute.xlu0 28
        %2010 = vperm.xlu0 %2009, %v252
        %v2011 = vpop.permute.xlu0 %2010
        %vm2012 = vcmp.eq.s32.totalorder %v258, %v2011
        %2013 = vset.pattern.permute.xlu0 28
        %2014 = vperm.xlu0 %2013, %v255
        %v2015 = vpop.permute.xlu0 %2014
        %v2017 = vsel %vm2012, %v2015, %v2008
        %2018 = vset.pattern.permute.xlu0 27
        %2019 = vperm.xlu0 %2018, %v252
        %v2020 = vpop.permute.xlu0 %2019
        %vm2021 = vcmp.eq.s32.totalorder %v258, %v2020
        %2022 = vset.pattern.permute.xlu0 27
        %2023 = vperm.xlu0 %2022, %v255
        %v2024 = vpop.permute.xlu0 %2023
        %v2026 = vsel %vm2021, %v2024, %v2017
        %2027 = vset.pattern.permute.xlu0 26
        %2028 = vperm.xlu0 %2027, %v252
        %v2029 = vpop.permute.xlu0 %2028
        %vm2030 = vcmp.eq.s32.totalorder %v258, %v2029
        %2031 = vset.pattern.permute.xlu0 26
        %2032 = vperm.xlu0 %2031, %v255
        %v2033 = vpop.permute.xlu0 %2032
        %v2035 = vsel %vm2030, %v2033, %v2026
        %2036 = vset.pattern.permute.xlu0 25
        %2037 = vperm.xlu0 %2036, %v252
        %v2038 = vpop.permute.xlu0 %2037
        %vm2039 = vcmp.eq.s32.totalorder %v258, %v2038
        %2040 = vset.pattern.permute.xlu0 25
        %2041 = vperm.xlu0 %2040, %v255
        %v2042 = vpop.permute.xlu0 %2041
        %v2044 = vsel %vm2039, %v2042, %v2035
        %2045 = vset.pattern.permute.xlu0 24
        %2046 = vperm.xlu0 %2045, %v252
        %v2047 = vpop.permute.xlu0 %2046
        %vm2048 = vcmp.eq.s32.totalorder %v258, %v2047
        %2049 = vset.pattern.permute.xlu0 24
        %2050 = vperm.xlu0 %2049, %v255
        %v2051 = vpop.permute.xlu0 %2050
        %v2053 = vsel %vm2048, %v2051, %v2044
        %v2054 = vadd.f32 %v1981, %v2053
        %2055 = vset.pattern.permute.xlu0 39
        %2056 = vperm.xlu0 %2055, %v252
        %v2057 = vpop.permute.xlu0 %2056
        %vm2058 = vcmp.eq.s32.totalorder %v258, %v2057
        %2059 = vset.pattern.permute.xlu0 39
        %2060 = vperm.xlu0 %2059, %v255
        %v2061 = vpop.permute.xlu0 %2060
        %v2063 = vsel %vm2058, %v2061, 0.0
        %2064 = vset.pattern.permute.xlu0 38
        %2065 = vperm.xlu0 %2064, %v252
        %v2066 = vpop.permute.xlu0 %2065
        %vm2067 = vcmp.eq.s32.totalorder %v258, %v2066
        %2068 = vset.pattern.permute.xlu0 38
        %2069 = vperm.xlu0 %2068, %v255
        %v2070 = vpop.permute.xlu0 %2069
        %v2072 = vsel %vm2067, %v2070, %v2063
        %2073 = vset.pattern.permute.xlu0 37
        %2074 = vperm.xlu0 %2073, %v252
        %v2075 = vpop.permute.xlu0 %2074
        %vm2076 = vcmp.eq.s32.totalorder %v258, %v2075
        %2077 = vset.pattern.permute.xlu0 37
        %2078 = vperm.xlu0 %2077, %v255
        %v2079 = vpop.permute.xlu0 %2078
        %v2081 = vsel %vm2076, %v2079, %v2072
        %2082 = vset.pattern.permute.xlu0 36
        %2083 = vperm.xlu0 %2082, %v252
        %v2084 = vpop.permute.xlu0 %2083
        %vm2085 = vcmp.eq.s32.totalorder %v258, %v2084
        %2086 = vset.pattern.permute.xlu0 36
        %2087 = vperm.xlu0 %2086, %v255
        %v2088 = vpop.permute.xlu0 %2087
        %v2090 = vsel %vm2085, %v2088, %v2081
        %2091 = vset.pattern.permute.xlu0 35
        %2092 = vperm.xlu0 %2091, %v252
        %v2093 = vpop.permute.xlu0 %2092
        %vm2094 = vcmp.eq.s32.totalorder %v258, %v2093
        %2095 = vset.pattern.permute.xlu0 35
        %2096 = vperm.xlu0 %2095, %v255
        %v2097 = vpop.permute.xlu0 %2096
        %v2099 = vsel %vm2094, %v2097, %v2090
        %2100 = vset.pattern.permute.xlu0 34
        %2101 = vperm.xlu0 %2100, %v252
        %v2102 = vpop.permute.xlu0 %2101
        %vm2103 = vcmp.eq.s32.totalorder %v258, %v2102
        %2104 = vset.pattern.permute.xlu0 34
        %2105 = vperm.xlu0 %2104, %v255
        %v2106 = vpop.permute.xlu0 %2105
        %v2108 = vsel %vm2103, %v2106, %v2099
        %2109 = vset.pattern.permute.xlu0 33
        %2110 = vperm.xlu0 %2109, %v252
        %v2111 = vpop.permute.xlu0 %2110
        %vm2112 = vcmp.eq.s32.totalorder %v258, %v2111
        %2113 = vset.pattern.permute.xlu0 33
        %2114 = vperm.xlu0 %2113, %v255
        %v2115 = vpop.permute.xlu0 %2114
        %v2117 = vsel %vm2112, %v2115, %v2108
        %2118 = vset.pattern.permute.xlu0 32
        %2119 = vperm.xlu0 %2118, %v252
        %v2120 = vpop.permute.xlu0 %2119
        %vm2121 = vcmp.eq.s32.totalorder %v258, %v2120
        %2122 = vset.pattern.permute.xlu0 32
        %2123 = vperm.xlu0 %2122, %v255
        %v2124 = vpop.permute.xlu0 %2123
        %v2126 = vsel %vm2121, %v2124, %v2117
        %2127 = vset.pattern.permute.xlu0 47
        %2128 = vperm.xlu0 %2127, %v252
        %v2129 = vpop.permute.xlu0 %2128
        %vm2130 = vcmp.eq.s32.totalorder %v258, %v2129
        %2131 = vset.pattern.permute.xlu0 47
        %2132 = vperm.xlu0 %2131, %v255
        %v2133 = vpop.permute.xlu0 %2132
        %v2135 = vsel %vm2130, %v2133, 0.0
        %2136 = vset.pattern.permute.xlu0 46
        %2137 = vperm.xlu0 %2136, %v252
        %v2138 = vpop.permute.xlu0 %2137
        %vm2139 = vcmp.eq.s32.totalorder %v258, %v2138
        %2140 = vset.pattern.permute.xlu0 46
        %2141 = vperm.xlu0 %2140, %v255
        %v2142 = vpop.permute.xlu0 %2141
        %v2144 = vsel %vm2139, %v2142, %v2135
        %2145 = vset.pattern.permute.xlu0 45
        %2146 = vperm.xlu0 %2145, %v252
        %v2147 = vpop.permute.xlu0 %2146
        %vm2148 = vcmp.eq.s32.totalorder %v258, %v2147
        %2149 = vset.pattern.permute.xlu0 45
        %2150 = vperm.xlu0 %2149, %v255
        %v2151 = vpop.permute.xlu0 %2150
        %v2153 = vsel %vm2148, %v2151, %v2144
        %2154 = vset.pattern.permute.xlu0 44
        %2155 = vperm.xlu0 %2154, %v252
        %v2156 = vpop.permute.xlu0 %2155
        %vm2157 = vcmp.eq.s32.totalorder %v258, %v2156
        %2158 = vset.pattern.permute.xlu0 44
        %2159 = vperm.xlu0 %2158, %v255
        %v2160 = vpop.permute.xlu0 %2159
        %v2162 = vsel %vm2157, %v2160, %v2153
        %2163 = vset.pattern.permute.xlu0 43
        %2164 = vperm.xlu0 %2163, %v252
        %v2165 = vpop.permute.xlu0 %2164
        %vm2166 = vcmp.eq.s32.totalorder %v258, %v2165
        %2167 = vset.pattern.permute.xlu0 43
        %2168 = vperm.xlu0 %2167, %v255
        %v2169 = vpop.permute.xlu0 %2168
        %v2171 = vsel %vm2166, %v2169, %v2162
        %2172 = vset.pattern.permute.xlu0 42
        %2173 = vperm.xlu0 %2172, %v252
        %v2174 = vpop.permute.xlu0 %2173
        %vm2175 = vcmp.eq.s32.totalorder %v258, %v2174
        %2176 = vset.pattern.permute.xlu0 42
        %2177 = vperm.xlu0 %2176, %v255
        %v2178 = vpop.permute.xlu0 %2177
        %v2180 = vsel %vm2175, %v2178, %v2171
        %2181 = vset.pattern.permute.xlu0 41
        %2182 = vperm.xlu0 %2181, %v252
        %v2183 = vpop.permute.xlu0 %2182
        %vm2184 = vcmp.eq.s32.totalorder %v258, %v2183
        %2185 = vset.pattern.permute.xlu0 41
        %2186 = vperm.xlu0 %2185, %v255
        %v2187 = vpop.permute.xlu0 %2186
        %v2189 = vsel %vm2184, %v2187, %v2180
        %2190 = vset.pattern.permute.xlu0 40
        %2191 = vperm.xlu0 %2190, %v252
        %v2192 = vpop.permute.xlu0 %2191
        %vm2193 = vcmp.eq.s32.totalorder %v258, %v2192
        %2194 = vset.pattern.permute.xlu0 40
        %2195 = vperm.xlu0 %2194, %v255
        %v2196 = vpop.permute.xlu0 %2195
        %v2198 = vsel %vm2193, %v2196, %v2189
        %v2199 = vadd.f32 %v2126, %v2198
        %2200 = vset.pattern.permute.xlu0 55
        %2201 = vperm.xlu0 %2200, %v252
        %v2202 = vpop.permute.xlu0 %2201
        %vm2203 = vcmp.eq.s32.totalorder %v258, %v2202
        %2204 = vset.pattern.permute.xlu0 55
        %2205 = vperm.xlu0 %2204, %v255
        %v2206 = vpop.permute.xlu0 %2205
        %v2208 = vsel %vm2203, %v2206, 0.0
        %2209 = vset.pattern.permute.xlu0 54
        %2210 = vperm.xlu0 %2209, %v252
        %v2211 = vpop.permute.xlu0 %2210
        %vm2212 = vcmp.eq.s32.totalorder %v258, %v2211
        %2213 = vset.pattern.permute.xlu0 54
        %2214 = vperm.xlu0 %2213, %v255
        %v2215 = vpop.permute.xlu0 %2214
        %v2217 = vsel %vm2212, %v2215, %v2208
        %2218 = vset.pattern.permute.xlu0 53
        %2219 = vperm.xlu0 %2218, %v252
        %v2220 = vpop.permute.xlu0 %2219
        %vm2221 = vcmp.eq.s32.totalorder %v258, %v2220
        %2222 = vset.pattern.permute.xlu0 53
        %2223 = vperm.xlu0 %2222, %v255
        %v2224 = vpop.permute.xlu0 %2223
        %v2226 = vsel %vm2221, %v2224, %v2217
        %2227 = vset.pattern.permute.xlu0 52
        %2228 = vperm.xlu0 %2227, %v252
        %v2229 = vpop.permute.xlu0 %2228
        %vm2230 = vcmp.eq.s32.totalorder %v258, %v2229
        %2231 = vset.pattern.permute.xlu0 52
        %2232 = vperm.xlu0 %2231, %v255
        %v2233 = vpop.permute.xlu0 %2232
        %v2235 = vsel %vm2230, %v2233, %v2226
        %2236 = vset.pattern.permute.xlu0 51
        %2237 = vperm.xlu0 %2236, %v252
        %v2238 = vpop.permute.xlu0 %2237
        %vm2239 = vcmp.eq.s32.totalorder %v258, %v2238
        %2240 = vset.pattern.permute.xlu0 51
        %2241 = vperm.xlu0 %2240, %v255
        %v2242 = vpop.permute.xlu0 %2241
        %v2244 = vsel %vm2239, %v2242, %v2235
        %2245 = vset.pattern.permute.xlu0 50
        %2246 = vperm.xlu0 %2245, %v252
        %v2247 = vpop.permute.xlu0 %2246
        %vm2248 = vcmp.eq.s32.totalorder %v258, %v2247
        %2249 = vset.pattern.permute.xlu0 50
        %2250 = vperm.xlu0 %2249, %v255
        %v2251 = vpop.permute.xlu0 %2250
        %v2253 = vsel %vm2248, %v2251, %v2244
        %2254 = vset.pattern.permute.xlu0 49
        %2255 = vperm.xlu0 %2254, %v252
        %v2256 = vpop.permute.xlu0 %2255
        %vm2257 = vcmp.eq.s32.totalorder %v258, %v2256
        %2258 = vset.pattern.permute.xlu0 49
        %2259 = vperm.xlu0 %2258, %v255
        %v2260 = vpop.permute.xlu0 %2259
        %v2262 = vsel %vm2257, %v2260, %v2253
        %2263 = vset.pattern.permute.xlu0 48
        %2264 = vperm.xlu0 %2263, %v252
        %v2265 = vpop.permute.xlu0 %2264
        %vm2266 = vcmp.eq.s32.totalorder %v258, %v2265
        %2267 = vset.pattern.permute.xlu0 48
        %2268 = vperm.xlu0 %2267, %v255
        %v2269 = vpop.permute.xlu0 %2268
        %v2271 = vsel %vm2266, %v2269, %v2262
        %v2272 = vadd.f32 %v2199, %v2271
        %2273 = vset.pattern.permute.xlu0 63
        %2274 = vperm.xlu0 %2273, %v252
        %v2275 = vpop.permute.xlu0 %2274
        %vm2276 = vcmp.eq.s32.totalorder %v258, %v2275
        %2277 = vset.pattern.permute.xlu0 63
        %2278 = vperm.xlu0 %2277, %v255
        %v2279 = vpop.permute.xlu0 %2278
        %v2281 = vsel %vm2276, %v2279, 0.0
        %2282 = vset.pattern.permute.xlu0 62
        %2283 = vperm.xlu0 %2282, %v252
        %v2284 = vpop.permute.xlu0 %2283
        %vm2285 = vcmp.eq.s32.totalorder %v258, %v2284
        %2286 = vset.pattern.permute.xlu0 62
        %2287 = vperm.xlu0 %2286, %v255
        %v2288 = vpop.permute.xlu0 %2287
        %v2290 = vsel %vm2285, %v2288, %v2281
        %2291 = vset.pattern.permute.xlu0 61
        %2292 = vperm.xlu0 %2291, %v252
        %v2293 = vpop.permute.xlu0 %2292
        %vm2294 = vcmp.eq.s32.totalorder %v258, %v2293
        %2295 = vset.pattern.permute.xlu0 61
        %2296 = vperm.xlu0 %2295, %v255
        %v2297 = vpop.permute.xlu0 %2296
        %v2299 = vsel %vm2294, %v2297, %v2290
        %2300 = vset.pattern.permute.xlu0 60
        %2301 = vperm.xlu0 %2300, %v252
        %v2302 = vpop.permute.xlu0 %2301
        %vm2303 = vcmp.eq.s32.totalorder %v258, %v2302
        %2304 = vset.pattern.permute.xlu0 60
        %2305 = vperm.xlu0 %2304, %v255
        %v2306 = vpop.permute.xlu0 %2305
        %v2308 = vsel %vm2303, %v2306, %v2299
        %2309 = vset.pattern.permute.xlu0 59
        %2310 = vperm.xlu0 %2309, %v252
        %v2311 = vpop.permute.xlu0 %2310
        %vm2312 = vcmp.eq.s32.totalorder %v258, %v2311
        %2313 = vset.pattern.permute.xlu0 59
        %2314 = vperm.xlu0 %2313, %v255
        %v2315 = vpop.permute.xlu0 %2314
        %v2317 = vsel %vm2312, %v2315, %v2308
        %2318 = vset.pattern.permute.xlu0 58
        %2319 = vperm.xlu0 %2318, %v252
        %v2320 = vpop.permute.xlu0 %2319
        %vm2321 = vcmp.eq.s32.totalorder %v258, %v2320
        %2322 = vset.pattern.permute.xlu0 58
        %2323 = vperm.xlu0 %2322, %v255
        %v2324 = vpop.permute.xlu0 %2323
        %v2326 = vsel %vm2321, %v2324, %v2317
        %2327 = vset.pattern.permute.xlu0 57
        %2328 = vperm.xlu0 %2327, %v252
        %v2329 = vpop.permute.xlu0 %2328
        %vm2330 = vcmp.eq.s32.totalorder %v258, %v2329
        %2331 = vset.pattern.permute.xlu0 57
        %2332 = vperm.xlu0 %2331, %v255
        %v2333 = vpop.permute.xlu0 %2332
        %v2335 = vsel %vm2330, %v2333, %v2326
        %2336 = vset.pattern.permute.xlu0 56
        %2337 = vperm.xlu0 %2336, %v252
        %v2338 = vpop.permute.xlu0 %2337
        %vm2339 = vcmp.eq.s32.totalorder %v258, %v2338
        %2340 = vset.pattern.permute.xlu0 56
        %2341 = vperm.xlu0 %2340, %v255
        %v2342 = vpop.permute.xlu0 %2341
        %v2344 = vsel %vm2339, %v2342, %v2335
        %v2345 = vadd.f32 %v2272, %v2344
        %2346 = vrot.lane.b32.xlu0 %v850, 112
        %v2347 = vpop.permute.xlu0 %2346
        %v2350 = vsel %vm851, %v2345, 0
        %2352 = vmatprep.subr.mxu0 0.0
        %2353 = vmatpush1.msra.mxu0 %v2347
        %2354 = vmatprep.subr.mxu0 0.0
        %2355 = vmatpush1.msra.mxu0 0.0
        %2356 = vmatprep.subr.mxu0 0.0
        %2357 = vmatpush1.msra.mxu0 0.0
        %2358 = vmatprep.subr.mxu0 0.0
        %2359 = vmatpush1.msra.mxu0 0.0
        %2360 = vmatprep.subr.mxu0 0.0
        %2361 = vmatpush1.msra.mxu0 0.0
        %2362 = vmatprep.subr.mxu0 0.0
        %2363 = vmatpush1.msra.mxu0 0.0
        %2364 = vmatprep.subr.mxu0 0.0
        %2365 = vmatpush1.msra.mxu0 0.0
        %2366 = vmatprep.subr.mxu0 0.0
        %2367 = vmatpush1.msra.mxu0 0.0
        %2368 = vmatprep.subr.mxu0 0.0
        %2369 = vmatpush1.msra.mxu0 0.0
        %2370 = vmatprep.subr.mxu0 0.0
        %2371 = vmatpush1.msra.mxu0 0.0
        %2372 = vmatprep.subr.mxu0 0.0
        %2373 = vmatpush1.msra.mxu0 0.0
        %2374 = vmatprep.subr.mxu0 0.0
        %2375 = vmatpush1.msra.mxu0 0.0
        %2376 = vmatprep.subr.mxu0 0.0
        %2377 = vmatpush1.msra.mxu0 0.0
        %2378 = vmatprep.subr.mxu0 0.0
        %2379 = vmatpush1.msra.mxu0 0.0
        %2380 = vmatprep.subr.mxu0 0.0
        %2381 = vmatpush1.msra.mxu0 0.0
        %2382 = vmatprep.subr.mxu0 0.0
        %2383 = vmatpush1.msra.mxu0 0.0
        %2384 = vmatprep.subr.mxu0 0.0
        %2385 = vmatpush1.msra.mxu0 0.0
        %2386 = vmatprep.subr.mxu0 0.0
        %2387 = vmatpush1.msra.mxu0 0.0
        %2388 = vmatprep.subr.mxu0 0.0
        %2389 = vmatpush1.msra.mxu0 0.0
        %2390 = vmatprep.subr.mxu0 0.0
        %2391 = vmatpush1.msra.mxu0 0.0
        %2392 = vmatprep.subr.mxu0 0.0
        %2393 = vmatpush1.msra.mxu0 0.0
        %2394 = vmatprep.subr.mxu0 0.0
        %2395 = vmatpush1.msra.mxu0 0.0
        %2396 = vmatprep.subr.mxu0 0.0
        %2397 = vmatpush1.msra.mxu0 0.0
        %2398 = vmatprep.subr.mxu0 0.0
        %2399 = vmatpush1.msra.mxu0 0.0
        %2400 = vmatprep.subr.mxu0 0.0
        %2401 = vmatpush1.msra.mxu0 0.0
        %2402 = vmatprep.subr.mxu0 0.0
        %2403 = vmatpush1.msra.mxu0 0.0
        %2404 = vmatprep.subr.mxu0 0.0
        %2405 = vmatpush1.msra.mxu0 0.0
        %2406 = vmatprep.subr.mxu0 0.0
        %2407 = vmatpush1.msra.mxu0 0.0
        %2408 = vmatprep.subr.mxu0 0.0
        %2409 = vmatpush1.msra.mxu0 0.0
        %2410 = vmatprep.subr.mxu0 0.0
        %2411 = vmatpush1.msra.mxu0 0.0
        %2412 = vmatprep.subr.mxu0 0.0
        %2413 = vmatpush1.msra.mxu0 0.0
        %2414 = vmatprep.subr.mxu0 0.0
        %2415 = vmatpush1.msra.mxu0 0.0
        %2416 = vmatprep.mubr.f32.mxu0 0.0
        %2417 = vmatmul.mubr.f32.gmra.mrb[0].mxu0 %v2350
        %v2418 = vpop.f32.mrb[0].mxu0
        %v2419 = vadd.f32 0.0, %v2418
        %v2420 = vpop.f32.mrb[0].mxu0
        %2421 = vdwg.mxu0
        %2422 = vrot.lane.b32.xlu0 %v551, 112
        %v2423 = vpop.permute.xlu0 %2422
        %2424 = vrot.lane.b32.xlu0 %v552, 112
        %v2425 = vpop.permute.xlu0 %2424
        %2426 = vrot.lane.b32.xlu0 %v553, 112
        %v2427 = vpop.permute.xlu0 %2426
        %2428 = vrot.lane.b32.xlu0 %v554, 112
        %v2429 = vpop.permute.xlu0 %2428
        %2430 = vrot.lane.b32.xlu0 %v555, 112
        %v2431 = vpop.permute.xlu0 %2430
        %2432 = vrot.lane.b32.xlu0 %v556, 112
        %v2433 = vpop.permute.xlu0 %2432
        %2434 = vrot.lane.b32.xlu0 %v557, 112
        %v2435 = vpop.permute.xlu0 %2434
        %2436 = vrot.lane.b32.xlu0 %v558, 112
        %v2437 = vpop.permute.xlu0 %2436
        %v2447 = vsel %vm925, %v2054, 0
        %2449 = vmatprep.subr.mxu0 0.0
        %2450 = vmatpush1.msra.mxu0 %v2423
        %2451 = vmatprep.subr.mxu0 0.0
        %2452 = vmatpush1.msra.mxu0 %v2425
        %2453 = vmatprep.subr.mxu0 0.0
        %2454 = vmatpush1.msra.mxu0 %v2427
        %2455 = vmatprep.subr.mxu0 0.0
        %2456 = vmatpush1.msra.mxu0 %v2429
        %2457 = vmatprep.subr.mxu0 0.0
        %2458 = vmatpush1.msra.mxu0 %v2431
        %2459 = vmatprep.subr.mxu0 0.0
        %2460 = vmatpush1.msra.mxu0 %v2433
        %2461 = vmatprep.subr.mxu0 0.0
        %2462 = vmatpush1.msra.mxu0 %v2435
        %2463 = vmatprep.subr.mxu0 0.0
        %2464 = vmatpush1.msra.mxu0 %v2437
        %2465 = vmatprep.subr.mxu0 0.0
        %2466 = vmatpush1.msra.mxu0 0.0
        %2467 = vmatprep.subr.mxu0 0.0
        %2468 = vmatpush1.msra.mxu0 0.0
        %2469 = vmatprep.subr.mxu0 0.0
        %2470 = vmatpush1.msra.mxu0 0.0
        %2471 = vmatprep.subr.mxu0 0.0
        %2472 = vmatpush1.msra.mxu0 0.0
        %2473 = vmatprep.subr.mxu0 0.0
        %2474 = vmatpush1.msra.mxu0 0.0
        %2475 = vmatprep.subr.mxu0 0.0
        %2476 = vmatpush1.msra.mxu0 0.0
        %2477 = vmatprep.subr.mxu0 0.0
        %2478 = vmatpush1.msra.mxu0 0.0
        %2479 = vmatprep.subr.mxu0 0.0
        %2480 = vmatpush1.msra.mxu0 0.0
        %2481 = vmatprep.subr.mxu0 0.0
        %2482 = vmatpush1.msra.mxu0 0.0
        %2483 = vmatprep.subr.mxu0 0.0
        %2484 = vmatpush1.msra.mxu0 0.0
        %2485 = vmatprep.subr.mxu0 0.0
        %2486 = vmatpush1.msra.mxu0 0.0
        %2487 = vmatprep.subr.mxu0 0.0
        %2488 = vmatpush1.msra.mxu0 0.0
        %2489 = vmatprep.subr.mxu0 0.0
        %2490 = vmatpush1.msra.mxu0 0.0
        %2491 = vmatprep.subr.mxu0 0.0
        %2492 = vmatpush1.msra.mxu0 0.0
        %2493 = vmatprep.subr.mxu0 0.0
        %2494 = vmatpush1.msra.mxu0 0.0
        %2495 = vmatprep.subr.mxu0 0.0
        %2496 = vmatpush1.msra.mxu0 0.0
        %2497 = vmatprep.subr.mxu0 0.0
        %2498 = vmatpush1.msra.mxu0 0.0
        %2499 = vmatprep.subr.mxu0 0.0
        %2500 = vmatpush1.msra.mxu0 0.0
        %2501 = vmatprep.subr.mxu0 0.0
        %2502 = vmatpush1.msra.mxu0 0.0
        %2503 = vmatprep.subr.mxu0 0.0
        %2504 = vmatpush1.msra.mxu0 0.0
        %2505 = vmatprep.subr.mxu0 0.0
        %2506 = vmatpush1.msra.mxu0 0.0
        %2507 = vmatprep.subr.mxu0 0.0
        %2508 = vmatpush1.msra.mxu0 0.0
        %2509 = vmatprep.subr.mxu0 0.0
        %2510 = vmatpush1.msra.mxu0 0.0
        %2511 = vmatprep.subr.mxu0 0.0
        %2512 = vmatpush1.msra.mxu0 0.0
        %2513 = vmatprep.mubr.f32.mxu0 0.0
        %2514 = vmatmul.mubr.f32.gmra.mrb[0].mxu0 %v2447
        %v2515 = vpop.f32.mrb[0].mxu0
        %v2516 = vadd.f32 %v2419, %v2515
        %v2517 = vpop.f32.mrb[0].mxu0
        %2518 = vdwg.mxu0
        %2519 = vset.pattern.permute.xlu0 71
        %2520 = vperm.xlu0 %2519, %v252
        %v2521 = vpop.permute.xlu0 %2520
        %vm2522 = vcmp.eq.s32.totalorder %v258, %v2521
        %2523 = vset.pattern.permute.xlu0 71
        %2524 = vperm.xlu0 %2523, %v255
        %v2525 = vpop.permute.xlu0 %2524
        %v2527 = vsel %vm2522, %v2525, 0.0
        %2528 = vset.pattern.permute.xlu0 70
        %2529 = vperm.xlu0 %2528, %v252
        %v2530 = vpop.permute.xlu0 %2529
        %vm2531 = vcmp.eq.s32.totalorder %v258, %v2530
        %2532 = vset.pattern.permute.xlu0 70
        %2533 = vperm.xlu0 %2532, %v255
        %v2534 = vpop.permute.xlu0 %2533
        %v2536 = vsel %vm2531, %v2534, %v2527
        %2537 = vset.pattern.permute.xlu0 69
        %2538 = vperm.xlu0 %2537, %v252
        %v2539 = vpop.permute.xlu0 %2538
        %vm2540 = vcmp.eq.s32.totalorder %v258, %v2539
        %2541 = vset.pattern.permute.xlu0 69
        %2542 = vperm.xlu0 %2541, %v255
        %v2543 = vpop.permute.xlu0 %2542
        %v2545 = vsel %vm2540, %v2543, %v2536
        %2546 = vset.pattern.permute.xlu0 68
        %2547 = vperm.xlu0 %2546, %v252
        %v2548 = vpop.permute.xlu0 %2547
        %vm2549 = vcmp.eq.s32.totalorder %v258, %v2548
        %2550 = vset.pattern.permute.xlu0 68
        %2551 = vperm.xlu0 %2550, %v255
        %v2552 = vpop.permute.xlu0 %2551
        %v2554 = vsel %vm2549, %v2552, %v2545
        %2555 = vset.pattern.permute.xlu0 67
        %2556 = vperm.xlu0 %2555, %v252
        %v2557 = vpop.permute.xlu0 %2556
        %vm2558 = vcmp.eq.s32.totalorder %v258, %v2557
        %2559 = vset.pattern.permute.xlu0 67
        %2560 = vperm.xlu0 %2559, %v255
        %v2561 = vpop.permute.xlu0 %2560
        %v2563 = vsel %vm2558, %v2561, %v2554
        %2564 = vset.pattern.permute.xlu0 66
        %2565 = vperm.xlu0 %2564, %v252
        %v2566 = vpop.permute.xlu0 %2565
        %vm2567 = vcmp.eq.s32.totalorder %v258, %v2566
        %2568 = vset.pattern.permute.xlu0 66
        %2569 = vperm.xlu0 %2568, %v255
        %v2570 = vpop.permute.xlu0 %2569
        %v2572 = vsel %vm2567, %v2570, %v2563
        %2573 = vset.pattern.permute.xlu0 65
        %2574 = vperm.xlu0 %2573, %v252
        %v2575 = vpop.permute.xlu0 %2574
        %vm2576 = vcmp.eq.s32.totalorder %v258, %v2575
        %2577 = vset.pattern.permute.xlu0 65
        %2578 = vperm.xlu0 %2577, %v255
        %v2579 = vpop.permute.xlu0 %2578
        %v2581 = vsel %vm2576, %v2579, %v2572
        %2582 = vset.pattern.permute.xlu0 64
        %2583 = vperm.xlu0 %2582, %v252
        %v2584 = vpop.permute.xlu0 %2583
        %vm2585 = vcmp.eq.s32.totalorder %v258, %v2584
        %2586 = vset.pattern.permute.xlu0 64
        %2587 = vperm.xlu0 %2586, %v255
        %v2588 = vpop.permute.xlu0 %2587
        %v2590 = vsel %vm2585, %v2588, %v2581
        %2591 = vset.pattern.permute.xlu0 79
        %2592 = vperm.xlu0 %2591, %v252
        %v2593 = vpop.permute.xlu0 %2592
        %vm2594 = vcmp.eq.s32.totalorder %v258, %v2593
        %2595 = vset.pattern.permute.xlu0 79
        %2596 = vperm.xlu0 %2595, %v255
        %v2597 = vpop.permute.xlu0 %2596
        %v2599 = vsel %vm2594, %v2597, 0.0
        %2600 = vset.pattern.permute.xlu0 78
        %2601 = vperm.xlu0 %2600, %v252
        %v2602 = vpop.permute.xlu0 %2601
        %vm2603 = vcmp.eq.s32.totalorder %v258, %v2602
        %2604 = vset.pattern.permute.xlu0 78
        %2605 = vperm.xlu0 %2604, %v255
        %v2606 = vpop.permute.xlu0 %2605
        %v2608 = vsel %vm2603, %v2606, %v2599
        %2609 = vset.pattern.permute.xlu0 77
        %2610 = vperm.xlu0 %2609, %v252
        %v2611 = vpop.permute.xlu0 %2610
        %vm2612 = vcmp.eq.s32.totalorder %v258, %v2611
        %2613 = vset.pattern.permute.xlu0 77
        %2614 = vperm.xlu0 %2613, %v255
        %v2615 = vpop.permute.xlu0 %2614
        %v2617 = vsel %vm2612, %v2615, %v2608
        %2618 = vset.pattern.permute.xlu0 76
        %2619 = vperm.xlu0 %2618, %v252
        %v2620 = vpop.permute.xlu0 %2619
        %vm2621 = vcmp.eq.s32.totalorder %v258, %v2620
        %2622 = vset.pattern.permute.xlu0 76
        %2623 = vperm.xlu0 %2622, %v255
        %v2624 = vpop.permute.xlu0 %2623
        %v2626 = vsel %vm2621, %v2624, %v2617
        %2627 = vset.pattern.permute.xlu0 75
        %2628 = vperm.xlu0 %2627, %v252
        %v2629 = vpop.permute.xlu0 %2628
        %vm2630 = vcmp.eq.s32.totalorder %v258, %v2629
        %2631 = vset.pattern.permute.xlu0 75
        %2632 = vperm.xlu0 %2631, %v255
        %v2633 = vpop.permute.xlu0 %2632
        %v2635 = vsel %vm2630, %v2633, %v2626
        %2636 = vset.pattern.permute.xlu0 74
        %2637 = vperm.xlu0 %2636, %v252
        %v2638 = vpop.permute.xlu0 %2637
        %vm2639 = vcmp.eq.s32.totalorder %v258, %v2638
        %2640 = vset.pattern.permute.xlu0 74
        %2641 = vperm.xlu0 %2640, %v255
        %v2642 = vpop.permute.xlu0 %2641
        %v2644 = vsel %vm2639, %v2642, %v2635
        %2645 = vset.pattern.permute.xlu0 73
        %2646 = vperm.xlu0 %2645, %v252
        %v2647 = vpop.permute.xlu0 %2646
        %vm2648 = vcmp.eq.s32.totalorder %v258, %v2647
        %2649 = vset.pattern.permute.xlu0 73
        %2650 = vperm.xlu0 %2649, %v255
        %v2651 = vpop.permute.xlu0 %2650
        %v2653 = vsel %vm2648, %v2651, %v2644
        %2654 = vset.pattern.permute.xlu0 72
        %2655 = vperm.xlu0 %2654, %v252
        %v2656 = vpop.permute.xlu0 %2655
        %vm2657 = vcmp.eq.s32.totalorder %v258, %v2656
        %2658 = vset.pattern.permute.xlu0 72
        %2659 = vperm.xlu0 %2658, %v255
        %v2660 = vpop.permute.xlu0 %2659
        %v2662 = vsel %vm2657, %v2660, %v2653
        %v2663 = vadd.f32 %v2590, %v2662
        %2664 = vset.pattern.permute.xlu0 87
        %2665 = vperm.xlu0 %2664, %v252
        %v2666 = vpop.permute.xlu0 %2665
        %vm2667 = vcmp.eq.s32.totalorder %v258, %v2666
        %2668 = vset.pattern.permute.xlu0 87
        %2669 = vperm.xlu0 %2668, %v255
        %v2670 = vpop.permute.xlu0 %2669
        %v2672 = vsel %vm2667, %v2670, 0.0
        %2673 = vset.pattern.permute.xlu0 86
        %2674 = vperm.xlu0 %2673, %v252
        %v2675 = vpop.permute.xlu0 %2674
        %vm2676 = vcmp.eq.s32.totalorder %v258, %v2675
        %2677 = vset.pattern.permute.xlu0 86
        %2678 = vperm.xlu0 %2677, %v255
        %v2679 = vpop.permute.xlu0 %2678
        %v2681 = vsel %vm2676, %v2679, %v2672
        %2682 = vset.pattern.permute.xlu0 85
        %2683 = vperm.xlu0 %2682, %v252
        %v2684 = vpop.permute.xlu0 %2683
        %vm2685 = vcmp.eq.s32.totalorder %v258, %v2684
        %2686 = vset.pattern.permute.xlu0 85
        %2687 = vperm.xlu0 %2686, %v255
        %v2688 = vpop.permute.xlu0 %2687
        %v2690 = vsel %vm2685, %v2688, %v2681
        %2691 = vset.pattern.permute.xlu0 84
        %2692 = vperm.xlu0 %2691, %v252
        %v2693 = vpop.permute.xlu0 %2692
        %vm2694 = vcmp.eq.s32.totalorder %v258, %v2693
        %2695 = vset.pattern.permute.xlu0 84
        %2696 = vperm.xlu0 %2695, %v255
        %v2697 = vpop.permute.xlu0 %2696
        %v2699 = vsel %vm2694, %v2697, %v2690
        %2700 = vset.pattern.permute.xlu0 83
        %2701 = vperm.xlu0 %2700, %v252
        %v2702 = vpop.permute.xlu0 %2701
        %vm2703 = vcmp.eq.s32.totalorder %v258, %v2702
        %2704 = vset.pattern.permute.xlu0 83
        %2705 = vperm.xlu0 %2704, %v255
        %v2706 = vpop.permute.xlu0 %2705
        %v2708 = vsel %vm2703, %v2706, %v2699
        %2709 = vset.pattern.permute.xlu0 82
        %2710 = vperm.xlu0 %2709, %v252
        %v2711 = vpop.permute.xlu0 %2710
        %vm2712 = vcmp.eq.s32.totalorder %v258, %v2711
        %2713 = vset.pattern.permute.xlu0 82
        %2714 = vperm.xlu0 %2713, %v255
        %v2715 = vpop.permute.xlu0 %2714
        %v2717 = vsel %vm2712, %v2715, %v2708
        %2718 = vset.pattern.permute.xlu0 81
        %2719 = vperm.xlu0 %2718, %v252
        %v2720 = vpop.permute.xlu0 %2719
        %vm2721 = vcmp.eq.s32.totalorder %v258, %v2720
        %2722 = vset.pattern.permute.xlu0 81
        %2723 = vperm.xlu0 %2722, %v255
        %v2724 = vpop.permute.xlu0 %2723
        %v2726 = vsel %vm2721, %v2724, %v2717
        %2727 = vset.pattern.permute.xlu0 80
        %2728 = vperm.xlu0 %2727, %v252
        %v2729 = vpop.permute.xlu0 %2728
        %vm2730 = vcmp.eq.s32.totalorder %v258, %v2729
        %2731 = vset.pattern.permute.xlu0 80
        %2732 = vperm.xlu0 %2731, %v255
        %v2733 = vpop.permute.xlu0 %2732
        %v2735 = vsel %vm2730, %v2733, %v2726
        %v2736 = vadd.f32 %v2663, %v2735
        %2737 = vset.pattern.permute.xlu0 95
        %2738 = vperm.xlu0 %2737, %v252
        %v2739 = vpop.permute.xlu0 %2738
        %vm2740 = vcmp.eq.s32.totalorder %v258, %v2739
        %2741 = vset.pattern.permute.xlu0 95
        %2742 = vperm.xlu0 %2741, %v255
        %v2743 = vpop.permute.xlu0 %2742
        %v2745 = vsel %vm2740, %v2743, 0.0
        %2746 = vset.pattern.permute.xlu0 94
        %2747 = vperm.xlu0 %2746, %v252
        %v2748 = vpop.permute.xlu0 %2747
        %vm2749 = vcmp.eq.s32.totalorder %v258, %v2748
        %2750 = vset.pattern.permute.xlu0 94
        %2751 = vperm.xlu0 %2750, %v255
        %v2752 = vpop.permute.xlu0 %2751
        %v2754 = vsel %vm2749, %v2752, %v2745
        %2755 = vset.pattern.permute.xlu0 93
        %2756 = vperm.xlu0 %2755, %v252
        %v2757 = vpop.permute.xlu0 %2756
        %vm2758 = vcmp.eq.s32.totalorder %v258, %v2757
        %2759 = vset.pattern.permute.xlu0 93
        %2760 = vperm.xlu0 %2759, %v255
        %v2761 = vpop.permute.xlu0 %2760
        %v2763 = vsel %vm2758, %v2761, %v2754
        %2764 = vset.pattern.permute.xlu0 92
        %2765 = vperm.xlu0 %2764, %v252
        %v2766 = vpop.permute.xlu0 %2765
        %vm2767 = vcmp.eq.s32.totalorder %v258, %v2766
        %2768 = vset.pattern.permute.xlu0 92
        %2769 = vperm.xlu0 %2768, %v255
        %v2770 = vpop.permute.xlu0 %2769
        %v2772 = vsel %vm2767, %v2770, %v2763
        %2773 = vset.pattern.permute.xlu0 91
        %2774 = vperm.xlu0 %2773, %v252
        %v2775 = vpop.permute.xlu0 %2774
        %vm2776 = vcmp.eq.s32.totalorder %v258, %v2775
        %2777 = vset.pattern.permute.xlu0 91
        %2778 = vperm.xlu0 %2777, %v255
        %v2779 = vpop.permute.xlu0 %2778
        %v2781 = vsel %vm2776, %v2779, %v2772
        %2782 = vset.pattern.permute.xlu0 90
        %2783 = vperm.xlu0 %2782, %v252
        %v2784 = vpop.permute.xlu0 %2783
        %vm2785 = vcmp.eq.s32.totalorder %v258, %v2784
        %2786 = vset.pattern.permute.xlu0 90
        %2787 = vperm.xlu0 %2786, %v255
        %v2788 = vpop.permute.xlu0 %2787
        %v2790 = vsel %vm2785, %v2788, %v2781
        %2791 = vset.pattern.permute.xlu0 89
        %2792 = vperm.xlu0 %2791, %v252
        %v2793 = vpop.permute.xlu0 %2792
        %vm2794 = vcmp.eq.s32.totalorder %v258, %v2793
        %2795 = vset.pattern.permute.xlu0 89
        %2796 = vperm.xlu0 %2795, %v255
        %v2797 = vpop.permute.xlu0 %2796
        %v2799 = vsel %vm2794, %v2797, %v2790
        %2800 = vset.pattern.permute.xlu0 88
        %2801 = vperm.xlu0 %2800, %v252
        %v2802 = vpop.permute.xlu0 %2801
        %vm2803 = vcmp.eq.s32.totalorder %v258, %v2802
        %2804 = vset.pattern.permute.xlu0 88
        %2805 = vperm.xlu0 %2804, %v255
        %v2806 = vpop.permute.xlu0 %2805
        %v2808 = vsel %vm2803, %v2806, %v2799
        %v2809 = vadd.f32 %v2736, %v2808
        %2810 = vset.pattern.permute.xlu0 103
        %2811 = vperm.xlu0 %2810, %v252
        %v2812 = vpop.permute.xlu0 %2811
        %vm2813 = vcmp.eq.s32.totalorder %v258, %v2812
        %2814 = vset.pattern.permute.xlu0 103
        %2815 = vperm.xlu0 %2814, %v255
        %v2816 = vpop.permute.xlu0 %2815
        %v2818 = vsel %vm2813, %v2816, 0.0
        %2819 = vset.pattern.permute.xlu0 102
        %2820 = vperm.xlu0 %2819, %v252
        %v2821 = vpop.permute.xlu0 %2820
        %vm2822 = vcmp.eq.s32.totalorder %v258, %v2821
        %2823 = vset.pattern.permute.xlu0 102
        %2824 = vperm.xlu0 %2823, %v255
        %v2825 = vpop.permute.xlu0 %2824
        %v2827 = vsel %vm2822, %v2825, %v2818
        %2828 = vset.pattern.permute.xlu0 101
        %2829 = vperm.xlu0 %2828, %v252
        %v2830 = vpop.permute.xlu0 %2829
        %vm2831 = vcmp.eq.s32.totalorder %v258, %v2830
        %2832 = vset.pattern.permute.xlu0 101
        %2833 = vperm.xlu0 %2832, %v255
        %v2834 = vpop.permute.xlu0 %2833
        %v2836 = vsel %vm2831, %v2834, %v2827
        %2837 = vset.pattern.permute.xlu0 100
        %2838 = vperm.xlu0 %2837, %v252
        %v2839 = vpop.permute.xlu0 %2838
        %vm2840 = vcmp.eq.s32.totalorder %v258, %v2839
        %2841 = vset.pattern.permute.xlu0 100
        %2842 = vperm.xlu0 %2841, %v255
        %v2843 = vpop.permute.xlu0 %2842
        %v2845 = vsel %vm2840, %v2843, %v2836
        %2846 = vset.pattern.permute.xlu0 99
        %2847 = vperm.xlu0 %2846, %v252
        %v2848 = vpop.permute.xlu0 %2847
        %vm2849 = vcmp.eq.s32.totalorder %v258, %v2848
        %2850 = vset.pattern.permute.xlu0 99
        %2851 = vperm.xlu0 %2850, %v255
        %v2852 = vpop.permute.xlu0 %2851
        %v2854 = vsel %vm2849, %v2852, %v2845
        %2855 = vset.pattern.permute.xlu0 98
        %2856 = vperm.xlu0 %2855, %v252
        %v2857 = vpop.permute.xlu0 %2856
        %vm2858 = vcmp.eq.s32.totalorder %v258, %v2857
        %2859 = vset.pattern.permute.xlu0 98
        %2860 = vperm.xlu0 %2859, %v255
        %v2861 = vpop.permute.xlu0 %2860
        %v2863 = vsel %vm2858, %v2861, %v2854
        %2864 = vset.pattern.permute.xlu0 97
        %2865 = vperm.xlu0 %2864, %v252
        %v2866 = vpop.permute.xlu0 %2865
        %vm2867 = vcmp.eq.s32.totalorder %v258, %v2866
        %2868 = vset.pattern.permute.xlu0 97
        %2869 = vperm.xlu0 %2868, %v255
        %v2870 = vpop.permute.xlu0 %2869
        %v2872 = vsel %vm2867, %v2870, %v2863
        %2873 = vset.pattern.permute.xlu0 96
        %2874 = vperm.xlu0 %2873, %v252
        %v2875 = vpop.permute.xlu0 %2874
        %vm2876 = vcmp.eq.s32.totalorder %v258, %v2875
        %2877 = vset.pattern.permute.xlu0 96
        %2878 = vperm.xlu0 %2877, %v255
        %v2879 = vpop.permute.xlu0 %2878
        %v2881 = vsel %vm2876, %v2879, %v2872
        %2882 = vset.pattern.permute.xlu0 111
        %2883 = vperm.xlu0 %2882, %v252
        %v2884 = vpop.permute.xlu0 %2883
        %vm2885 = vcmp.eq.s32.totalorder %v258, %v2884
        %2886 = vset.pattern.permute.xlu0 111
        %2887 = vperm.xlu0 %2886, %v255
        %v2888 = vpop.permute.xlu0 %2887
        %v2890 = vsel %vm2885, %v2888, 0.0
        %2891 = vset.pattern.permute.xlu0 110
        %2892 = vperm.xlu0 %2891, %v252
        %v2893 = vpop.permute.xlu0 %2892
        %vm2894 = vcmp.eq.s32.totalorder %v258, %v2893
        %2895 = vset.pattern.permute.xlu0 110
        %2896 = vperm.xlu0 %2895, %v255
        %v2897 = vpop.permute.xlu0 %2896
        %v2899 = vsel %vm2894, %v2897, %v2890
        %2900 = vset.pattern.permute.xlu0 109
        %2901 = vperm.xlu0 %2900, %v252
        %v2902 = vpop.permute.xlu0 %2901
        %vm2903 = vcmp.eq.s32.totalorder %v258, %v2902
        %2904 = vset.pattern.permute.xlu0 109
        %2905 = vperm.xlu0 %2904, %v255
        %v2906 = vpop.permute.xlu0 %2905
        %v2908 = vsel %vm2903, %v2906, %v2899
        %2909 = vset.pattern.permute.xlu0 108
        %2910 = vperm.xlu0 %2909, %v252
        %v2911 = vpop.permute.xlu0 %2910
        %vm2912 = vcmp.eq.s32.totalorder %v258, %v2911
        %2913 = vset.pattern.permute.xlu0 108
        %2914 = vperm.xlu0 %2913, %v255
        %v2915 = vpop.permute.xlu0 %2914
        %v2917 = vsel %vm2912, %v2915, %v2908
        %2918 = vset.pattern.permute.xlu0 107
        %2919 = vperm.xlu0 %2918, %v252
        %v2920 = vpop.permute.xlu0 %2919
        %vm2921 = vcmp.eq.s32.totalorder %v258, %v2920
        %2922 = vset.pattern.permute.xlu0 107
        %2923 = vperm.xlu0 %2922, %v255
        %v2924 = vpop.permute.xlu0 %2923
        %v2926 = vsel %vm2921, %v2924, %v2917
        %2927 = vset.pattern.permute.xlu0 106
        %2928 = vperm.xlu0 %2927, %v252
        %v2929 = vpop.permute.xlu0 %2928
        %vm2930 = vcmp.eq.s32.totalorder %v258, %v2929
        %2931 = vset.pattern.permute.xlu0 106
        %2932 = vperm.xlu0 %2931, %v255
        %v2933 = vpop.permute.xlu0 %2932
        %v2935 = vsel %vm2930, %v2933, %v2926
        %2936 = vset.pattern.permute.xlu0 105
        %2937 = vperm.xlu0 %2936, %v252
        %v2938 = vpop.permute.xlu0 %2937
        %vm2939 = vcmp.eq.s32.totalorder %v258, %v2938
        %2940 = vset.pattern.permute.xlu0 105
        %2941 = vperm.xlu0 %2940, %v255
        %v2942 = vpop.permute.xlu0 %2941
        %v2944 = vsel %vm2939, %v2942, %v2935
        %2945 = vset.pattern.permute.xlu0 104
        %2946 = vperm.xlu0 %2945, %v252
        %v2947 = vpop.permute.xlu0 %2946
        %vm2948 = vcmp.eq.s32.totalorder %v258, %v2947
        %2949 = vset.pattern.permute.xlu0 104
        %2950 = vperm.xlu0 %2949, %v255
        %v2951 = vpop.permute.xlu0 %2950
        %v2953 = vsel %vm2948, %v2951, %v2944
        %v2954 = vadd.f32 %v2881, %v2953
        %2955 = vset.pattern.permute.xlu0 119
        %2956 = vperm.xlu0 %2955, %v252
        %v2957 = vpop.permute.xlu0 %2956
        %vm2958 = vcmp.eq.s32.totalorder %v258, %v2957
        %2959 = vset.pattern.permute.xlu0 119
        %2960 = vperm.xlu0 %2959, %v255
        %v2961 = vpop.permute.xlu0 %2960
        %v2963 = vsel %vm2958, %v2961, 0.0
        %2964 = vset.pattern.permute.xlu0 118
        %2965 = vperm.xlu0 %2964, %v252
        %v2966 = vpop.permute.xlu0 %2965
        %vm2967 = vcmp.eq.s32.totalorder %v258, %v2966
        %2968 = vset.pattern.permute.xlu0 118
        %2969 = vperm.xlu0 %2968, %v255
        %v2970 = vpop.permute.xlu0 %2969
        %v2972 = vsel %vm2967, %v2970, %v2963
        %2973 = vset.pattern.permute.xlu0 117
        %2974 = vperm.xlu0 %2973, %v252
        %v2975 = vpop.permute.xlu0 %2974
        %vm2976 = vcmp.eq.s32.totalorder %v258, %v2975
        %2977 = vset.pattern.permute.xlu0 117
        %2978 = vperm.xlu0 %2977, %v255
        %v2979 = vpop.permute.xlu0 %2978
        %v2981 = vsel %vm2976, %v2979, %v2972
        %2982 = vset.pattern.permute.xlu0 116
        %2983 = vperm.xlu0 %2982, %v252
        %v2984 = vpop.permute.xlu0 %2983
        %vm2985 = vcmp.eq.s32.totalorder %v258, %v2984
        %2986 = vset.pattern.permute.xlu0 116
        %2987 = vperm.xlu0 %2986, %v255
        %v2988 = vpop.permute.xlu0 %2987
        %v2990 = vsel %vm2985, %v2988, %v2981
        %2991 = vset.pattern.permute.xlu0 115
        %2992 = vperm.xlu0 %2991, %v252
        %v2993 = vpop.permute.xlu0 %2992
        %vm2994 = vcmp.eq.s32.totalorder %v258, %v2993
        %2995 = vset.pattern.permute.xlu0 115
        %2996 = vperm.xlu0 %2995, %v255
        %v2997 = vpop.permute.xlu0 %2996
        %v2999 = vsel %vm2994, %v2997, %v2990
        %3000 = vset.pattern.permute.xlu0 114
        %3001 = vperm.xlu0 %3000, %v252
        %v3002 = vpop.permute.xlu0 %3001
        %vm3003 = vcmp.eq.s32.totalorder %v258, %v3002
        %3004 = vset.pattern.permute.xlu0 114
        %3005 = vperm.xlu0 %3004, %v255
        %v3006 = vpop.permute.xlu0 %3005
        %v3008 = vsel %vm3003, %v3006, %v2999
        %3009 = vset.pattern.permute.xlu0 113
        %3010 = vperm.xlu0 %3009, %v252
        %v3011 = vpop.permute.xlu0 %3010
        %vm3012 = vcmp.eq.s32.totalorder %v258, %v3011
        %3013 = vset.pattern.permute.xlu0 113
        %3014 = vperm.xlu0 %3013, %v255
        %v3015 = vpop.permute.xlu0 %3014
        %v3017 = vsel %vm3012, %v3015, %v3008
        %3018 = vset.pattern.permute.xlu0 112
        %3019 = vperm.xlu0 %3018, %v252
        %v3020 = vpop.permute.xlu0 %3019
        %vm3021 = vcmp.eq.s32.totalorder %v258, %v3020
        %3022 = vset.pattern.permute.xlu0 112
        %3023 = vperm.xlu0 %3022, %v255
        %v3024 = vpop.permute.xlu0 %3023
        %v3026 = vsel %vm3021, %v3024, %v3017
        %v3027 = vadd.f32 %v2954, %v3026
        %3028 = vset.pattern.permute.xlu0 127
        %3029 = vperm.xlu0 %3028, %v252
        %v3030 = vpop.permute.xlu0 %3029
        %vm3031 = vcmp.eq.s32.totalorder %v258, %v3030
        %3032 = vset.pattern.permute.xlu0 127
        %3033 = vperm.xlu0 %3032, %v255
        %v3034 = vpop.permute.xlu0 %3033
        %v3036 = vsel %vm3031, %v3034, 0.0
        %3037 = vset.pattern.permute.xlu0 126
        %3038 = vperm.xlu0 %3037, %v252
        %v3039 = vpop.permute.xlu0 %3038
        %vm3040 = vcmp.eq.s32.totalorder %v258, %v3039
        %3041 = vset.pattern.permute.xlu0 126
        %3042 = vperm.xlu0 %3041, %v255
        %v3043 = vpop.permute.xlu0 %3042
        %v3045 = vsel %vm3040, %v3043, %v3036
        %3046 = vset.pattern.permute.xlu0 125
        %3047 = vperm.xlu0 %3046, %v252
        %v3048 = vpop.permute.xlu0 %3047
        %vm3049 = vcmp.eq.s32.totalorder %v258, %v3048
        %3050 = vset.pattern.permute.xlu0 125
        %3051 = vperm.xlu0 %3050, %v255
        %v3052 = vpop.permute.xlu0 %3051
        %v3054 = vsel %vm3049, %v3052, %v3045
        %3055 = vset.pattern.permute.xlu0 124
        %3056 = vperm.xlu0 %3055, %v252
        %v3057 = vpop.permute.xlu0 %3056
        %vm3058 = vcmp.eq.s32.totalorder %v258, %v3057
        %3059 = vset.pattern.permute.xlu0 124
        %3060 = vperm.xlu0 %3059, %v255
        %v3061 = vpop.permute.xlu0 %3060
        %v3063 = vsel %vm3058, %v3061, %v3054
        %3064 = vset.pattern.permute.xlu0 123
        %3065 = vperm.xlu0 %3064, %v252
        %v3066 = vpop.permute.xlu0 %3065
        %vm3067 = vcmp.eq.s32.totalorder %v258, %v3066
        %3068 = vset.pattern.permute.xlu0 123
        %3069 = vperm.xlu0 %3068, %v255
        %v3070 = vpop.permute.xlu0 %3069
        %v3072 = vsel %vm3067, %v3070, %v3063
        %3073 = vset.pattern.permute.xlu0 122
        %3074 = vperm.xlu0 %3073, %v252
        %v3075 = vpop.permute.xlu0 %3074
        %vm3076 = vcmp.eq.s32.totalorder %v258, %v3075
        %3077 = vset.pattern.permute.xlu0 122
        %3078 = vperm.xlu0 %3077, %v255
        %v3079 = vpop.permute.xlu0 %3078
        %v3081 = vsel %vm3076, %v3079, %v3072
        %3082 = vset.pattern.permute.xlu0 121
        %3083 = vperm.xlu0 %3082, %v252
        %v3084 = vpop.permute.xlu0 %3083
        %vm3085 = vcmp.eq.s32.totalorder %v258, %v3084
        %3086 = vset.pattern.permute.xlu0 121
        %3087 = vperm.xlu0 %3086, %v255
        %v3088 = vpop.permute.xlu0 %3087
        %v3090 = vsel %vm3085, %v3088, %v3081
        %3091 = vset.pattern.permute.xlu0 120
        %3092 = vperm.xlu0 %3091, %v252
        %v3093 = vpop.permute.xlu0 %3092
        %vm3094 = vcmp.eq.s32.totalorder %v258, %v3093
        %3095 = vset.pattern.permute.xlu0 120
        %3096 = vperm.xlu0 %3095, %v255
        %v3097 = vpop.permute.xlu0 %3096
        %v3099 = vsel %vm3094, %v3097, %v3090
        %v3100 = vadd.f32 %v3027, %v3099
        %3101 = vrot.lane.b32.xlu0 %v850, 104
        %v3102 = vpop.permute.xlu0 %3101
        %v3105 = vsel %vm851, %v3100, 0
        %3107 = vmatprep.subr.mxu0 0.0
        %3108 = vmatpush1.msra.mxu0 %v3102
        %3109 = vmatprep.subr.mxu0 0.0
        %3110 = vmatpush1.msra.mxu0 0.0
        %3111 = vmatprep.subr.mxu0 0.0
        %3112 = vmatpush1.msra.mxu0 0.0
        %3113 = vmatprep.subr.mxu0 0.0
        %3114 = vmatpush1.msra.mxu0 0.0
        %3115 = vmatprep.subr.mxu0 0.0
        %3116 = vmatpush1.msra.mxu0 0.0
        %3117 = vmatprep.subr.mxu0 0.0
        %3118 = vmatpush1.msra.mxu0 0.0
        %3119 = vmatprep.subr.mxu0 0.0
        %3120 = vmatpush1.msra.mxu0 0.0
        %3121 = vmatprep.subr.mxu0 0.0
        %3122 = vmatpush1.msra.mxu0 0.0
        %3123 = vmatprep.subr.mxu0 0.0
        %3124 = vmatpush1.msra.mxu0 0.0
        %3125 = vmatprep.subr.mxu0 0.0
        %3126 = vmatpush1.msra.mxu0 0.0
        %3127 = vmatprep.subr.mxu0 0.0
        %3128 = vmatpush1.msra.mxu0 0.0
        %3129 = vmatprep.subr.mxu0 0.0
        %3130 = vmatpush1.msra.mxu0 0.0
        %3131 = vmatprep.subr.mxu0 0.0
        %3132 = vmatpush1.msra.mxu0 0.0
        %3133 = vmatprep.subr.mxu0 0.0
        %3134 = vmatpush1.msra.mxu0 0.0
        %3135 = vmatprep.subr.mxu0 0.0
        %3136 = vmatpush1.msra.mxu0 0.0
        %3137 = vmatprep.subr.mxu0 0.0
        %3138 = vmatpush1.msra.mxu0 0.0
        %3139 = vmatprep.subr.mxu0 0.0
        %3140 = vmatpush1.msra.mxu0 0.0
        %3141 = vmatprep.subr.mxu0 0.0
        %3142 = vmatpush1.msra.mxu0 0.0
        %3143 = vmatprep.subr.mxu0 0.0
        %3144 = vmatpush1.msra.mxu0 0.0
        %3145 = vmatprep.subr.mxu0 0.0
        %3146 = vmatpush1.msra.mxu0 0.0
        %3147 = vmatprep.subr.mxu0 0.0
        %3148 = vmatpush1.msra.mxu0 0.0
        %3149 = vmatprep.subr.mxu0 0.0
        %3150 = vmatpush1.msra.mxu0 0.0
        %3151 = vmatprep.subr.mxu0 0.0
        %3152 = vmatpush1.msra.mxu0 0.0
        %3153 = vmatprep.subr.mxu0 0.0
        %3154 = vmatpush1.msra.mxu0 0.0
        %3155 = vmatprep.subr.mxu0 0.0
        %3156 = vmatpush1.msra.mxu0 0.0
        %3157 = vmatprep.subr.mxu0 0.0
        %3158 = vmatpush1.msra.mxu0 0.0
        %3159 = vmatprep.subr.mxu0 0.0
        %3160 = vmatpush1.msra.mxu0 0.0
        %3161 = vmatprep.subr.mxu0 0.0
        %3162 = vmatpush1.msra.mxu0 0.0
        %3163 = vmatprep.subr.mxu0 0.0
        %3164 = vmatpush1.msra.mxu0 0.0
        %3165 = vmatprep.subr.mxu0 0.0
        %3166 = vmatpush1.msra.mxu0 0.0
        %3167 = vmatprep.subr.mxu0 0.0
        %3168 = vmatpush1.msra.mxu0 0.0
        %3169 = vmatprep.subr.mxu0 0.0
        %3170 = vmatpush1.msra.mxu0 0.0
        %3171 = vmatprep.mubr.f32.mxu0 0.0
        %3172 = vmatmul.mubr.f32.gmra.mrb[0].mxu0 %v3105
        %v3173 = vpop.f32.mrb[0].mxu0
        %v3174 = vadd.f32 0.0, %v3173
        %v3175 = vpop.f32.mrb[0].mxu0
        %3176 = vdwg.mxu0
        %3177 = vrot.lane.b32.xlu0 %v551, 104
        %v3178 = vpop.permute.xlu0 %3177
        %3179 = vrot.lane.b32.xlu0 %v552, 104
        %v3180 = vpop.permute.xlu0 %3179
        %3181 = vrot.lane.b32.xlu0 %v553, 104
        %v3182 = vpop.permute.xlu0 %3181
        %3183 = vrot.lane.b32.xlu0 %v554, 104
        %v3184 = vpop.permute.xlu0 %3183
        %3185 = vrot.lane.b32.xlu0 %v555, 104
        %v3186 = vpop.permute.xlu0 %3185
        %3187 = vrot.lane.b32.xlu0 %v556, 104
        %v3188 = vpop.permute.xlu0 %3187
        %3189 = vrot.lane.b32.xlu0 %v557, 104
        %v3190 = vpop.permute.xlu0 %3189
        %3191 = vrot.lane.b32.xlu0 %v558, 104
        %v3192 = vpop.permute.xlu0 %3191
        %v3202 = vsel %vm925, %v2809, 0
        %3204 = vmatprep.subr.mxu0 0.0
        %3205 = vmatpush1.msra.mxu0 %v3178
        %3206 = vmatprep.subr.mxu0 0.0
        %3207 = vmatpush1.msra.mxu0 %v3180
        %3208 = vmatprep.subr.mxu0 0.0
        %3209 = vmatpush1.msra.mxu0 %v3182
        %3210 = vmatprep.subr.mxu0 0.0
        %3211 = vmatpush1.msra.mxu0 %v3184
        %3212 = vmatprep.subr.mxu0 0.0
        %3213 = vmatpush1.msra.mxu0 %v3186
        %3214 = vmatprep.subr.mxu0 0.0
        %3215 = vmatpush1.msra.mxu0 %v3188
        %3216 = vmatprep.subr.mxu0 0.0
        %3217 = vmatpush1.msra.mxu0 %v3190
        %3218 = vmatprep.subr.mxu0 0.0
        %3219 = vmatpush1.msra.mxu0 %v3192
        %3220 = vmatprep.subr.mxu0 0.0
        %3221 = vmatpush1.msra.mxu0 0.0
        %3222 = vmatprep.subr.mxu0 0.0
        %3223 = vmatpush1.msra.mxu0 0.0
        %3224 = vmatprep.subr.mxu0 0.0
        %3225 = vmatpush1.msra.mxu0 0.0
        %3226 = vmatprep.subr.mxu0 0.0
        %3227 = vmatpush1.msra.mxu0 0.0
        %3228 = vmatprep.subr.mxu0 0.0
        %3229 = vmatpush1.msra.mxu0 0.0
        %3230 = vmatprep.subr.mxu0 0.0
        %3231 = vmatpush1.msra.mxu0 0.0
        %3232 = vmatprep.subr.mxu0 0.0
        %3233 = vmatpush1.msra.mxu0 0.0
        %3234 = vmatprep.subr.mxu0 0.0
        %3235 = vmatpush1.msra.mxu0 0.0
        %3236 = vmatprep.subr.mxu0 0.0
        %3237 = vmatpush1.msra.mxu0 0.0
        %3238 = vmatprep.subr.mxu0 0.0
        %3239 = vmatpush1.msra.mxu0 0.0
        %3240 = vmatprep.subr.mxu0 0.0
        %3241 = vmatpush1.msra.mxu0 0.0
        %3242 = vmatprep.subr.mxu0 0.0
        %3243 = vmatpush1.msra.mxu0 0.0
        %3244 = vmatprep.subr.mxu0 0.0
        %3245 = vmatpush1.msra.mxu0 0.0
        %3246 = vmatprep.subr.mxu0 0.0
        %3247 = vmatpush1.msra.mxu0 0.0
        %3248 = vmatprep.subr.mxu0 0.0
        %3249 = vmatpush1.msra.mxu0 0.0
        %3250 = vmatprep.subr.mxu0 0.0
        %3251 = vmatpush1.msra.mxu0 0.0
        %3252 = vmatprep.subr.mxu0 0.0
        %3253 = vmatpush1.msra.mxu0 0.0
        %3254 = vmatprep.subr.mxu0 0.0
        %3255 = vmatpush1.msra.mxu0 0.0
        %3256 = vmatprep.subr.mxu0 0.0
        %3257 = vmatpush1.msra.mxu0 0.0
        %3258 = vmatprep.subr.mxu0 0.0
        %3259 = vmatpush1.msra.mxu0 0.0
        %3260 = vmatprep.subr.mxu0 0.0
        %3261 = vmatpush1.msra.mxu0 0.0
        %3262 = vmatprep.subr.mxu0 0.0
        %3263 = vmatpush1.msra.mxu0 0.0
        %3264 = vmatprep.subr.mxu0 0.0
        %3265 = vmatpush1.msra.mxu0 0.0
        %3266 = vmatprep.subr.mxu0 0.0
        %3267 = vmatpush1.msra.mxu0 0.0
        %3268 = vmatprep.mubr.f32.mxu0 0.0
        %3269 = vmatmul.mubr.f32.gmra.mrb[0].mxu0 %v3202
        %v3270 = vpop.f32.mrb[0].mxu0
        %v3271 = vadd.f32 %v3174, %v3270
        %v3272 = vpop.f32.mrb[0].mxu0
        %3273 = vdwg.mxu0
        %3274 = vset.pattern.permute.xlu0 7
        %3275 = vperm.xlu0 %3274, %v253
        %v3276 = vpop.permute.xlu0 %3275
        %vm3277 = vcmp.eq.s32.totalorder %v258, %v3276
        %3279 = vset.pattern.permute.xlu0 7
        %3280 = vperm.xlu0 %3279, %v256
        %v3281 = vpop.permute.xlu0 %3280
        %v3283 = vsel %vm3277, %v3281, 0.0
        %3284 = vset.pattern.permute.xlu0 6
        %3285 = vperm.xlu0 %3284, %v253
        %v3286 = vpop.permute.xlu0 %3285
        %vm3287 = vcmp.eq.s32.totalorder %v258, %v3286
        %3288 = vset.pattern.permute.xlu0 6
        %3289 = vperm.xlu0 %3288, %v256
        %v3290 = vpop.permute.xlu0 %3289
        %v3292 = vsel %vm3287, %v3290, %v3283
        %3293 = vset.pattern.permute.xlu0 5
        %3294 = vperm.xlu0 %3293, %v253
        %v3295 = vpop.permute.xlu0 %3294
        %vm3296 = vcmp.eq.s32.totalorder %v258, %v3295
        %3297 = vset.pattern.permute.xlu0 5
        %3298 = vperm.xlu0 %3297, %v256
        %v3299 = vpop.permute.xlu0 %3298
        %v3301 = vsel %vm3296, %v3299, %v3292
        %3302 = vset.pattern.permute.xlu0 4
        %3303 = vperm.xlu0 %3302, %v253
        %v3304 = vpop.permute.xlu0 %3303
        %vm3305 = vcmp.eq.s32.totalorder %v258, %v3304
        %3306 = vset.pattern.permute.xlu0 4
        %3307 = vperm.xlu0 %3306, %v256
        %v3308 = vpop.permute.xlu0 %3307
        %v3310 = vsel %vm3305, %v3308, %v3301
        %3311 = vset.pattern.permute.xlu0 3
        %3312 = vperm.xlu0 %3311, %v253
        %v3313 = vpop.permute.xlu0 %3312
        %vm3314 = vcmp.eq.s32.totalorder %v258, %v3313
        %3315 = vset.pattern.permute.xlu0 3
        %3316 = vperm.xlu0 %3315, %v256
        %v3317 = vpop.permute.xlu0 %3316
        %v3319 = vsel %vm3314, %v3317, %v3310
        %3320 = vset.pattern.permute.xlu0 2
        %3321 = vperm.xlu0 %3320, %v253
        %v3322 = vpop.permute.xlu0 %3321
        %vm3323 = vcmp.eq.s32.totalorder %v258, %v3322
        %3324 = vset.pattern.permute.xlu0 2
        %3325 = vperm.xlu0 %3324, %v256
        %v3326 = vpop.permute.xlu0 %3325
        %v3328 = vsel %vm3323, %v3326, %v3319
        %3329 = vset.pattern.permute.xlu0 1
        %3330 = vperm.xlu0 %3329, %v253
        %v3331 = vpop.permute.xlu0 %3330
        %vm3332 = vcmp.eq.s32.totalorder %v258, %v3331
        %3333 = vset.pattern.permute.xlu0 1
        %3334 = vperm.xlu0 %3333, %v256
        %v3335 = vpop.permute.xlu0 %3334
        %v3337 = vsel %vm3332, %v3335, %v3328
        %3338 = vset.pattern.permute.xlu0 0
        %3339 = vperm.xlu0 %3338, %v253
        %v3340 = vpop.permute.xlu0 %3339
        %vm3341 = vcmp.eq.s32.totalorder %v258, %v3340
        %3342 = vset.pattern.permute.xlu0 0
        %3343 = vperm.xlu0 %3342, %v256
        %v3344 = vpop.permute.xlu0 %3343
        %v3346 = vsel %vm3341, %v3344, %v3337
        %3347 = vset.pattern.permute.xlu0 15
        %3348 = vperm.xlu0 %3347, %v253
        %v3349 = vpop.permute.xlu0 %3348
        %vm3350 = vcmp.eq.s32.totalorder %v258, %v3349
        %3351 = vset.pattern.permute.xlu0 15
        %3352 = vperm.xlu0 %3351, %v256
        %v3353 = vpop.permute.xlu0 %3352
        %v3355 = vsel %vm3350, %v3353, 0.0
        %3356 = vset.pattern.permute.xlu0 14
        %3357 = vperm.xlu0 %3356, %v253
        %v3358 = vpop.permute.xlu0 %3357
        %vm3359 = vcmp.eq.s32.totalorder %v258, %v3358
        %3360 = vset.pattern.permute.xlu0 14
        %3361 = vperm.xlu0 %3360, %v256
        %v3362 = vpop.permute.xlu0 %3361
        %v3364 = vsel %vm3359, %v3362, %v3355
        %3365 = vset.pattern.permute.xlu0 13
        %3366 = vperm.xlu0 %3365, %v253
        %v3367 = vpop.permute.xlu0 %3366
        %vm3368 = vcmp.eq.s32.totalorder %v258, %v3367
        %3369 = vset.pattern.permute.xlu0 13
        %3370 = vperm.xlu0 %3369, %v256
        %v3371 = vpop.permute.xlu0 %3370
        %v3373 = vsel %vm3368, %v3371, %v3364
        %3374 = vset.pattern.permute.xlu0 12
        %3375 = vperm.xlu0 %3374, %v253
        %v3376 = vpop.permute.xlu0 %3375
        %vm3377 = vcmp.eq.s32.totalorder %v258, %v3376
        %3378 = vset.pattern.permute.xlu0 12
        %3379 = vperm.xlu0 %3378, %v256
        %v3380 = vpop.permute.xlu0 %3379
        %v3382 = vsel %vm3377, %v3380, %v3373
        %3383 = vset.pattern.permute.xlu0 11
        %3384 = vperm.xlu0 %3383, %v253
        %v3385 = vpop.permute.xlu0 %3384
        %vm3386 = vcmp.eq.s32.totalorder %v258, %v3385
        %3387 = vset.pattern.permute.xlu0 11
        %3388 = vperm.xlu0 %3387, %v256
        %v3389 = vpop.permute.xlu0 %3388
        %v3391 = vsel %vm3386, %v3389, %v3382
        %3392 = vset.pattern.permute.xlu0 10
        %3393 = vperm.xlu0 %3392, %v253
        %v3394 = vpop.permute.xlu0 %3393
        %vm3395 = vcmp.eq.s32.totalorder %v258, %v3394
        %3396 = vset.pattern.permute.xlu0 10
        %3397 = vperm.xlu0 %3396, %v256
        %v3398 = vpop.permute.xlu0 %3397
        %v3400 = vsel %vm3395, %v3398, %v3391
        %3401 = vset.pattern.permute.xlu0 9
        %3402 = vperm.xlu0 %3401, %v253
        %v3403 = vpop.permute.xlu0 %3402
        %vm3404 = vcmp.eq.s32.totalorder %v258, %v3403
        %3405 = vset.pattern.permute.xlu0 9
        %3406 = vperm.xlu0 %3405, %v256
        %v3407 = vpop.permute.xlu0 %3406
        %v3409 = vsel %vm3404, %v3407, %v3400
        %3410 = vset.pattern.permute.xlu0 8
        %3411 = vperm.xlu0 %3410, %v253
        %v3412 = vpop.permute.xlu0 %3411
        %vm3413 = vcmp.eq.s32.totalorder %v258, %v3412
        %3414 = vset.pattern.permute.xlu0 8
        %3415 = vperm.xlu0 %3414, %v256
        %v3416 = vpop.permute.xlu0 %3415
        %v3418 = vsel %vm3413, %v3416, %v3409
        %v3419 = vadd.f32 %v3346, %v3418
        %3420 = vset.pattern.permute.xlu0 23
        %3421 = vperm.xlu0 %3420, %v253
        %v3422 = vpop.permute.xlu0 %3421
        %vm3423 = vcmp.eq.s32.totalorder %v258, %v3422
        %3424 = vset.pattern.permute.xlu0 23
        %3425 = vperm.xlu0 %3424, %v256
        %v3426 = vpop.permute.xlu0 %3425
        %v3428 = vsel %vm3423, %v3426, 0.0
        %3429 = vset.pattern.permute.xlu0 22
        %3430 = vperm.xlu0 %3429, %v253
        %v3431 = vpop.permute.xlu0 %3430
        %vm3432 = vcmp.eq.s32.totalorder %v258, %v3431
        %3433 = vset.pattern.permute.xlu0 22
        %3434 = vperm.xlu0 %3433, %v256
        %v3435 = vpop.permute.xlu0 %3434
        %v3437 = vsel %vm3432, %v3435, %v3428
        %3438 = vset.pattern.permute.xlu0 21
        %3439 = vperm.xlu0 %3438, %v253
        %v3440 = vpop.permute.xlu0 %3439
        %vm3441 = vcmp.eq.s32.totalorder %v258, %v3440
        %3442 = vset.pattern.permute.xlu0 21
        %3443 = vperm.xlu0 %3442, %v256
        %v3444 = vpop.permute.xlu0 %3443
        %v3446 = vsel %vm3441, %v3444, %v3437
        %3447 = vset.pattern.permute.xlu0 20
        %3448 = vperm.xlu0 %3447, %v253
        %v3449 = vpop.permute.xlu0 %3448
        %vm3450 = vcmp.eq.s32.totalorder %v258, %v3449
        %3451 = vset.pattern.permute.xlu0 20
        %3452 = vperm.xlu0 %3451, %v256
        %v3453 = vpop.permute.xlu0 %3452
        %v3455 = vsel %vm3450, %v3453, %v3446
        %3456 = vset.pattern.permute.xlu0 19
        %3457 = vperm.xlu0 %3456, %v253
        %v3458 = vpop.permute.xlu0 %3457
        %vm3459 = vcmp.eq.s32.totalorder %v258, %v3458
        %3460 = vset.pattern.permute.xlu0 19
        %3461 = vperm.xlu0 %3460, %v256
        %v3462 = vpop.permute.xlu0 %3461
        %v3464 = vsel %vm3459, %v3462, %v3455
        %3465 = vset.pattern.permute.xlu0 18
        %3466 = vperm.xlu0 %3465, %v253
        %v3467 = vpop.permute.xlu0 %3466
        %vm3468 = vcmp.eq.s32.totalorder %v258, %v3467
        %3469 = vset.pattern.permute.xlu0 18
        %3470 = vperm.xlu0 %3469, %v256
        %v3471 = vpop.permute.xlu0 %3470
        %v3473 = vsel %vm3468, %v3471, %v3464
        %3474 = vset.pattern.permute.xlu0 17
        %3475 = vperm.xlu0 %3474, %v253
        %v3476 = vpop.permute.xlu0 %3475
        %vm3477 = vcmp.eq.s32.totalorder %v258, %v3476
        %3478 = vset.pattern.permute.xlu0 17
        %3479 = vperm.xlu0 %3478, %v256
        %v3480 = vpop.permute.xlu0 %3479
        %v3482 = vsel %vm3477, %v3480, %v3473
        %3483 = vset.pattern.permute.xlu0 16
        %3484 = vperm.xlu0 %3483, %v253
        %v3485 = vpop.permute.xlu0 %3484
        %vm3486 = vcmp.eq.s32.totalorder %v258, %v3485
        %3487 = vset.pattern.permute.xlu0 16
        %3488 = vperm.xlu0 %3487, %v256
        %v3489 = vpop.permute.xlu0 %3488
        %v3491 = vsel %vm3486, %v3489, %v3482
        %v3492 = vadd.f32 %v3419, %v3491
        %3493 = vset.pattern.permute.xlu0 31
        %3494 = vperm.xlu0 %3493, %v253
        %v3495 = vpop.permute.xlu0 %3494
        %vm3496 = vcmp.eq.s32.totalorder %v258, %v3495
        %3497 = vset.pattern.permute.xlu0 31
        %3498 = vperm.xlu0 %3497, %v256
        %v3499 = vpop.permute.xlu0 %3498
        %v3501 = vsel %vm3496, %v3499, 0.0
        %3502 = vset.pattern.permute.xlu0 30
        %3503 = vperm.xlu0 %3502, %v253
        %v3504 = vpop.permute.xlu0 %3503
        %vm3505 = vcmp.eq.s32.totalorder %v258, %v3504
        %3506 = vset.pattern.permute.xlu0 30
        %3507 = vperm.xlu0 %3506, %v256
        %v3508 = vpop.permute.xlu0 %3507
        %v3510 = vsel %vm3505, %v3508, %v3501
        %3511 = vset.pattern.permute.xlu0 29
        %3512 = vperm.xlu0 %3511, %v253
        %v3513 = vpop.permute.xlu0 %3512
        %vm3514 = vcmp.eq.s32.totalorder %v258, %v3513
        %3515 = vset.pattern.permute.xlu0 29
        %3516 = vperm.xlu0 %3515, %v256
        %v3517 = vpop.permute.xlu0 %3516
        %v3519 = vsel %vm3514, %v3517, %v3510
        %3520 = vset.pattern.permute.xlu0 28
        %3521 = vperm.xlu0 %3520, %v253
        %v3522 = vpop.permute.xlu0 %3521
        %vm3523 = vcmp.eq.s32.totalorder %v258, %v3522
        %3524 = vset.pattern.permute.xlu0 28
        %3525 = vperm.xlu0 %3524, %v256
        %v3526 = vpop.permute.xlu0 %3525
        %v3528 = vsel %vm3523, %v3526, %v3519
        %3529 = vset.pattern.permute.xlu0 27
        %3530 = vperm.xlu0 %3529, %v253
        %v3531 = vpop.permute.xlu0 %3530
        %vm3532 = vcmp.eq.s32.totalorder %v258, %v3531
        %3533 = vset.pattern.permute.xlu0 27
        %3534 = vperm.xlu0 %3533, %v256
        %v3535 = vpop.permute.xlu0 %3534
        %v3537 = vsel %vm3532, %v3535, %v3528
        %3538 = vset.pattern.permute.xlu0 26
        %3539 = vperm.xlu0 %3538, %v253
        %v3540 = vpop.permute.xlu0 %3539
        %vm3541 = vcmp.eq.s32.totalorder %v258, %v3540
        %3542 = vset.pattern.permute.xlu0 26
        %3543 = vperm.xlu0 %3542, %v256
        %v3544 = vpop.permute.xlu0 %3543
        %v3546 = vsel %vm3541, %v3544, %v3537
        %3547 = vset.pattern.permute.xlu0 25
        %3548 = vperm.xlu0 %3547, %v253
        %v3549 = vpop.permute.xlu0 %3548
        %vm3550 = vcmp.eq.s32.totalorder %v258, %v3549
        %3551 = vset.pattern.permute.xlu0 25
        %3552 = vperm.xlu0 %3551, %v256
        %v3553 = vpop.permute.xlu0 %3552
        %v3555 = vsel %vm3550, %v3553, %v3546
        %3556 = vset.pattern.permute.xlu0 24
        %3557 = vperm.xlu0 %3556, %v253
        %v3558 = vpop.permute.xlu0 %3557
        %vm3559 = vcmp.eq.s32.totalorder %v258, %v3558
        %3560 = vset.pattern.permute.xlu0 24
        %3561 = vperm.xlu0 %3560, %v256
        %v3562 = vpop.permute.xlu0 %3561
        %v3564 = vsel %vm3559, %v3562, %v3555
        %v3565 = vadd.f32 %v3492, %v3564
        %3566 = vset.pattern.permute.xlu0 39
        %3567 = vperm.xlu0 %3566, %v253
        %v3568 = vpop.permute.xlu0 %3567
        %vm3569 = vcmp.eq.s32.totalorder %v258, %v3568
        %3570 = vset.pattern.permute.xlu0 39
        %3571 = vperm.xlu0 %3570, %v256
        %v3572 = vpop.permute.xlu0 %3571
        %v3574 = vsel %vm3569, %v3572, 0.0
        %3575 = vset.pattern.permute.xlu0 38
        %3576 = vperm.xlu0 %3575, %v253
        %v3577 = vpop.permute.xlu0 %3576
        %vm3578 = vcmp.eq.s32.totalorder %v258, %v3577
        %3579 = vset.pattern.permute.xlu0 38
        %3580 = vperm.xlu0 %3579, %v256
        %v3581 = vpop.permute.xlu0 %3580
        %v3583 = vsel %vm3578, %v3581, %v3574
        %3584 = vset.pattern.permute.xlu0 37
        %3585 = vperm.xlu0 %3584, %v253
        %v3586 = vpop.permute.xlu0 %3585
        %vm3587 = vcmp.eq.s32.totalorder %v258, %v3586
        %3588 = vset.pattern.permute.xlu0 37
        %3589 = vperm.xlu0 %3588, %v256
        %v3590 = vpop.permute.xlu0 %3589
        %v3592 = vsel %vm3587, %v3590, %v3583
        %3593 = vset.pattern.permute.xlu0 36
        %3594 = vperm.xlu0 %3593, %v253
        %v3595 = vpop.permute.xlu0 %3594
        %vm3596 = vcmp.eq.s32.totalorder %v258, %v3595
        %3597 = vset.pattern.permute.xlu0 36
        %3598 = vperm.xlu0 %3597, %v256
        %v3599 = vpop.permute.xlu0 %3598
        %v3601 = vsel %vm3596, %v3599, %v3592
        %3602 = vset.pattern.permute.xlu0 35
        %3603 = vperm.xlu0 %3602, %v253
        %v3604 = vpop.permute.xlu0 %3603
        %vm3605 = vcmp.eq.s32.totalorder %v258, %v3604
        %3606 = vset.pattern.permute.xlu0 35
        %3607 = vperm.xlu0 %3606, %v256
        %v3608 = vpop.permute.xlu0 %3607
        %v3610 = vsel %vm3605, %v3608, %v3601
        %3611 = vset.pattern.permute.xlu0 34
        %3612 = vperm.xlu0 %3611, %v253
        %v3613 = vpop.permute.xlu0 %3612
        %vm3614 = vcmp.eq.s32.totalorder %v258, %v3613
        %3615 = vset.pattern.permute.xlu0 34
        %3616 = vperm.xlu0 %3615, %v256
        %v3617 = vpop.permute.xlu0 %3616
        %v3619 = vsel %vm3614, %v3617, %v3610
        %3620 = vset.pattern.permute.xlu0 33
        %3621 = vperm.xlu0 %3620, %v253
        %v3622 = vpop.permute.xlu0 %3621
        %vm3623 = vcmp.eq.s32.totalorder %v258, %v3622
        %3624 = vset.pattern.permute.xlu0 33
        %3625 = vperm.xlu0 %3624, %v256
        %v3626 = vpop.permute.xlu0 %3625
        %v3628 = vsel %vm3623, %v3626, %v3619
        %3629 = vset.pattern.permute.xlu0 32
        %3630 = vperm.xlu0 %3629, %v253
        %v3631 = vpop.permute.xlu0 %3630
        %vm3632 = vcmp.eq.s32.totalorder %v258, %v3631
        %3633 = vset.pattern.permute.xlu0 32
        %3634 = vperm.xlu0 %3633, %v256
        %v3635 = vpop.permute.xlu0 %3634
        %v3637 = vsel %vm3632, %v3635, %v3628
        %3638 = vset.pattern.permute.xlu0 47
        %3639 = vperm.xlu0 %3638, %v253
        %v3640 = vpop.permute.xlu0 %3639
        %vm3641 = vcmp.eq.s32.totalorder %v258, %v3640
        %3642 = vset.pattern.permute.xlu0 47
        %3643 = vperm.xlu0 %3642, %v256
        %v3644 = vpop.permute.xlu0 %3643
        %v3646 = vsel %vm3641, %v3644, 0.0
        %3647 = vset.pattern.permute.xlu0 46
        %3648 = vperm.xlu0 %3647, %v253
        %v3649 = vpop.permute.xlu0 %3648
        %vm3650 = vcmp.eq.s32.totalorder %v258, %v3649
        %3651 = vset.pattern.permute.xlu0 46
        %3652 = vperm.xlu0 %3651, %v256
        %v3653 = vpop.permute.xlu0 %3652
        %v3655 = vsel %vm3650, %v3653, %v3646
        %3656 = vset.pattern.permute.xlu0 45
        %3657 = vperm.xlu0 %3656, %v253
        %v3658 = vpop.permute.xlu0 %3657
        %vm3659 = vcmp.eq.s32.totalorder %v258, %v3658
        %3660 = vset.pattern.permute.xlu0 45
        %3661 = vperm.xlu0 %3660, %v256
        %v3662 = vpop.permute.xlu0 %3661
        %v3664 = vsel %vm3659, %v3662, %v3655
        %3665 = vset.pattern.permute.xlu0 44
        %3666 = vperm.xlu0 %3665, %v253
        %v3667 = vpop.permute.xlu0 %3666
        %vm3668 = vcmp.eq.s32.totalorder %v258, %v3667
        %3669 = vset.pattern.permute.xlu0 44
        %3670 = vperm.xlu0 %3669, %v256
        %v3671 = vpop.permute.xlu0 %3670
        %v3673 = vsel %vm3668, %v3671, %v3664
        %3674 = vset.pattern.permute.xlu0 43
        %3675 = vperm.xlu0 %3674, %v253
        %v3676 = vpop.permute.xlu0 %3675
        %vm3677 = vcmp.eq.s32.totalorder %v258, %v3676
        %3678 = vset.pattern.permute.xlu0 43
        %3679 = vperm.xlu0 %3678, %v256
        %v3680 = vpop.permute.xlu0 %3679
        %v3682 = vsel %vm3677, %v3680, %v3673
        %3683 = vset.pattern.permute.xlu0 42
        %3684 = vperm.xlu0 %3683, %v253
        %v3685 = vpop.permute.xlu0 %3684
        %vm3686 = vcmp.eq.s32.totalorder %v258, %v3685
        %3687 = vset.pattern.permute.xlu0 42
        %3688 = vperm.xlu0 %3687, %v256
        %v3689 = vpop.permute.xlu0 %3688
        %v3691 = vsel %vm3686, %v3689, %v3682
        %3692 = vset.pattern.permute.xlu0 41
        %3693 = vperm.xlu0 %3692, %v253
        %v3694 = vpop.permute.xlu0 %3693
        %vm3695 = vcmp.eq.s32.totalorder %v258, %v3694
        %3696 = vset.pattern.permute.xlu0 41
        %3697 = vperm.xlu0 %3696, %v256
        %v3698 = vpop.permute.xlu0 %3697
        %v3700 = vsel %vm3695, %v3698, %v3691
        %3701 = vset.pattern.permute.xlu0 40
        %3702 = vperm.xlu0 %3701, %v253
        %v3703 = vpop.permute.xlu0 %3702
        %vm3704 = vcmp.eq.s32.totalorder %v258, %v3703
        %3705 = vset.pattern.permute.xlu0 40
        %3706 = vperm.xlu0 %3705, %v256
        %v3707 = vpop.permute.xlu0 %3706
        %v3709 = vsel %vm3704, %v3707, %v3700
        %v3710 = vadd.f32 %v3637, %v3709
        %3711 = vset.pattern.permute.xlu0 55
        %3712 = vperm.xlu0 %3711, %v253
        %v3713 = vpop.permute.xlu0 %3712
        %vm3714 = vcmp.eq.s32.totalorder %v258, %v3713
        %3715 = vset.pattern.permute.xlu0 55
        %3716 = vperm.xlu0 %3715, %v256
        %v3717 = vpop.permute.xlu0 %3716
        %v3719 = vsel %vm3714, %v3717, 0.0
        %3720 = vset.pattern.permute.xlu0 54
        %3721 = vperm.xlu0 %3720, %v253
        %v3722 = vpop.permute.xlu0 %3721
        %vm3723 = vcmp.eq.s32.totalorder %v258, %v3722
        %3724 = vset.pattern.permute.xlu0 54
        %3725 = vperm.xlu0 %3724, %v256
        %v3726 = vpop.permute.xlu0 %3725
        %v3728 = vsel %vm3723, %v3726, %v3719
        %3729 = vset.pattern.permute.xlu0 53
        %3730 = vperm.xlu0 %3729, %v253
        %v3731 = vpop.permute.xlu0 %3730
        %vm3732 = vcmp.eq.s32.totalorder %v258, %v3731
        %3733 = vset.pattern.permute.xlu0 53
        %3734 = vperm.xlu0 %3733, %v256
        %v3735 = vpop.permute.xlu0 %3734
        %v3737 = vsel %vm3732, %v3735, %v3728
        %3738 = vset.pattern.permute.xlu0 52
        %3739 = vperm.xlu0 %3738, %v253
        %v3740 = vpop.permute.xlu0 %3739
        %vm3741 = vcmp.eq.s32.totalorder %v258, %v3740
        %3742 = vset.pattern.permute.xlu0 52
        %3743 = vperm.xlu0 %3742, %v256
        %v3744 = vpop.permute.xlu0 %3743
        %v3746 = vsel %vm3741, %v3744, %v3737
        %3747 = vset.pattern.permute.xlu0 51
        %3748 = vperm.xlu0 %3747, %v253
        %v3749 = vpop.permute.xlu0 %3748
        %vm3750 = vcmp.eq.s32.totalorder %v258, %v3749
        %3751 = vset.pattern.permute.xlu0 51
        %3752 = vperm.xlu0 %3751, %v256
        %v3753 = vpop.permute.xlu0 %3752
        %v3755 = vsel %vm3750, %v3753, %v3746
        %3756 = vset.pattern.permute.xlu0 50
        %3757 = vperm.xlu0 %3756, %v253
        %v3758 = vpop.permute.xlu0 %3757
        %vm3759 = vcmp.eq.s32.totalorder %v258, %v3758
        %3760 = vset.pattern.permute.xlu0 50
        %3761 = vperm.xlu0 %3760, %v256
        %v3762 = vpop.permute.xlu0 %3761
        %v3764 = vsel %vm3759, %v3762, %v3755
        %3765 = vset.pattern.permute.xlu0 49
        %3766 = vperm.xlu0 %3765, %v253
        %v3767 = vpop.permute.xlu0 %3766
        %vm3768 = vcmp.eq.s32.totalorder %v258, %v3767
        %3769 = vset.pattern.permute.xlu0 49
        %3770 = vperm.xlu0 %3769, %v256
        %v3771 = vpop.permute.xlu0 %3770
        %v3773 = vsel %vm3768, %v3771, %v3764
        %3774 = vset.pattern.permute.xlu0 48
        %3775 = vperm.xlu0 %3774, %v253
        %v3776 = vpop.permute.xlu0 %3775
        %vm3777 = vcmp.eq.s32.totalorder %v258, %v3776
        %3778 = vset.pattern.permute.xlu0 48
        %3779 = vperm.xlu0 %3778, %v256
        %v3780 = vpop.permute.xlu0 %3779
        %v3782 = vsel %vm3777, %v3780, %v3773
        %v3783 = vadd.f32 %v3710, %v3782
        %3784 = vset.pattern.permute.xlu0 63
        %3785 = vperm.xlu0 %3784, %v253
        %v3786 = vpop.permute.xlu0 %3785
        %vm3787 = vcmp.eq.s32.totalorder %v258, %v3786
        %3788 = vset.pattern.permute.xlu0 63
        %3789 = vperm.xlu0 %3788, %v256
        %v3790 = vpop.permute.xlu0 %3789
        %v3792 = vsel %vm3787, %v3790, 0.0
        %3793 = vset.pattern.permute.xlu0 62
        %3794 = vperm.xlu0 %3793, %v253
        %v3795 = vpop.permute.xlu0 %3794
        %vm3796 = vcmp.eq.s32.totalorder %v258, %v3795
        %3797 = vset.pattern.permute.xlu0 62
        %3798 = vperm.xlu0 %3797, %v256
        %v3799 = vpop.permute.xlu0 %3798
        %v3801 = vsel %vm3796, %v3799, %v3792
        %3802 = vset.pattern.permute.xlu0 61
        %3803 = vperm.xlu0 %3802, %v253
        %v3804 = vpop.permute.xlu0 %3803
        %vm3805 = vcmp.eq.s32.totalorder %v258, %v3804
        %3806 = vset.pattern.permute.xlu0 61
        %3807 = vperm.xlu0 %3806, %v256
        %v3808 = vpop.permute.xlu0 %3807
        %v3810 = vsel %vm3805, %v3808, %v3801
        %3811 = vset.pattern.permute.xlu0 60
        %3812 = vperm.xlu0 %3811, %v253
        %v3813 = vpop.permute.xlu0 %3812
        %vm3814 = vcmp.eq.s32.totalorder %v258, %v3813
        %3815 = vset.pattern.permute.xlu0 60
        %3816 = vperm.xlu0 %3815, %v256
        %v3817 = vpop.permute.xlu0 %3816
        %v3819 = vsel %vm3814, %v3817, %v3810
        %3820 = vset.pattern.permute.xlu0 59
        %3821 = vperm.xlu0 %3820, %v253
        %v3822 = vpop.permute.xlu0 %3821
        %vm3823 = vcmp.eq.s32.totalorder %v258, %v3822
        %3824 = vset.pattern.permute.xlu0 59
        %3825 = vperm.xlu0 %3824, %v256
        %v3826 = vpop.permute.xlu0 %3825
        %v3828 = vsel %vm3823, %v3826, %v3819
        %3829 = vset.pattern.permute.xlu0 58
        %3830 = vperm.xlu0 %3829, %v253
        %v3831 = vpop.permute.xlu0 %3830
        %vm3832 = vcmp.eq.s32.totalorder %v258, %v3831
        %3833 = vset.pattern.permute.xlu0 58
        %3834 = vperm.xlu0 %3833, %v256
        %v3835 = vpop.permute.xlu0 %3834
        %v3837 = vsel %vm3832, %v3835, %v3828
        %3838 = vset.pattern.permute.xlu0 57
        %3839 = vperm.xlu0 %3838, %v253
        %v3840 = vpop.permute.xlu0 %3839
        %vm3841 = vcmp.eq.s32.totalorder %v258, %v3840
        %3842 = vset.pattern.permute.xlu0 57
        %3843 = vperm.xlu0 %3842, %v256
        %v3844 = vpop.permute.xlu0 %3843
        %v3846 = vsel %vm3841, %v3844, %v3837
        %3847 = vset.pattern.permute.xlu0 56
        %3848 = vperm.xlu0 %3847, %v253
        %v3849 = vpop.permute.xlu0 %3848
        %vm3850 = vcmp.eq.s32.totalorder %v258, %v3849
        %3851 = vset.pattern.permute.xlu0 56
        %3852 = vperm.xlu0 %3851, %v256
        %v3853 = vpop.permute.xlu0 %3852
        %v3855 = vsel %vm3850, %v3853, %v3846
        %v3856 = vadd.f32 %v3783, %v3855
        %3857 = vrot.lane.b32.xlu0 %v850, 96
        %v3858 = vpop.permute.xlu0 %3857
        %v3861 = vsel %vm851, %v3856, 0
        %3863 = vmatprep.subr.mxu0 0.0
        %3864 = vmatpush1.msra.mxu0 %v3858
        %3865 = vmatprep.subr.mxu0 0.0
        %3866 = vmatpush1.msra.mxu0 0.0
        %3867 = vmatprep.subr.mxu0 0.0
        %3868 = vmatpush1.msra.mxu0 0.0
        %3869 = vmatprep.subr.mxu0 0.0
        %3870 = vmatpush1.msra.mxu0 0.0
        %3871 = vmatprep.subr.mxu0 0.0
        %3872 = vmatpush1.msra.mxu0 0.0
        %3873 = vmatprep.subr.mxu0 0.0
        %3874 = vmatpush1.msra.mxu0 0.0
        %3875 = vmatprep.subr.mxu0 0.0
        %3876 = vmatpush1.msra.mxu0 0.0
        %3877 = vmatprep.subr.mxu0 0.0
        %3878 = vmatpush1.msra.mxu0 0.0
        %3879 = vmatprep.subr.mxu0 0.0
        %3880 = vmatpush1.msra.mxu0 0.0
        %3881 = vmatprep.subr.mxu0 0.0
        %3882 = vmatpush1.msra.mxu0 0.0
        %3883 = vmatprep.subr.mxu0 0.0
        %3884 = vmatpush1.msra.mxu0 0.0
        %3885 = vmatprep.subr.mxu0 0.0
        %3886 = vmatpush1.msra.mxu0 0.0
        %3887 = vmatprep.subr.mxu0 0.0
        %3888 = vmatpush1.msra.mxu0 0.0
        %3889 = vmatprep.subr.mxu0 0.0
        %3890 = vmatpush1.msra.mxu0 0.0
        %3891 = vmatprep.subr.mxu0 0.0
        %3892 = vmatpush1.msra.mxu0 0.0
        %3893 = vmatprep.subr.mxu0 0.0
        %3894 = vmatpush1.msra.mxu0 0.0
        %3895 = vmatprep.subr.mxu0 0.0
        %3896 = vmatpush1.msra.mxu0 0.0
        %3897 = vmatprep.subr.mxu0 0.0
        %3898 = vmatpush1.msra.mxu0 0.0
        %3899 = vmatprep.subr.mxu0 0.0
        %3900 = vmatpush1.msra.mxu0 0.0
        %3901 = vmatprep.subr.mxu0 0.0
        %3902 = vmatpush1.msra.mxu0 0.0
        %3903 = vmatprep.subr.mxu0 0.0
        %3904 = vmatpush1.msra.mxu0 0.0
        %3905 = vmatprep.subr.mxu0 0.0
        %3906 = vmatpush1.msra.mxu0 0.0
        %3907 = vmatprep.subr.mxu0 0.0
        %3908 = vmatpush1.msra.mxu0 0.0
        %3909 = vmatprep.subr.mxu0 0.0
        %3910 = vmatpush1.msra.mxu0 0.0
        %3911 = vmatprep.subr.mxu0 0.0
        %3912 = vmatpush1.msra.mxu0 0.0
        %3913 = vmatprep.subr.mxu0 0.0
        %3914 = vmatpush1.msra.mxu0 0.0
        %3915 = vmatprep.subr.mxu0 0.0
        %3916 = vmatpush1.msra.mxu0 0.0
        %3917 = vmatprep.subr.mxu0 0.0
        %3918 = vmatpush1.msra.mxu0 0.0
        %3919 = vmatprep.subr.mxu0 0.0
        %3920 = vmatpush1.msra.mxu0 0.0
        %3921 = vmatprep.subr.mxu0 0.0
        %3922 = vmatpush1.msra.mxu0 0.0
        %3923 = vmatprep.subr.mxu0 0.0
        %3924 = vmatpush1.msra.mxu0 0.0
        %3925 = vmatprep.subr.mxu0 0.0
        %3926 = vmatpush1.msra.mxu0 0.0
        %3927 = vmatprep.mubr.f32.mxu0 0.0
        %3928 = vmatmul.mubr.f32.gmra.mrb[0].mxu0 %v3861
        %v3929 = vpop.f32.mrb[0].mxu0
        %v3930 = vadd.f32 0.0, %v3929
        %v3931 = vpop.f32.mrb[0].mxu0
        %3932 = vdwg.mxu0
        %3933 = vrot.lane.b32.xlu0 %v551, 96
        %v3934 = vpop.permute.xlu0 %3933
        %3935 = vrot.lane.b32.xlu0 %v552, 96
        %v3936 = vpop.permute.xlu0 %3935
        %3937 = vrot.lane.b32.xlu0 %v553, 96
        %v3938 = vpop.permute.xlu0 %3937
        %3939 = vrot.lane.b32.xlu0 %v554, 96
        %v3940 = vpop.permute.xlu0 %3939
        %3941 = vrot.lane.b32.xlu0 %v555, 96
        %v3942 = vpop.permute.xlu0 %3941
        %3943 = vrot.lane.b32.xlu0 %v556, 96
        %v3944 = vpop.permute.xlu0 %3943
        %3945 = vrot.lane.b32.xlu0 %v557, 96
        %v3946 = vpop.permute.xlu0 %3945
        %3947 = vrot.lane.b32.xlu0 %v558, 96
        %v3948 = vpop.permute.xlu0 %3947
        %v3958 = vsel %vm925, %v3565, 0
        %3960 = vmatprep.subr.mxu0 0.0
        %3961 = vmatpush1.msra.mxu0 %v3934
        %3962 = vmatprep.subr.mxu0 0.0
        %3963 = vmatpush1.msra.mxu0 %v3936
        %3964 = vmatprep.subr.mxu0 0.0
        %3965 = vmatpush1.msra.mxu0 %v3938
        %3966 = vmatprep.subr.mxu0 0.0
        %3967 = vmatpush1.msra.mxu0 %v3940
        %3968 = vmatprep.subr.mxu0 0.0
        %3969 = vmatpush1.msra.mxu0 %v3942
        %3970 = vmatprep.subr.mxu0 0.0
        %3971 = vmatpush1.msra.mxu0 %v3944
        %3972 = vmatprep.subr.mxu0 0.0
        %3973 = vmatpush1.msra.mxu0 %v3946
        %3974 = vmatprep.subr.mxu0 0.0
        %3975 = vmatpush1.msra.mxu0 %v3948
        %3976 = vmatprep.subr.mxu0 0.0
        %3977 = vmatpush1.msra.mxu0 0.0
        %3978 = vmatprep.subr.mxu0 0.0
        %3979 = vmatpush1.msra.mxu0 0.0
        %3980 = vmatprep.subr.mxu0 0.0
        %3981 = vmatpush1.msra.mxu0 0.0
        %3982 = vmatprep.subr.mxu0 0.0
        %3983 = vmatpush1.msra.mxu0 0.0
        %3984 = vmatprep.subr.mxu0 0.0
        %3985 = vmatpush1.msra.mxu0 0.0
        %3986 = vmatprep.subr.mxu0 0.0
        %3987 = vmatpush1.msra.mxu0 0.0
        %3988 = vmatprep.subr.mxu0 0.0
        %3989 = vmatpush1.msra.mxu0 0.0
        %3990 = vmatprep.subr.mxu0 0.0
        %3991 = vmatpush1.msra.mxu0 0.0
        %3992 = vmatprep.subr.mxu0 0.0
        %3993 = vmatpush1.msra.mxu0 0.0
        %3994 = vmatprep.subr.mxu0 0.0
        %3995 = vmatpush1.msra.mxu0 0.0
        %3996 = vmatprep.subr.mxu0 0.0
        %3997 = vmatpush1.msra.mxu0 0.0
        %3998 = vmatprep.subr.mxu0 0.0
        %3999 = vmatpush1.msra.mxu0 0.0
        %4000 = vmatprep.subr.mxu0 0.0
        %4001 = vmatpush1.msra.mxu0 0.0
        %4002 = vmatprep.subr.mxu0 0.0
        %4003 = vmatpush1.msra.mxu0 0.0
        %4004 = vmatprep.subr.mxu0 0.0
        %4005 = vmatpush1.msra.mxu0 0.0
        %4006 = vmatprep.subr.mxu0 0.0
        %4007 = vmatpush1.msra.mxu0 0.0
        %4008 = vmatprep.subr.mxu0 0.0
        %4009 = vmatpush1.msra.mxu0 0.0
        %4010 = vmatprep.subr.mxu0 0.0
        %4011 = vmatpush1.msra.mxu0 0.0
        %4012 = vmatprep.subr.mxu0 0.0
        %4013 = vmatpush1.msra.mxu0 0.0
        %4014 = vmatprep.subr.mxu0 0.0
        %4015 = vmatpush1.msra.mxu0 0.0
        %4016 = vmatprep.subr.mxu0 0.0
        %4017 = vmatpush1.msra.mxu0 0.0
        %4018 = vmatprep.subr.mxu0 0.0
        %4019 = vmatpush1.msra.mxu0 0.0
        %4020 = vmatprep.subr.mxu0 0.0
        %4021 = vmatpush1.msra.mxu0 0.0
        %4022 = vmatprep.subr.mxu0 0.0
        %4023 = vmatpush1.msra.mxu0 0.0
        %4024 = vmatprep.mubr.f32.mxu0 0.0
        %4025 = vmatmul.mubr.f32.gmra.mrb[0].mxu0 %v3958
        %v4026 = vpop.f32.mrb[0].mxu0
        %v4027 = vadd.f32 %v3930, %v4026
        %v4028 = vpop.f32.mrb[0].mxu0
        %4029 = vdwg.mxu0
        %4030 = vset.pattern.permute.xlu0 71
        %4031 = vperm.xlu0 %4030, %v253
        %v4032 = vpop.permute.xlu0 %4031
        %vm4033 = vcmp.eq.s32.totalorder %v258, %v4032
        %4034 = vset.pattern.permute.xlu0 71
        %4035 = vperm.xlu0 %4034, %v256
        %v4036 = vpop.permute.xlu0 %4035
        %v4038 = vsel %vm4033, %v4036, 0.0
        %4039 = vset.pattern.permute.xlu0 70
        %4040 = vperm.xlu0 %4039, %v253
        %v4041 = vpop.permute.xlu0 %4040
        %vm4042 = vcmp.eq.s32.totalorder %v258, %v4041
        %4043 = vset.pattern.permute.xlu0 70
        %4044 = vperm.xlu0 %4043, %v256
        %v4045 = vpop.permute.xlu0 %4044
        %v4047 = vsel %vm4042, %v4045, %v4038
        %4048 = vset.pattern.permute.xlu0 69
        %4049 = vperm.xlu0 %4048, %v253
        %v4050 = vpop.permute.xlu0 %4049
        %vm4051 = vcmp.eq.s32.totalorder %v258, %v4050
        %4052 = vset.pattern.permute.xlu0 69
        %4053 = vperm.xlu0 %4052, %v256
        %v4054 = vpop.permute.xlu0 %4053
        %v4056 = vsel %vm4051, %v4054, %v4047
        %4057 = vset.pattern.permute.xlu0 68
        %4058 = vperm.xlu0 %4057, %v253
        %v4059 = vpop.permute.xlu0 %4058
        %vm4060 = vcmp.eq.s32.totalorder %v258, %v4059
        %4061 = vset.pattern.permute.xlu0 68
        %4062 = vperm.xlu0 %4061, %v256
        %v4063 = vpop.permute.xlu0 %4062
        %v4065 = vsel %vm4060, %v4063, %v4056
        %4066 = vset.pattern.permute.xlu0 67
        %4067 = vperm.xlu0 %4066, %v253
        %v4068 = vpop.permute.xlu0 %4067
        %vm4069 = vcmp.eq.s32.totalorder %v258, %v4068
        %4070 = vset.pattern.permute.xlu0 67
        %4071 = vperm.xlu0 %4070, %v256
        %v4072 = vpop.permute.xlu0 %4071
        %v4074 = vsel %vm4069, %v4072, %v4065
        %4075 = vset.pattern.permute.xlu0 66
        %4076 = vperm.xlu0 %4075, %v253
        %v4077 = vpop.permute.xlu0 %4076
        %vm4078 = vcmp.eq.s32.totalorder %v258, %v4077
        %4079 = vset.pattern.permute.xlu0 66
        %4080 = vperm.xlu0 %4079, %v256
        %v4081 = vpop.permute.xlu0 %4080
        %v4083 = vsel %vm4078, %v4081, %v4074
        %4084 = vset.pattern.permute.xlu0 65
        %4085 = vperm.xlu0 %4084, %v253
        %v4086 = vpop.permute.xlu0 %4085
        %vm4087 = vcmp.eq.s32.totalorder %v258, %v4086
        %4088 = vset.pattern.permute.xlu0 65
        %4089 = vperm.xlu0 %4088, %v256
        %v4090 = vpop.permute.xlu0 %4089
        %v4092 = vsel %vm4087, %v4090, %v4083
        %4093 = vset.pattern.permute.xlu0 64
        %4094 = vperm.xlu0 %4093, %v253
        %v4095 = vpop.permute.xlu0 %4094
        %vm4096 = vcmp.eq.s32.totalorder %v258, %v4095
        %4097 = vset.pattern.permute.xlu0 64
        %4098 = vperm.xlu0 %4097, %v256
        %v4099 = vpop.permute.xlu0 %4098
        %v4101 = vsel %vm4096, %v4099, %v4092
        %4102 = vset.pattern.permute.xlu0 79
        %4103 = vperm.xlu0 %4102, %v253
        %v4104 = vpop.permute.xlu0 %4103
        %vm4105 = vcmp.eq.s32.totalorder %v258, %v4104
        %4106 = vset.pattern.permute.xlu0 79
        %4107 = vperm.xlu0 %4106, %v256
        %v4108 = vpop.permute.xlu0 %4107
        %v4110 = vsel %vm4105, %v4108, 0.0
        %4111 = vset.pattern.permute.xlu0 78
        %4112 = vperm.xlu0 %4111, %v253
        %v4113 = vpop.permute.xlu0 %4112
        %vm4114 = vcmp.eq.s32.totalorder %v258, %v4113
        %4115 = vset.pattern.permute.xlu0 78
        %4116 = vperm.xlu0 %4115, %v256
        %v4117 = vpop.permute.xlu0 %4116
        %v4119 = vsel %vm4114, %v4117, %v4110
        %4120 = vset.pattern.permute.xlu0 77
        %4121 = vperm.xlu0 %4120, %v253
        %v4122 = vpop.permute.xlu0 %4121
        %vm4123 = vcmp.eq.s32.totalorder %v258, %v4122
        %4124 = vset.pattern.permute.xlu0 77
        %4125 = vperm.xlu0 %4124, %v256
        %v4126 = vpop.permute.xlu0 %4125
        %v4128 = vsel %vm4123, %v4126, %v4119
        %4129 = vset.pattern.permute.xlu0 76
        %4130 = vperm.xlu0 %4129, %v253
        %v4131 = vpop.permute.xlu0 %4130
        %vm4132 = vcmp.eq.s32.totalorder %v258, %v4131
        %4133 = vset.pattern.permute.xlu0 76
        %4134 = vperm.xlu0 %4133, %v256
        %v4135 = vpop.permute.xlu0 %4134
        %v4137 = vsel %vm4132, %v4135, %v4128
        %4138 = vset.pattern.permute.xlu0 75
        %4139 = vperm.xlu0 %4138, %v253
        %v4140 = vpop.permute.xlu0 %4139
        %vm4141 = vcmp.eq.s32.totalorder %v258, %v4140
        %4142 = vset.pattern.permute.xlu0 75
        %4143 = vperm.xlu0 %4142, %v256
        %v4144 = vpop.permute.xlu0 %4143
        %v4146 = vsel %vm4141, %v4144, %v4137
        %4147 = vset.pattern.permute.xlu0 74
        %4148 = vperm.xlu0 %4147, %v253
        %v4149 = vpop.permute.xlu0 %4148
        %vm4150 = vcmp.eq.s32.totalorder %v258, %v4149
        %4151 = vset.pattern.permute.xlu0 74
        %4152 = vperm.xlu0 %4151, %v256
        %v4153 = vpop.permute.xlu0 %4152
        %v4155 = vsel %vm4150, %v4153, %v4146
        %4156 = vset.pattern.permute.xlu0 73
        %4157 = vperm.xlu0 %4156, %v253
        %v4158 = vpop.permute.xlu0 %4157
        %vm4159 = vcmp.eq.s32.totalorder %v258, %v4158
        %4160 = vset.pattern.permute.xlu0 73
        %4161 = vperm.xlu0 %4160, %v256
        %v4162 = vpop.permute.xlu0 %4161
        %v4164 = vsel %vm4159, %v4162, %v4155
        %4165 = vset.pattern.permute.xlu0 72
        %4166 = vperm.xlu0 %4165, %v253
        %v4167 = vpop.permute.xlu0 %4166
        %vm4168 = vcmp.eq.s32.totalorder %v258, %v4167
        %4169 = vset.pattern.permute.xlu0 72
        %4170 = vperm.xlu0 %4169, %v256
        %v4171 = vpop.permute.xlu0 %4170
        %v4173 = vsel %vm4168, %v4171, %v4164
        %v4174 = vadd.f32 %v4101, %v4173
        %4175 = vset.pattern.permute.xlu0 87
        %4176 = vperm.xlu0 %4175, %v253
        %v4177 = vpop.permute.xlu0 %4176
        %vm4178 = vcmp.eq.s32.totalorder %v258, %v4177
        %4179 = vset.pattern.permute.xlu0 87
        %4180 = vperm.xlu0 %4179, %v256
        %v4181 = vpop.permute.xlu0 %4180
        %v4183 = vsel %vm4178, %v4181, 0.0
        %4184 = vset.pattern.permute.xlu0 86
        %4185 = vperm.xlu0 %4184, %v253
        %v4186 = vpop.permute.xlu0 %4185
        %vm4187 = vcmp.eq.s32.totalorder %v258, %v4186
        %4188 = vset.pattern.permute.xlu0 86
        %4189 = vperm.xlu0 %4188, %v256
        %v4190 = vpop.permute.xlu0 %4189
        %v4192 = vsel %vm4187, %v4190, %v4183
        %4193 = vset.pattern.permute.xlu0 85
        %4194 = vperm.xlu0 %4193, %v253
        %v4195 = vpop.permute.xlu0 %4194
        %vm4196 = vcmp.eq.s32.totalorder %v258, %v4195
        %4197 = vset.pattern.permute.xlu0 85
        %4198 = vperm.xlu0 %4197, %v256
        %v4199 = vpop.permute.xlu0 %4198
        %v4201 = vsel %vm4196, %v4199, %v4192
        %4202 = vset.pattern.permute.xlu0 84
        %4203 = vperm.xlu0 %4202, %v253
        %v4204 = vpop.permute.xlu0 %4203
        %vm4205 = vcmp.eq.s32.totalorder %v258, %v4204
        %4206 = vset.pattern.permute.xlu0 84
        %4207 = vperm.xlu0 %4206, %v256
        %v4208 = vpop.permute.xlu0 %4207
        %v4210 = vsel %vm4205, %v4208, %v4201
        %4211 = vset.pattern.permute.xlu0 83
        %4212 = vperm.xlu0 %4211, %v253
        %v4213 = vpop.permute.xlu0 %4212
        %vm4214 = vcmp.eq.s32.totalorder %v258, %v4213
        %4215 = vset.pattern.permute.xlu0 83
        %4216 = vperm.xlu0 %4215, %v256
        %v4217 = vpop.permute.xlu0 %4216
        %v4219 = vsel %vm4214, %v4217, %v4210
        %4220 = vset.pattern.permute.xlu0 82
        %4221 = vperm.xlu0 %4220, %v253
        %v4222 = vpop.permute.xlu0 %4221
        %vm4223 = vcmp.eq.s32.totalorder %v258, %v4222
        %4224 = vset.pattern.permute.xlu0 82
        %4225 = vperm.xlu0 %4224, %v256
        %v4226 = vpop.permute.xlu0 %4225
        %v4228 = vsel %vm4223, %v4226, %v4219
        %4229 = vset.pattern.permute.xlu0 81
        %4230 = vperm.xlu0 %4229, %v253
        %v4231 = vpop.permute.xlu0 %4230
        %vm4232 = vcmp.eq.s32.totalorder %v258, %v4231
        %4233 = vset.pattern.permute.xlu0 81
        %4234 = vperm.xlu0 %4233, %v256
        %v4235 = vpop.permute.xlu0 %4234
        %v4237 = vsel %vm4232, %v4235, %v4228
        %4238 = vset.pattern.permute.xlu0 80
        %4239 = vperm.xlu0 %4238, %v253
        %v4240 = vpop.permute.xlu0 %4239
        %vm4241 = vcmp.eq.s32.totalorder %v258, %v4240
        %4242 = vset.pattern.permute.xlu0 80
        %4243 = vperm.xlu0 %4242, %v256
        %v4244 = vpop.permute.xlu0 %4243
        %v4246 = vsel %vm4241, %v4244, %v4237
        %v4247 = vadd.f32 %v4174, %v4246
        %4248 = vset.pattern.permute.xlu0 95
        %4249 = vperm.xlu0 %4248, %v253
        %v4250 = vpop.permute.xlu0 %4249
        %vm4251 = vcmp.eq.s32.totalorder %v258, %v4250
        %4252 = vset.pattern.permute.xlu0 95
        %4253 = vperm.xlu0 %4252, %v256
        %v4254 = vpop.permute.xlu0 %4253
        %v4256 = vsel %vm4251, %v4254, 0.0
        %4257 = vset.pattern.permute.xlu0 94
        %4258 = vperm.xlu0 %4257, %v253
        %v4259 = vpop.permute.xlu0 %4258
        %vm4260 = vcmp.eq.s32.totalorder %v258, %v4259
        %4261 = vset.pattern.permute.xlu0 94
        %4262 = vperm.xlu0 %4261, %v256
        %v4263 = vpop.permute.xlu0 %4262
        %v4265 = vsel %vm4260, %v4263, %v4256
        %4266 = vset.pattern.permute.xlu0 93
        %4267 = vperm.xlu0 %4266, %v253
        %v4268 = vpop.permute.xlu0 %4267
        %vm4269 = vcmp.eq.s32.totalorder %v258, %v4268
        %4270 = vset.pattern.permute.xlu0 93
        %4271 = vperm.xlu0 %4270, %v256
        %v4272 = vpop.permute.xlu0 %4271
        %v4274 = vsel %vm4269, %v4272, %v4265
        %4275 = vset.pattern.permute.xlu0 92
        %4276 = vperm.xlu0 %4275, %v253
        %v4277 = vpop.permute.xlu0 %4276
        %vm4278 = vcmp.eq.s32.totalorder %v258, %v4277
        %4279 = vset.pattern.permute.xlu0 92
        %4280 = vperm.xlu0 %4279, %v256
        %v4281 = vpop.permute.xlu0 %4280
        %v4283 = vsel %vm4278, %v4281, %v4274
        %4284 = vset.pattern.permute.xlu0 91
        %4285 = vperm.xlu0 %4284, %v253
        %v4286 = vpop.permute.xlu0 %4285
        %vm4287 = vcmp.eq.s32.totalorder %v258, %v4286
        %4288 = vset.pattern.permute.xlu0 91
        %4289 = vperm.xlu0 %4288, %v256
        %v4290 = vpop.permute.xlu0 %4289
        %v4292 = vsel %vm4287, %v4290, %v4283
        %4293 = vset.pattern.permute.xlu0 90
        %4294 = vperm.xlu0 %4293, %v253
        %v4295 = vpop.permute.xlu0 %4294
        %vm4296 = vcmp.eq.s32.totalorder %v258, %v4295
        %4297 = vset.pattern.permute.xlu0 90
        %4298 = vperm.xlu0 %4297, %v256
        %v4299 = vpop.permute.xlu0 %4298
        %v4301 = vsel %vm4296, %v4299, %v4292
        %4302 = vset.pattern.permute.xlu0 89
        %4303 = vperm.xlu0 %4302, %v253
        %v4304 = vpop.permute.xlu0 %4303
        %vm4305 = vcmp.eq.s32.totalorder %v258, %v4304
        %4306 = vset.pattern.permute.xlu0 89
        %4307 = vperm.xlu0 %4306, %v256
        %v4308 = vpop.permute.xlu0 %4307
        %v4310 = vsel %vm4305, %v4308, %v4301
        %4311 = vset.pattern.permute.xlu0 88
        %4312 = vperm.xlu0 %4311, %v253
        %v4313 = vpop.permute.xlu0 %4312
        %vm4314 = vcmp.eq.s32.totalorder %v258, %v4313
        %4315 = vset.pattern.permute.xlu0 88
        %4316 = vperm.xlu0 %4315, %v256
        %v4317 = vpop.permute.xlu0 %4316
        %v4319 = vsel %vm4314, %v4317, %v4310
        %v4320 = vadd.f32 %v4247, %v4319
        %4321 = vset.pattern.permute.xlu0 103
        %4322 = vperm.xlu0 %4321, %v253
        %v4323 = vpop.permute.xlu0 %4322
        %vm4324 = vcmp.eq.s32.totalorder %v258, %v4323
        %4325 = vset.pattern.permute.xlu0 103
        %4326 = vperm.xlu0 %4325, %v256
        %v4327 = vpop.permute.xlu0 %4326
        %v4329 = vsel %vm4324, %v4327, 0.0
        %4330 = vset.pattern.permute.xlu0 102
        %4331 = vperm.xlu0 %4330, %v253
        %v4332 = vpop.permute.xlu0 %4331
        %vm4333 = vcmp.eq.s32.totalorder %v258, %v4332
        %4334 = vset.pattern.permute.xlu0 102
        %4335 = vperm.xlu0 %4334, %v256
        %v4336 = vpop.permute.xlu0 %4335
        %v4338 = vsel %vm4333, %v4336, %v4329
        %4339 = vset.pattern.permute.xlu0 101
        %4340 = vperm.xlu0 %4339, %v253
        %v4341 = vpop.permute.xlu0 %4340
        %vm4342 = vcmp.eq.s32.totalorder %v258, %v4341
        %4343 = vset.pattern.permute.xlu0 101
        %4344 = vperm.xlu0 %4343, %v256
        %v4345 = vpop.permute.xlu0 %4344
        %v4347 = vsel %vm4342, %v4345, %v4338
        %4348 = vset.pattern.permute.xlu0 100
        %4349 = vperm.xlu0 %4348, %v253
        %v4350 = vpop.permute.xlu0 %4349
        %vm4351 = vcmp.eq.s32.totalorder %v258, %v4350
        %4352 = vset.pattern.permute.xlu0 100
        %4353 = vperm.xlu0 %4352, %v256
        %v4354 = vpop.permute.xlu0 %4353
        %v4356 = vsel %vm4351, %v4354, %v4347
        %4357 = vset.pattern.permute.xlu0 99
        %4358 = vperm.xlu0 %4357, %v253
        %v4359 = vpop.permute.xlu0 %4358
        %vm4360 = vcmp.eq.s32.totalorder %v258, %v4359
        %4361 = vset.pattern.permute.xlu0 99
        %4362 = vperm.xlu0 %4361, %v256
        %v4363 = vpop.permute.xlu0 %4362
        %v4365 = vsel %vm4360, %v4363, %v4356
        %4366 = vset.pattern.permute.xlu0 98
        %4367 = vperm.xlu0 %4366, %v253
        %v4368 = vpop.permute.xlu0 %4367
        %vm4369 = vcmp.eq.s32.totalorder %v258, %v4368
        %4370 = vset.pattern.permute.xlu0 98
        %4371 = vperm.xlu0 %4370, %v256
        %v4372 = vpop.permute.xlu0 %4371
        %v4374 = vsel %vm4369, %v4372, %v4365
        %4375 = vset.pattern.permute.xlu0 97
        %4376 = vperm.xlu0 %4375, %v253
        %v4377 = vpop.permute.xlu0 %4376
        %vm4378 = vcmp.eq.s32.totalorder %v258, %v4377
        %4379 = vset.pattern.permute.xlu0 97
        %4380 = vperm.xlu0 %4379, %v256
        %v4381 = vpop.permute.xlu0 %4380
        %v4383 = vsel %vm4378, %v4381, %v4374
        %4384 = vset.pattern.permute.xlu0 96
        %4385 = vperm.xlu0 %4384, %v253
        %v4386 = vpop.permute.xlu0 %4385
        %vm4387 = vcmp.eq.s32.totalorder %v258, %v4386
        %4388 = vset.pattern.permute.xlu0 96
        %4389 = vperm.xlu0 %4388, %v256
        %v4390 = vpop.permute.xlu0 %4389
        %v4392 = vsel %vm4387, %v4390, %v4383
        %4393 = vset.pattern.permute.xlu0 111
        %4394 = vperm.xlu0 %4393, %v253
        %v4395 = vpop.permute.xlu0 %4394
        %vm4396 = vcmp.eq.s32.totalorder %v258, %v4395
        %4397 = vset.pattern.permute.xlu0 111
        %4398 = vperm.xlu0 %4397, %v256
        %v4399 = vpop.permute.xlu0 %4398
        %v4401 = vsel %vm4396, %v4399, 0.0
        %4402 = vset.pattern.permute.xlu0 110
        %4403 = vperm.xlu0 %4402, %v253
        %v4404 = vpop.permute.xlu0 %4403
        %vm4405 = vcmp.eq.s32.totalorder %v258, %v4404
        %4406 = vset.pattern.permute.xlu0 110
        %4407 = vperm.xlu0 %4406, %v256
        %v4408 = vpop.permute.xlu0 %4407
        %v4410 = vsel %vm4405, %v4408, %v4401
        %4411 = vset.pattern.permute.xlu0 109
        %4412 = vperm.xlu0 %4411, %v253
        %v4413 = vpop.permute.xlu0 %4412
        %vm4414 = vcmp.eq.s32.totalorder %v258, %v4413
        %4415 = vset.pattern.permute.xlu0 109
        %4416 = vperm.xlu0 %4415, %v256
        %v4417 = vpop.permute.xlu0 %4416
        %v4419 = vsel %vm4414, %v4417, %v4410
        %4420 = vset.pattern.permute.xlu0 108
        %4421 = vperm.xlu0 %4420, %v253
        %v4422 = vpop.permute.xlu0 %4421
        %vm4423 = vcmp.eq.s32.totalorder %v258, %v4422
        %4424 = vset.pattern.permute.xlu0 108
        %4425 = vperm.xlu0 %4424, %v256
        %v4426 = vpop.permute.xlu0 %4425
        %v4428 = vsel %vm4423, %v4426, %v4419
        %4429 = vset.pattern.permute.xlu0 107
        %4430 = vperm.xlu0 %4429, %v253
        %v4431 = vpop.permute.xlu0 %4430
        %vm4432 = vcmp.eq.s32.totalorder %v258, %v4431
        %4433 = vset.pattern.permute.xlu0 107
        %4434 = vperm.xlu0 %4433, %v256
        %v4435 = vpop.permute.xlu0 %4434
        %v4437 = vsel %vm4432, %v4435, %v4428
        %4438 = vset.pattern.permute.xlu0 106
        %4439 = vperm.xlu0 %4438, %v253
        %v4440 = vpop.permute.xlu0 %4439
        %vm4441 = vcmp.eq.s32.totalorder %v258, %v4440
        %4442 = vset.pattern.permute.xlu0 106
        %4443 = vperm.xlu0 %4442, %v256
        %v4444 = vpop.permute.xlu0 %4443
        %v4446 = vsel %vm4441, %v4444, %v4437
        %4447 = vset.pattern.permute.xlu0 105
        %4448 = vperm.xlu0 %4447, %v253
        %v4449 = vpop.permute.xlu0 %4448
        %vm4450 = vcmp.eq.s32.totalorder %v258, %v4449
        %4451 = vset.pattern.permute.xlu0 105
        %4452 = vperm.xlu0 %4451, %v256
        %v4453 = vpop.permute.xlu0 %4452
        %v4455 = vsel %vm4450, %v4453, %v4446
        %4456 = vset.pattern.permute.xlu0 104
        %4457 = vperm.xlu0 %4456, %v253
        %v4458 = vpop.permute.xlu0 %4457
        %vm4459 = vcmp.eq.s32.totalorder %v258, %v4458
        %4460 = vset.pattern.permute.xlu0 104
        %4461 = vperm.xlu0 %4460, %v256
        %v4462 = vpop.permute.xlu0 %4461
        %v4464 = vsel %vm4459, %v4462, %v4455
        %v4465 = vadd.f32 %v4392, %v4464
        %4466 = vset.pattern.permute.xlu0 119
        %4467 = vperm.xlu0 %4466, %v253
        %v4468 = vpop.permute.xlu0 %4467
        %vm4469 = vcmp.eq.s32.totalorder %v258, %v4468
        %4470 = vset.pattern.permute.xlu0 119
        %4471 = vperm.xlu0 %4470, %v256
        %v4472 = vpop.permute.xlu0 %4471
        %v4474 = vsel %vm4469, %v4472, 0.0
        %4475 = vset.pattern.permute.xlu0 118
        %4476 = vperm.xlu0 %4475, %v253
        %v4477 = vpop.permute.xlu0 %4476
        %vm4478 = vcmp.eq.s32.totalorder %v258, %v4477
        %4479 = vset.pattern.permute.xlu0 118
        %4480 = vperm.xlu0 %4479, %v256
        %v4481 = vpop.permute.xlu0 %4480
        %v4483 = vsel %vm4478, %v4481, %v4474
        %4484 = vset.pattern.permute.xlu0 117
        %4485 = vperm.xlu0 %4484, %v253
        %v4486 = vpop.permute.xlu0 %4485
        %vm4487 = vcmp.eq.s32.totalorder %v258, %v4486
        %4488 = vset.pattern.permute.xlu0 117
        %4489 = vperm.xlu0 %4488, %v256
        %v4490 = vpop.permute.xlu0 %4489
        %v4492 = vsel %vm4487, %v4490, %v4483
        %4493 = vset.pattern.permute.xlu0 116
        %4494 = vperm.xlu0 %4493, %v253
        %v4495 = vpop.permute.xlu0 %4494
        %vm4496 = vcmp.eq.s32.totalorder %v258, %v4495
        %4497 = vset.pattern.permute.xlu0 116
        %4498 = vperm.xlu0 %4497, %v256
        %v4499 = vpop.permute.xlu0 %4498
        %v4501 = vsel %vm4496, %v4499, %v4492
        %4502 = vset.pattern.permute.xlu0 115
        %4503 = vperm.xlu0 %4502, %v253
        %v4504 = vpop.permute.xlu0 %4503
        %vm4505 = vcmp.eq.s32.totalorder %v258, %v4504
        %4506 = vset.pattern.permute.xlu0 115
        %4507 = vperm.xlu0 %4506, %v256
        %v4508 = vpop.permute.xlu0 %4507
        %v4510 = vsel %vm4505, %v4508, %v4501
        %4511 = vset.pattern.permute.xlu0 114
        %4512 = vperm.xlu0 %4511, %v253
        %v4513 = vpop.permute.xlu0 %4512
        %vm4514 = vcmp.eq.s32.totalorder %v258, %v4513
        %4515 = vset.pattern.permute.xlu0 114
        %4516 = vperm.xlu0 %4515, %v256
        %v4517 = vpop.permute.xlu0 %4516
        %v4519 = vsel %vm4514, %v4517, %v4510
        %4520 = vset.pattern.permute.xlu0 113
        %4521 = vperm.xlu0 %4520, %v253
        %v4522 = vpop.permute.xlu0 %4521
        %vm4523 = vcmp.eq.s32.totalorder %v258, %v4522
        %4524 = vset.pattern.permute.xlu0 113
        %4525 = vperm.xlu0 %4524, %v256
        %v4526 = vpop.permute.xlu0 %4525
        %v4528 = vsel %vm4523, %v4526, %v4519
        %4529 = vset.pattern.permute.xlu0 112
        %4530 = vperm.xlu0 %4529, %v253
        %v4531 = vpop.permute.xlu0 %4530
        %vm4532 = vcmp.eq.s32.totalorder %v258, %v4531
        %4533 = vset.pattern.permute.xlu0 112
        %4534 = vperm.xlu0 %4533, %v256
        %v4535 = vpop.permute.xlu0 %4534
        %v4537 = vsel %vm4532, %v4535, %v4528
        %v4538 = vadd.f32 %v4465, %v4537
        %4539 = vset.pattern.permute.xlu0 127
        %4540 = vperm.xlu0 %4539, %v253
        %v4541 = vpop.permute.xlu0 %4540
        %vm4542 = vcmp.eq.s32.totalorder %v258, %v4541
        %4543 = vset.pattern.permute.xlu0 127
        %4544 = vperm.xlu0 %4543, %v256
        %v4545 = vpop.permute.xlu0 %4544
        %v4547 = vsel %vm4542, %v4545, 0.0
        %4548 = vset.pattern.permute.xlu0 126
        %4549 = vperm.xlu0 %4548, %v253
        %v4550 = vpop.permute.xlu0 %4549
        %vm4551 = vcmp.eq.s32.totalorder %v258, %v4550
        %4552 = vset.pattern.permute.xlu0 126
        %4553 = vperm.xlu0 %4552, %v256
        %v4554 = vpop.permute.xlu0 %4553
        %v4556 = vsel %vm4551, %v4554, %v4547
        %4557 = vset.pattern.permute.xlu0 125
        %4558 = vperm.xlu0 %4557, %v253
        %v4559 = vpop.permute.xlu0 %4558
        %vm4560 = vcmp.eq.s32.totalorder %v258, %v4559
        %4561 = vset.pattern.permute.xlu0 125
        %4562 = vperm.xlu0 %4561, %v256
        %v4563 = vpop.permute.xlu0 %4562
        %v4565 = vsel %vm4560, %v4563, %v4556
        %4566 = vset.pattern.permute.xlu0 124
        %4567 = vperm.xlu0 %4566, %v253
        %v4568 = vpop.permute.xlu0 %4567
        %vm4569 = vcmp.eq.s32.totalorder %v258, %v4568
        %4570 = vset.pattern.permute.xlu0 124
        %4571 = vperm.xlu0 %4570, %v256
        %v4572 = vpop.permute.xlu0 %4571
        %v4574 = vsel %vm4569, %v4572, %v4565
        %4575 = vset.pattern.permute.xlu0 123
        %4576 = vperm.xlu0 %4575, %v253
        %v4577 = vpop.permute.xlu0 %4576
        %vm4578 = vcmp.eq.s32.totalorder %v258, %v4577
        %4579 = vset.pattern.permute.xlu0 123
        %4580 = vperm.xlu0 %4579, %v256
        %v4581 = vpop.permute.xlu0 %4580
        %v4583 = vsel %vm4578, %v4581, %v4574
        %4584 = vset.pattern.permute.xlu0 122
        %4585 = vperm.xlu0 %4584, %v253
        %v4586 = vpop.permute.xlu0 %4585
        %vm4587 = vcmp.eq.s32.totalorder %v258, %v4586
        %4588 = vset.pattern.permute.xlu0 122
        %4589 = vperm.xlu0 %4588, %v256
        %v4590 = vpop.permute.xlu0 %4589
        %v4592 = vsel %vm4587, %v4590, %v4583
        %4593 = vset.pattern.permute.xlu0 121
        %4594 = vperm.xlu0 %4593, %v253
        %v4595 = vpop.permute.xlu0 %4594
        %vm4596 = vcmp.eq.s32.totalorder %v258, %v4595
        %4597 = vset.pattern.permute.xlu0 121
        %4598 = vperm.xlu0 %4597, %v256
        %v4599 = vpop.permute.xlu0 %4598
        %v4601 = vsel %vm4596, %v4599, %v4592
        %4602 = vset.pattern.permute.xlu0 120
        %4603 = vperm.xlu0 %4602, %v253
        %v4604 = vpop.permute.xlu0 %4603
        %vm4605 = vcmp.eq.s32.totalorder %v258, %v4604
        %4606 = vset.pattern.permute.xlu0 120
        %4607 = vperm.xlu0 %4606, %v256
        %v4608 = vpop.permute.xlu0 %4607
        %v4610 = vsel %vm4605, %v4608, %v4601
        %v4611 = vadd.f32 %v4538, %v4610
        %4612 = vrot.lane.b32.xlu0 %v850, 88
        %v4613 = vpop.permute.xlu0 %4612
        %v4616 = vsel %vm851, %v4611, 0
        %4618 = vmatprep.subr.mxu0 0.0
        %4619 = vmatpush1.msra.mxu0 %v4613
        %4620 = vmatprep.subr.mxu0 0.0
        %4621 = vmatpush1.msra.mxu0 0.0
        %4622 = vmatprep.subr.mxu0 0.0
        %4623 = vmatpush1.msra.mxu0 0.0
        %4624 = vmatprep.subr.mxu0 0.0
        %4625 = vmatpush1.msra.mxu0 0.0
        %4626 = vmatprep.subr.mxu0 0.0
        %4627 = vmatpush1.msra.mxu0 0.0
        %4628 = vmatprep.subr.mxu0 0.0
        %4629 = vmatpush1.msra.mxu0 0.0
        %4630 = vmatprep.subr.mxu0 0.0
        %4631 = vmatpush1.msra.mxu0 0.0
        %4632 = vmatprep.subr.mxu0 0.0
        %4633 = vmatpush1.msra.mxu0 0.0
        %4634 = vmatprep.subr.mxu0 0.0
        %4635 = vmatpush1.msra.mxu0 0.0
        %4636 = vmatprep.subr.mxu0 0.0
        %4637 = vmatpush1.msra.mxu0 0.0
        %4638 = vmatprep.subr.mxu0 0.0
        %4639 = vmatpush1.msra.mxu0 0.0
        %4640 = vmatprep.subr.mxu0 0.0
        %4641 = vmatpush1.msra.mxu0 0.0
        %4642 = vmatprep.subr.mxu0 0.0
        %4643 = vmatpush1.msra.mxu0 0.0
        %4644 = vmatprep.subr.mxu0 0.0
        %4645 = vmatpush1.msra.mxu0 0.0
        %4646 = vmatprep.subr.mxu0 0.0
        %4647 = vmatpush1.msra.mxu0 0.0
        %4648 = vmatprep.subr.mxu0 0.0
        %4649 = vmatpush1.msra.mxu0 0.0
        %4650 = vmatprep.subr.mxu0 0.0
        %4651 = vmatpush1.msra.mxu0 0.0
        %4652 = vmatprep.subr.mxu0 0.0
        %4653 = vmatpush1.msra.mxu0 0.0
        %4654 = vmatprep.subr.mxu0 0.0
        %4655 = vmatpush1.msra.mxu0 0.0
        %4656 = vmatprep.subr.mxu0 0.0
        %4657 = vmatpush1.msra.mxu0 0.0
        %4658 = vmatprep.subr.mxu0 0.0
        %4659 = vmatpush1.msra.mxu0 0.0
        %4660 = vmatprep.subr.mxu0 0.0
        %4661 = vmatpush1.msra.mxu0 0.0
        %4662 = vmatprep.subr.mxu0 0.0
        %4663 = vmatpush1.msra.mxu0 0.0
        %4664 = vmatprep.subr.mxu0 0.0
        %4665 = vmatpush1.msra.mxu0 0.0
        %4666 = vmatprep.subr.mxu0 0.0
        %4667 = vmatpush1.msra.mxu0 0.0
        %4668 = vmatprep.subr.mxu0 0.0
        %4669 = vmatpush1.msra.mxu0 0.0
        %4670 = vmatprep.subr.mxu0 0.0
        %4671 = vmatpush1.msra.mxu0 0.0
        %4672 = vmatprep.subr.mxu0 0.0
        %4673 = vmatpush1.msra.mxu0 0.0
        %4674 = vmatprep.subr.mxu0 0.0
        %4675 = vmatpush1.msra.mxu0 0.0
        %4676 = vmatprep.subr.mxu0 0.0
        %4677 = vmatpush1.msra.mxu0 0.0
        %4678 = vmatprep.subr.mxu0 0.0
        %4679 = vmatpush1.msra.mxu0 0.0
        %4680 = vmatprep.subr.mxu0 0.0
        %4681 = vmatpush1.msra.mxu0 0.0
        %4682 = vmatprep.mubr.f32.mxu0 0.0
        %4683 = vmatmul.mubr.f32.gmra.mrb[0].mxu0 %v4616
        %v4684 = vpop.f32.mrb[0].mxu0
        %v4685 = vadd.f32 0.0, %v4684
        %v4686 = vpop.f32.mrb[0].mxu0
        %4687 = vdwg.mxu0
        %4688 = vrot.lane.b32.xlu0 %v551, 88
        %v4689 = vpop.permute.xlu0 %4688
        %4690 = vrot.lane.b32.xlu0 %v552, 88
        %v4691 = vpop.permute.xlu0 %4690
        %4692 = vrot.lane.b32.xlu0 %v553, 88
        %v4693 = vpop.permute.xlu0 %4692
        %4694 = vrot.lane.b32.xlu0 %v554, 88
        %v4695 = vpop.permute.xlu0 %4694
        %4696 = vrot.lane.b32.xlu0 %v555, 88
        %v4697 = vpop.permute.xlu0 %4696
        %4698 = vrot.lane.b32.xlu0 %v556, 88
        %v4699 = vpop.permute.xlu0 %4698
        %4700 = vrot.lane.b32.xlu0 %v557, 88
        %v4701 = vpop.permute.xlu0 %4700
        %4702 = vrot.lane.b32.xlu0 %v558, 88
        %v4703 = vpop.permute.xlu0 %4702
        %v4713 = vsel %vm925, %v4320, 0
        %4715 = vmatprep.subr.mxu0 0.0
        %4716 = vmatpush1.msra.mxu0 %v4689
        %4717 = vmatprep.subr.mxu0 0.0
        %4718 = vmatpush1.msra.mxu0 %v4691
        %4719 = vmatprep.subr.mxu0 0.0
        %4720 = vmatpush1.msra.mxu0 %v4693
        %4721 = vmatprep.subr.mxu0 0.0
        %4722 = vmatpush1.msra.mxu0 %v4695
        %4723 = vmatprep.subr.mxu0 0.0
        %4724 = vmatpush1.msra.mxu0 %v4697
        %4725 = vmatprep.subr.mxu0 0.0
        %4726 = vmatpush1.msra.mxu0 %v4699
        %4727 = vmatprep.subr.mxu0 0.0
        %4728 = vmatpush1.msra.mxu0 %v4701
        %4729 = vmatprep.subr.mxu0 0.0
        %4730 = vmatpush1.msra.mxu0 %v4703
        %4731 = vmatprep.subr.mxu0 0.0
        %4732 = vmatpush1.msra.mxu0 0.0
        %4733 = vmatprep.subr.mxu0 0.0
        %4734 = vmatpush1.msra.mxu0 0.0
        %4735 = vmatprep.subr.mxu0 0.0
        %4736 = vmatpush1.msra.mxu0 0.0
        %4737 = vmatprep.subr.mxu0 0.0
        %4738 = vmatpush1.msra.mxu0 0.0
        %4739 = vmatprep.subr.mxu0 0.0
        %4740 = vmatpush1.msra.mxu0 0.0
        %4741 = vmatprep.subr.mxu0 0.0
        %4742 = vmatpush1.msra.mxu0 0.0
        %4743 = vmatprep.subr.mxu0 0.0
        %4744 = vmatpush1.msra.mxu0 0.0
        %4745 = vmatprep.subr.mxu0 0.0
        %4746 = vmatpush1.msra.mxu0 0.0
        %4747 = vmatprep.subr.mxu0 0.0
        %4748 = vmatpush1.msra.mxu0 0.0
        %4749 = vmatprep.subr.mxu0 0.0
        %4750 = vmatpush1.msra.mxu0 0.0
        %4751 = vmatprep.subr.mxu0 0.0
        %4752 = vmatpush1.msra.mxu0 0.0
        %4753 = vmatprep.subr.mxu0 0.0
        %4754 = vmatpush1.msra.mxu0 0.0
        %4755 = vmatprep.subr.mxu0 0.0
        %4756 = vmatpush1.msra.mxu0 0.0
        %4757 = vmatprep.subr.mxu0 0.0
        %4758 = vmatpush1.msra.mxu0 0.0
        %4759 = vmatprep.subr.mxu0 0.0
        %4760 = vmatpush1.msra.mxu0 0.0
        %4761 = vmatprep.subr.mxu0 0.0
        %4762 = vmatpush1.msra.mxu0 0.0
        %4763 = vmatprep.subr.mxu0 0.0
        %4764 = vmatpush1.msra.mxu0 0.0
        %4765 = vmatprep.subr.mxu0 0.0
        %4766 = vmatpush1.msra.mxu0 0.0
        %4767 = vmatprep.subr.mxu0 0.0
        %4768 = vmatpush1.msra.mxu0 0.0
        %4769 = vmatprep.subr.mxu0 0.0
        %4770 = vmatpush1.msra.mxu0 0.0
        %4771 = vmatprep.subr.mxu0 0.0
        %4772 = vmatpush1.msra.mxu0 0.0
        %4773 = vmatprep.subr.mxu0 0.0
        %4774 = vmatpush1.msra.mxu0 0.0
        %4775 = vmatprep.subr.mxu0 0.0
        %4776 = vmatpush1.msra.mxu0 0.0
        %4777 = vmatprep.subr.mxu0 0.0
        %4778 = vmatpush1.msra.mxu0 0.0
        %4779 = vmatprep.mubr.f32.mxu0 0.0
        %4780 = vmatmul.mubr.f32.gmra.mrb[0].mxu0 %v4713
        %v4781 = vpop.f32.mrb[0].mxu0
        %v4782 = vadd.f32 %v4685, %v4781
        %v4783 = vpop.f32.mrb[0].mxu0
        %4784 = vdwg.mxu0
        %4786 = vrot.lane.b32.xlu0 %v1760, 8
        %v4787 = vpop.permute.xlu0 %4786
        %4790 = vrot.lane.b32.xlu0 %v2516, 16
        %v4791 = vpop.permute.xlu0 %4790
        %4794 = vrot.lane.b32.xlu0 %v3271, 24
        %v4795 = vpop.permute.xlu0 %4794
        %4798 = vrot.lane.b32.xlu0 %v4027, 32
        %v4799 = vpop.permute.xlu0 %4798
        %4802 = vrot.lane.b32.xlu0 %v4782, 40
        %v4803 = vpop.permute.xlu0 %4802
        %v4805 = vsel %vm851, %v996, %v4787
        %vm4806 = vcmask 130048
        %v4807 = vsel %vm4806, %v4805, %v4791
        %vm4808 = vcmask 195584
        %v4809 = vsel %vm4808, %v4807, %v4795
        %vm4810 = vcmask 261120
        %v4811 = vsel %vm4810, %v4809, %v4799
        %vm4812 = vcmask 326656
        %v4813 = vsel %vm4812, %v4811, %v4803
        %vm4814 = vcmask 392192
        %v4815 = vsel %vm4814, %v4813, 0.0
        %4816 = vst [vmem:[%s227] sm:$0xff] %v4815
        %s4817 = sand.u32 %s121, 1
        %s4818 = scalar_lea.sflag [#allocation3], %s4817
        %s4819 = sand.u32 %s121, 1
        %s4820 = smul.addr %s4819, 8
        %s4821 = scalar_lea.vmem [#allocation2], %s4820
        // Predicated region
        $region33: #{tpu_custom_call.1} parent=31 // pred_check
          %p4822 = pneg %p131
        $region34: #{tpu_custom_call.1} parent=31 // pred_check_branch
          %4824 = sbr.rel (%p4822) target = $region36
        $region35: #{tpu_custom_call.1} parent=31 // pred_region
          %s4826 = ssub.s32 128, 128
          %4827 = vsyncadd %s4818, %s4826
          %s4828 = smul.addr %s21, 2
          %s4829 = sadd.s32 %s22, %s4828
          %s4830 = smul.addr %s4829, 128
          %s4831 = scalar_lea.hbm %s3, %s4830
          %s4833 = sshll.u32 %s4821, 4
          %s4834 = int_to_ptr.vmem [resolvable:$true] %s4833
          %4836 = dma.vmem_to_hbm [thread:$0]  %s4834, 128, %s4831, %s4818
        $region36: #{tpu_custom_call.1} parent=31 // pred_fallthru
          _
      $region32: #{tpu_custom_call.1} parent=5 // pred_fallthru
        _
      %p4837 = scmp.le.s32.totalorder 2, %s12
      // Predicated region
      $region37: #{tpu_custom_call.1} parent=5 // pred_check
        %p4838 = pneg %p4837
      $region38: #{tpu_custom_call.1} parent=5 // pred_check_branch
        %4840 = sbr.rel (%p4838) target = $region40
      $region39: #{tpu_custom_call.1} parent=5 // pred_region
        %s4841 = ssub.s32 %s12, 2
        // Predicated region
        $region41: #{tpu_custom_call.1} parent=39 // pred_check
          %p4842 = pneg %p137
        $region42: #{tpu_custom_call.1} parent=39 // pred_check_branch
          %4844 = sbr.rel (%p4842) target = $region44
        $region43: #{tpu_custom_call.1} parent=39 // pred_region
          %s4845 = sand.u32 %s122, 1
          %s4846 = scalar_lea.sflag [#allocation3], %s4845
          %s4847 = sand.u32 %s122, 1
          %s4848 = smul.addr %s4847, 8
          %s4849 = scalar_lea.vmem [#allocation2], %s4848
          %4850 = dma.done %s4846, 128
        $region44: #{tpu_custom_call.1} parent=39 // pred_fallthru
          _
      $region40: #{tpu_custom_call.1} parent=5 // pred_fallthru
        _
    $region6: #{tpu_custom_call.1} parent=1 // loop_footer
      %s16 = sadd.s32 1, %s12
    $region7: #{tpu_custom_call.1} parent=1 // loop_footer_branch
      %11 = sbr.rel target = $region3
    $region8: #{tpu_custom_call.1} parent=1 // loop_exit
      _
    %4851 = vsyncpa [#allocation3], 1
    %s4852 = scalar_lea.sflag [#allocation3], 1
    %4853 = vsyncpa %s4852, 1

</llo_original>
